<compile_context>
chip_gen: v7x
topology: tpu7x:2x2x1
jax: 0.10.0
libtpu: 0.0.40
codegen_flags: <defaults>
</compile_context>

<pallas_src>
import jax
import jax.numpy as jnp
from jax.experimental import pallas as pl
from jax.experimental.pallas import tpu as pltpu

EPS = 1e-5


def _round_up(x, m):
    return ((x + m - 1) // m) * m


def _choose_tn(M):
    """Lane tile over the spatial axis M: biggest 128-multiple tile that keeps
    at least 2 grid blocks (v7x megacore), else the full extent."""
    for t in (512, 256, 128):
        if M % t == 0 and M // t >= 2:
            return t
    return M


# ----------------------------- Pallas kernels -----------------------------

def _conv_stats_kernel(w_ref, p_ref, y_ref, s1_ref, s2_ref):
    """out^T tile = W^T @ patches^T tile (bf16 in, f32 accumulate) fused with
    per-channel sum / sum-of-squares for BatchNorm batch statistics."""
    y = jnp.dot(w_ref[...], p_ref[...], preferred_element_type=jnp.float32)
    y_ref[...] = y
    s1_ref[...] = jnp.sum(y, axis=1, keepdims=True)[None]
    s2_ref[...] = jnp.sum(y * y, axis=1, keepdims=True)[None]


def _bn_relu_kernel(y_ref, sc_ref, sh_ref, o_ref):
    o_ref[...] = jnp.maximum(y_ref[...] * sc_ref[...] + sh_ref[...], 0.0)


def _bn_residual_kernel(y_ref, sc_ref, sh_ref, r_ref, o_ref):
    o_ref[...] = y_ref[...] * sc_ref[...] + sh_ref[...] + r_ref[...]


def _conv_bias_tanh_kernel(w_ref, p_ref, b_ref, o_ref):
    y = jnp.dot(w_ref[...], p_ref[...], preferred_element_type=jnp.float32)
    o_ref[...] = jnp.tanh(y + b_ref[...])


# ----------------------------- GEMM / BN wrappers ---------------------------

def _gemm_stats(wT, pT):
    """wT:(C,Kp) bf16, pT:(Kp,M) bf16 -> yT:(C,M) f32 (transposed conv output)
    plus per-block per-channel sum and sum-of-squares."""
    C, Kp = wT.shape
    M = pT.shape[1]
    tn = _choose_tn(M)
    nb = M // tn
    return pl.pallas_call(
        _conv_stats_kernel,
        out_shape=(jax.ShapeDtypeStruct((C, M), jnp.float32),
                   jax.ShapeDtypeStruct((nb, C, 1), jnp.float32),
                   jax.ShapeDtypeStruct((nb, C, 1), jnp.float32)),
        grid_spec=pltpu.PrefetchScalarGridSpec(
            num_scalar_prefetch=0,
            grid=(nb,),
            in_specs=[pl.BlockSpec((C, Kp), lambda j: (0, 0)),
                      pl.BlockSpec((Kp, tn), lambda j: (0, j))],
            out_specs=(pl.BlockSpec((C, tn), lambda j: (0, j)),
                       pl.BlockSpec((1, C, 1), lambda j: (j, 0, 0)),
                       pl.BlockSpec((1, C, 1), lambda j: (j, 0, 0)))),
        compiler_params=pltpu.CompilerParams(
            dimension_semantics=("parallel",)),
    )(wT, pT)


def _bn_scale_shift(tot, tot2, gamma, beta, count):
    """Fold training-mode BN (biased stats) into a per-channel scale/shift."""
    mean = tot / count
    var = jnp.maximum(tot2 / count - mean * mean, 0.0)
    scale = gamma * jax.lax.rsqrt(var + EPS)
    shift = beta - mean * scale
    return scale, shift


def _bn_epilogue(yT, scale, shift, residual_T=None):
    """y*scale + shift fused with ReLU (residual_T is None) or residual add."""
    C, M = yT.shape
    tn = _choose_tn(M)
    nb = M // tn
    sc = scale.reshape(C, 1).astype(jnp.float32)
    sh = shift.reshape(C, 1).astype(jnp.float32)
    y_spec = pl.BlockSpec((C, tn), lambda j: (0, j))
    v_spec = pl.BlockSpec((C, 1), lambda j: (0, 0))
    cp = pltpu.CompilerParams(dimension_semantics=("parallel",))
    out_shape = jax.ShapeDtypeStruct((C, M), jnp.float32)
    if residual_T is None:
        return pl.pallas_call(
            _bn_relu_kernel, out_shape=out_shape,
            grid_spec=pltpu.PrefetchScalarGridSpec(
                num_scalar_prefetch=0, grid=(nb,),
                in_specs=[y_spec, v_spec, v_spec], out_specs=y_spec),
            compiler_params=cp,
        )(yT, sc, sh)
    return pl.pallas_call(
        _bn_residual_kernel, out_shape=out_shape,
        grid_spec=pltpu.PrefetchScalarGridSpec(
            num_scalar_prefetch=0, grid=(nb,),
            in_specs=[y_spec, v_spec, v_spec, y_spec], out_specs=y_spec),
        compiler_params=cp,
    )(yT, sc, sh, residual_T)


def _im2col_T(x_nchw, K, stride, pad, pad_mode):
    """Transposed im2col: (Kp, N*Ho*Wo) bf16, contraction dim zero-padded to a
    128 multiple (keeps the single in-kernel dot's tail exact)."""
    N, Cin, H, W = x_nchw.shape
    if pad > 0:
        mode = 'reflect' if pad_mode == 'reflect' else 'constant'
        x_nchw = jnp.pad(x_nchw, ((0, 0), (0, 0), (pad, pad), (pad, pad)),
                         mode=mode)
    Hp, Wp = x_nchw.shape[2], x_nchw.shape[3]
    Ho = (Hp - K) // stride + 1
    Wo = (Wp - K) // stride + 1
    # TODO(synk): at full CycleGAN size, move im2col into the Pallas kernel
    # (K*K shifted-window dots on a VMEM-resident input tile) to avoid the
    # K*K-fold activation HBM blowup of XLA-side patch extraction.
    patches = [x_nchw[:, :, kh:kh + stride * Ho:stride,
                      kw:kw + stride * Wo:stride]
               for kh in range(K) for kw in range(K)]
    pT = jnp.stack(patches, axis=2)                      # (N, Cin, K*K, Ho, Wo)
    pT = jnp.transpose(pT, (1, 2, 0, 3, 4)).reshape(Cin * K * K, N * Ho * Wo)
    Kc = Cin * K * K
    Kp = _round_up(Kc, 128)
    pT = jnp.pad(pT.astype(jnp.bfloat16), ((0, Kp - Kc), (0, 0)))
    return pT, Kp, (N, Ho, Wo)


# ----------------------------- layer wrappers ------------------------------

def conv_bn(x_nchw, w_oihw, gamma, beta, stride=1, pad=0, pad_mode='zero',
            residual_nchw=None):
    """Conv2d (bias omitted: exactly cancelled by training-mode BatchNorm) +
    BatchNorm2d + (ReLU if residual is None else residual add). 2 Pallas calls."""
    Cout, Cin, K, _ = w_oihw.shape
    pT, Kp, (N, Ho, Wo) = _im2col_T(x_nchw, K, stride, pad, pad_mode)
    wT = jnp.pad(w_oihw.reshape(Cout, Cin * K * K).astype(jnp.bfloat16),
                 ((0, 0), (0, Kp - Cin * K * K)))
    M = N * Ho * Wo
    yT, s1, s2 = _gemm_stats(wT, pT)
    tot = jnp.sum(s1, axis=(0, 2))
    tot2 = jnp.sum(s2, axis=(0, 2))
    scale, shift = _bn_scale_shift(tot, tot2, gamma, beta, float(M))
    rT = None
    if residual_nchw is not None:
        rT = jnp.transpose(residual_nchw, (1, 0, 2, 3)).reshape(Cout, M)
    outT = _bn_epilogue(yT, scale, shift, residual_T=rT)
    return outT.reshape(Cout, N, Ho, Wo).transpose(1, 0, 2, 3)


def conv_transpose_bn_relu(x_nchw, w_iohw, gamma, beta):
    """ConvTranspose2d(k=3, stride=2, padding=1, output_padding=1) + BN + ReLU
    via sub-pixel decomposition: the 4 output phases become one GEMM with
    rows = 4*Cout and contraction K = 4*Cin (only non-zero taps touched)."""
    N, Cin, H, W = x_nchw.shape
    Cout = w_iohw.shape[1]
    # input taps x[p+dh, q+dw], zero-padded one row/col at the bottom/right
    xp = jnp.pad(x_nchw, ((0, 0), (0, 0), (0, 1), (0, 1)))
    taps = [(0, 0), (0, 1), (1, 0), (1, 1)]
    pT = jnp.stack([xp[:, :, dh:dh + H, dw:dw + W] for dh, dw in taps], axis=1)
    pT = jnp.transpose(pT, (1, 2, 0, 3, 4)).reshape(4 * Cin, N * H * W)
    Kc = 4 * Cin
    Kp = _round_up(Kc, 128)
    pT = jnp.pad(pT.astype(jnp.bfloat16), ((0, Kp - Kc), (0, 0)))

    def wblk(kh, kw):                       # (Cout, Cin)
        return jnp.transpose(w_iohw[:, :, kh, kw])

    Z = jnp.zeros((Cout, Cin), jnp.float32)
    # rows: output phases (dh,dw) = ee, eo, oe, oo; cols: input taps above
    Wc = jnp.concatenate([
        jnp.concatenate([wblk(1, 1), Z,          Z,          Z         ], 1),
        jnp.concatenate([wblk(1, 2), wblk(1, 0), Z,          Z         ], 1),
        jnp.concatenate([wblk(2, 1), Z,          wblk(0, 1), Z         ], 1),
        jnp.concatenate([wblk(2, 2), wblk(2, 0), wblk(0, 2), wblk(0, 0)], 1),
    ], axis=0)                                              # (4*Cout, 4*Cin)
    Wc = jnp.pad(Wc.astype(jnp.bfloat16), ((0, 0), (0, Kp - Kc)))

    M = N * H * W
    yT, s1, s2 = _gemm_stats(Wc, pT)                        # yT: (4*Cout, M)
    # BatchNorm stats are per channel over all 4 output phases
    tot = jnp.sum(s1, axis=(0, 2)).reshape(4, Cout).sum(axis=0)
    tot2 = jnp.sum(s2, axis=(0, 2)).reshape(4, Cout).sum(axis=0)
    scale, shift = _bn_scale_shift(tot, tot2, gamma, beta, float(4 * M))
    outT = _bn_epilogue(yT, jnp.tile(scale, 4), jnp.tile(shift, 4))
    # sub-pixel shuffle: rows (dh, dw, co), cols (n, h, w) -> (N, Cout, 2H, 2W)
    y = outT.reshape(2, 2, Cout, N, H, W)
    return jnp.transpose(y, (3, 2, 4, 0, 5, 1)).reshape(N, Cout, 2 * H, 2 * W)


def conv_bias_tanh(x_nchw, w_oihw, bias, pad=3):
    """ReflectionPad2d + 7x7 Conv2d + bias + tanh fused into one Pallas call."""
    Cout, Cin, K, _ = w_oihw.shape
    pT, Kp, (N, Ho, Wo) = _im2col_T(x_nchw, K, 1, pad, 'reflect')
    wT = jnp.pad(w_oihw.reshape(Cout, Cin * K * K).astype(jnp.bfloat16),
                 ((0, 0), (0, Kp - Cin * K * K)))
    M = N * Ho * Wo
    tn = _choose_tn(M)
    nb = M // tn
    yT = pl.pallas_call(
        _conv_bias_tanh_kernel,
        out_shape=jax.ShapeDtypeStruct((Cout, M), jnp.float32),
        grid_spec=pltpu.PrefetchScalarGridSpec(
            num_scalar_prefetch=0,
            grid=(nb,),
            in_specs=[pl.BlockSpec((Cout, Kp), lambda j: (0, 0)),
                      pl.BlockSpec((Kp, tn), lambda j: (0, j)),
                      pl.BlockSpec((Cout, 1), lambda j: (0, 0))],
            out_specs=pl.BlockSpec((Cout, tn), lambda j: (0, j))),
        compiler_params=pltpu.CompilerParams(
            dimension_semantics=("parallel",)),
    )(wT, pT, bias.reshape(Cout, 1).astype(jnp.float32))
    return yT.reshape(Cout, N, Ho, Wo).transpose(1, 0, 2, 3)


# ----------------------------- model definition ----------------------------

def init_params(key, input_nc=3, output_nc=3, ngf=8, n_blocks=2):
    def conv_init(k, cout, cin, ks):
        kw, kb = jax.random.split(k)
        w = jax.random.normal(kw, (cout, cin, ks, ks), jnp.float32) * 0.05
        b = jax.random.normal(kb, (cout,), jnp.float32) * 0.01
        return w, b

    def convT_init(k, cin, cout, ks):
        kw, kb = jax.random.split(k)
        w = jax.random.normal(kw, (cin, cout, ks, ks), jnp.float32) * 0.05
        b = jax.random.normal(kb, (cout,), jnp.float32) * 0.01
        return w, b

    def bn_init(c):  # PyTorch BatchNorm2d default init
        return jnp.ones((c,), jnp.float32), jnp.zeros((c,), jnp.float32)

    keys = iter(jax.random.split(key, 64))
    p = {'n_blocks': n_blocks}
    p['c0'] = conv_init(next(keys), ngf, input_nc, 7) + bn_init(ngf)
    for i in range(2):                                   # downsampling
        mult = 2 ** i
        p[f'd{i}'] = (conv_init(next(keys), ngf * mult * 2, ngf * mult, 3)
                      + bn_init(ngf * mult * 2))
    mult = 4
    for i in range(n_blocks):                            # resnet blocks
        w1, b1 = conv_init(next(keys), ngf * mult, ngf * mult, 3)
        g1, be1 = bn_init(ngf * mult)
        w2, b2 = conv_init(next(keys), ngf * mult, ngf * mult, 3)
        g2, be2 = bn_init(ngf * mult)
        p[f'r{i}'] = (w1, b1, g1, be1, w2, b2, g2, be2)
    for i in range(2):                                   # upsampling
        mult = 2 ** (2 - i)
        p[f'u{i}'] = (convT_init(next(keys), ngf * mult, ngf * mult // 2, 3)
                      + bn_init(ngf * mult // 2))
    p['cf'] = conv_init(next(keys), output_nc, ngf, 7)
    return p


def resnet_generator_forward(params, x_nchw):
    x = x_nchw.astype(jnp.float32)

    # ReflectionPad2d(3) + Conv(7x7) + BN + ReLU.  Conv biases feeding BN are
    # module parameters but are cancelled exactly by the batch-mean
    # subtraction of training-mode BatchNorm, so they are not applied.
    w, _b, g, be = params['c0']
    x = conv_bn(x, w, g, be, stride=1, pad=3, pad_mode='reflect')

    # two stride-2 downsampling convs (zero pad 1) + BN + ReLU
    for i in range(2):
        w, _b, g, be = params[f'd{i}']
        x = conv_bn(x, w, g, be, stride=2, pad=1, pad_mode='zero')

    # resnet blocks: x + [reflpad, conv, BN, ReLU, reflpad, conv, BN](x)
    for i in range(params['n_blocks']):
        w1, _b1, g1, be1, w2, _b2, g2, be2 = params[f'r{i}']
        y = conv_bn(x, w1, g1, be1, stride=1, pad=1, pad_mode='reflect')
        x = conv_bn(y, w2, g2, be2, stride=1, pad=1, pad_mode='reflect',
                    residual_nchw=x)

    # two ConvTranspose2d(k=3, s=2, p=1, output_padding=1) + BN + ReLU
    for i in range(2):
        w, _b, g, be = params[f'u{i}']
        x = conv_transpose_bn_relu(x, w, g, be)

    # ReflectionPad2d(3) + Conv(7x7) + bias + Tanh (single fused kernel)
    w, b = params['cf']
    return conv_bias_tanh(x, w, b, pad=3)


# ----------------------------------- main -----------------------------------

if __name__ == "__main__":
    key = jax.random.PRNGKey(0)
    kp, kx = jax.random.split(key)

    # small-shape instantiation of ResnetGenerator(input_nc=3, output_nc=3)
    params = init_params(kp, input_nc=3, output_nc=3, ngf=8, n_blocks=2)
    x = jax.random.normal(kx, (2, 3, 32, 32), jnp.float32)   # NCHW input

    fwd = jax.jit(lambda inp: resnet_generator_forward(params, inp))
    out = fwd(x)
    jax.block_until_ready(out)

    assert out.shape == (2, 3, 32, 32), out.shape
    assert bool(jnp.all(jnp.isfinite(out)))
    assert bool(jnp.all(jnp.abs(out) <= 1.0 + 1e-6))  # tanh output range
    print("KERNEL_OK")
</pallas_src>

<mosaic_0001>
module attributes {stable_mosaic.version = 11 : i64} {
  func.func @_bn_relu_kernel(%arg0: i32, %arg1: memref<8x512xf32, #tpu.memory_space<vmem>>, %arg2: memref<8x1xf32, #tpu.memory_space<vmem>>, %arg3: memref<8x1xf32, #tpu.memory_space<vmem>>, %arg4: memref<8x512xf32, #tpu.memory_space<vmem>>) attributes {dimension_semantics = [#tpu.dimension_semantics<parallel>], iteration_bounds = array<i64: 4>, scalar_prefetch = 0 : i64, scratch_operands = 0 : i64, tpu.core_type = #tpu.core_type<tc>, window_params = [{transform_indices = @transform_0, window_bounds = array<i64: 8, 512>}, {pipeline_mode = #tpu.pipeline_mode<synchronous>, transform_indices = @transform_1, window_bounds = array<i64: 8, 1>}, {pipeline_mode = #tpu.pipeline_mode<synchronous>, transform_indices = @transform_2, window_bounds = array<i64: 8, 1>}, {transform_indices = @transform_3, window_bounds = array<i64: 8, 512>}]} {
    %c0 = arith.constant 0 : index
    %c0_0 = arith.constant 0 : index
    %0 = vector.load %arg1[%c0, %c0_0] : memref<8x512xf32, #tpu.memory_space<vmem>>, vector<8x512xf32>
    %c0_1 = arith.constant 0 : index
    %c0_2 = arith.constant 0 : index
    %1 = vector.load %arg2[%c0_1, %c0_2] : memref<8x1xf32, #tpu.memory_space<vmem>>, vector<8x1xf32>
    %2 = vector.broadcast %1 : vector<8x1xf32> to vector<8x512xf32>
    %3 = arith.mulf %0, %2 : vector<8x512xf32>
    %c0_3 = arith.constant 0 : index
    %c0_4 = arith.constant 0 : index
    %4 = vector.load %arg3[%c0_3, %c0_4] : memref<8x1xf32, #tpu.memory_space<vmem>>, vector<8x1xf32>
    %5 = vector.broadcast %4 : vector<8x1xf32> to vector<8x512xf32>
    %6 = arith.addf %3, %5 : vector<8x512xf32>
    %cst = arith.constant 0.000000e+00 : f32
    %7 = vector.broadcast %cst : f32 to vector<8x512xf32>
    %8 = arith.maximumf %6, %7 : vector<8x512xf32>
    %c0_5 = arith.constant 0 : index
    %c0_6 = arith.constant 0 : index
    %9 = vector.load %arg4[%c0_5, %c0_6] : memref<8x512xf32, #tpu.memory_space<vmem>>, vector<8x512xf32>
    tpu.vector_store %arg4[%c0_5, %c0_6], %8 {strides = array<i32>} : memref<8x512xf32, #tpu.memory_space<vmem>>, vector<8x512xf32>,
    return
  }
  func.func @transform_0(%arg0: i32) -> (i32, i32) {
    %c0_i32 = arith.constant 0 : i32
    %c0_i32_0 = arith.constant 0 : i32
    return %c0_i32, %arg0 : i32, i32
  }
  func.func @transform_1(%arg0: i32) -> (i32, i32) {
    %c0_i32 = arith.constant 0 : i32
    %c0_i32_0 = arith.constant 0 : i32
    %c0_i32_1 = arith.constant 0 : i32
    return %c0_i32, %c0_i32_0 : i32, i32
  }
  func.func @transform_2(%arg0: i32) -> (i32, i32) {
    %c0_i32 = arith.constant 0 : i32
    %c0_i32_0 = arith.constant 0 : i32
    %c0_i32_1 = arith.constant 0 : i32
    return %c0_i32, %c0_i32_0 : i32, i32
  }
  func.func @transform_3(%arg0: i32) -> (i32, i32) {
    %c0_i32 = arith.constant 0 : i32
    %c0_i32_0 = arith.constant 0 : i32
    return %c0_i32, %arg0 : i32, i32
  }
}

module attributes {stable_mosaic.version = 11 : i64} {
  func.func @_conv_stats_kernel(%arg0: i32, %arg1: memref<8x256xbf16, #tpu.memory_space<vmem>>, %arg2: memref<256x512xbf16, #tpu.memory_space<vmem>>, %arg3: memref<8x512xf32, #tpu.memory_space<vmem>>, %arg4: memref<1x8x1xf32, #tpu.memory_space<vmem>>, %arg5: memref<1x8x1xf32, #tpu.memory_space<vmem>>) attributes {dimension_semantics = [#tpu.dimension_semantics<parallel>], iteration_bounds = array<i64: 4>, scalar_prefetch = 0 : i64, scratch_operands = 0 : i64, tpu.core_type = #tpu.core_type<tc>, window_params = [{pipeline_mode = #tpu.pipeline_mode<synchronous>, transform_indices = @transform_0, window_bounds = array<i64: 8, 256>}, {transform_indices = @transform_1, window_bounds = array<i64: 256, 512>}, {transform_indices = @transform_2, window_bounds = array<i64: 8, 512>}, {transform_indices = @transform_3, window_bounds = array<i64: 1, 8, 1>}, {transform_indices = @transform_4, window_bounds = array<i64: 1, 8, 1>}]} {
    %c0 = arith.constant 0 : index
    %c0_0 = arith.constant 0 : index
    %0 = vector.load %arg1[%c0, %c0_0] : memref<8x256xbf16, #tpu.memory_space<vmem>>, vector<8x256xbf16>
    %c0_1 = arith.constant 0 : index
    %c0_2 = arith.constant 0 : index
    %1 = vector.load %arg2[%c0_1, %c0_2] : memref<256x512xbf16, #tpu.memory_space<vmem>>, vector<256x512xbf16>
    %cst = arith.constant dense<0.000000e+00> : vector<8x512xf32>
    %2 = tpu.matmul %0, %1, %cst {dimension_numbers = #tpu.dot_dimension_numbers<[1], [0], [0], [1], [0, 0, 1, 1], [], []>} : vector<8x256xbf16>, vector<256x512xbf16>, vector<8x512xf32> -> vector<8x512xf32>
    %c0_3 = arith.constant 0 : index
    %c0_4 = arith.constant 0 : index
    %3 = vector.load %arg3[%c0_3, %c0_4] : memref<8x512xf32, #tpu.memory_space<vmem>>, vector<8x512xf32>
    tpu.vector_store %arg3[%c0_3, %c0_4], %2 {strides = array<i32>} : memref<8x512xf32, #tpu.memory_space<vmem>>, vector<8x512xf32>,
    %cst_5 = arith.constant dense<0.000000e+00> : vector<8xf32>
    %4 = vector.multi_reduction <add>, %2, %cst_5 [1] : vector<8x512xf32> to vector<8xf32>
    %5 = vector.shape_cast %4 : vector<8xf32> to vector<8x1xf32>
    %6 = vector.shape_cast %5 : vector<8x1xf32> to vector<1x8x1xf32>
    %c0_6 = arith.constant 0 : index
    %c0_7 = arith.constant 0 : index
    %c0_8 = arith.constant 0 : index
    %7 = vector.load %arg4[%c0_6, %c0_7, %c0_8] : memref<1x8x1xf32, #tpu.memory_space<vmem>>, vector<1x8x1xf32>
    tpu.vector_store %arg4[%c0_6, %c0_7, %c0_8], %6 {strides = array<i32>} : memref<1x8x1xf32, #tpu.memory_space<vmem>>, vector<1x8x1xf32>,
    %8 = arith.mulf %2, %2 : vector<8x512xf32>
    %cst_9 = arith.constant dense<0.000000e+00> : vector<8xf32>
    %9 = vector.multi_reduction <add>, %8, %cst_9 [1] : vector<8x512xf32> to vector<8xf32>
    %10 = vector.shape_cast %9 : vector<8xf32> to vector<8x1xf32>
    %11 = vector.shape_cast %10 : vector<8x1xf32> to vector<1x8x1xf32>
    %c0_10 = arith.constant 0 : index
    %c0_11 = arith.constant 0 : index
    %c0_12 = arith.constant 0 : index
    %12 = vector.load %arg5[%c0_10, %c0_11, %c0_12] : memref<1x8x1xf32, #tpu.memory_space<vmem>>, vector<1x8x1xf32>
    tpu.vector_store %arg5[%c0_10, %c0_11, %c0_12], %11 {strides = array<i32>} : memref<1x8x1xf32, #tpu.memory_space<vmem>>, vector<1x8x1xf32>,
    return
  }
  func.func @transform_0(%arg0: i32) -> (i32, i32) {
    %c0_i32 = arith.constant 0 : i32
    %c0_i32_0 = arith.constant 0 : i32
    %c0_i32_1 = arith.constant 0 : i32
    return %c0_i32, %c0_i32_0 : i32, i32
  }
  func.func @transform_1(%arg0: i32) -> (i32, i32) {
    %c0_i32 = arith.constant 0 : i32
    %c0_i32_0 = arith.constant 0 : i32
    return %c0_i32, %arg0 : i32, i32
  }
  func.func @transform_2(%arg0: i32) -> (i32, i32) {
    %c0_i32 = arith.constant 0 : i32
    %c0_i32_0 = arith.constant 0 : i32
    return %c0_i32, %arg0 : i32, i32
  }
  func.func @transform_3(%arg0: i32) -> (i32, i32, i32) {
    %c0_i32 = arith.constant 0 : i32
    %c0_i32_0 = arith.constant 0 : i32
    %c0_i32_1 = arith.constant 0 : i32
    return %arg0, %c0_i32, %c0_i32_0 : i32, i32, i32
  }
  func.func @transform_4(%arg0: i32) -> (i32, i32, i32) {
    %c0_i32 = arith.constant 0 : i32
    %c0_i32_0 = arith.constant 0 : i32
    %c0_i32_1 = arith.constant 0 : i32
    return %arg0, %c0_i32, %c0_i32_0 : i32, i32, i32
  }
}

module attributes {stable_mosaic.version = 11 : i64} {
  func.func @_conv_stats_kernel(%arg0: i32, %arg1: memref<16x128xbf16, #tpu.memory_space<vmem>>, %arg2: memref<128x256xbf16, #tpu.memory_space<vmem>>, %arg3: memref<16x256xf32, #tpu.memory_space<vmem>>, %arg4: memref<1x16x1xf32, #tpu.memory_space<vmem>>, %arg5: memref<1x16x1xf32, #tpu.memory_space<vmem>>) attributes {dimension_semantics = [#tpu.dimension_semantics<parallel>], iteration_bounds = array<i64: 2>, scalar_prefetch = 0 : i64, scratch_operands = 0 : i64, tpu.core_type = #tpu.core_type<tc>, window_params = [{pipeline_mode = #tpu.pipeline_mode<synchronous>, transform_indices = @transform_0, window_bounds = array<i64: 16, 128>}, {transform_indices = @transform_1, window_bounds = array<i64: 128, 256>}, {transform_indices = @transform_2, window_bounds = array<i64: 16, 256>}, {transform_indices = @transform_3, window_bounds = array<i64: 1, 16, 1>}, {transform_indices = @transform_4, window_bounds = array<i64: 1, 16, 1>}]} {
    %c0 = arith.constant 0 : index
    %c0_0 = arith.constant 0 : index
    %0 = vector.load %arg1[%c0, %c0_0] : memref<16x128xbf16, #tpu.memory_space<vmem>>, vector<16x128xbf16>
    %c0_1 = arith.constant 0 : index
    %c0_2 = arith.constant 0 : index
    %1 = vector.load %arg2[%c0_1, %c0_2] : memref<128x256xbf16, #tpu.memory_space<vmem>>, vector<128x256xbf16>
    %cst = arith.constant dense<0.000000e+00> : vector<16x256xf32>
    %2 = tpu.matmul %0, %1, %cst {dimension_numbers = #tpu.dot_dimension_numbers<[1], [0], [0], [1], [0, 0, 1, 1], [], []>} : vector<16x128xbf16>, vector<128x256xbf16>, vector<16x256xf32> -> vector<16x256xf32>
    %c0_3 = arith.constant 0 : index
    %c0_4 = arith.constant 0 : index
    %3 = vector.load %arg3[%c0_3, %c0_4] : memref<16x256xf32, #tpu.memory_space<vmem>>, vector<16x256xf32>
    tpu.vector_store %arg3[%c0_3, %c0_4], %2 {strides = array<i32>} : memref<16x256xf32, #tpu.memory_space<vmem>>, vector<16x256xf32>,
    %cst_5 = arith.constant dense<0.000000e+00> : vector<16xf32>
    %4 = vector.multi_reduction <add>, %2, %cst_5 [1] : vector<16x256xf32> to vector<16xf32>
    %5 = vector.shape_cast %4 : vector<16xf32> to vector<16x1xf32>
    %6 = vector.shape_cast %5 : vector<16x1xf32> to vector<1x16x1xf32>
    %c0_6 = arith.constant 0 : index
    %c0_7 = arith.constant 0 : index
    %c0_8 = arith.constant 0 : index
    %7 = vector.load %arg4[%c0_6, %c0_7, %c0_8] : memref<1x16x1xf32, #tpu.memory_space<vmem>>, vector<1x16x1xf32>
    tpu.vector_store %arg4[%c0_6, %c0_7, %c0_8], %6 {strides = array<i32>} : memref<1x16x1xf32, #tpu.memory_space<vmem>>, vector<1x16x1xf32>,
    %8 = arith.mulf %2, %2 : vector<16x256xf32>
    %cst_9 = arith.constant dense<0.000000e+00> : vector<16xf32>
    %9 = vector.multi_reduction <add>, %8, %cst_9 [1] : vector<16x256xf32> to vector<16xf32>
    %10 = vector.shape_cast %9 : vector<16xf32> to vector<16x1xf32>
    %11 = vector.shape_cast %10 : vector<16x1xf32> to vector<1x16x1xf32>
    %c0_10 = arith.constant 0 : index
    %c0_11 = arith.constant 0 : index
    %c0_12 = arith.constant 0 : index
    %12 = vector.load %arg5[%c0_10, %c0_11, %c0_12] : memref<1x16x1xf32, #tpu.memory_space<vmem>>, vector<1x16x1xf32>
    tpu.vector_store %arg5[%c0_10, %c0_11, %c0_12], %11 {strides = array<i32>} : memref<1x16x1xf32, #tpu.memory_space<vmem>>, vector<1x16x1xf32>,
    return
  }
  func.func @transform_0(%arg0: i32) -> (i32, i32) {
    %c0_i32 = arith.constant 0 : i32
    %c0_i32_0 = arith.constant 0 : i32
    %c0_i32_1 = arith.constant 0 : i32
    return %c0_i32, %c0_i32_0 : i32, i32
  }
  func.func @transform_1(%arg0: i32) -> (i32, i32) {
    %c0_i32 = arith.constant 0 : i32
    %c0_i32_0 = arith.constant 0 : i32
    return %c0_i32, %arg0 : i32, i32
  }
  func.func @transform_2(%arg0: i32) -> (i32, i32) {
    %c0_i32 = arith.constant 0 : i32
    %c0_i32_0 = arith.constant 0 : i32
    return %c0_i32, %arg0 : i32, i32
  }
  func.func @transform_3(%arg0: i32) -> (i32, i32, i32) {
    %c0_i32 = arith.constant 0 : i32
    %c0_i32_0 = arith.constant 0 : i32
    %c0_i32_1 = arith.constant 0 : i32
    return %arg0, %c0_i32, %c0_i32_0 : i32, i32, i32
  }
  func.func @transform_4(%arg0: i32) -> (i32, i32, i32) {
    %c0_i32 = arith.constant 0 : i32
    %c0_i32_0 = arith.constant 0 : i32
    %c0_i32_1 = arith.constant 0 : i32
    return %arg0, %c0_i32, %c0_i32_0 : i32, i32, i32
  }
}

module attributes {stable_mosaic.version = 11 : i64} {
  func.func @_bn_relu_kernel(%arg0: i32, %arg1: memref<16x256xf32, #tpu.memory_space<vmem>>, %arg2: memref<16x1xf32, #tpu.memory_space<vmem>>, %arg3: memref<16x1xf32, #tpu.memory_space<vmem>>, %arg4: memref<16x256xf32, #tpu.memory_space<vmem>>) attributes {dimension_semantics = [#tpu.dimension_semantics<parallel>], iteration_bounds = array<i64: 2>, scalar_prefetch = 0 : i64, scratch_operands = 0 : i64, tpu.core_type = #tpu.core_type<tc>, window_params = [{transform_indices = @transform_0, window_bounds = array<i64: 16, 256>}, {pipeline_mode = #tpu.pipeline_mode<synchronous>, transform_indices = @transform_1, window_bounds = array<i64: 16, 1>}, {pipeline_mode = #tpu.pipeline_mode<synchronous>, transform_indices = @transform_2, window_bounds = array<i64: 16, 1>}, {transform_indices = @transform_3, window_bounds = array<i64: 16, 256>}]} {
    %c0 = arith.constant 0 : index
    %c0_0 = arith.constant 0 : index
    %0 = vector.load %arg1[%c0, %c0_0] : memref<16x256xf32, #tpu.memory_space<vmem>>, vector<16x256xf32>
    %c0_1 = arith.constant 0 : index
    %c0_2 = arith.constant 0 : index
    %1 = vector.load %arg2[%c0_1, %c0_2] : memref<16x1xf32, #tpu.memory_space<vmem>>, vector<16x1xf32>
    %2 = vector.broadcast %1 : vector<16x1xf32> to vector<16x256xf32>
    %3 = arith.mulf %0, %2 : vector<16x256xf32>
    %c0_3 = arith.constant 0 : index
    %c0_4 = arith.constant 0 : index
    %4 = vector.load %arg3[%c0_3, %c0_4] : memref<16x1xf32, #tpu.memory_space<vmem>>, vector<16x1xf32>
    %5 = vector.broadcast %4 : vector<16x1xf32> to vector<16x256xf32>
    %6 = arith.addf %3, %5 : vector<16x256xf32>
    %cst = arith.constant 0.000000e+00 : f32
    %7 = vector.broadcast %cst : f32 to vector<16x256xf32>
    %8 = arith.maximumf %6, %7 : vector<16x256xf32>
    %c0_5 = arith.constant 0 : index
    %c0_6 = arith.constant 0 : index
    %9 = vector.load %arg4[%c0_5, %c0_6] : memref<16x256xf32, #tpu.memory_space<vmem>>, vector<16x256xf32>
    tpu.vector_store %arg4[%c0_5, %c0_6], %8 {strides = array<i32>} : memref<16x256xf32, #tpu.memory_space<vmem>>, vector<16x256xf32>,
    return
  }
  func.func @transform_0(%arg0: i32) -> (i32, i32) {
    %c0_i32 = arith.constant 0 : i32
    %c0_i32_0 = arith.constant 0 : i32
    return %c0_i32, %arg0 : i32, i32
  }
  func.func @transform_1(%arg0: i32) -> (i32, i32) {
    %c0_i32 = arith.constant 0 : i32
    %c0_i32_0 = arith.constant 0 : i32
    %c0_i32_1 = arith.constant 0 : i32
    return %c0_i32, %c0_i32_0 : i32, i32
  }
  func.func @transform_2(%arg0: i32) -> (i32, i32) {
    %c0_i32 = arith.constant 0 : i32
    %c0_i32_0 = arith.constant 0 : i32
    %c0_i32_1 = arith.constant 0 : i32
    return %c0_i32, %c0_i32_0 : i32, i32
  }
  func.func @transform_3(%arg0: i32) -> (i32, i32) {
    %c0_i32 = arith.constant 0 : i32
    %c0_i32_0 = arith.constant 0 : i32
    return %c0_i32, %arg0 : i32, i32
  }
}

module attributes {stable_mosaic.version = 11 : i64} {
  func.func @_conv_stats_kernel(%arg0: i32, %arg1: memref<32x256xbf16, #tpu.memory_space<vmem>>, %arg2: memref<256x128xbf16, #tpu.memory_space<vmem>>, %arg3: memref<32x128xf32, #tpu.memory_space<vmem>>, %arg4: memref<1x32x1xf32, #tpu.memory_space<vmem>>, %arg5: memref<1x32x1xf32, #tpu.memory_space<vmem>>) attributes {dimension_semantics = [#tpu.dimension_semantics<parallel>], iteration_bounds = array<i64: 1>, scalar_prefetch = 0 : i64, scratch_operands = 0 : i64, tpu.core_type = #tpu.core_type<tc>, window_params = [{pipeline_mode = #tpu.pipeline_mode<synchronous>, transform_indices = @transform_0, window_bounds = array<i64: 32, 256>}, {transform_indices = @transform_1, window_bounds = array<i64: 256, 128>}, {transform_indices = @transform_2, window_bounds = array<i64: 32, 128>}, {transform_indices = @transform_3, window_bounds = array<i64: 1, 32, 1>}, {transform_indices = @transform_4, window_bounds = array<i64: 1, 32, 1>}]} {
    %c0 = arith.constant 0 : index
    %c0_0 = arith.constant 0 : index
    %0 = vector.load %arg1[%c0, %c0_0] : memref<32x256xbf16, #tpu.memory_space<vmem>>, vector<32x256xbf16>
    %c0_1 = arith.constant 0 : index
    %c0_2 = arith.constant 0 : index
    %1 = vector.load %arg2[%c0_1, %c0_2] : memref<256x128xbf16, #tpu.memory_space<vmem>>, vector<256x128xbf16>
    %cst = arith.constant dense<0.000000e+00> : vector<32x128xf32>
    %2 = tpu.matmul %0, %1, %cst {dimension_numbers = #tpu.dot_dimension_numbers<[1], [0], [0], [1], [0, 0, 1, 1], [], []>} : vector<32x256xbf16>, vector<256x128xbf16>, vector<32x128xf32> -> vector<32x128xf32>
    %c0_3 = arith.constant 0 : index
    %c0_4 = arith.constant 0 : index
    %3 = vector.load %arg3[%c0_3, %c0_4] : memref<32x128xf32, #tpu.memory_space<vmem>>, vector<32x128xf32>
    tpu.vector_store %arg3[%c0_3, %c0_4], %2 {strides = array<i32>} : memref<32x128xf32, #tpu.memory_space<vmem>>, vector<32x128xf32>,
    %cst_5 = arith.constant dense<0.000000e+00> : vector<32xf32>
    %4 = vector.multi_reduction <add>, %2, %cst_5 [1] : vector<32x128xf32> to vector<32xf32>
    %5 = vector.shape_cast %4 : vector<32xf32> to vector<32x1xf32>
    %6 = vector.shape_cast %5 : vector<32x1xf32> to vector<1x32x1xf32>
    %c0_6 = arith.constant 0 : index
    %c0_7 = arith.constant 0 : index
    %c0_8 = arith.constant 0 : index
    %7 = vector.load %arg4[%c0_6, %c0_7, %c0_8] : memref<1x32x1xf32, #tpu.memory_space<vmem>>, vector<1x32x1xf32>
    tpu.vector_store %arg4[%c0_6, %c0_7, %c0_8], %6 {strides = array<i32>} : memref<1x32x1xf32, #tpu.memory_space<vmem>>, vector<1x32x1xf32>,
    %8 = arith.mulf %2, %2 : vector<32x128xf32>
    %cst_9 = arith.constant dense<0.000000e+00> : vector<32xf32>
    %9 = vector.multi_reduction <add>, %8, %cst_9 [1] : vector<32x128xf32> to vector<32xf32>
    %10 = vector.shape_cast %9 : vector<32xf32> to vector<32x1xf32>
    %11 = vector.shape_cast %10 : vector<32x1xf32> to vector<1x32x1xf32>
    %c0_10 = arith.constant 0 : index
    %c0_11 = arith.constant 0 : index
    %c0_12 = arith.constant 0 : index
    %12 = vector.load %arg5[%c0_10, %c0_11, %c0_12] : memref<1x32x1xf32, #tpu.memory_space<vmem>>, vector<1x32x1xf32>
    tpu.vector_store %arg5[%c0_10, %c0_11, %c0_12], %11 {strides = array<i32>} : memref<1x32x1xf32, #tpu.memory_space<vmem>>, vector<1x32x1xf32>,
    return
  }
  func.func @transform_0(%arg0: i32) -> (i32, i32) {
    %c0_i32 = arith.constant 0 : i32
    %c0_i32_0 = arith.constant 0 : i32
    %c0_i32_1 = arith.constant 0 : i32
    return %c0_i32, %c0_i32_0 : i32, i32
  }
  func.func @transform_1(%arg0: i32) -> (i32, i32) {
    %c0_i32 = arith.constant 0 : i32
    %c0_i32_0 = arith.constant 0 : i32
    return %c0_i32, %arg0 : i32, i32
  }
  func.func @transform_2(%arg0: i32) -> (i32, i32) {
    %c0_i32 = arith.constant 0 : i32
    %c0_i32_0 = arith.constant 0 : i32
    return %c0_i32, %arg0 : i32, i32
  }
  func.func @transform_3(%arg0: i32) -> (i32, i32, i32) {
    %c0_i32 = arith.constant 0 : i32
    %c0_i32_0 = arith.constant 0 : i32
    %c0_i32_1 = arith.constant 0 : i32
    return %arg0, %c0_i32, %c0_i32_0 : i32, i32, i32
  }
  func.func @transform_4(%arg0: i32) -> (i32, i32, i32) {
    %c0_i32 = arith.constant 0 : i32
    %c0_i32_0 = arith.constant 0 : i32
    %c0_i32_1 = arith.constant 0 : i32
    return %arg0, %c0_i32, %c0_i32_0 : i32, i32, i32
  }
}

module attributes {stable_mosaic.version = 11 : i64} {
  func.func @_bn_relu_kernel(%arg0: i32, %arg1: memref<32x128xf32, #tpu.memory_space<vmem>>, %arg2: memref<32x1xf32, #tpu.memory_space<vmem>>, %arg3: memref<32x1xf32, #tpu.memory_space<vmem>>, %arg4: memref<32x128xf32, #tpu.memory_space<vmem>>) attributes {dimension_semantics = [#tpu.dimension_semantics<parallel>], iteration_bounds = array<i64: 1>, scalar_prefetch = 0 : i64, scratch_operands = 0 : i64, tpu.core_type = #tpu.core_type<tc>, window_params = [{transform_indices = @transform_0, window_bounds = array<i64: 32, 128>}, {pipeline_mode = #tpu.pipeline_mode<synchronous>, transform_indices = @transform_1, window_bounds = array<i64: 32, 1>}, {pipeline_mode = #tpu.pipeline_mode<synchronous>, transform_indices = @transform_2, window_bounds = array<i64: 32, 1>}, {transform_indices = @transform_3, window_bounds = array<i64: 32, 128>}]} {
    %c0 = arith.constant 0 : index
    %c0_0 = arith.constant 0 : index
    %0 = vector.load %arg1[%c0, %c0_0] : memref<32x128xf32, #tpu.memory_space<vmem>>, vector<32x128xf32>
    %c0_1 = arith.constant 0 : index
    %c0_2 = arith.constant 0 : index
    %1 = vector.load %arg2[%c0_1, %c0_2] : memref<32x1xf32, #tpu.memory_space<vmem>>, vector<32x1xf32>
    %2 = vector.broadcast %1 : vector<32x1xf32> to vector<32x128xf32>
    %3 = arith.mulf %0, %2 : vector<32x128xf32>
    %c0_3 = arith.constant 0 : index
    %c0_4 = arith.constant 0 : index
    %4 = vector.load %arg3[%c0_3, %c0_4] : memref<32x1xf32, #tpu.memory_space<vmem>>, vector<32x1xf32>
    %5 = vector.broadcast %4 : vector<32x1xf32> to vector<32x128xf32>
    %6 = arith.addf %3, %5 : vector<32x128xf32>
    %cst = arith.constant 0.000000e+00 : f32
    %7 = vector.broadcast %cst : f32 to vector<32x128xf32>
    %8 = arith.maximumf %6, %7 : vector<32x128xf32>
    %c0_5 = arith.constant 0 : index
    %c0_6 = arith.constant 0 : index
    %9 = vector.load %arg4[%c0_5, %c0_6] : memref<32x128xf32, #tpu.memory_space<vmem>>, vector<32x128xf32>
    tpu.vector_store %arg4[%c0_5, %c0_6], %8 {strides = array<i32>} : memref<32x128xf32, #tpu.memory_space<vmem>>, vector<32x128xf32>,
    return
  }
  func.func @transform_0(%arg0: i32) -> (i32, i32) {
    %c0_i32 = arith.constant 0 : i32
    %c0_i32_0 = arith.constant 0 : i32
    return %c0_i32, %arg0 : i32, i32
  }
  func.func @transform_1(%arg0: i32) -> (i32, i32) {
    %c0_i32 = arith.constant 0 : i32
    %c0_i32_0 = arith.constant 0 : i32
    %c0_i32_1 = arith.constant 0 : i32
    return %c0_i32, %c0_i32_0 : i32, i32
  }
  func.func @transform_2(%arg0: i32) -> (i32, i32) {
    %c0_i32 = arith.constant 0 : i32
    %c0_i32_0 = arith.constant 0 : i32
    %c0_i32_1 = arith.constant 0 : i32
    return %c0_i32, %c0_i32_0 : i32, i32
  }
  func.func @transform_3(%arg0: i32) -> (i32, i32) {
    %c0_i32 = arith.constant 0 : i32
    %c0_i32_0 = arith.constant 0 : i32
    return %c0_i32, %arg0 : i32, i32
  }
}

module attributes {stable_mosaic.version = 11 : i64} {
  func.func @_conv_stats_kernel(%arg0: i32, %arg1: memref<32x384xbf16, #tpu.memory_space<vmem>>, %arg2: memref<384x128xbf16, #tpu.memory_space<vmem>>, %arg3: memref<32x128xf32, #tpu.memory_space<vmem>>, %arg4: memref<1x32x1xf32, #tpu.memory_space<vmem>>, %arg5: memref<1x32x1xf32, #tpu.memory_space<vmem>>) attributes {dimension_semantics = [#tpu.dimension_semantics<parallel>], iteration_bounds = array<i64: 1>, scalar_prefetch = 0 : i64, scratch_operands = 0 : i64, tpu.core_type = #tpu.core_type<tc>, window_params = [{pipeline_mode = #tpu.pipeline_mode<synchronous>, transform_indices = @transform_0, window_bounds = array<i64: 32, 384>}, {transform_indices = @transform_1, window_bounds = array<i64: 384, 128>}, {transform_indices = @transform_2, window_bounds = array<i64: 32, 128>}, {transform_indices = @transform_3, window_bounds = array<i64: 1, 32, 1>}, {transform_indices = @transform_4, window_bounds = array<i64: 1, 32, 1>}]} {
    %c0 = arith.constant 0 : index
    %c0_0 = arith.constant 0 : index
    %0 = vector.load %arg1[%c0, %c0_0] : memref<32x384xbf16, #tpu.memory_space<vmem>>, vector<32x384xbf16>
    %c0_1 = arith.constant 0 : index
    %c0_2 = arith.constant 0 : index
    %1 = vector.load %arg2[%c0_1, %c0_2] : memref<384x128xbf16, #tpu.memory_space<vmem>>, vector<384x128xbf16>
    %cst = arith.constant dense<0.000000e+00> : vector<32x128xf32>
    %2 = tpu.matmul %0, %1, %cst {dimension_numbers = #tpu.dot_dimension_numbers<[1], [0], [0], [1], [0, 0, 1, 1], [], []>} : vector<32x384xbf16>, vector<384x128xbf16>, vector<32x128xf32> -> vector<32x128xf32>
    %c0_3 = arith.constant 0 : index
    %c0_4 = arith.constant 0 : index
    %3 = vector.load %arg3[%c0_3, %c0_4] : memref<32x128xf32, #tpu.memory_space<vmem>>, vector<32x128xf32>
    tpu.vector_store %arg3[%c0_3, %c0_4], %2 {strides = array<i32>} : memref<32x128xf32, #tpu.memory_space<vmem>>, vector<32x128xf32>,
    %cst_5 = arith.constant dense<0.000000e+00> : vector<32xf32>
    %4 = vector.multi_reduction <add>, %2, %cst_5 [1] : vector<32x128xf32> to vector<32xf32>
    %5 = vector.shape_cast %4 : vector<32xf32> to vector<32x1xf32>
    %6 = vector.shape_cast %5 : vector<32x1xf32> to vector<1x32x1xf32>
    %c0_6 = arith.constant 0 : index
    %c0_7 = arith.constant 0 : index
    %c0_8 = arith.constant 0 : index
    %7 = vector.load %arg4[%c0_6, %c0_7, %c0_8] : memref<1x32x1xf32, #tpu.memory_space<vmem>>, vector<1x32x1xf32>
    tpu.vector_store %arg4[%c0_6, %c0_7, %c0_8], %6 {strides = array<i32>} : memref<1x32x1xf32, #tpu.memory_space<vmem>>, vector<1x32x1xf32>,
    %8 = arith.mulf %2, %2 : vector<32x128xf32>
    %cst_9 = arith.constant dense<0.000000e+00> : vector<32xf32>
    %9 = vector.multi_reduction <add>, %8, %cst_9 [1] : vector<32x128xf32> to vector<32xf32>
    %10 = vector.shape_cast %9 : vector<32xf32> to vector<32x1xf32>
    %11 = vector.shape_cast %10 : vector<32x1xf32> to vector<1x32x1xf32>
    %c0_10 = arith.constant 0 : index
    %c0_11 = arith.constant 0 : index
    %c0_12 = arith.constant 0 : index
    %12 = vector.load %arg5[%c0_10, %c0_11, %c0_12] : memref<1x32x1xf32, #tpu.memory_space<vmem>>, vector<1x32x1xf32>
    tpu.vector_store %arg5[%c0_10, %c0_11, %c0_12], %11 {strides = array<i32>} : memref<1x32x1xf32, #tpu.memory_space<vmem>>, vector<1x32x1xf32>,
    return
  }
  func.func @transform_0(%arg0: i32) -> (i32, i32) {
    %c0_i32 = arith.constant 0 : i32
    %c0_i32_0 = arith.constant 0 : i32
    %c0_i32_1 = arith.constant 0 : i32
    return %c0_i32, %c0_i32_0 : i32, i32
  }
  func.func @transform_1(%arg0: i32) -> (i32, i32) {
    %c0_i32 = arith.constant 0 : i32
    %c0_i32_0 = arith.constant 0 : i32
    return %c0_i32, %arg0 : i32, i32
  }
  func.func @transform_2(%arg0: i32) -> (i32, i32) {
    %c0_i32 = arith.constant 0 : i32
    %c0_i32_0 = arith.constant 0 : i32
    return %c0_i32, %arg0 : i32, i32
  }
  func.func @transform_3(%arg0: i32) -> (i32, i32, i32) {
    %c0_i32 = arith.constant 0 : i32
    %c0_i32_0 = arith.constant 0 : i32
    %c0_i32_1 = arith.constant 0 : i32
    return %arg0, %c0_i32, %c0_i32_0 : i32, i32, i32
  }
  func.func @transform_4(%arg0: i32) -> (i32, i32, i32) {
    %c0_i32 = arith.constant 0 : i32
    %c0_i32_0 = arith.constant 0 : i32
    %c0_i32_1 = arith.constant 0 : i32
    return %arg0, %c0_i32, %c0_i32_0 : i32, i32, i32
  }
}

module attributes {stable_mosaic.version = 11 : i64} {
  func.func @_bn_residual_kernel(%arg0: i32, %arg1: memref<32x128xf32, #tpu.memory_space<vmem>>, %arg2: memref<32x1xf32, #tpu.memory_space<vmem>>, %arg3: memref<32x1xf32, #tpu.memory_space<vmem>>, %arg4: memref<32x128xf32, #tpu.memory_space<vmem>>, %arg5: memref<32x128xf32, #tpu.memory_space<vmem>>) attributes {dimension_semantics = [#tpu.dimension_semantics<parallel>], iteration_bounds = array<i64: 1>, scalar_prefetch = 0 : i64, scratch_operands = 0 : i64, tpu.core_type = #tpu.core_type<tc>, window_params = [{transform_indices = @transform_0, window_bounds = array<i64: 32, 128>}, {pipeline_mode = #tpu.pipeline_mode<synchronous>, transform_indices = @transform_1, window_bounds = array<i64: 32, 1>}, {pipeline_mode = #tpu.pipeline_mode<synchronous>, transform_indices = @transform_2, window_bounds = array<i64: 32, 1>}, {transform_indices = @transform_3, window_bounds = array<i64: 32, 128>}, {transform_indices = @transform_4, window_bounds = array<i64: 32, 128>}]} {
    %c0 = arith.constant 0 : index
    %c0_0 = arith.constant 0 : index
    %0 = vector.load %arg1[%c0, %c0_0] : memref<32x128xf32, #tpu.memory_space<vmem>>, vector<32x128xf32>
    %c0_1 = arith.constant 0 : index
    %c0_2 = arith.constant 0 : index
    %1 = vector.load %arg2[%c0_1, %c0_2] : memref<32x1xf32, #tpu.memory_space<vmem>>, vector<32x1xf32>
    %2 = vector.broadcast %1 : vector<32x1xf32> to vector<32x128xf32>
    %3 = arith.mulf %0, %2 : vector<32x128xf32>
    %c0_3 = arith.constant 0 : index
    %c0_4 = arith.constant 0 : index
    %4 = vector.load %arg3[%c0_3, %c0_4] : memref<32x1xf32, #tpu.memory_space<vmem>>, vector<32x1xf32>
    %5 = vector.broadcast %4 : vector<32x1xf32> to vector<32x128xf32>
    %6 = arith.addf %3, %5 : vector<32x128xf32>
    %c0_5 = arith.constant 0 : index
    %c0_6 = arith.constant 0 : index
    %7 = vector.load %arg4[%c0_5, %c0_6] : memref<32x128xf32, #tpu.memory_space<vmem>>, vector<32x128xf32>
    %8 = arith.addf %6, %7 : vector<32x128xf32>
    %c0_7 = arith.constant 0 : index
    %c0_8 = arith.constant 0 : index
    %9 = vector.load %arg5[%c0_7, %c0_8] : memref<32x128xf32, #tpu.memory_space<vmem>>, vector<32x128xf32>
    tpu.vector_store %arg5[%c0_7, %c0_8], %8 {strides = array<i32>} : memref<32x128xf32, #tpu.memory_space<vmem>>, vector<32x128xf32>,
    return
  }
  func.func @transform_0(%arg0: i32) -> (i32, i32) {
    %c0_i32 = arith.constant 0 : i32
    %c0_i32_0 = arith.constant 0 : i32
    return %c0_i32, %arg0 : i32, i32
  }
  func.func @transform_1(%arg0: i32) -> (i32, i32) {
    %c0_i32 = arith.constant 0 : i32
    %c0_i32_0 = arith.constant 0 : i32
    %c0_i32_1 = arith.constant 0 : i32
    return %c0_i32, %c0_i32_0 : i32, i32
  }
  func.func @transform_2(%arg0: i32) -> (i32, i32) {
    %c0_i32 = arith.constant 0 : i32
    %c0_i32_0 = arith.constant 0 : i32
    %c0_i32_1 = arith.constant 0 : i32
    return %c0_i32, %c0_i32_0 : i32, i32
  }
  func.func @transform_3(%arg0: i32) -> (i32, i32) {
    %c0_i32 = arith.constant 0 : i32
    %c0_i32_0 = arith.constant 0 : i32
    return %c0_i32, %arg0 : i32, i32
  }
  func.func @transform_4(%arg0: i32) -> (i32, i32) {
    %c0_i32 = arith.constant 0 : i32
    %c0_i32_0 = arith.constant 0 : i32
    return %c0_i32, %arg0 : i32, i32
  }
}

module attributes {stable_mosaic.version = 11 : i64} {
  func.func @_conv_stats_kernel(%arg0: i32, %arg1: memref<64x128xbf16, #tpu.memory_space<vmem>>, %arg2: memref<128x128xbf16, #tpu.memory_space<vmem>>, %arg3: memref<64x128xf32, #tpu.memory_space<vmem>>, %arg4: memref<1x64x1xf32, #tpu.memory_space<vmem>>, %arg5: memref<1x64x1xf32, #tpu.memory_space<vmem>>) attributes {dimension_semantics = [#tpu.dimension_semantics<parallel>], iteration_bounds = array<i64: 1>, scalar_prefetch = 0 : i64, scratch_operands = 0 : i64, tpu.core_type = #tpu.core_type<tc>, window_params = [{pipeline_mode = #tpu.pipeline_mode<synchronous>, transform_indices = @transform_0, window_bounds = array<i64: 64, 128>}, {transform_indices = @transform_1, window_bounds = array<i64: 128, 128>}, {transform_indices = @transform_2, window_bounds = array<i64: 64, 128>}, {transform_indices = @transform_3, window_bounds = array<i64: 1, 64, 1>}, {transform_indices = @transform_4, window_bounds = array<i64: 1, 64, 1>}]} {
    %c0 = arith.constant 0 : index
    %c0_0 = arith.constant 0 : index
    %0 = vector.load %arg1[%c0, %c0_0] : memref<64x128xbf16, #tpu.memory_space<vmem>>, vector<64x128xbf16>
    %c0_1 = arith.constant 0 : index
    %c0_2 = arith.constant 0 : index
    %1 = vector.load %arg2[%c0_1, %c0_2] : memref<128x128xbf16, #tpu.memory_space<vmem>>, vector<128x128xbf16>
    %cst = arith.constant dense<0.000000e+00> : vector<64x128xf32>
    %2 = tpu.matmul %0, %1, %cst {dimension_numbers = #tpu.dot_dimension_numbers<[1], [0], [0], [1], [0, 0, 1, 1], [], []>} : vector<64x128xbf16>, vector<128x128xbf16>, vector<64x128xf32> -> vector<64x128xf32>
    %c0_3 = arith.constant 0 : index
    %c0_4 = arith.constant 0 : index
    %3 = vector.load %arg3[%c0_3, %c0_4] : memref<64x128xf32, #tpu.memory_space<vmem>>, vector<64x128xf32>
    tpu.vector_store %arg3[%c0_3, %c0_4], %2 {strides = array<i32>} : memref<64x128xf32, #tpu.memory_space<vmem>>, vector<64x128xf32>,
    %cst_5 = arith.constant dense<0.000000e+00> : vector<64xf32>
    %4 = vector.multi_reduction <add>, %2, %cst_5 [1] : vector<64x128xf32> to vector<64xf32>
    %5 = vector.shape_cast %4 : vector<64xf32> to vector<64x1xf32>
    %6 = vector.shape_cast %5 : vector<64x1xf32> to vector<1x64x1xf32>
    %c0_6 = arith.constant 0 : index
    %c0_7 = arith.constant 0 : index
    %c0_8 = arith.constant 0 : index
    %7 = vector.load %arg4[%c0_6, %c0_7, %c0_8] : memref<1x64x1xf32, #tpu.memory_space<vmem>>, vector<1x64x1xf32>
    tpu.vector_store %arg4[%c0_6, %c0_7, %c0_8], %6 {strides = array<i32>} : memref<1x64x1xf32, #tpu.memory_space<vmem>>, vector<1x64x1xf32>,
    %8 = arith.mulf %2, %2 : vector<64x128xf32>
    %cst_9 = arith.constant dense<0.000000e+00> : vector<64xf32>
    %9 = vector.multi_reduction <add>, %8, %cst_9 [1] : vector<64x128xf32> to vector<64xf32>
    %10 = vector.shape_cast %9 : vector<64xf32> to vector<64x1xf32>
    %11 = vector.shape_cast %10 : vector<64x1xf32> to vector<1x64x1xf32>
    %c0_10 = arith.constant 0 : index
    %c0_11 = arith.constant 0 : index
    %c0_12 = arith.constant 0 : index
    %12 = vector.load %arg5[%c0_10, %c0_11, %c0_12] : memref<1x64x1xf32, #tpu.memory_space<vmem>>, vector<1x64x1xf32>
    tpu.vector_store %arg5[%c0_10, %c0_11, %c0_12], %11 {strides = array<i32>} : memref<1x64x1xf32, #tpu.memory_space<vmem>>, vector<1x64x1xf32>,
    return
  }
  func.func @transform_0(%arg0: i32) -> (i32, i32) {
    %c0_i32 = arith.constant 0 : i32
    %c0_i32_0 = arith.constant 0 : i32
    %c0_i32_1 = arith.constant 0 : i32
    return %c0_i32, %c0_i32_0 : i32, i32
  }
  func.func @transform_1(%arg0: i32) -> (i32, i32) {
    %c0_i32 = arith.constant 0 : i32
    %c0_i32_0 = arith.constant 0 : i32
    return %c0_i32, %arg0 : i32, i32
  }
  func.func @transform_2(%arg0: i32) -> (i32, i32) {
    %c0_i32 = arith.constant 0 : i32
    %c0_i32_0 = arith.constant 0 : i32
    return %c0_i32, %arg0 : i32, i32
  }
  func.func @transform_3(%arg0: i32) -> (i32, i32, i32) {
    %c0_i32 = arith.constant 0 : i32
    %c0_i32_0 = arith.constant 0 : i32
    %c0_i32_1 = arith.constant 0 : i32
    return %arg0, %c0_i32, %c0_i32_0 : i32, i32, i32
  }
  func.func @transform_4(%arg0: i32) -> (i32, i32, i32) {
    %c0_i32 = arith.constant 0 : i32
    %c0_i32_0 = arith.constant 0 : i32
    %c0_i32_1 = arith.constant 0 : i32
    return %arg0, %c0_i32, %c0_i32_0 : i32, i32, i32
  }
}

module attributes {stable_mosaic.version = 11 : i64} {
  func.func @_bn_relu_kernel(%arg0: i32, %arg1: memref<64x128xf32, #tpu.memory_space<vmem>>, %arg2: memref<64x1xf32, #tpu.memory_space<vmem>>, %arg3: memref<64x1xf32, #tpu.memory_space<vmem>>, %arg4: memref<64x128xf32, #tpu.memory_space<vmem>>) attributes {dimension_semantics = [#tpu.dimension_semantics<parallel>], iteration_bounds = array<i64: 1>, scalar_prefetch = 0 : i64, scratch_operands = 0 : i64, tpu.core_type = #tpu.core_type<tc>, window_params = [{transform_indices = @transform_0, window_bounds = array<i64: 64, 128>}, {pipeline_mode = #tpu.pipeline_mode<synchronous>, transform_indices = @transform_1, window_bounds = array<i64: 64, 1>}, {pipeline_mode = #tpu.pipeline_mode<synchronous>, transform_indices = @transform_2, window_bounds = array<i64: 64, 1>}, {transform_indices = @transform_3, window_bounds = array<i64: 64, 128>}]} {
    %c0 = arith.constant 0 : index
    %c0_0 = arith.constant 0 : index
    %0 = vector.load %arg1[%c0, %c0_0] : memref<64x128xf32, #tpu.memory_space<vmem>>, vector<64x128xf32>
    %c0_1 = arith.constant 0 : index
    %c0_2 = arith.constant 0 : index
    %1 = vector.load %arg2[%c0_1, %c0_2] : memref<64x1xf32, #tpu.memory_space<vmem>>, vector<64x1xf32>
    %2 = vector.broadcast %1 : vector<64x1xf32> to vector<64x128xf32>
    %3 = arith.mulf %0, %2 : vector<64x128xf32>
    %c0_3 = arith.constant 0 : index
    %c0_4 = arith.constant 0 : index
    %4 = vector.load %arg3[%c0_3, %c0_4] : memref<64x1xf32, #tpu.memory_space<vmem>>, vector<64x1xf32>
    %5 = vector.broadcast %4 : vector<64x1xf32> to vector<64x128xf32>
    %6 = arith.addf %3, %5 : vector<64x128xf32>
    %cst = arith.constant 0.000000e+00 : f32
    %7 = vector.broadcast %cst : f32 to vector<64x128xf32>
    %8 = arith.maximumf %6, %7 : vector<64x128xf32>
    %c0_5 = arith.constant 0 : index
    %c0_6 = arith.constant 0 : index
    %9 = vector.load %arg4[%c0_5, %c0_6] : memref<64x128xf32, #tpu.memory_space<vmem>>, vector<64x128xf32>
    tpu.vector_store %arg4[%c0_5, %c0_6], %8 {strides = array<i32>} : memref<64x128xf32, #tpu.memory_space<vmem>>, vector<64x128xf32>,
    return
  }
  func.func @transform_0(%arg0: i32) -> (i32, i32) {
    %c0_i32 = arith.constant 0 : i32
    %c0_i32_0 = arith.constant 0 : i32
    return %c0_i32, %arg0 : i32, i32
  }
  func.func @transform_1(%arg0: i32) -> (i32, i32) {
    %c0_i32 = arith.constant 0 : i32
    %c0_i32_0 = arith.constant 0 : i32
    %c0_i32_1 = arith.constant 0 : i32
    return %c0_i32, %c0_i32_0 : i32, i32
  }
  func.func @transform_2(%arg0: i32) -> (i32, i32) {
    %c0_i32 = arith.constant 0 : i32
    %c0_i32_0 = arith.constant 0 : i32
    %c0_i32_1 = arith.constant 0 : i32
    return %c0_i32, %c0_i32_0 : i32, i32
  }
  func.func @transform_3(%arg0: i32) -> (i32, i32) {
    %c0_i32 = arith.constant 0 : i32
    %c0_i32_0 = arith.constant 0 : i32
    return %c0_i32, %arg0 : i32, i32
  }
}

module attributes {stable_mosaic.version = 11 : i64} {
  func.func @_conv_stats_kernel(%arg0: i32, %arg1: memref<32x128xbf16, #tpu.memory_space<vmem>>, %arg2: memref<128x256xbf16, #tpu.memory_space<vmem>>, %arg3: memref<32x256xf32, #tpu.memory_space<vmem>>, %arg4: memref<1x32x1xf32, #tpu.memory_space<vmem>>, %arg5: memref<1x32x1xf32, #tpu.memory_space<vmem>>) attributes {dimension_semantics = [#tpu.dimension_semantics<parallel>], iteration_bounds = array<i64: 2>, scalar_prefetch = 0 : i64, scratch_operands = 0 : i64, tpu.core_type = #tpu.core_type<tc>, window_params = [{pipeline_mode = #tpu.pipeline_mode<synchronous>, transform_indices = @transform_0, window_bounds = array<i64: 32, 128>}, {transform_indices = @transform_1, window_bounds = array<i64: 128, 256>}, {transform_indices = @transform_2, window_bounds = array<i64: 32, 256>}, {transform_indices = @transform_3, window_bounds = array<i64: 1, 32, 1>}, {transform_indices = @transform_4, window_bounds = array<i64: 1, 32, 1>}]} {
    %c0 = arith.constant 0 : index
    %c0_0 = arith.constant 0 : index
    %0 = vector.load %arg1[%c0, %c0_0] : memref<32x128xbf16, #tpu.memory_space<vmem>>, vector<32x128xbf16>
    %c0_1 = arith.constant 0 : index
    %c0_2 = arith.constant 0 : index
    %1 = vector.load %arg2[%c0_1, %c0_2] : memref<128x256xbf16, #tpu.memory_space<vmem>>, vector<128x256xbf16>
    %cst = arith.constant dense<0.000000e+00> : vector<32x256xf32>
    %2 = tpu.matmul %0, %1, %cst {dimension_numbers = #tpu.dot_dimension_numbers<[1], [0], [0], [1], [0, 0, 1, 1], [], []>} : vector<32x128xbf16>, vector<128x256xbf16>, vector<32x256xf32> -> vector<32x256xf32>
    %c0_3 = arith.constant 0 : index
    %c0_4 = arith.constant 0 : index
    %3 = vector.load %arg3[%c0_3, %c0_4] : memref<32x256xf32, #tpu.memory_space<vmem>>, vector<32x256xf32>
    tpu.vector_store %arg3[%c0_3, %c0_4], %2 {strides = array<i32>} : memref<32x256xf32, #tpu.memory_space<vmem>>, vector<32x256xf32>,
    %cst_5 = arith.constant dense<0.000000e+00> : vector<32xf32>
    %4 = vector.multi_reduction <add>, %2, %cst_5 [1] : vector<32x256xf32> to vector<32xf32>
    %5 = vector.shape_cast %4 : vector<32xf32> to vector<32x1xf32>
    %6 = vector.shape_cast %5 : vector<32x1xf32> to vector<1x32x1xf32>
    %c0_6 = arith.constant 0 : index
    %c0_7 = arith.constant 0 : index
    %c0_8 = arith.constant 0 : index
    %7 = vector.load %arg4[%c0_6, %c0_7, %c0_8] : memref<1x32x1xf32, #tpu.memory_space<vmem>>, vector<1x32x1xf32>
    tpu.vector_store %arg4[%c0_6, %c0_7, %c0_8], %6 {strides = array<i32>} : memref<1x32x1xf32, #tpu.memory_space<vmem>>, vector<1x32x1xf32>,
    %8 = arith.mulf %2, %2 : vector<32x256xf32>
    %cst_9 = arith.constant dense<0.000000e+00> : vector<32xf32>
    %9 = vector.multi_reduction <add>, %8, %cst_9 [1] : vector<32x256xf32> to vector<32xf32>
    %10 = vector.shape_cast %9 : vector<32xf32> to vector<32x1xf32>
    %11 = vector.shape_cast %10 : vector<32x1xf32> to vector<1x32x1xf32>
    %c0_10 = arith.constant 0 : index
    %c0_11 = arith.constant 0 : index
    %c0_12 = arith.constant 0 : index
    %12 = vector.load %arg5[%c0_10, %c0_11, %c0_12] : memref<1x32x1xf32, #tpu.memory_space<vmem>>, vector<1x32x1xf32>
    tpu.vector_store %arg5[%c0_10, %c0_11, %c0_12], %11 {strides = array<i32>} : memref<1x32x1xf32, #tpu.memory_space<vmem>>, vector<1x32x1xf32>,
    return
  }
  func.func @transform_0(%arg0: i32) -> (i32, i32) {
    %c0_i32 = arith.constant 0 : i32
    %c0_i32_0 = arith.constant 0 : i32
    %c0_i32_1 = arith.constant 0 : i32
    return %c0_i32, %c0_i32_0 : i32, i32
  }
  func.func @transform_1(%arg0: i32) -> (i32, i32) {
    %c0_i32 = arith.constant 0 : i32
    %c0_i32_0 = arith.constant 0 : i32
    return %c0_i32, %arg0 : i32, i32
  }
  func.func @transform_2(%arg0: i32) -> (i32, i32) {
    %c0_i32 = arith.constant 0 : i32
    %c0_i32_0 = arith.constant 0 : i32
    return %c0_i32, %arg0 : i32, i32
  }
  func.func @transform_3(%arg0: i32) -> (i32, i32, i32) {
    %c0_i32 = arith.constant 0 : i32
    %c0_i32_0 = arith.constant 0 : i32
    %c0_i32_1 = arith.constant 0 : i32
    return %arg0, %c0_i32, %c0_i32_0 : i32, i32, i32
  }
  func.func @transform_4(%arg0: i32) -> (i32, i32, i32) {
    %c0_i32 = arith.constant 0 : i32
    %c0_i32_0 = arith.constant 0 : i32
    %c0_i32_1 = arith.constant 0 : i32
    return %arg0, %c0_i32, %c0_i32_0 : i32, i32, i32
  }
}

module attributes {stable_mosaic.version = 11 : i64} {
  func.func @_bn_relu_kernel(%arg0: i32, %arg1: memref<32x256xf32, #tpu.memory_space<vmem>>, %arg2: memref<32x1xf32, #tpu.memory_space<vmem>>, %arg3: memref<32x1xf32, #tpu.memory_space<vmem>>, %arg4: memref<32x256xf32, #tpu.memory_space<vmem>>) attributes {dimension_semantics = [#tpu.dimension_semantics<parallel>], iteration_bounds = array<i64: 2>, scalar_prefetch = 0 : i64, scratch_operands = 0 : i64, tpu.core_type = #tpu.core_type<tc>, window_params = [{transform_indices = @transform_0, window_bounds = array<i64: 32, 256>}, {pipeline_mode = #tpu.pipeline_mode<synchronous>, transform_indices = @transform_1, window_bounds = array<i64: 32, 1>}, {pipeline_mode = #tpu.pipeline_mode<synchronous>, transform_indices = @transform_2, window_bounds = array<i64: 32, 1>}, {transform_indices = @transform_3, window_bounds = array<i64: 32, 256>}]} {
    %c0 = arith.constant 0 : index
    %c0_0 = arith.constant 0 : index
    %0 = vector.load %arg1[%c0, %c0_0] : memref<32x256xf32, #tpu.memory_space<vmem>>, vector<32x256xf32>
    %c0_1 = arith.constant 0 : index
    %c0_2 = arith.constant 0 : index
    %1 = vector.load %arg2[%c0_1, %c0_2] : memref<32x1xf32, #tpu.memory_space<vmem>>, vector<32x1xf32>
    %2 = vector.broadcast %1 : vector<32x1xf32> to vector<32x256xf32>
    %3 = arith.mulf %0, %2 : vector<32x256xf32>
    %c0_3 = arith.constant 0 : index
    %c0_4 = arith.constant 0 : index
    %4 = vector.load %arg3[%c0_3, %c0_4] : memref<32x1xf32, #tpu.memory_space<vmem>>, vector<32x1xf32>
    %5 = vector.broadcast %4 : vector<32x1xf32> to vector<32x256xf32>
    %6 = arith.addf %3, %5 : vector<32x256xf32>
    %cst = arith.constant 0.000000e+00 : f32
    %7 = vector.broadcast %cst : f32 to vector<32x256xf32>
    %8 = arith.maximumf %6, %7 : vector<32x256xf32>
    %c0_5 = arith.constant 0 : index
    %c0_6 = arith.constant 0 : index
    %9 = vector.load %arg4[%c0_5, %c0_6] : memref<32x256xf32, #tpu.memory_space<vmem>>, vector<32x256xf32>
    tpu.vector_store %arg4[%c0_5, %c0_6], %8 {strides = array<i32>} : memref<32x256xf32, #tpu.memory_space<vmem>>, vector<32x256xf32>,
    return
  }
  func.func @transform_0(%arg0: i32) -> (i32, i32) {
    %c0_i32 = arith.constant 0 : i32
    %c0_i32_0 = arith.constant 0 : i32
    return %c0_i32, %arg0 : i32, i32
  }
  func.func @transform_1(%arg0: i32) -> (i32, i32) {
    %c0_i32 = arith.constant 0 : i32
    %c0_i32_0 = arith.constant 0 : i32
    %c0_i32_1 = arith.constant 0 : i32
    return %c0_i32, %c0_i32_0 : i32, i32
  }
  func.func @transform_2(%arg0: i32) -> (i32, i32) {
    %c0_i32 = arith.constant 0 : i32
    %c0_i32_0 = arith.constant 0 : i32
    %c0_i32_1 = arith.constant 0 : i32
    return %c0_i32, %c0_i32_0 : i32, i32
  }
  func.func @transform_3(%arg0: i32) -> (i32, i32) {
    %c0_i32 = arith.constant 0 : i32
    %c0_i32_0 = arith.constant 0 : i32
    return %c0_i32, %arg0 : i32, i32
  }
}

module attributes {stable_mosaic.version = 11 : i64} {
  func.func @_conv_bias_tanh_kernel(%arg0: i32, %arg1: memref<3x512xbf16, #tpu.memory_space<vmem>>, %arg2: memref<512x512xbf16, #tpu.memory_space<vmem>>, %arg3: memref<3x1xf32, #tpu.memory_space<vmem>>, %arg4: memref<3x512xf32, #tpu.memory_space<vmem>>) attributes {dimension_semantics = [#tpu.dimension_semantics<parallel>], iteration_bounds = array<i64: 4>, scalar_prefetch = 0 : i64, scratch_operands = 0 : i64, tpu.core_type = #tpu.core_type<tc>, window_params = [{pipeline_mode = #tpu.pipeline_mode<synchronous>, transform_indices = @transform_0, window_bounds = array<i64: 3, 512>}, {transform_indices = @transform_1, window_bounds = array<i64: 512, 512>}, {pipeline_mode = #tpu.pipeline_mode<synchronous>, transform_indices = @transform_2, window_bounds = array<i64: 3, 1>}, {transform_indices = @transform_3, window_bounds = array<i64: 3, 512>}]} {
    %c0 = arith.constant 0 : index
    %c0_0 = arith.constant 0 : index
    %0 = vector.load %arg1[%c0, %c0_0] : memref<3x512xbf16, #tpu.memory_space<vmem>>, vector<3x512xbf16>
    %c0_1 = arith.constant 0 : index
    %c0_2 = arith.constant 0 : index
    %1 = vector.load %arg2[%c0_1, %c0_2] : memref<512x512xbf16, #tpu.memory_space<vmem>>, vector<512x512xbf16>
    %cst = arith.constant dense<0.000000e+00> : vector<3x512xf32>
    %2 = tpu.matmul %0, %1, %cst {dimension_numbers = #tpu.dot_dimension_numbers<[1], [0], [0], [1], [0, 0, 1, 1], [], []>} : vector<3x512xbf16>, vector<512x512xbf16>, vector<3x512xf32> -> vector<3x512xf32>
    %c0_3 = arith.constant 0 : index
    %c0_4 = arith.constant 0 : index
    %3 = vector.load %arg3[%c0_3, %c0_4] : memref<3x1xf32, #tpu.memory_space<vmem>>, vector<3x1xf32>
    %4 = vector.broadcast %3 : vector<3x1xf32> to vector<3x512xf32>
    %5 = arith.addf %2, %4 : vector<3x512xf32>
    %6 = math.tanh %5 : vector<3x512xf32>
    %c0_5 = arith.constant 0 : index
    %c0_6 = arith.constant 0 : index
    %7 = vector.load %arg4[%c0_5, %c0_6] : memref<3x512xf32, #tpu.memory_space<vmem>>, vector<3x512xf32>
    tpu.vector_store %arg4[%c0_5, %c0_6], %6 {strides = array<i32>} : memref<3x512xf32, #tpu.memory_space<vmem>>, vector<3x512xf32>,
    return
  }
  func.func @transform_0(%arg0: i32) -> (i32, i32) {
    %c0_i32 = arith.constant 0 : i32
    %c0_i32_0 = arith.constant 0 : i32
    %c0_i32_1 = arith.constant 0 : i32
    return %c0_i32, %c0_i32_0 : i32, i32
  }
  func.func @transform_1(%arg0: i32) -> (i32, i32) {
    %c0_i32 = arith.constant 0 : i32
    %c0_i32_0 = arith.constant 0 : i32
    return %c0_i32, %arg0 : i32, i32
  }
  func.func @transform_2(%arg0: i32) -> (i32, i32) {
    %c0_i32 = arith.constant 0 : i32
    %c0_i32_0 = arith.constant 0 : i32
    %c0_i32_1 = arith.constant 0 : i32
    return %c0_i32, %c0_i32_0 : i32, i32
  }
  func.func @transform_3(%arg0: i32) -> (i32, i32) {
    %c0_i32 = arith.constant 0 : i32
    %c0_i32_0 = arith.constant 0 : i32
    return %c0_i32, %arg0 : i32, i32
  }
}

</mosaic_0001>

<llo_original>
// kernel: _lambda_.20
$region0: #{_lambda_.20}
  #allocation0 [shape = 'u32[]', space=smem, size = 0x4, offset = 0x4, fixed_abs, tag = 'smem constant byte address 0x4 - core index']
  #allocation1 [shape = 'u32[144,128]{1,0:T(1,128)}', space=vmem, size = 0x12000, scoped, tag = 'internal scratch']
  %s0 = inlined_call_operand.vmem [shape: f32[8,2048], index: 0, kind: input, shape index: {}]
  %s1 = inlined_call_operand.vmem [shape: f32[8,1], index: 1, kind: input, shape index: {}]
  %s2 = inlined_call_operand.vmem [shape: f32[8,1], index: 2, kind: input, shape index: {}]
  %s3 = inlined_call_operand.vmem [shape: f32[8,2048], index: 3, kind: output, shape index: {}]
  %s4 = sld [smem:[#allocation0]]
  $region45: #{_lambda_.20} parent=0
    _
  %s6 = ssub.s32 1, %s4
  %s7 = scalar_select 0, %s6, %s4
  loop: start=0, step=1, limit=6
  $region2: #{_lambda_.20} parent=0 // loop_pre_header
    _
  $region3: #{_lambda_.20} parent=0 // loop_header
    %s9 = sphi 0, %s13
    %p10 = scmp.ge.s32.totalorder %s9, 6
    %s19 = sphi 0, %s21
    %s22 = sphi 0, %s19
    %s23 = sphi 0, %s22
    %s39 = sphi 0, %s23
    %s43 = sphi 0, %s43
    %s45 = sphi 0, %s43
    %s46 = sphi 0, %s45
    %s60 = sphi 0, %s46
    %s64 = sphi 0, %s64
    %s66 = sphi 0, %s64
    %s67 = sphi 0, %s66
    %s81 = sphi 0, %s67
    %s87 = sphi 0, %s89
    %s90 = sphi 0, %s87
    %s91 = sphi 0, %s90
    %s107 = sphi 0, %s91
  $region4: #{_lambda_.20} parent=0 // loop_header_branch
    %12 = sbr.rel (%p10) target = $region8
  $region5: #{_lambda_.20} parent=0 // loop_body
    %s14 = ssub.s32 %s9, 1
    %s15 = ssub.s32 %s9, 2
    %s16 = sadd.s32 %s9, 1
    %s17 = ssub.s32 %s9, %s16
    %p18 = scmp.eq.s32.totalorder %s17, 0
    %s20 = sadd.s32 %s19, 1
    %s21 = scalar_select %p18, %s19, %s20
    %p24 = pneg %p18
    %p25 = scmp.eq.s32.totalorder %s9, 3
    %p26 = por %p24, %p25
    %p27 = scmp.ne.s32.totalorder %s19, %s22
    %p28 = scmp.eq.s32.totalorder %s9, 0
    %p29 = por %p27, %p28
    %p30 = scmp.ne.s32.totalorder %s19, %s22
    %p31 = scmp.eq.s32.totalorder %s14, 3
    %p32 = por %p30, %p31
    %p33 = scmp.ne.s32.totalorder %s22, %s23
    %p34 = scmp.eq.s32.totalorder %s14, 0
    %p35 = por %p33, %p34
    %p36 = scmp.ne.s32.totalorder %s22, %s23
    %p37 = scmp.eq.s32.totalorder %s15, 3
    %p38 = por %p36, %p37
    %p40 = scmp.ne.s32.totalorder %s23, %s39
    %p41 = scmp.eq.s32.totalorder %s15, 0
    %p42 = por %p40, %p41
    %s44 = sadd.s32 %s43, 1
    %p47 = scmp.eq.s32.totalorder %s9, 3
    %p48 = scmp.ne.s32.totalorder %s43, %s45
    %p49 = scmp.eq.s32.totalorder %s9, 0
    %p50 = por %p48, %p49
    %p51 = scmp.ne.s32.totalorder %s43, %s45
    %p52 = scmp.eq.s32.totalorder %s14, 3
    %p53 = por %p51, %p52
    %p54 = scmp.ne.s32.totalorder %s45, %s46
    %p55 = scmp.eq.s32.totalorder %s14, 0
    %p56 = por %p54, %p55
    %p57 = scmp.ne.s32.totalorder %s45, %s46
    %p58 = scmp.eq.s32.totalorder %s15, 3
    %p59 = por %p57, %p58
    %p61 = scmp.ne.s32.totalorder %s46, %s60
    %p62 = scmp.eq.s32.totalorder %s15, 0
    %p63 = por %p61, %p62
    %s65 = sadd.s32 %s64, 1
    %p68 = scmp.eq.s32.totalorder %s9, 3
    %p69 = scmp.ne.s32.totalorder %s64, %s66
    %p70 = scmp.eq.s32.totalorder %s9, 0
    %p71 = por %p69, %p70
    %p72 = scmp.ne.s32.totalorder %s64, %s66
    %p73 = scmp.eq.s32.totalorder %s14, 3
    %p74 = por %p72, %p73
    %p75 = scmp.ne.s32.totalorder %s66, %s67
    %p76 = scmp.eq.s32.totalorder %s14, 0
    %p77 = por %p75, %p76
    %p78 = scmp.ne.s32.totalorder %s66, %s67
    %p79 = scmp.eq.s32.totalorder %s15, 3
    %p80 = por %p78, %p79
    %p82 = scmp.ne.s32.totalorder %s67, %s81
    %p83 = scmp.eq.s32.totalorder %s15, 0
    %p84 = por %p82, %p83
    %s85 = ssub.s32 %s9, %s16
    %p86 = scmp.eq.s32.totalorder %s85, 0
    %s88 = sadd.s32 %s87, 1
    %s89 = scalar_select %p86, %s87, %s88
    %p92 = pneg %p86
    %p93 = scmp.eq.s32.totalorder %s9, 3
    %p94 = por %p92, %p93
    %p95 = scmp.ne.s32.totalorder %s87, %s90
    %p96 = scmp.eq.s32.totalorder %s9, 0
    %p97 = por %p95, %p96
    %p98 = scmp.ne.s32.totalorder %s87, %s90
    %p99 = scmp.eq.s32.totalorder %s14, 3
    %p100 = por %p98, %p99
    %p101 = scmp.ne.s32.totalorder %s90, %s91
    %p102 = scmp.eq.s32.totalorder %s14, 0
    %p103 = por %p101, %p102
    %p104 = scmp.ne.s32.totalorder %s90, %s91
    %p105 = scmp.eq.s32.totalorder %s15, 3
    %p106 = por %p104, %p105
    %p108 = scmp.ne.s32.totalorder %s91, %s107
    %p109 = scmp.eq.s32.totalorder %s15, 0
    %p110 = por %p108, %p109
    %p111 = scmp.le.s32.totalorder 1, %s9
    %p112 = scmp.lt.s32.totalorder %s9, 5
    %p113 = pnand %p111, %p112
    %p114 = pneg %p113
    // Predicated region
    $region9: #{_lambda_.20} parent=5 // pred_check
      _
    $region10: #{_lambda_.20} parent=5 // pred_check_branch
      %116 = sbr.rel (%p113) target = $region12
    $region11: #{_lambda_.20} parent=5 // pred_region
      %s117 = ssub.s32 %s9, 1
      // Predicated region
      $region13: #{_lambda_.20} parent=11 // pred_check
        %p118 = pneg %p56
      $region14: #{_lambda_.20} parent=11 // pred_check_branch
        %120 = sbr.rel (%p118) target = $region16
      $region15: #{_lambda_.20} parent=11 // pred_region
        _
      $region16: #{_lambda_.20} parent=11 // pred_fallthru
        _
      // Predicated region
      $region17: #{_lambda_.20} parent=11 // pred_check
        %p121 = pneg %p77
      $region18: #{_lambda_.20} parent=11 // pred_check_branch
        %123 = sbr.rel (%p121) target = $region20
      $region19: #{_lambda_.20} parent=11 // pred_region
        _
      $region20: #{_lambda_.20} parent=11 // pred_fallthru
        _
    $region12: #{_lambda_.20} parent=5 // pred_fallthru
      _
    %p124 = scmp.lt.s32.totalorder %s9, 4
    // Predicated region
    $region21: #{_lambda_.20} parent=5 // pred_check
      %p125 = pneg %p124
    $region22: #{_lambda_.20} parent=5 // pred_check_branch
      %127 = sbr.rel (%p125) target = $region24
    $region23: #{_lambda_.20} parent=5 // pred_region
      // Predicated region
      $region25: #{_lambda_.20} parent=23 // pred_check
        %p128 = pneg %p29
      $region26: #{_lambda_.20} parent=23 // pred_check_branch
        %130 = sbr.rel (%p128) target = $region28
      $region27: #{_lambda_.20} parent=23 // pred_region
        %s131 = smul.u32 4, %s9
        %p132 = scmp.lt.s32.totalorder %s131, 15
        %s133 = scalar_select %p132, %s131, 15
        %s134 = smul.addr %s133, 8
        %s135 = scalar_lea.vmem %s0, %s134
        %s136 = smul.u32 4, %s9
      $region28: #{_lambda_.20} parent=23 // pred_fallthru
        _
    $region24: #{_lambda_.20} parent=5 // pred_fallthru
      _
    %p137 = scmp.le.s32.totalorder 1, %s9
    %p138 = scmp.lt.s32.totalorder %s9, 5
    %p139 = pnand %p137, %p138
    %p140 = pneg %p139
    // Predicated region
    $region29: #{_lambda_.20} parent=5 // pred_check
      _
    $region30: #{_lambda_.20} parent=5 // pred_check_branch
      %142 = sbr.rel (%p139) target = $region32
    $region31: #{_lambda_.20} parent=5 // pred_region
      %s143 = ssub.s32 %s9, 1
      %s144 = smul.u32 4, %s14
      %p145 = scmp.lt.s32.totalorder %s144, 15
      %s146 = scalar_select %p145, %s144, 15
      %s147 = smul.addr %s146, 8
      %s148 = scalar_lea.vmem %s0, %s147
      %p149 = pneg %p35
      %p150 = pneg %p32
      %p151 = pneg %p56
      %p152 = pneg %p53
      %p153 = pneg %p77
      %p154 = pneg %p74
      %p155 = pneg %p103
      %p156 = pneg %p100
      %s157 = smul.u32 4, %s14
      %p158 = scmp.lt.s32.totalorder %s157, 15
      %s159 = scalar_select %p158, %s157, 15
      %s160 = smul.addr %s159, 8
      %s161 = scalar_lea.vmem %s3, %s160
      %s162 = smul.u32 4, %s14
      %p163 = scmp.lt.s32.totalorder %s162, 15
      %s164 = scalar_select %p163, %s162, 15
      %s165 = smul.addr %s164, 8
      %s166 = scalar_lea.vmem %s0, %s165
      %s167 = smul.u32 4, %s14
      %s168 = smul.u32 4, %s14
      %p169 = scmp.lt.s32.totalorder %s168, 15
      %s170 = scalar_select %p169, %s168, 15
      %s171 = smul.addr %s170, 8
      %s172 = scalar_lea.vmem %s3, %s171
      %s173 = smul.u32 4, %s14
      %v174 = vld [vmem:[%s166] sm:$0xff]
      %v175 = vld [vmem:[%s166 + $0x8] sm:$0xff]
      %v176 = vld [vmem:[%s166 + $0x10] sm:$0xff]
      %v177 = vld [vmem:[%s166 + $0x18] sm:$0xff]
      %v178 = vld [vmem:[%s1] sm:$0xff]
      %180 = vset.pattern.permute.xlu0 0
      %181 = vperm.xlu0 %180, %v178
      %v182 = vpop.permute.xlu0 %181
      %v184 = vmul.f32 %v174, %v182
      %v185 = vmul.f32 %v175, %v182
      %v186 = vmul.f32 %v176, %v182
      %v187 = vmul.f32 %v177, %v182
      %v188 = vld [vmem:[%s2] sm:$0xff]
      %190 = vset.pattern.permute.xlu0 0
      %191 = vperm.xlu0 %190, %v188
      %v192 = vpop.permute.xlu0 %191
      %v194 = vadd.f32 %v184, %v192
      %v195 = vadd.f32 %v185, %v192
      %v196 = vadd.f32 %v186, %v192
      %v197 = vadd.f32 %v187, %v192
      %v198 = vmax.f32 %v194, 0.0
      %v199 = vmax.f32 %v195, 0.0
      %v200 = vmax.f32 %v196, 0.0
      %v201 = vmax.f32 %v197, 0.0
      %202 = vst [vmem:[%s172] sm:$0xff] %v198
      %203 = vst [vmem:[%s172 + $0x8] sm:$0xff] %v199
      %204 = vst [vmem:[%s172 + $0x10] sm:$0xff] %v200
      %205 = vst [vmem:[%s172 + $0x18] sm:$0xff] %v201
      %s206 = smul.u32 4, %s14
      %p207 = scmp.lt.s32.totalorder %s206, 15
      %s208 = scalar_select %p207, %s206, 15
      %s209 = smul.addr %s208, 8
      %s210 = scalar_lea.vmem %s3, %s209
      // Predicated region
      $region33: #{_lambda_.20} parent=31 // pred_check
        %p211 = pneg %p100
      $region34: #{_lambda_.20} parent=31 // pred_check_branch
        %213 = sbr.rel (%p211) target = $region36
      $region35: #{_lambda_.20} parent=31 // pred_region
        %s214 = smul.u32 4, %s14
      $region36: #{_lambda_.20} parent=31 // pred_fallthru
        _
    $region32: #{_lambda_.20} parent=5 // pred_fallthru
      _
    %p215 = scmp.le.s32.totalorder 2, %s9
    // Predicated region
    $region37: #{_lambda_.20} parent=5 // pred_check
      %p216 = pneg %p215
    $region38: #{_lambda_.20} parent=5 // pred_check_branch
      %218 = sbr.rel (%p216) target = $region40
    $region39: #{_lambda_.20} parent=5 // pred_region
      %s219 = ssub.s32 %s9, 2
      // Predicated region
      $region41: #{_lambda_.20} parent=39 // pred_check
        %p220 = pneg %p106
      $region42: #{_lambda_.20} parent=39 // pred_check_branch
        %222 = sbr.rel (%p220) target = $region44
      $region43: #{_lambda_.20} parent=39 // pred_region
        %s223 = smul.u32 4, %s15
        %p224 = scmp.lt.s32.totalorder %s223, 15
        %s225 = scalar_select %p224, %s223, 15
        %s226 = smul.addr %s225, 8
        %s227 = scalar_lea.vmem %s3, %s226
      $region44: #{_lambda_.20} parent=39 // pred_fallthru
        _
    $region40: #{_lambda_.20} parent=5 // pred_fallthru
      _
  $region6: #{_lambda_.20} parent=0 // loop_footer
    %s13 = sadd.s32 1, %s9
  $region7: #{_lambda_.20} parent=0 // loop_footer_branch
    %8 = sbr.rel target = $region3
  $region8: #{_lambda_.20} parent=0 // loop_exit
    _

// kernel: _lambda_.19
$region0: #{_lambda_.19}
  #allocation0 [shape = 'u32[]', space=smem, size = 0x4, offset = 0x4, fixed_abs, tag = 'smem constant byte address 0x4 - core index']
  #allocation1 [shape = 'u32[144,128]{1,0:T(1,128)}', space=vmem, size = 0x12000, scoped, tag = 'internal scratch']
  %s0 = inlined_call_operand.vmem [shape: bf16[8,256], index: 0, kind: input, shape index: {}]
  %s1 = inlined_call_operand.vmem [shape: bf16[256,2048], index: 1, kind: input, shape index: {}]
  %s2 = inlined_call_operand.vmem [shape: f32[8,2048], index: 2, kind: output, shape index: {0}]
  %s3 = inlined_call_operand.vmem [shape: f32[4,8,1], index: 3, kind: output, shape index: {1}]
  %s4 = inlined_call_operand.vmem [shape: f32[4,8,1], index: 4, kind: output, shape index: {2}]
  %5 = xla_tuple %s2, %s3, %s4
  %s6 = sld [smem:[#allocation0]]
  $region80: #{_lambda_.19} parent=0
    _
  %s8 = ssub.s32 1, %s6
  %s9 = scalar_select 0, %s8, %s6
  $region1: #{_lambda_.19} parent=0
    #allocation2 [shape = 'u8[524288]{0}', space=vmem, size = 0x80000, scoped, tag = 'input window, operand 1']
    loop: start=0, step=1, limit=6
    $region2: #{_lambda_.19} parent=1 // loop_pre_header
      _
    $region3: #{_lambda_.19} parent=1 // loop_header
      %s11 = sphi 0, %s15
      %p12 = scmp.ge.s32.totalorder %s11, 6
      %s19 = sphi 0, %s19
      %s21 = sphi 0, %s19
      %s22 = sphi 0, %s21
      %s36 = sphi 0, %s22
      %s42 = sphi 0, %s44
      %s45 = sphi 0, %s42
      %s46 = sphi 0, %s45
      %s62 = sphi 0, %s46
      %s68 = sphi 0, %s70
      %s71 = sphi 0, %s68
      %s72 = sphi 0, %s71
      %s88 = sphi 0, %s72
      %s94 = sphi 0, %s96
      %s97 = sphi 0, %s94
      %s98 = sphi 0, %s97
      %s114 = sphi 0, %s98
      %s120 = sphi 0, %s122
      %s123 = sphi 0, %s120
      %s124 = sphi 0, %s123
      %s140 = sphi 0, %s124
    $region4: #{_lambda_.19} parent=1 // loop_header_branch
      %14 = sbr.rel (%p12) target = $region8
    $region5: #{_lambda_.19} parent=1 // loop_body
      %s16 = ssub.s32 %s11, 1
      %s17 = ssub.s32 %s11, 2
      %s18 = sadd.s32 %s11, 1
      %s20 = sadd.s32 %s19, 1
      %p23 = scmp.eq.s32.totalorder %s11, 3
      %p24 = scmp.ne.s32.totalorder %s19, %s21
      %p25 = scmp.eq.s32.totalorder %s11, 0
      %p26 = por %p24, %p25
      %p27 = scmp.ne.s32.totalorder %s19, %s21
      %p28 = scmp.eq.s32.totalorder %s16, 3
      %p29 = por %p27, %p28
      %p30 = scmp.ne.s32.totalorder %s21, %s22
      %p31 = scmp.eq.s32.totalorder %s16, 0
      %p32 = por %p30, %p31
      %p33 = scmp.ne.s32.totalorder %s21, %s22
      %p34 = scmp.eq.s32.totalorder %s17, 3
      %p35 = por %p33, %p34
      %p37 = scmp.ne.s32.totalorder %s22, %s36
      %p38 = scmp.eq.s32.totalorder %s17, 0
      %p39 = por %p37, %p38
      %s40 = ssub.s32 %s11, %s18
      %p41 = scmp.eq.s32.totalorder %s40, 0
      %s43 = sadd.s32 %s42, 1
      %s44 = scalar_select %p41, %s42, %s43
      %p47 = pneg %p41
      %p48 = scmp.eq.s32.totalorder %s11, 3
      %p49 = por %p47, %p48
      %p50 = scmp.ne.s32.totalorder %s42, %s45
      %p51 = scmp.eq.s32.totalorder %s11, 0
      %p52 = por %p50, %p51
      %p53 = scmp.ne.s32.totalorder %s42, %s45
      %p54 = scmp.eq.s32.totalorder %s16, 3
      %p55 = por %p53, %p54
      %p56 = scmp.ne.s32.totalorder %s45, %s46
      %p57 = scmp.eq.s32.totalorder %s16, 0
      %p58 = por %p56, %p57
      %p59 = scmp.ne.s32.totalorder %s45, %s46
      %p60 = scmp.eq.s32.totalorder %s17, 3
      %p61 = por %p59, %p60
      %p63 = scmp.ne.s32.totalorder %s46, %s62
      %p64 = scmp.eq.s32.totalorder %s17, 0
      %p65 = por %p63, %p64
      %s66 = ssub.s32 %s11, %s18
      %p67 = scmp.eq.s32.totalorder %s66, 0
      %s69 = sadd.s32 %s68, 1
      %s70 = scalar_select %p67, %s68, %s69
      %p73 = pneg %p67
      %p74 = scmp.eq.s32.totalorder %s11, 3
      %p75 = por %p73, %p74
      %p76 = scmp.ne.s32.totalorder %s68, %s71
      %p77 = scmp.eq.s32.totalorder %s11, 0
      %p78 = por %p76, %p77
      %p79 = scmp.ne.s32.totalorder %s68, %s71
      %p80 = scmp.eq.s32.totalorder %s16, 3
      %p81 = por %p79, %p80
      %p82 = scmp.ne.s32.totalorder %s71, %s72
      %p83 = scmp.eq.s32.totalorder %s16, 0
      %p84 = por %p82, %p83
      %p85 = scmp.ne.s32.totalorder %s71, %s72
      %p86 = scmp.eq.s32.totalorder %s17, 3
      %p87 = por %p85, %p86
      %p89 = scmp.ne.s32.totalorder %s72, %s88
      %p90 = scmp.eq.s32.totalorder %s17, 0
      %p91 = por %p89, %p90
      %s92 = ssub.s32 %s11, %s18
      %p93 = scmp.eq.s32.totalorder %s92, 0
      %s95 = sadd.s32 %s94, 1
      %s96 = scalar_select %p93, %s94, %s95
      %p99 = pneg %p93
      %p100 = scmp.eq.s32.totalorder %s11, 3
      %p101 = por %p99, %p100
      %p102 = scmp.ne.s32.totalorder %s94, %s97
      %p103 = scmp.eq.s32.totalorder %s11, 0
      %p104 = por %p102, %p103
      %p105 = scmp.ne.s32.totalorder %s94, %s97
      %p106 = scmp.eq.s32.totalorder %s16, 3
      %p107 = por %p105, %p106
      %p108 = scmp.ne.s32.totalorder %s97, %s98
      %p109 = scmp.eq.s32.totalorder %s16, 0
      %p110 = por %p108, %p109
      %p111 = scmp.ne.s32.totalorder %s97, %s98
      %p112 = scmp.eq.s32.totalorder %s17, 3
      %p113 = por %p111, %p112
      %p115 = scmp.ne.s32.totalorder %s98, %s114
      %p116 = scmp.eq.s32.totalorder %s17, 0
      %p117 = por %p115, %p116
      %s118 = ssub.s32 %s11, %s18
      %p119 = scmp.eq.s32.totalorder %s118, 0
      %s121 = sadd.s32 %s120, 1
      %s122 = scalar_select %p119, %s120, %s121
      %p125 = pneg %p119
      %p126 = scmp.eq.s32.totalorder %s11, 3
      %p127 = por %p125, %p126
      %p128 = scmp.ne.s32.totalorder %s120, %s123
      %p129 = scmp.eq.s32.totalorder %s11, 0
      %p130 = por %p128, %p129
      %p131 = scmp.ne.s32.totalorder %s120, %s123
      %p132 = scmp.eq.s32.totalorder %s16, 3
      %p133 = por %p131, %p132
      %p134 = scmp.ne.s32.totalorder %s123, %s124
      %p135 = scmp.eq.s32.totalorder %s16, 0
      %p136 = por %p134, %p135
      %p137 = scmp.ne.s32.totalorder %s123, %s124
      %p138 = scmp.eq.s32.totalorder %s17, 3
      %p139 = por %p137, %p138
      %p141 = scmp.ne.s32.totalorder %s124, %s140
      %p142 = scmp.eq.s32.totalorder %s17, 0
      %p143 = por %p141, %p142
      %p144 = scmp.le.s32.totalorder 1, %s11
      %p145 = scmp.lt.s32.totalorder %s11, 5
      %p146 = pnand %p144, %p145
      %p147 = pneg %p146
      // Predicated region
      $region9: #{_lambda_.19} parent=5 // pred_check
        _
      $region10: #{_lambda_.19} parent=5 // pred_check_branch
        %149 = sbr.rel (%p146) target = $region12
      $region11: #{_lambda_.19} parent=5 // pred_region
        %s150 = ssub.s32 %s11, 1
        // Predicated region
        $region13: #{_lambda_.19} parent=11 // pred_check
          %p151 = pneg %p32
        $region14: #{_lambda_.19} parent=11 // pred_check_branch
          %153 = sbr.rel (%p151) target = $region16
        $region15: #{_lambda_.19} parent=11 // pred_region
          _
        $region16: #{_lambda_.19} parent=11 // pred_fallthru
          _
      $region12: #{_lambda_.19} parent=5 // pred_fallthru
        _
      %p154 = scmp.lt.s32.totalorder %s11, 4
      // Predicated region
      $region17: #{_lambda_.19} parent=5 // pred_check
        %p155 = pneg %p154
      $region18: #{_lambda_.19} parent=5 // pred_check_branch
        %157 = sbr.rel (%p155) target = $region20
      $region19: #{_lambda_.19} parent=5 // pred_region
        // Predicated region
        $region21: #{_lambda_.19} parent=19 // pred_check
          %p158 = pneg %p52
        $region22: #{_lambda_.19} parent=19 // pred_check_branch
          %160 = sbr.rel (%p158) target = $region24
        $region23: #{_lambda_.19} parent=19 // pred_region
          %s161 = sand.u32 %s42, 1
          %s162 = sand.u32 %s42, 1
          %s163 = smul.addr %s162, 512
          %s164 = scalar_lea.vmem [#allocation2], %s163
          %s165 = smul.u32 4, %s11
          %s166 = smul.addr %s165, 4
          %s167 = scalar_lea.vmem %s1, %s166
          // Predicated region
          $region25: #{_lambda_.19} parent=23 // pred_check
            _
          $region26: #{_lambda_.19} parent=23 // pred_check_branch
            %169 = sbr.rel (0) target = $region28
          $region27: #{_lambda_.19} parent=23 // pred_region
            // Predicated region
            $region29: #{_lambda_.19} parent=27 // pred_check
              _
            $region30: #{_lambda_.19} parent=27 // pred_check_branch
              %171 = sbr.rel (0) target = $region32
            $region31: #{_lambda_.19} parent=27 // pred_region
              loop: start=0, step=1, limit=1
              $region33: #{_lambda_.19} parent=31 // loop_pre_header
                _
              $region34: #{_lambda_.19} parent=31 // loop_header
                %s173 = sphi 0, %s177
                %p174 = scmp.ge.s32.totalorder %s173, 1
                %s178 = sphi %s167, %s167
                %s179 = sphi %s164, %s164
              $region35: #{_lambda_.19} parent=31 // loop_header_branch
                %176 = sbr.rel (%p174) target = $region39
              $region36: #{_lambda_.19} parent=31 // loop_body
                %v180 = vld [vmem:[%s178] sm:$0xff]
                %181 = vst [vmem:[%s179] sm:$0xff] %v180
                %v182 = vld [vmem:[%s178 + $0x8] sm:$0xff]
                %183 = vst [vmem:[%s179 + $0x8] sm:$0xff] %v182
                %v184 = vld [vmem:[%s178 + $0x40] sm:$0xff]
                %185 = vst [vmem:[%s179 + $0x10] sm:$0xff] %v184
                %v186 = vld [vmem:[%s178 + $0x48] sm:$0xff]
                %187 = vst [vmem:[%s179 + $0x18] sm:$0xff] %v186
                %v188 = vld [vmem:[%s178 + $0x80] sm:$0xff]
                %189 = vst [vmem:[%s179 + $0x20] sm:$0xff] %v188
                %v190 = vld [vmem:[%s178 + $0x88] sm:$0xff]
                %191 = vst [vmem:[%s179 + $0x28] sm:$0xff] %v190
                %v192 = vld [vmem:[%s178 + $0xc0] sm:$0xff]
                %193 = vst [vmem:[%s179 + $0x30] sm:$0xff] %v192
                %v194 = vld [vmem:[%s178 + $0xc8] sm:$0xff]
                %195 = vst [vmem:[%s179 + $0x38] sm:$0xff] %v194
                %v196 = vld [vmem:[%s178 + $0x100] sm:$0xff]
                %197 = vst [vmem:[%s179 + $0x40] sm:$0xff] %v196
                %v198 = vld [vmem:[%s178 + $0x108] sm:$0xff]
                %199 = vst [vmem:[%s179 + $0x48] sm:$0xff] %v198
                %v200 = vld [vmem:[%s178 + $0x140] sm:$0xff]
                %201 = vst [vmem:[%s179 + $0x50] sm:$0xff] %v200
                %v202 = vld [vmem:[%s178 + $0x148] sm:$0xff]
                %203 = vst [vmem:[%s179 + $0x58] sm:$0xff] %v202
                %v204 = vld [vmem:[%s178 + $0x180] sm:$0xff]
                %205 = vst [vmem:[%s179 + $0x60] sm:$0xff] %v204
                %v206 = vld [vmem:[%s178 + $0x188] sm:$0xff]
                %207 = vst [vmem:[%s179 + $0x68] sm:$0xff] %v206
                %v208 = vld [vmem:[%s178 + $0x1c0] sm:$0xff]
                %209 = vst [vmem:[%s179 + $0x70] sm:$0xff] %v208
                %v210 = vld [vmem:[%s178 + $0x1c8] sm:$0xff]
                %211 = vst [vmem:[%s179 + $0x78] sm:$0xff] %v210
                %v212 = vld [vmem:[%s178 + $0x200] sm:$0xff]
                %213 = vst [vmem:[%s179 + $0x80] sm:$0xff] %v212
                %v214 = vld [vmem:[%s178 + $0x208] sm:$0xff]
                %215 = vst [vmem:[%s179 + $0x88] sm:$0xff] %v214
                %v216 = vld [vmem:[%s178 + $0x240] sm:$0xff]
                %217 = vst [vmem:[%s179 + $0x90] sm:$0xff] %v216
                %v218 = vld [vmem:[%s178 + $0x248] sm:$0xff]
                %219 = vst [vmem:[%s179 + $0x98] sm:$0xff] %v218
                %v220 = vld [vmem:[%s178 + $0x280] sm:$0xff]
                %221 = vst [vmem:[%s179 + $0xa0] sm:$0xff] %v220
                %v222 = vld [vmem:[%s178 + $0x288] sm:$0xff]
                %223 = vst [vmem:[%s179 + $0xa8] sm:$0xff] %v222
                %v224 = vld [vmem:[%s178 + $0x2c0] sm:$0xff]
                %225 = vst [vmem:[%s179 + $0xb0] sm:$0xff] %v224
                %v226 = vld [vmem:[%s178 + $0x2c8] sm:$0xff]
                %227 = vst [vmem:[%s179 + $0xb8] sm:$0xff] %v226
                %v228 = vld [vmem:[%s178 + $0x300] sm:$0xff]
                %229 = vst [vmem:[%s179 + $0xc0] sm:$0xff] %v228
                %v230 = vld [vmem:[%s178 + $0x308] sm:$0xff]
                %231 = vst [vmem:[%s179 + $0xc8] sm:$0xff] %v230
                %v232 = vld [vmem:[%s178 + $0x340] sm:$0xff]
                %233 = vst [vmem:[%s179 + $0xd0] sm:$0xff] %v232
                %v234 = vld [vmem:[%s178 + $0x348] sm:$0xff]
                %235 = vst [vmem:[%s179 + $0xd8] sm:$0xff] %v234
                %v236 = vld [vmem:[%s178 + $0x380] sm:$0xff]
                %237 = vst [vmem:[%s179 + $0xe0] sm:$0xff] %v236
                %v238 = vld [vmem:[%s178 + $0x388] sm:$0xff]
                %239 = vst [vmem:[%s179 + $0xe8] sm:$0xff] %v238
                %v240 = vld [vmem:[%s178 + $0x3c0] sm:$0xff]
                %241 = vst [vmem:[%s179 + $0xf0] sm:$0xff] %v240
                %v242 = vld [vmem:[%s178 + $0x3c8] sm:$0xff]
                %243 = vst [vmem:[%s179 + $0xf8] sm:$0xff] %v242
                %v244 = vld [vmem:[%s178 + $0x400] sm:$0xff]
                %245 = vst [vmem:[%s179 + $0x100] sm:$0xff] %v244
                %v246 = vld [vmem:[%s178 + $0x408] sm:$0xff]
                %247 = vst [vmem:[%s179 + $0x108] sm:$0xff] %v246
                %v248 = vld [vmem:[%s178 + $0x440] sm:$0xff]
                %249 = vst [vmem:[%s179 + $0x110] sm:$0xff] %v248
                %v250 = vld [vmem:[%s178 + $0x448] sm:$0xff]
                %251 = vst [vmem:[%s179 + $0x118] sm:$0xff] %v250
                %v252 = vld [vmem:[%s178 + $0x480] sm:$0xff]
                %253 = vst [vmem:[%s179 + $0x120] sm:$0xff] %v252
                %v254 = vld [vmem:[%s178 + $0x488] sm:$0xff]
                %255 = vst [vmem:[%s179 + $0x128] sm:$0xff] %v254
                %v256 = vld [vmem:[%s178 + $0x4c0] sm:$0xff]
                %257 = vst [vmem:[%s179 + $0x130] sm:$0xff] %v256
                %v258 = vld [vmem:[%s178 + $0x4c8] sm:$0xff]
                %259 = vst [vmem:[%s179 + $0x138] sm:$0xff] %v258
                %v260 = vld [vmem:[%s178 + $0x500] sm:$0xff]
                %261 = vst [vmem:[%s179 + $0x140] sm:$0xff] %v260
                %v262 = vld [vmem:[%s178 + $0x508] sm:$0xff]
                %263 = vst [vmem:[%s179 + $0x148] sm:$0xff] %v262
                %v264 = vld [vmem:[%s178 + $0x540] sm:$0xff]
                %265 = vst [vmem:[%s179 + $0x150] sm:$0xff] %v264
                %v266 = vld [vmem:[%s178 + $0x548] sm:$0xff]
                %267 = vst [vmem:[%s179 + $0x158] sm:$0xff] %v266
                %v268 = vld [vmem:[%s178 + $0x580] sm:$0xff]
                %269 = vst [vmem:[%s179 + $0x160] sm:$0xff] %v268
                %v270 = vld [vmem:[%s178 + $0x588] sm:$0xff]
                %271 = vst [vmem:[%s179 + $0x168] sm:$0xff] %v270
                %v272 = vld [vmem:[%s178 + $0x5c0] sm:$0xff]
                %273 = vst [vmem:[%s179 + $0x170] sm:$0xff] %v272
                %v274 = vld [vmem:[%s178 + $0x5c8] sm:$0xff]
                %275 = vst [vmem:[%s179 + $0x178] sm:$0xff] %v274
                %v276 = vld [vmem:[%s178 + $0x600] sm:$0xff]
                %277 = vst [vmem:[%s179 + $0x180] sm:$0xff] %v276
                %v278 = vld [vmem:[%s178 + $0x608] sm:$0xff]
                %279 = vst [vmem:[%s179 + $0x188] sm:$0xff] %v278
                %v280 = vld [vmem:[%s178 + $0x640] sm:$0xff]
                %281 = vst [vmem:[%s179 + $0x190] sm:$0xff] %v280
                %v282 = vld [vmem:[%s178 + $0x648] sm:$0xff]
                %283 = vst [vmem:[%s179 + $0x198] sm:$0xff] %v282
                %v284 = vld [vmem:[%s178 + $0x680] sm:$0xff]
                %285 = vst [vmem:[%s179 + $0x1a0] sm:$0xff] %v284
                %v286 = vld [vmem:[%s178 + $0x688] sm:$0xff]
                %287 = vst [vmem:[%s179 + $0x1a8] sm:$0xff] %v286
                %v288 = vld [vmem:[%s178 + $0x6c0] sm:$0xff]
                %289 = vst [vmem:[%s179 + $0x1b0] sm:$0xff] %v288
                %v290 = vld [vmem:[%s178 + $0x6c8] sm:$0xff]
                %291 = vst [vmem:[%s179 + $0x1b8] sm:$0xff] %v290
                %v292 = vld [vmem:[%s178 + $0x700] sm:$0xff]
                %293 = vst [vmem:[%s179 + $0x1c0] sm:$0xff] %v292
                %v294 = vld [vmem:[%s178 + $0x708] sm:$0xff]
                %295 = vst [vmem:[%s179 + $0x1c8] sm:$0xff] %v294
                %v296 = vld [vmem:[%s178 + $0x740] sm:$0xff]
                %297 = vst [vmem:[%s179 + $0x1d0] sm:$0xff] %v296
                %v298 = vld [vmem:[%s178 + $0x748] sm:$0xff]
                %299 = vst [vmem:[%s179 + $0x1d8] sm:$0xff] %v298
                %v300 = vld [vmem:[%s178 + $0x780] sm:$0xff]
                %301 = vst [vmem:[%s179 + $0x1e0] sm:$0xff] %v300
                %v302 = vld [vmem:[%s178 + $0x788] sm:$0xff]
                %303 = vst [vmem:[%s179 + $0x1e8] sm:$0xff] %v302
                %v304 = vld [vmem:[%s178 + $0x7c0] sm:$0xff]
                %305 = vst [vmem:[%s179 + $0x1f0] sm:$0xff] %v304
                %v306 = vld [vmem:[%s178 + $0x7c8] sm:$0xff]
                %307 = vst [vmem:[%s179 + $0x1f8] sm:$0xff] %v306
              $region37: #{_lambda_.19} parent=31 // loop_footer
                %s177 = sadd.s32 1, %s173
              $region38: #{_lambda_.19} parent=31 // loop_footer_branch
                %172 = sbr.rel target = $region34
              $region39: #{_lambda_.19} parent=31 // loop_exit
                _
            $region32: #{_lambda_.19} parent=27 // pred_fallthru
              _
            // Predicated region
            $region40: #{_lambda_.19} parent=27 // pred_check
              _
            $region41: #{_lambda_.19} parent=27 // pred_check_branch
              %309 = sbr.rel target = $region43
            $region42: #{_lambda_.19} parent=27 // pred_region
              _
            $region43: #{_lambda_.19} parent=27 // pred_fallthru
              _
          $region28: #{_lambda_.19} parent=23 // pred_fallthru
            _
          %310 = vnop
        $region24: #{_lambda_.19} parent=19 // pred_fallthru
          _
      $region20: #{_lambda_.19} parent=5 // pred_fallthru
        _
      %p311 = scmp.le.s32.totalorder 1, %s11
      %p312 = scmp.lt.s32.totalorder %s11, 5
      %p313 = pnand %p311, %p312
      %p314 = pneg %p313
      // Predicated region
      $region44: #{_lambda_.19} parent=5 // pred_check
        _
      $region45: #{_lambda_.19} parent=5 // pred_check_branch
        %316 = sbr.rel (%p313) target = $region47
      $region46: #{_lambda_.19} parent=5 // pred_region
        %s317 = ssub.s32 %s11, 1
        %s318 = sand.u32 %s45, 1
        %s319 = sand.u32 %s45, 1
        %s320 = smul.addr %s319, 512
        %s321 = scalar_lea.vmem [#allocation2], %s320
        // Predicated region
        $region48: #{_lambda_.19} parent=46 // pred_check
          %p322 = pneg %p58
        $region49: #{_lambda_.19} parent=46 // pred_check_branch
          %324 = sbr.rel (%p322) target = $region51
        $region50: #{_lambda_.19} parent=46 // pred_region
          _
        $region51: #{_lambda_.19} parent=46 // pred_fallthru
          _
        %p325 = pneg %p32
        %p326 = pneg %p29
        %s327 = sand.u32 %s45, 1
        %s328 = sand.u32 %s45, 1
        %s329 = smul.addr %s328, 512
        %s330 = scalar_lea.vmem [#allocation2], %s329
        %p331 = pneg %p58
        %p332 = pneg %p55
        %p333 = pneg %p84
        %p334 = pneg %p81
        %s335 = smul.u32 4, %s16
        %p336 = scmp.lt.s32.totalorder %s335, 15
        %s337 = scalar_select %p336, %s335, 15
        %s338 = smul.addr %s337, 8
        %s339 = scalar_lea.vmem %s2, %s338
        %p340 = pneg %p110
        %p341 = pneg %p107
        %p342 = scmp.lt.s32.totalorder %s16, 3
        %s343 = scalar_select %p342, %s16, 3
        %s344 = smul.addr %s343, 8
        %s345 = scalar_lea.vmem %s3, %s344
        %p346 = pneg %p136
        %p347 = pneg %p133
        %p348 = scmp.lt.s32.totalorder %s16, 3
        %s349 = scalar_select %p348, %s16, 3
        %s350 = smul.addr %s349, 8
        %s351 = scalar_lea.vmem %s4, %s350
        %s352 = smul.u32 4, %s16
        %s353 = smul.u32 4, %s16
        %p354 = scmp.lt.s32.totalorder %s353, 15
        %s355 = scalar_select %p354, %s353, 15
        %s356 = smul.addr %s355, 8
        %s357 = scalar_lea.vmem %s2, %s356
        %s358 = smul.u32 4, %s16
        %p359 = scmp.lt.s32.totalorder %s16, 3
        %s360 = scalar_select %p359, %s16, 3
        %s361 = smul.addr %s360, 8
        %s362 = scalar_lea.vmem %s3, %s361
        %p363 = scmp.lt.s32.totalorder %s16, 3
        %s364 = scalar_select %p363, %s16, 3
        %s365 = smul.addr %s364, 8
        %s366 = scalar_lea.vmem %s4, %s365
        %v367 = vld [vmem:[%s0] sm:$0xff]
        %v368 = vld [vmem:[%s321] sm:$0xff]
        %v369 = vld [vmem:[%s321 + $0x8] sm:$0xff]
        %v370 = vld [vmem:[%s321 + $0x10] sm:$0xff]
        %v371 = vld [vmem:[%s321 + $0x18] sm:$0xff]
        %v372 = vld [vmem:[%s321 + $0x20] sm:$0xff]
        %v373 = vld [vmem:[%s321 + $0x28] sm:$0xff]
        %v374 = vld [vmem:[%s321 + $0x30] sm:$0xff]
        %v375 = vld [vmem:[%s321 + $0x38] sm:$0xff]
        %v376 = vld [vmem:[%s321 + $0x40] sm:$0xff]
        %v377 = vld [vmem:[%s321 + $0x48] sm:$0xff]
        %v378 = vld [vmem:[%s321 + $0x50] sm:$0xff]
        %v379 = vld [vmem:[%s321 + $0x58] sm:$0xff]
        %v380 = vld [vmem:[%s321 + $0x60] sm:$0xff]
        %v381 = vld [vmem:[%s321 + $0x68] sm:$0xff]
        %v382 = vld [vmem:[%s321 + $0x70] sm:$0xff]
        %v383 = vld [vmem:[%s321 + $0x78] sm:$0xff]
        %v384 = vld [vmem:[%s321 + $0x80] sm:$0xff]
        %v385 = vld [vmem:[%s321 + $0x88] sm:$0xff]
        %v386 = vld [vmem:[%s321 + $0x90] sm:$0xff]
        %v387 = vld [vmem:[%s321 + $0x98] sm:$0xff]
        %v388 = vld [vmem:[%s321 + $0xa0] sm:$0xff]
        %v389 = vld [vmem:[%s321 + $0xa8] sm:$0xff]
        %v390 = vld [vmem:[%s321 + $0xb0] sm:$0xff]
        %v391 = vld [vmem:[%s321 + $0xb8] sm:$0xff]
        %v392 = vld [vmem:[%s321 + $0xc0] sm:$0xff]
        %v393 = vld [vmem:[%s321 + $0xc8] sm:$0xff]
        %v394 = vld [vmem:[%s321 + $0xd0] sm:$0xff]
        %v395 = vld [vmem:[%s321 + $0xd8] sm:$0xff]
        %v396 = vld [vmem:[%s321 + $0xe0] sm:$0xff]
        %v397 = vld [vmem:[%s321 + $0xe8] sm:$0xff]
        %v398 = vld [vmem:[%s321 + $0xf0] sm:$0xff]
        %v399 = vld [vmem:[%s321 + $0xf8] sm:$0xff]
        %v400 = vld [vmem:[%s321 + $0x100] sm:$0xff]
        %v401 = vld [vmem:[%s321 + $0x108] sm:$0xff]
        %v402 = vld [vmem:[%s321 + $0x110] sm:$0xff]
        %v403 = vld [vmem:[%s321 + $0x118] sm:$0xff]
        %v404 = vld [vmem:[%s321 + $0x120] sm:$0xff]
        %v405 = vld [vmem:[%s321 + $0x128] sm:$0xff]
        %v406 = vld [vmem:[%s321 + $0x130] sm:$0xff]
        %v407 = vld [vmem:[%s321 + $0x138] sm:$0xff]
        %v408 = vld [vmem:[%s321 + $0x140] sm:$0xff]
        %v409 = vld [vmem:[%s321 + $0x148] sm:$0xff]
        %v410 = vld [vmem:[%s321 + $0x150] sm:$0xff]
        %v411 = vld [vmem:[%s321 + $0x158] sm:$0xff]
        %v412 = vld [vmem:[%s321 + $0x160] sm:$0xff]
        %v413 = vld [vmem:[%s321 + $0x168] sm:$0xff]
        %v414 = vld [vmem:[%s321 + $0x170] sm:$0xff]
        %v415 = vld [vmem:[%s321 + $0x178] sm:$0xff]
        %v416 = vld [vmem:[%s321 + $0x180] sm:$0xff]
        %v417 = vld [vmem:[%s321 + $0x188] sm:$0xff]
        %v418 = vld [vmem:[%s321 + $0x190] sm:$0xff]
        %v419 = vld [vmem:[%s321 + $0x198] sm:$0xff]
        %v420 = vld [vmem:[%s321 + $0x1a0] sm:$0xff]
        %v421 = vld [vmem:[%s321 + $0x1a8] sm:$0xff]
        %v422 = vld [vmem:[%s321 + $0x1b0] sm:$0xff]
        %v423 = vld [vmem:[%s321 + $0x1b8] sm:$0xff]
        %v424 = vld [vmem:[%s321 + $0x1c0] sm:$0xff]
        %v425 = vld [vmem:[%s321 + $0x1c8] sm:$0xff]
        %v426 = vld [vmem:[%s321 + $0x1d0] sm:$0xff]
        %v427 = vld [vmem:[%s321 + $0x1d8] sm:$0xff]
        %v428 = vld [vmem:[%s321 + $0x1e0] sm:$0xff]
        %v429 = vld [vmem:[%s321 + $0x1e8] sm:$0xff]
        %v430 = vld [vmem:[%s321 + $0x1f0] sm:$0xff]
        %v431 = vld [vmem:[%s321 + $0x1f8] sm:$0xff]
        %v433 = vunpack.c.l.b16 %v367
        %v434 = vunpack.c.h.b16 %v367
        %v435 = vpack.c.b16 %v433, %v433
        %v436 = vpack.c.b16 %v434, %v434
        %v503 = vunpack.c.l.b16 %v368
        %v504 = vunpack.c.h.b16 %v368
        %v505 = vunpack.c.l.b16 %v369
        %v506 = vunpack.c.h.b16 %v369
        %v507 = vunpack.c.l.b16 %v370
        %v508 = vunpack.c.h.b16 %v370
        %v509 = vunpack.c.l.b16 %v371
        %v510 = vunpack.c.h.b16 %v371
        %v511 = vunpack.c.l.b16 %v372
        %v512 = vunpack.c.h.b16 %v372
        %v513 = vunpack.c.l.b16 %v373
        %v514 = vunpack.c.h.b16 %v373
        %v515 = vunpack.c.l.b16 %v374
        %v516 = vunpack.c.h.b16 %v374
        %v517 = vunpack.c.l.b16 %v375
        %v518 = vunpack.c.h.b16 %v375
        %v519 = vunpack.c.l.b16 %v376
        %v520 = vunpack.c.h.b16 %v376
        %v521 = vunpack.c.l.b16 %v377
        %v522 = vunpack.c.h.b16 %v377
        %v523 = vunpack.c.l.b16 %v378
        %v524 = vunpack.c.h.b16 %v378
        %v525 = vunpack.c.l.b16 %v379
        %v526 = vunpack.c.h.b16 %v379
        %v527 = vunpack.c.l.b16 %v380
        %v528 = vunpack.c.h.b16 %v380
        %v529 = vunpack.c.l.b16 %v381
        %v530 = vunpack.c.h.b16 %v381
        %v531 = vunpack.c.l.b16 %v382
        %v532 = vunpack.c.h.b16 %v382
        %v533 = vunpack.c.l.b16 %v383
        %v534 = vunpack.c.h.b16 %v383
        %v535 = vunpack.c.l.b16 %v384
        %v536 = vunpack.c.h.b16 %v384
        %v537 = vunpack.c.l.b16 %v385
        %v538 = vunpack.c.h.b16 %v385
        %v539 = vunpack.c.l.b16 %v386
        %v540 = vunpack.c.h.b16 %v386
        %v541 = vunpack.c.l.b16 %v387
        %v542 = vunpack.c.h.b16 %v387
        %v543 = vunpack.c.l.b16 %v388
        %v544 = vunpack.c.h.b16 %v388
        %v545 = vunpack.c.l.b16 %v389
        %v546 = vunpack.c.h.b16 %v389
        %v547 = vunpack.c.l.b16 %v390
        %v548 = vunpack.c.h.b16 %v390
        %v549 = vunpack.c.l.b16 %v391
        %v550 = vunpack.c.h.b16 %v391
        %v551 = vunpack.c.l.b16 %v392
        %v552 = vunpack.c.h.b16 %v392
        %v553 = vunpack.c.l.b16 %v393
        %v554 = vunpack.c.h.b16 %v393
        %v555 = vunpack.c.l.b16 %v394
        %v556 = vunpack.c.h.b16 %v394
        %v557 = vunpack.c.l.b16 %v395
        %v558 = vunpack.c.h.b16 %v395
        %v559 = vunpack.c.l.b16 %v396
        %v560 = vunpack.c.h.b16 %v396
        %v561 = vunpack.c.l.b16 %v397
        %v562 = vunpack.c.h.b16 %v397
        %v563 = vunpack.c.l.b16 %v398
        %v564 = vunpack.c.h.b16 %v398
        %v565 = vunpack.c.l.b16 %v399
        %v566 = vunpack.c.h.b16 %v399
        %v567 = vunpack.c.l.b16 %v400
        %v568 = vunpack.c.h.b16 %v400
        %v569 = vunpack.c.l.b16 %v401
        %v570 = vunpack.c.h.b16 %v401
        %v571 = vunpack.c.l.b16 %v402
        %v572 = vunpack.c.h.b16 %v402
        %v573 = vunpack.c.l.b16 %v403
        %v574 = vunpack.c.h.b16 %v403
        %v575 = vunpack.c.l.b16 %v404
        %v576 = vunpack.c.h.b16 %v404
        %v577 = vunpack.c.l.b16 %v405
        %v578 = vunpack.c.h.b16 %v405
        %v579 = vunpack.c.l.b16 %v406
        %v580 = vunpack.c.h.b16 %v406
        %v581 = vunpack.c.l.b16 %v407
        %v582 = vunpack.c.h.b16 %v407
        %v583 = vunpack.c.l.b16 %v408
        %v584 = vunpack.c.h.b16 %v408
        %v585 = vunpack.c.l.b16 %v409
        %v586 = vunpack.c.h.b16 %v409
        %v587 = vunpack.c.l.b16 %v410
        %v588 = vunpack.c.h.b16 %v410
        %v589 = vunpack.c.l.b16 %v411
        %v590 = vunpack.c.h.b16 %v411
        %v591 = vunpack.c.l.b16 %v412
        %v592 = vunpack.c.h.b16 %v412
        %v593 = vunpack.c.l.b16 %v413
        %v594 = vunpack.c.h.b16 %v413
        %v595 = vunpack.c.l.b16 %v414
        %v596 = vunpack.c.h.b16 %v414
        %v597 = vunpack.c.l.b16 %v415
        %v598 = vunpack.c.h.b16 %v415
        %v599 = vunpack.c.l.b16 %v416
        %v600 = vunpack.c.h.b16 %v416
        %v601 = vunpack.c.l.b16 %v417
        %v602 = vunpack.c.h.b16 %v417
        %v603 = vunpack.c.l.b16 %v418
        %v604 = vunpack.c.h.b16 %v418
        %v605 = vunpack.c.l.b16 %v419
        %v606 = vunpack.c.h.b16 %v419
        %v607 = vunpack.c.l.b16 %v420
        %v608 = vunpack.c.h.b16 %v420
        %v609 = vunpack.c.l.b16 %v421
        %v610 = vunpack.c.h.b16 %v421
        %v611 = vunpack.c.l.b16 %v422
        %v612 = vunpack.c.h.b16 %v422
        %v613 = vunpack.c.l.b16 %v423
        %v614 = vunpack.c.h.b16 %v423
        %v615 = vunpack.c.l.b16 %v424
        %v616 = vunpack.c.h.b16 %v424
        %v617 = vunpack.c.l.b16 %v425
        %v618 = vunpack.c.h.b16 %v425
        %v619 = vunpack.c.l.b16 %v426
        %v620 = vunpack.c.h.b16 %v426
        %v621 = vunpack.c.l.b16 %v427
        %v622 = vunpack.c.h.b16 %v427
        %v623 = vunpack.c.l.b16 %v428
        %v624 = vunpack.c.h.b16 %v428
        %v625 = vunpack.c.l.b16 %v429
        %v626 = vunpack.c.h.b16 %v429
        %v627 = vunpack.c.l.b16 %v430
        %v628 = vunpack.c.h.b16 %v430
        %v629 = vunpack.c.l.b16 %v431
        %v630 = vunpack.c.h.b16 %v431
        %v631 = vpack.c.b16 %v507, %v503
        %v632 = vpack.c.b16 %v508, %v504
        %v633 = vpack.c.b16 %v509, %v505
        %v634 = vpack.c.b16 %v510, %v506
        %v635 = vpack.c.b16 %v515, %v511
        %v636 = vpack.c.b16 %v516, %v512
        %v637 = vpack.c.b16 %v517, %v513
        %v638 = vpack.c.b16 %v518, %v514
        %v639 = vpack.c.b16 %v523, %v519
        %v640 = vpack.c.b16 %v524, %v520
        %v641 = vpack.c.b16 %v525, %v521
        %v642 = vpack.c.b16 %v526, %v522
        %v643 = vpack.c.b16 %v531, %v527
        %v644 = vpack.c.b16 %v532, %v528
        %v645 = vpack.c.b16 %v533, %v529
        %v646 = vpack.c.b16 %v534, %v530
        %v647 = vpack.c.b16 %v539, %v535
        %v648 = vpack.c.b16 %v540, %v536
        %v649 = vpack.c.b16 %v541, %v537
        %v650 = vpack.c.b16 %v542, %v538
        %v651 = vpack.c.b16 %v547, %v543
        %v652 = vpack.c.b16 %v548, %v544
        %v653 = vpack.c.b16 %v549, %v545
        %v654 = vpack.c.b16 %v550, %v546
        %v655 = vpack.c.b16 %v555, %v551
        %v656 = vpack.c.b16 %v556, %v552
        %v657 = vpack.c.b16 %v557, %v553
        %v658 = vpack.c.b16 %v558, %v554
        %v659 = vpack.c.b16 %v563, %v559
        %v660 = vpack.c.b16 %v564, %v560
        %v661 = vpack.c.b16 %v565, %v561
        %v662 = vpack.c.b16 %v566, %v562
        %v663 = vpack.c.b16 %v571, %v567
        %v664 = vpack.c.b16 %v572, %v568
        %v665 = vpack.c.b16 %v573, %v569
        %v666 = vpack.c.b16 %v574, %v570
        %v667 = vpack.c.b16 %v579, %v575
        %v668 = vpack.c.b16 %v580, %v576
        %v669 = vpack.c.b16 %v581, %v577
        %v670 = vpack.c.b16 %v582, %v578
        %v671 = vpack.c.b16 %v587, %v583
        %v672 = vpack.c.b16 %v588, %v584
        %v673 = vpack.c.b16 %v589, %v585
        %v674 = vpack.c.b16 %v590, %v586
        %v675 = vpack.c.b16 %v595, %v591
        %v676 = vpack.c.b16 %v596, %v592
        %v677 = vpack.c.b16 %v597, %v593
        %v678 = vpack.c.b16 %v598, %v594
        %v679 = vpack.c.b16 %v603, %v599
        %v680 = vpack.c.b16 %v604, %v600
        %v681 = vpack.c.b16 %v605, %v601
        %v682 = vpack.c.b16 %v606, %v602
        %v683 = vpack.c.b16 %v611, %v607
        %v684 = vpack.c.b16 %v612, %v608
        %v685 = vpack.c.b16 %v613, %v609
        %v686 = vpack.c.b16 %v614, %v610
        %v687 = vpack.c.b16 %v619, %v615
        %v688 = vpack.c.b16 %v620, %v616
        %v689 = vpack.c.b16 %v621, %v617
        %v690 = vpack.c.b16 %v622, %v618
        %v691 = vpack.c.b16 %v627, %v623
        %v692 = vpack.c.b16 %v628, %v624
        %v693 = vpack.c.b16 %v629, %v625
        %v694 = vpack.c.b16 %v630, %v626
        %759 = vmatprep.subr.bf16.mxu0 %v632
        %760 = vmatpush1.bf16.msra.mxu0 %v631
        %761 = vmatprep.subr.bf16.mxu0 %v636
        %762 = vmatpush1.bf16.msra.mxu0 %v635
        %763 = vmatprep.subr.bf16.mxu0 %v640
        %764 = vmatpush1.bf16.msra.mxu0 %v639
        %765 = vmatprep.subr.bf16.mxu0 %v644
        %766 = vmatpush1.bf16.msra.mxu0 %v643
        %767 = vmatprep.subr.bf16.mxu0 %v648
        %768 = vmatpush1.bf16.msra.mxu0 %v647
        %769 = vmatprep.subr.bf16.mxu0 %v652
        %770 = vmatpush1.bf16.msra.mxu0 %v651
        %771 = vmatprep.subr.bf16.mxu0 %v656
        %772 = vmatpush1.bf16.msra.mxu0 %v655
        %773 = vmatprep.subr.bf16.mxu0 %v660
        %774 = vmatpush1.bf16.msra.mxu0 %v659
        %775 = vmatprep.subr.bf16.mxu0 %v664
        %776 = vmatpush1.bf16.msra.mxu0 %v663
        %777 = vmatprep.subr.bf16.mxu0 %v668
        %778 = vmatpush1.bf16.msra.mxu0 %v667
        %779 = vmatprep.subr.bf16.mxu0 %v672
        %780 = vmatpush1.bf16.msra.mxu0 %v671
        %781 = vmatprep.subr.bf16.mxu0 %v676
        %782 = vmatpush1.bf16.msra.mxu0 %v675
        %783 = vmatprep.subr.bf16.mxu0 %v680
        %784 = vmatpush1.bf16.msra.mxu0 %v679
        %785 = vmatprep.subr.bf16.mxu0 %v684
        %786 = vmatpush1.bf16.msra.mxu0 %v683
        %787 = vmatprep.subr.bf16.mxu0 %v688
        %788 = vmatpush1.bf16.msra.mxu0 %v687
        %789 = vmatprep.subr.bf16.mxu0 %v692
        %790 = vmatpush1.bf16.msra.mxu0 %v691
        %791 = vmatprep.mubr.bf16.mxu0 %v436
        %792 = vmatmul.mubr.bf16.gmra.mrb[0].mxu0 %v435
        %v793 = vpop.f32.mrb[0].mxu0
        %v794 = vadd.f32 0.0, %v793
        %v795 = vpop.f32.mrb[0].mxu0
        %v796 = vadd.f32 0.0, %v795
        %v797 = vpop.f32.mrb[0].mxu0
        %v798 = vpop.f32.mrb[0].mxu0
        %799 = vdwg.mxu0
        %800 = vmatprep.subr.bf16.mxu0 %v634
        %801 = vmatpush1.bf16.msra.mxu0 %v633
        %802 = vmatprep.subr.bf16.mxu0 %v638
        %803 = vmatpush1.bf16.msra.mxu0 %v637
        %804 = vmatprep.subr.bf16.mxu0 %v642
        %805 = vmatpush1.bf16.msra.mxu0 %v641
        %806 = vmatprep.subr.bf16.mxu0 %v646
        %807 = vmatpush1.bf16.msra.mxu0 %v645
        %808 = vmatprep.subr.bf16.mxu0 %v650
        %809 = vmatpush1.bf16.msra.mxu0 %v649
        %810 = vmatprep.subr.bf16.mxu0 %v654
        %811 = vmatpush1.bf16.msra.mxu0 %v653
        %812 = vmatprep.subr.bf16.mxu0 %v658
        %813 = vmatpush1.bf16.msra.mxu0 %v657
        %814 = vmatprep.subr.bf16.mxu0 %v662
        %815 = vmatpush1.bf16.msra.mxu0 %v661
        %816 = vmatprep.subr.bf16.mxu0 %v666
        %817 = vmatpush1.bf16.msra.mxu0 %v665
        %818 = vmatprep.subr.bf16.mxu0 %v670
        %819 = vmatpush1.bf16.msra.mxu0 %v669
        %820 = vmatprep.subr.bf16.mxu0 %v674
        %821 = vmatpush1.bf16.msra.mxu0 %v673
        %822 = vmatprep.subr.bf16.mxu0 %v678
        %823 = vmatpush1.bf16.msra.mxu0 %v677
        %824 = vmatprep.subr.bf16.mxu0 %v682
        %825 = vmatpush1.bf16.msra.mxu0 %v681
        %826 = vmatprep.subr.bf16.mxu0 %v686
        %827 = vmatpush1.bf16.msra.mxu0 %v685
        %828 = vmatprep.subr.bf16.mxu0 %v690
        %829 = vmatpush1.bf16.msra.mxu0 %v689
        %830 = vmatprep.subr.bf16.mxu0 %v694
        %831 = vmatpush1.bf16.msra.mxu0 %v693
        %832 = vmatprep.mubr.bf16.mxu0 %v436
        %833 = vmatmul.mubr.bf16.gmra.mrb[0].mxu0 %v435
        %v834 = vpop.f32.mrb[0].mxu0
        %v835 = vadd.f32 0.0, %v834
        %v836 = vpop.f32.mrb[0].mxu0
        %v837 = vadd.f32 0.0, %v836
        %v838 = vpop.f32.mrb[0].mxu0
        %v839 = vpop.f32.mrb[0].mxu0
        %840 = vdwg.mxu0
        %841 = vst [vmem:[%s357] sm:$0xff] %v794
        %842 = vst [vmem:[%s357 + $0x8] sm:$0xff] %v796
        %843 = vst [vmem:[%s357 + $0x10] sm:$0xff] %v835
        %844 = vst [vmem:[%s357 + $0x18] sm:$0xff] %v837
        %v845 = vadd.f32 %v794, %v796
        %v846 = vadd.f32 %v845, %v835
        %v847 = vadd.f32 %v846, %v837
        %848 = vadd.xlane.f32.xlu0 %v847
        %v849 = vpop.xlane.xlu0 %848
        %vm850 = vcmask 7168
        %851 = vst.msk [vmem:[%s362] sm:$0xff] %vm850, %v849
        %v852 = vmul.f32 %v794, %v794
        %v853 = vmul.f32 %v796, %v796
        %v854 = vmul.f32 %v835, %v835
        %v855 = vmul.f32 %v837, %v837
        %v856 = vadd.f32 %v852, %v853
        %v857 = vadd.f32 %v856, %v854
        %v858 = vadd.f32 %v857, %v855
        %859 = vadd.xlane.f32.xlu0 %v858
        %v860 = vpop.xlane.xlu0 %859
        %861 = vst.msk [vmem:[%s366] sm:$0xff] %vm850, %v860
        %s862 = smul.u32 4, %s16
        %p863 = scmp.lt.s32.totalorder %s862, 15
        %s864 = scalar_select %p863, %s862, 15
        %s865 = smul.addr %s864, 8
        %s866 = scalar_lea.vmem %s2, %s865
        %p867 = scmp.lt.s32.totalorder %s16, 3
        %s868 = scalar_select %p867, %s16, 3
        %s869 = smul.addr %s868, 8
        %s870 = scalar_lea.vmem %s3, %s869
        %p871 = scmp.lt.s32.totalorder %s16, 3
        %s872 = scalar_select %p871, %s16, 3
        %s873 = smul.addr %s872, 8
        %s874 = scalar_lea.vmem %s4, %s873
        // Predicated region
        $region52: #{_lambda_.19} parent=46 // pred_check
          %p875 = pneg %p81
        $region53: #{_lambda_.19} parent=46 // pred_check_branch
          %877 = sbr.rel (%p875) target = $region55
        $region54: #{_lambda_.19} parent=46 // pred_region
          %s878 = smul.u32 4, %s16
        $region55: #{_lambda_.19} parent=46 // pred_fallthru
          _
        // Predicated region
        $region56: #{_lambda_.19} parent=46 // pred_check
          %p879 = pneg %p107
        $region57: #{_lambda_.19} parent=46 // pred_check_branch
          %881 = sbr.rel (%p879) target = $region59
        $region58: #{_lambda_.19} parent=46 // pred_region
          _
        $region59: #{_lambda_.19} parent=46 // pred_fallthru
          _
        // Predicated region
        $region60: #{_lambda_.19} parent=46 // pred_check
          %p882 = pneg %p133
        $region61: #{_lambda_.19} parent=46 // pred_check_branch
          %884 = sbr.rel (%p882) target = $region63
        $region62: #{_lambda_.19} parent=46 // pred_region
          _
        $region63: #{_lambda_.19} parent=46 // pred_fallthru
          _
      $region47: #{_lambda_.19} parent=5 // pred_fallthru
        _
      %p885 = scmp.le.s32.totalorder 2, %s11
      // Predicated region
      $region64: #{_lambda_.19} parent=5 // pred_check
        %p886 = pneg %p885
      $region65: #{_lambda_.19} parent=5 // pred_check_branch
        %888 = sbr.rel (%p886) target = $region67
      $region66: #{_lambda_.19} parent=5 // pred_region
        %s889 = ssub.s32 %s11, 2
        // Predicated region
        $region68: #{_lambda_.19} parent=66 // pred_check
          %p890 = pneg %p87
        $region69: #{_lambda_.19} parent=66 // pred_check_branch
          %892 = sbr.rel (%p890) target = $region71
        $region70: #{_lambda_.19} parent=66 // pred_region
          %s893 = smul.u32 4, %s17
          %p894 = scmp.lt.s32.totalorder %s893, 15
          %s895 = scalar_select %p894, %s893, 15
          %s896 = smul.addr %s895, 8
          %s897 = scalar_lea.vmem %s2, %s896
        $region71: #{_lambda_.19} parent=66 // pred_fallthru
          _
        // Predicated region
        $region72: #{_lambda_.19} parent=66 // pred_check
          %p898 = pneg %p113
        $region73: #{_lambda_.19} parent=66 // pred_check_branch
          %900 = sbr.rel (%p898) target = $region75
        $region74: #{_lambda_.19} parent=66 // pred_region
          %p901 = scmp.lt.s32.totalorder %s17, 3
          %s902 = scalar_select %p901, %s17, 3
          %s903 = smul.addr %s902, 8
          %s904 = scalar_lea.vmem %s3, %s903
        $region75: #{_lambda_.19} parent=66 // pred_fallthru
          _
        // Predicated region
        $region76: #{_lambda_.19} parent=66 // pred_check
          %p905 = pneg %p139
        $region77: #{_lambda_.19} parent=66 // pred_check_branch
          %907 = sbr.rel (%p905) target = $region79
        $region78: #{_lambda_.19} parent=66 // pred_region
          %p908 = scmp.lt.s32.totalorder %s17, 3
          %s909 = scalar_select %p908, %s17, 3
          %s910 = smul.addr %s909, 8
          %s911 = scalar_lea.vmem %s4, %s910
        $region79: #{_lambda_.19} parent=66 // pred_fallthru
          _
      $region67: #{_lambda_.19} parent=5 // pred_fallthru
        _
    $region6: #{_lambda_.19} parent=1 // loop_footer
      %s15 = sadd.s32 1, %s11
    $region7: #{_lambda_.19} parent=1 // loop_footer_branch
      %10 = sbr.rel target = $region3
    $region8: #{_lambda_.19} parent=1 // loop_exit
      _

// kernel: _lambda_.21
$region0: #{_lambda_.21}
  #allocation0 [shape = 'u32[]', space=smem, size = 0x4, offset = 0x4, fixed_abs, tag = 'smem constant byte address 0x4 - core index']
  #allocation1 [shape = 'u32[144,128]{1,0:T(1,128)}', space=vmem, size = 0x12000, scoped, tag = 'internal scratch']
  %s0 = inlined_call_operand.vmem [shape: bf16[16,128], index: 0, kind: input, shape index: {}]
  %s1 = inlined_call_operand.vmem [shape: bf16[128,512], index: 1, kind: input, shape index: {}]
  %s2 = inlined_call_operand.vmem [shape: f32[16,512], index: 2, kind: output, shape index: {0}]
  %s3 = inlined_call_operand.vmem [shape: f32[2,16,1], index: 3, kind: output, shape index: {1}]
  %s4 = inlined_call_operand.vmem [shape: f32[2,16,1], index: 4, kind: output, shape index: {2}]
  %5 = xla_tuple %s2, %s3, %s4
  %s6 = sld [smem:[#allocation0]]
  $region114: #{_lambda_.21} parent=0
    _
  %s8 = ssub.s32 1, %s6
  %s9 = scalar_select 0, %s8, %s6
  $region1: #{_lambda_.21} parent=0
    #allocation2 [shape = 'u8[131072]{0}', space=vmem, size = 0x20000, scoped, tag = 'input window, operand 1']
    #allocation3 [shape = 'u8[32768]{0}', space=vmem, size = 0x8000, scoped, tag = 'output window, operand 0']
    loop: start=0, step=1, limit=4
    $region2: #{_lambda_.21} parent=1 // loop_pre_header
      _
    $region3: #{_lambda_.21} parent=1 // loop_header
      %s11 = sphi 0, %s15
      %p12 = scmp.ge.s32.totalorder %s11, 4
      %s19 = sphi 0, %s19
      %s21 = sphi 0, %s19
      %s22 = sphi 0, %s21
      %s36 = sphi 0, %s22
      %s42 = sphi 0, %s44
      %s45 = sphi 0, %s42
      %s46 = sphi 0, %s45
      %s62 = sphi 0, %s46
      %s68 = sphi 0, %s70
      %s71 = sphi 0, %s68
      %s72 = sphi 0, %s71
      %s88 = sphi 0, %s72
      %s94 = sphi 0, %s96
      %s97 = sphi 0, %s94
      %s98 = sphi 0, %s97
      %s114 = sphi 0, %s98
      %s120 = sphi 0, %s122
      %s123 = sphi 0, %s120
      %s124 = sphi 0, %s123
      %s140 = sphi 0, %s124
    $region4: #{_lambda_.21} parent=1 // loop_header_branch
      %14 = sbr.rel (%p12) target = $region8
    $region5: #{_lambda_.21} parent=1 // loop_body
      %s16 = ssub.s32 %s11, 1
      %s17 = ssub.s32 %s11, 2
      %s18 = sadd.s32 %s11, 1
      %s20 = sadd.s32 %s19, 1
      %p23 = scmp.eq.s32.totalorder %s11, 1
      %p24 = scmp.ne.s32.totalorder %s19, %s21
      %p25 = scmp.eq.s32.totalorder %s11, 0
      %p26 = por %p24, %p25
      %p27 = scmp.ne.s32.totalorder %s19, %s21
      %p28 = scmp.eq.s32.totalorder %s16, 1
      %p29 = por %p27, %p28
      %p30 = scmp.ne.s32.totalorder %s21, %s22
      %p31 = scmp.eq.s32.totalorder %s16, 0
      %p32 = por %p30, %p31
      %p33 = scmp.ne.s32.totalorder %s21, %s22
      %p34 = scmp.eq.s32.totalorder %s17, 1
      %p35 = por %p33, %p34
      %p37 = scmp.ne.s32.totalorder %s22, %s36
      %p38 = scmp.eq.s32.totalorder %s17, 0
      %p39 = por %p37, %p38
      %s40 = ssub.s32 %s11, %s18
      %p41 = scmp.eq.s32.totalorder %s40, 0
      %s43 = sadd.s32 %s42, 1
      %s44 = scalar_select %p41, %s42, %s43
      %p47 = pneg %p41
      %p48 = scmp.eq.s32.totalorder %s11, 1
      %p49 = por %p47, %p48
      %p50 = scmp.ne.s32.totalorder %s42, %s45
      %p51 = scmp.eq.s32.totalorder %s11, 0
      %p52 = por %p50, %p51
      %p53 = scmp.ne.s32.totalorder %s42, %s45
      %p54 = scmp.eq.s32.totalorder %s16, 1
      %p55 = por %p53, %p54
      %p56 = scmp.ne.s32.totalorder %s45, %s46
      %p57 = scmp.eq.s32.totalorder %s16, 0
      %p58 = por %p56, %p57
      %p59 = scmp.ne.s32.totalorder %s45, %s46
      %p60 = scmp.eq.s32.totalorder %s17, 1
      %p61 = por %p59, %p60
      %p63 = scmp.ne.s32.totalorder %s46, %s62
      %p64 = scmp.eq.s32.totalorder %s17, 0
      %p65 = por %p63, %p64
      %s66 = ssub.s32 %s11, %s18
      %p67 = scmp.eq.s32.totalorder %s66, 0
      %s69 = sadd.s32 %s68, 1
      %s70 = scalar_select %p67, %s68, %s69
      %p73 = pneg %p67
      %p74 = scmp.eq.s32.totalorder %s11, 1
      %p75 = por %p73, %p74
      %p76 = scmp.ne.s32.totalorder %s68, %s71
      %p77 = scmp.eq.s32.totalorder %s11, 0
      %p78 = por %p76, %p77
      %p79 = scmp.ne.s32.totalorder %s68, %s71
      %p80 = scmp.eq.s32.totalorder %s16, 1
      %p81 = por %p79, %p80
      %p82 = scmp.ne.s32.totalorder %s71, %s72
      %p83 = scmp.eq.s32.totalorder %s16, 0
      %p84 = por %p82, %p83
      %p85 = scmp.ne.s32.totalorder %s71, %s72
      %p86 = scmp.eq.s32.totalorder %s17, 1
      %p87 = por %p85, %p86
      %p89 = scmp.ne.s32.totalorder %s72, %s88
      %p90 = scmp.eq.s32.totalorder %s17, 0
      %p91 = por %p89, %p90
      %s92 = ssub.s32 %s11, %s18
      %p93 = scmp.eq.s32.totalorder %s92, 0
      %s95 = sadd.s32 %s94, 1
      %s96 = scalar_select %p93, %s94, %s95
      %p99 = pneg %p93
      %p100 = scmp.eq.s32.totalorder %s11, 1
      %p101 = por %p99, %p100
      %p102 = scmp.ne.s32.totalorder %s94, %s97
      %p103 = scmp.eq.s32.totalorder %s11, 0
      %p104 = por %p102, %p103
      %p105 = scmp.ne.s32.totalorder %s94, %s97
      %p106 = scmp.eq.s32.totalorder %s16, 1
      %p107 = por %p105, %p106
      %p108 = scmp.ne.s32.totalorder %s97, %s98
      %p109 = scmp.eq.s32.totalorder %s16, 0
      %p110 = por %p108, %p109
      %p111 = scmp.ne.s32.totalorder %s97, %s98
      %p112 = scmp.eq.s32.totalorder %s17, 1
      %p113 = por %p111, %p112
      %p115 = scmp.ne.s32.totalorder %s98, %s114
      %p116 = scmp.eq.s32.totalorder %s17, 0
      %p117 = por %p115, %p116
      %s118 = ssub.s32 %s11, %s18
      %p119 = scmp.eq.s32.totalorder %s118, 0
      %s121 = sadd.s32 %s120, 1
      %s122 = scalar_select %p119, %s120, %s121
      %p125 = pneg %p119
      %p126 = scmp.eq.s32.totalorder %s11, 1
      %p127 = por %p125, %p126
      %p128 = scmp.ne.s32.totalorder %s120, %s123
      %p129 = scmp.eq.s32.totalorder %s11, 0
      %p130 = por %p128, %p129
      %p131 = scmp.ne.s32.totalorder %s120, %s123
      %p132 = scmp.eq.s32.totalorder %s16, 1
      %p133 = por %p131, %p132
      %p134 = scmp.ne.s32.totalorder %s123, %s124
      %p135 = scmp.eq.s32.totalorder %s16, 0
      %p136 = por %p134, %p135
      %p137 = scmp.ne.s32.totalorder %s123, %s124
      %p138 = scmp.eq.s32.totalorder %s17, 1
      %p139 = por %p137, %p138
      %p141 = scmp.ne.s32.totalorder %s124, %s140
      %p142 = scmp.eq.s32.totalorder %s17, 0
      %p143 = por %p141, %p142
      %p144 = scmp.le.s32.totalorder 1, %s11
      %p145 = scmp.lt.s32.totalorder %s11, 3
      %p146 = pnand %p144, %p145
      %p147 = pneg %p146
      // Predicated region
      $region9: #{_lambda_.21} parent=5 // pred_check
        _
      $region10: #{_lambda_.21} parent=5 // pred_check_branch
        %149 = sbr.rel (%p146) target = $region12
      $region11: #{_lambda_.21} parent=5 // pred_region
        %s150 = ssub.s32 %s11, 1
        // Predicated region
        $region13: #{_lambda_.21} parent=11 // pred_check
          %p151 = pneg %p32
        $region14: #{_lambda_.21} parent=11 // pred_check_branch
          %153 = sbr.rel (%p151) target = $region16
        $region15: #{_lambda_.21} parent=11 // pred_region
          _
        $region16: #{_lambda_.21} parent=11 // pred_fallthru
          _
      $region12: #{_lambda_.21} parent=5 // pred_fallthru
        _
      %p154 = scmp.lt.s32.totalorder %s11, 2
      // Predicated region
      $region17: #{_lambda_.21} parent=5 // pred_check
        %p155 = pneg %p154
      $region18: #{_lambda_.21} parent=5 // pred_check_branch
        %157 = sbr.rel (%p155) target = $region20
      $region19: #{_lambda_.21} parent=5 // pred_region
        // Predicated region
        $region21: #{_lambda_.21} parent=19 // pred_check
          %p158 = pneg %p52
        $region22: #{_lambda_.21} parent=19 // pred_check_branch
          %160 = sbr.rel (%p158) target = $region24
        $region23: #{_lambda_.21} parent=19 // pred_region
          %s161 = sand.u32 %s42, 1
          %s162 = sand.u32 %s42, 1
          %s163 = smul.addr %s162, 128
          %s164 = scalar_lea.vmem [#allocation2], %s163
          %s165 = smul.u32 2, %s11
          %s166 = smul.addr %s165, 4
          %s167 = scalar_lea.vmem %s1, %s166
          // Predicated region
          $region25: #{_lambda_.21} parent=23 // pred_check
            _
          $region26: #{_lambda_.21} parent=23 // pred_check_branch
            %169 = sbr.rel (0) target = $region28
          $region27: #{_lambda_.21} parent=23 // pred_region
            // Predicated region
            $region29: #{_lambda_.21} parent=27 // pred_check
              _
            $region30: #{_lambda_.21} parent=27 // pred_check_branch
              %171 = sbr.rel (0) target = $region32
            $region31: #{_lambda_.21} parent=27 // pred_region
              // Predicated region
              $region44: #{_lambda_.21} parent=31 // pred_check
                _
              $region45: #{_lambda_.21} parent=31 // pred_check_branch
                %216 = sbr.rel (0) target = $region47
              $region46: #{_lambda_.21} parent=31 // pred_region
                loop: start=0, step=1, limit=1
                $region48: #{_lambda_.21} parent=46 // loop_pre_header
                  _
                $region49: #{_lambda_.21} parent=46 // loop_header
                  %s218 = sphi 0, %s222
                  %p219 = scmp.ge.s32.totalorder %s218, 1
                  %s223 = sphi %s167, %s167
                  %s224 = sphi %s164, %s164
                $region50: #{_lambda_.21} parent=46 // loop_header_branch
                  %221 = sbr.rel (%p219) target = $region54
                $region51: #{_lambda_.21} parent=46 // loop_body
                  %v225 = vld [vmem:[%s223] sm:$0xff]
                  %226 = vst [vmem:[%s224] sm:$0xff] %v225
                  %v227 = vld [vmem:[%s223 + $0x10] sm:$0xff]
                  %228 = vst [vmem:[%s224 + $0x8] sm:$0xff] %v227
                  %v229 = vld [vmem:[%s223 + $0x20] sm:$0xff]
                  %230 = vst [vmem:[%s224 + $0x10] sm:$0xff] %v229
                  %v231 = vld [vmem:[%s223 + $0x30] sm:$0xff]
                  %232 = vst [vmem:[%s224 + $0x18] sm:$0xff] %v231
                  %v233 = vld [vmem:[%s223 + $0x40] sm:$0xff]
                  %234 = vst [vmem:[%s224 + $0x20] sm:$0xff] %v233
                  %v235 = vld [vmem:[%s223 + $0x50] sm:$0xff]
                  %236 = vst [vmem:[%s224 + $0x28] sm:$0xff] %v235
                  %v237 = vld [vmem:[%s223 + $0x60] sm:$0xff]
                  %238 = vst [vmem:[%s224 + $0x30] sm:$0xff] %v237
                  %v239 = vld [vmem:[%s223 + $0x70] sm:$0xff]
                  %240 = vst [vmem:[%s224 + $0x38] sm:$0xff] %v239
                  %v241 = vld [vmem:[%s223 + $0x80] sm:$0xff]
                  %242 = vst [vmem:[%s224 + $0x40] sm:$0xff] %v241
                  %v243 = vld [vmem:[%s223 + $0x90] sm:$0xff]
                  %244 = vst [vmem:[%s224 + $0x48] sm:$0xff] %v243
                  %v245 = vld [vmem:[%s223 + $0xa0] sm:$0xff]
                  %246 = vst [vmem:[%s224 + $0x50] sm:$0xff] %v245
                  %v247 = vld [vmem:[%s223 + $0xb0] sm:$0xff]
                  %248 = vst [vmem:[%s224 + $0x58] sm:$0xff] %v247
                  %v249 = vld [vmem:[%s223 + $0xc0] sm:$0xff]
                  %250 = vst [vmem:[%s224 + $0x60] sm:$0xff] %v249
                  %v251 = vld [vmem:[%s223 + $0xd0] sm:$0xff]
                  %252 = vst [vmem:[%s224 + $0x68] sm:$0xff] %v251
                  %v253 = vld [vmem:[%s223 + $0xe0] sm:$0xff]
                  %254 = vst [vmem:[%s224 + $0x70] sm:$0xff] %v253
                  %v255 = vld [vmem:[%s223 + $0xf0] sm:$0xff]
                  %256 = vst [vmem:[%s224 + $0x78] sm:$0xff] %v255
                $region52: #{_lambda_.21} parent=46 // loop_footer
                  %s222 = sadd.s32 1, %s218
                $region53: #{_lambda_.21} parent=46 // loop_footer_branch
                  %217 = sbr.rel target = $region49
                $region54: #{_lambda_.21} parent=46 // loop_exit
                  _
              $region47: #{_lambda_.21} parent=31 // pred_fallthru
                _
              // Predicated region
              $region55: #{_lambda_.21} parent=31 // pred_check
                _
              $region56: #{_lambda_.21} parent=31 // pred_check_branch
                %258 = sbr.rel target = $region58
              $region57: #{_lambda_.21} parent=31 // pred_region
                _
              $region58: #{_lambda_.21} parent=31 // pred_fallthru
                _
            $region32: #{_lambda_.21} parent=27 // pred_fallthru
              _
            // Predicated region
            $region33: #{_lambda_.21} parent=27 // pred_check
              _
            $region34: #{_lambda_.21} parent=27 // pred_check_branch
              %173 = sbr.rel target = $region36
            $region35: #{_lambda_.21} parent=27 // pred_region
              loop: start=0, step=1, limit=1
              $region37: #{_lambda_.21} parent=35 // loop_pre_header
                _
              $region38: #{_lambda_.21} parent=35 // loop_header
                %s176 = sphi 0, %s180
                %p177 = scmp.ge.s32.totalorder %s176, 1
                %s181 = sphi %s167, %s167
                %s182 = sphi %s164, %s164
              $region39: #{_lambda_.21} parent=35 // loop_header_branch
                %179 = sbr.rel (%p177) target = $region43
              $region40: #{_lambda_.21} parent=35 // loop_body
                %v183 = vld [vmem:[%s181] sm:$0xff]
                %184 = vst [vmem:[%s182] sm:$0xff] %v183
                %v185 = vld [vmem:[%s181 + $0x10] sm:$0xff]
                %186 = vst [vmem:[%s182 + $0x8] sm:$0xff] %v185
                %v187 = vld [vmem:[%s181 + $0x20] sm:$0xff]
                %188 = vst [vmem:[%s182 + $0x10] sm:$0xff] %v187
                %v189 = vld [vmem:[%s181 + $0x30] sm:$0xff]
                %190 = vst [vmem:[%s182 + $0x18] sm:$0xff] %v189
                %v191 = vld [vmem:[%s181 + $0x40] sm:$0xff]
                %192 = vst [vmem:[%s182 + $0x20] sm:$0xff] %v191
                %v193 = vld [vmem:[%s181 + $0x50] sm:$0xff]
                %194 = vst [vmem:[%s182 + $0x28] sm:$0xff] %v193
                %v195 = vld [vmem:[%s181 + $0x60] sm:$0xff]
                %196 = vst [vmem:[%s182 + $0x30] sm:$0xff] %v195
                %v197 = vld [vmem:[%s181 + $0x70] sm:$0xff]
                %198 = vst [vmem:[%s182 + $0x38] sm:$0xff] %v197
                %v199 = vld [vmem:[%s181 + $0x80] sm:$0xff]
                %200 = vst [vmem:[%s182 + $0x40] sm:$0xff] %v199
                %v201 = vld [vmem:[%s181 + $0x90] sm:$0xff]
                %202 = vst [vmem:[%s182 + $0x48] sm:$0xff] %v201
                %v203 = vld [vmem:[%s181 + $0xa0] sm:$0xff]
                %204 = vst [vmem:[%s182 + $0x50] sm:$0xff] %v203
                %v205 = vld [vmem:[%s181 + $0xb0] sm:$0xff]
                %206 = vst [vmem:[%s182 + $0x58] sm:$0xff] %v205
                %v207 = vld [vmem:[%s181 + $0xc0] sm:$0xff]
                %208 = vst [vmem:[%s182 + $0x60] sm:$0xff] %v207
                %v209 = vld [vmem:[%s181 + $0xd0] sm:$0xff]
                %210 = vst [vmem:[%s182 + $0x68] sm:$0xff] %v209
                %v211 = vld [vmem:[%s181 + $0xe0] sm:$0xff]
                %212 = vst [vmem:[%s182 + $0x70] sm:$0xff] %v211
                %v213 = vld [vmem:[%s181 + $0xf0] sm:$0xff]
                %214 = vst [vmem:[%s182 + $0x78] sm:$0xff] %v213
              $region41: #{_lambda_.21} parent=35 // loop_footer
                %s180 = sadd.s32 1, %s176
              $region42: #{_lambda_.21} parent=35 // loop_footer_branch
                %175 = sbr.rel target = $region38
              $region43: #{_lambda_.21} parent=35 // loop_exit
                _
            $region36: #{_lambda_.21} parent=27 // pred_fallthru
              _
          $region28: #{_lambda_.21} parent=23 // pred_fallthru
            _
          %259 = vnop
        $region24: #{_lambda_.21} parent=19 // pred_fallthru
          _
      $region20: #{_lambda_.21} parent=5 // pred_fallthru
        _
      %p260 = scmp.le.s32.totalorder 1, %s11
      %p261 = scmp.lt.s32.totalorder %s11, 3
      %p262 = pnand %p260, %p261
      %p263 = pneg %p262
      // Predicated region
      $region59: #{_lambda_.21} parent=5 // pred_check
        _
      $region60: #{_lambda_.21} parent=5 // pred_check_branch
        %265 = sbr.rel (%p262) target = $region62
      $region61: #{_lambda_.21} parent=5 // pred_region
        %s266 = ssub.s32 %s11, 1
        %s267 = sand.u32 %s45, 1
        %s268 = sand.u32 %s45, 1
        %s269 = smul.addr %s268, 128
        %s270 = scalar_lea.vmem [#allocation2], %s269
        // Predicated region
        $region63: #{_lambda_.21} parent=61 // pred_check
          %p271 = pneg %p58
        $region64: #{_lambda_.21} parent=61 // pred_check_branch
          %273 = sbr.rel (%p271) target = $region66
        $region65: #{_lambda_.21} parent=61 // pred_region
          _
        $region66: #{_lambda_.21} parent=61 // pred_fallthru
          _
        %p274 = pneg %p32
        %p275 = pneg %p29
        %s276 = sand.u32 %s45, 1
        %s277 = sand.u32 %s45, 1
        %s278 = smul.addr %s277, 128
        %s279 = scalar_lea.vmem [#allocation2], %s278
        %p280 = pneg %p58
        %p281 = pneg %p55
        %p282 = pneg %p84
        %p283 = pneg %p81
        %s284 = sand.u32 %s71, 1
        %s285 = sand.u32 %s71, 1
        %s286 = smul.addr %s285, 32
        %s287 = scalar_lea.vmem [#allocation3], %s286
        %p288 = pneg %p110
        %p289 = pneg %p107
        %p290 = scmp.lt.s32.totalorder %s16, 1
        %s291 = scalar_select %p290, %s16, 1
        %s292 = smul.addr %s291, 2
        %s293 = smul.addr %s292, 8
        %s294 = scalar_lea.vmem %s3, %s293
        %p295 = pneg %p136
        %p296 = pneg %p133
        %p297 = scmp.lt.s32.totalorder %s16, 1
        %s298 = scalar_select %p297, %s16, 1
        %s299 = smul.addr %s298, 2
        %s300 = smul.addr %s299, 8
        %s301 = scalar_lea.vmem %s4, %s300
        %s302 = smul.u32 2, %s16
        %s303 = smul.u32 2, %s16
        %p304 = scmp.lt.s32.totalorder %s16, 1
        %s305 = scalar_select %p304, %s16, 1
        %s306 = smul.addr %s305, 2
        %s307 = smul.addr %s306, 8
        %s308 = scalar_lea.vmem %s3, %s307
        %p309 = scmp.lt.s32.totalorder %s16, 1
        %s310 = scalar_select %p309, %s16, 1
        %s311 = smul.addr %s310, 2
        %s312 = smul.addr %s311, 8
        %s313 = scalar_lea.vmem %s4, %s312
        %v315 = vld [vmem:[%s0] sm:$0xf]
        %v316 = vld [vmem:[%s0 + $0x4] sm:$0xf]
        %v317 = vld [vmem:[%s270] sm:$0xff]
        %v318 = vld [vmem:[%s270 + $0x8] sm:$0xff]
        %v319 = vld [vmem:[%s270 + $0x10] sm:$0xff]
        %v320 = vld [vmem:[%s270 + $0x18] sm:$0xff]
        %v321 = vld [vmem:[%s270 + $0x20] sm:$0xff]
        %v322 = vld [vmem:[%s270 + $0x28] sm:$0xff]
        %v323 = vld [vmem:[%s270 + $0x30] sm:$0xff]
        %v324 = vld [vmem:[%s270 + $0x38] sm:$0xff]
        %v325 = vld [vmem:[%s270 + $0x40] sm:$0xff]
        %v326 = vld [vmem:[%s270 + $0x48] sm:$0xff]
        %v327 = vld [vmem:[%s270 + $0x50] sm:$0xff]
        %v328 = vld [vmem:[%s270 + $0x58] sm:$0xff]
        %v329 = vld [vmem:[%s270 + $0x60] sm:$0xff]
        %v330 = vld [vmem:[%s270 + $0x68] sm:$0xff]
        %v331 = vld [vmem:[%s270 + $0x70] sm:$0xff]
        %v332 = vld [vmem:[%s270 + $0x78] sm:$0xff]
        %v335 = vunpack.c.l.b16 %v315
        %v336 = vunpack.c.l.b16 %v316
        %v337 = vpack.c.b16 %v336, %v335
        %v355 = vunpack.c.l.b16 %v317
        %v356 = vunpack.c.h.b16 %v317
        %v357 = vunpack.c.l.b16 %v318
        %v358 = vunpack.c.h.b16 %v318
        %v359 = vunpack.c.l.b16 %v319
        %v360 = vunpack.c.h.b16 %v319
        %v361 = vunpack.c.l.b16 %v320
        %v362 = vunpack.c.h.b16 %v320
        %v363 = vunpack.c.l.b16 %v321
        %v364 = vunpack.c.h.b16 %v321
        %v365 = vunpack.c.l.b16 %v322
        %v366 = vunpack.c.h.b16 %v322
        %v367 = vunpack.c.l.b16 %v323
        %v368 = vunpack.c.h.b16 %v323
        %v369 = vunpack.c.l.b16 %v324
        %v370 = vunpack.c.h.b16 %v324
        %v371 = vunpack.c.l.b16 %v325
        %v372 = vunpack.c.h.b16 %v325
        %v373 = vunpack.c.l.b16 %v326
        %v374 = vunpack.c.h.b16 %v326
        %v375 = vunpack.c.l.b16 %v327
        %v376 = vunpack.c.h.b16 %v327
        %v377 = vunpack.c.l.b16 %v328
        %v378 = vunpack.c.h.b16 %v328
        %v379 = vunpack.c.l.b16 %v329
        %v380 = vunpack.c.h.b16 %v329
        %v381 = vunpack.c.l.b16 %v330
        %v382 = vunpack.c.h.b16 %v330
        %v383 = vunpack.c.l.b16 %v331
        %v384 = vunpack.c.h.b16 %v331
        %v385 = vunpack.c.l.b16 %v332
        %v386 = vunpack.c.h.b16 %v332
        %v387 = vpack.c.b16 %v357, %v355
        %v388 = vpack.c.b16 %v358, %v356
        %v389 = vpack.c.b16 %v361, %v359
        %v390 = vpack.c.b16 %v362, %v360
        %v391 = vpack.c.b16 %v365, %v363
        %v392 = vpack.c.b16 %v366, %v364
        %v393 = vpack.c.b16 %v369, %v367
        %v394 = vpack.c.b16 %v370, %v368
        %v395 = vpack.c.b16 %v373, %v371
        %v396 = vpack.c.b16 %v374, %v372
        %v397 = vpack.c.b16 %v377, %v375
        %v398 = vpack.c.b16 %v378, %v376
        %v399 = vpack.c.b16 %v381, %v379
        %v400 = vpack.c.b16 %v382, %v380
        %v401 = vpack.c.b16 %v385, %v383
        %v402 = vpack.c.b16 %v386, %v384
        %419 = vmatprep.subr.bf16.mxu0 %v388
        %420 = vmatpush1.bf16.msra.mxu0 %v387
        %421 = vmatprep.subr.bf16.mxu0 %v390
        %422 = vmatpush1.bf16.msra.mxu0 %v389
        %423 = vmatprep.subr.bf16.mxu0 %v392
        %424 = vmatpush1.bf16.msra.mxu0 %v391
        %425 = vmatprep.subr.bf16.mxu0 %v394
        %426 = vmatpush1.bf16.msra.mxu0 %v393
        %427 = vmatprep.subr.bf16.mxu0 %v396
        %428 = vmatpush1.bf16.msra.mxu0 %v395
        %429 = vmatprep.subr.bf16.mxu0 %v398
        %430 = vmatpush1.bf16.msra.mxu0 %v397
        %431 = vmatprep.subr.bf16.mxu0 %v400
        %432 = vmatpush1.bf16.msra.mxu0 %v399
        %433 = vmatprep.subr.bf16.mxu0 %v402
        %434 = vmatpush1.bf16.msra.mxu0 %v401
        %435 = vmatprep.subr.bf16.mxu0 0
        %436 = vmatpush1.bf16.msra.mxu0 0
        %437 = vmatprep.subr.bf16.mxu0 0
        %438 = vmatpush1.bf16.msra.mxu0 0
        %439 = vmatprep.subr.bf16.mxu0 0
        %440 = vmatpush1.bf16.msra.mxu0 0
        %441 = vmatprep.subr.bf16.mxu0 0
        %442 = vmatpush1.bf16.msra.mxu0 0
        %443 = vmatprep.subr.bf16.mxu0 0
        %444 = vmatpush1.bf16.msra.mxu0 0
        %445 = vmatprep.subr.bf16.mxu0 0
        %446 = vmatpush1.bf16.msra.mxu0 0
        %447 = vmatprep.subr.bf16.mxu0 0
        %448 = vmatpush1.bf16.msra.mxu0 0
        %449 = vmatprep.subr.bf16.mxu0 0
        %450 = vmatpush1.bf16.msra.mxu0 0
        %451 = vmatprep.mubr.bf16.mxu0 0
        %452 = vmatmul.mubr.bf16.gmra.mrb[0].mxu0 %v337
        %v453 = vpop.f32.mrb[0].mxu0
        %v454 = vadd.f32 0.0, %v453
        %v455 = vpop.f32.mrb[0].mxu0
        %v456 = vadd.f32 0.0, %v455
        %v457 = vpop.f32.mrb[0].mxu0
        %v458 = vadd.f32 0.0, %v457
        %v459 = vpop.f32.mrb[0].mxu0
        %v460 = vadd.f32 0.0, %v459
        %461 = vdwg.mxu0
        %462 = vst [vmem:[%s287] sm:$0xff] %v454
        %463 = vst [vmem:[%s287 + $0x8] sm:$0xff] %v456
        %464 = vst [vmem:[%s287 + $0x10] sm:$0xff] %v458
        %465 = vst [vmem:[%s287 + $0x18] sm:$0xff] %v460
        %v466 = vadd.f32 %v454, %v456
        %467 = vadd.xlane.f32.xlu0 %v466
        %v468 = vpop.xlane.xlu0 %467
        %v469 = vadd.f32 %v458, %v460
        %470 = vadd.xlane.f32.xlu0 %v469
        %v471 = vpop.xlane.xlu0 %470
        %vm472 = vcmask 7168
        %473 = vst.msk [vmem:[%s308] sm:$0xff] %vm472, %v468
        %474 = vst.msk [vmem:[%s308 + $0x8] sm:$0xff] %vm472, %v471
        %v475 = vmul.f32 %v454, %v454
        %v476 = vmul.f32 %v456, %v456
        %v477 = vmul.f32 %v458, %v458
        %v478 = vmul.f32 %v460, %v460
        %v479 = vadd.f32 %v475, %v476
        %480 = vadd.xlane.f32.xlu0 %v479
        %v481 = vpop.xlane.xlu0 %480
        %v482 = vadd.f32 %v477, %v478
        %483 = vadd.xlane.f32.xlu0 %v482
        %v484 = vpop.xlane.xlu0 %483
        %485 = vst.msk [vmem:[%s313] sm:$0xff] %vm472, %v481
        %486 = vst.msk [vmem:[%s313 + $0x8] sm:$0xff] %vm472, %v484
        %s487 = sand.u32 %s71, 1
        %s488 = sand.u32 %s71, 1
        %s489 = smul.addr %s488, 32
        %s490 = scalar_lea.vmem [#allocation3], %s489
        %p491 = scmp.lt.s32.totalorder %s16, 1
        %s492 = scalar_select %p491, %s16, 1
        %s493 = smul.addr %s492, 2
        %s494 = smul.addr %s493, 8
        %s495 = scalar_lea.vmem %s3, %s494
        %p496 = scmp.lt.s32.totalorder %s16, 1
        %s497 = scalar_select %p496, %s16, 1
        %s498 = smul.addr %s497, 2
        %s499 = smul.addr %s498, 8
        %s500 = scalar_lea.vmem %s4, %s499
        // Predicated region
        $region67: #{_lambda_.21} parent=61 // pred_check
          %p501 = pneg %p81
        $region68: #{_lambda_.21} parent=61 // pred_check_branch
          %503 = sbr.rel (%p501) target = $region70
        $region69: #{_lambda_.21} parent=61 // pred_region
          %s504 = smul.u32 2, %s16
          %s505 = smul.addr %s504, 8
          %s506 = scalar_lea.vmem %s2, %s505
          // Predicated region
          $region71: #{_lambda_.21} parent=69 // pred_check
            _
          $region72: #{_lambda_.21} parent=69 // pred_check_branch
            %508 = sbr.rel (0) target = $region74
          $region73: #{_lambda_.21} parent=69 // pred_region
            // Predicated region
            $region75: #{_lambda_.21} parent=73 // pred_check
              _
            $region76: #{_lambda_.21} parent=73 // pred_check_branch
              %510 = sbr.rel (0) target = $region78
            $region77: #{_lambda_.21} parent=73 // pred_region
              loop: start=0, step=1, limit=1
              $region79: #{_lambda_.21} parent=77 // loop_pre_header
                _
              $region80: #{_lambda_.21} parent=77 // loop_header
                %s512 = sphi 0, %s516
                %p513 = scmp.ge.s32.totalorder %s512, 1
                %s517 = sphi %s490, %s490
                %s518 = sphi %s506, %s506
              $region81: #{_lambda_.21} parent=77 // loop_header_branch
                %515 = sbr.rel (%p513) target = $region85
              $region82: #{_lambda_.21} parent=77 // loop_body
                %v519 = vld [vmem:[%s517] sm:$0xff]
                %520 = vst [vmem:[%s518] sm:$0xff] %v519
                %v521 = vld [vmem:[%s517 + $0x8] sm:$0xff]
                %522 = vst [vmem:[%s518 + $0x8] sm:$0xff] %v521
                %v523 = vld [vmem:[%s517 + $0x10] sm:$0xff]
                %524 = vst [vmem:[%s518 + $0x20] sm:$0xff] %v523
                %v525 = vld [vmem:[%s517 + $0x18] sm:$0xff]
                %526 = vst [vmem:[%s518 + $0x28] sm:$0xff] %v525
              $region83: #{_lambda_.21} parent=77 // loop_footer
                %s516 = sadd.s32 1, %s512
              $region84: #{_lambda_.21} parent=77 // loop_footer_branch
                %511 = sbr.rel target = $region80
              $region85: #{_lambda_.21} parent=77 // loop_exit
                _
            $region78: #{_lambda_.21} parent=73 // pred_fallthru
              _
            // Predicated region
            $region86: #{_lambda_.21} parent=73 // pred_check
              _
            $region87: #{_lambda_.21} parent=73 // pred_check_branch
              %528 = sbr.rel target = $region89
            $region88: #{_lambda_.21} parent=73 // pred_region
              _
            $region89: #{_lambda_.21} parent=73 // pred_fallthru
              _
          $region74: #{_lambda_.21} parent=69 // pred_fallthru
            _
          %529 = vnop
        $region70: #{_lambda_.21} parent=61 // pred_fallthru
          _
        // Predicated region
        $region90: #{_lambda_.21} parent=61 // pred_check
          %p530 = pneg %p107
        $region91: #{_lambda_.21} parent=61 // pred_check_branch
          %532 = sbr.rel (%p530) target = $region93
        $region92: #{_lambda_.21} parent=61 // pred_region
          _
        $region93: #{_lambda_.21} parent=61 // pred_fallthru
          _
        // Predicated region
        $region94: #{_lambda_.21} parent=61 // pred_check
          %p533 = pneg %p133
        $region95: #{_lambda_.21} parent=61 // pred_check_branch
          %535 = sbr.rel (%p533) target = $region97
        $region96: #{_lambda_.21} parent=61 // pred_region
          _
        $region97: #{_lambda_.21} parent=61 // pred_fallthru
          _
      $region62: #{_lambda_.21} parent=5 // pred_fallthru
        _
      %p536 = scmp.le.s32.totalorder 2, %s11
      // Predicated region
      $region98: #{_lambda_.21} parent=5 // pred_check
        %p537 = pneg %p536
      $region99: #{_lambda_.21} parent=5 // pred_check_branch
        %539 = sbr.rel (%p537) target = $region101
      $region100: #{_lambda_.21} parent=5 // pred_region
        %s540 = ssub.s32 %s11, 2
        // Predicated region
        $region102: #{_lambda_.21} parent=100 // pred_check
          %p541 = pneg %p87
        $region103: #{_lambda_.21} parent=100 // pred_check_branch
          %543 = sbr.rel (%p541) target = $region105
        $region104: #{_lambda_.21} parent=100 // pred_region
          %s544 = sand.u32 %s72, 1
          %s545 = sand.u32 %s72, 1
          %s546 = smul.addr %s545, 32
          %s547 = scalar_lea.vmem [#allocation3], %s546
        $region105: #{_lambda_.21} parent=100 // pred_fallthru
          _
        // Predicated region
        $region106: #{_lambda_.21} parent=100 // pred_check
          %p548 = pneg %p113
        $region107: #{_lambda_.21} parent=100 // pred_check_branch
          %550 = sbr.rel (%p548) target = $region109
        $region108: #{_lambda_.21} parent=100 // pred_region
          %p551 = scmp.lt.s32.totalorder %s17, 1
          %s552 = scalar_select %p551, %s17, 1
          %s553 = smul.addr %s552, 2
          %s554 = smul.addr %s553, 8
          %s555 = scalar_lea.vmem %s3, %s554
        $region109: #{_lambda_.21} parent=100 // pred_fallthru
          _
        // Predicated region
        $region110: #{_lambda_.21} parent=100 // pred_check
          %p556 = pneg %p139
        $region111: #{_lambda_.21} parent=100 // pred_check_branch
          %558 = sbr.rel (%p556) target = $region113
        $region112: #{_lambda_.21} parent=100 // pred_region
          %p559 = scmp.lt.s32.totalorder %s17, 1
          %s560 = scalar_select %p559, %s17, 1
          %s561 = smul.addr %s560, 2
          %s562 = smul.addr %s561, 8
          %s563 = scalar_lea.vmem %s4, %s562
        $region113: #{_lambda_.21} parent=100 // pred_fallthru
          _
      $region101: #{_lambda_.21} parent=5 // pred_fallthru
        _
    $region6: #{_lambda_.21} parent=1 // loop_footer
      %s15 = sadd.s32 1, %s11
    $region7: #{_lambda_.21} parent=1 // loop_footer_branch
      %10 = sbr.rel target = $region3
    $region8: #{_lambda_.21} parent=1 // loop_exit
      _

// kernel: _lambda_.22
$region0: #{_lambda_.22}
  #allocation0 [shape = 'u32[]', space=smem, size = 0x4, offset = 0x4, fixed_abs, tag = 'smem constant byte address 0x4 - core index']
  #allocation1 [shape = 'u32[144,128]{1,0:T(1,128)}', space=vmem, size = 0x12000, scoped, tag = 'internal scratch']
  %s0 = inlined_call_operand.vmem [shape: f32[16,512], index: 0, kind: input, shape index: {}]
  %s1 = inlined_call_operand.vmem [shape: f32[16,1], index: 1, kind: input, shape index: {}]
  %s2 = inlined_call_operand.vmem [shape: f32[16,1], index: 2, kind: input, shape index: {}]
  %s3 = inlined_call_operand.vmem [shape: f32[16,512], index: 3, kind: output, shape index: {}]
  %s4 = sld [smem:[#allocation0]]
  $region87: #{_lambda_.22} parent=0
    _
  %s6 = ssub.s32 1, %s4
  %s7 = scalar_select 0, %s6, %s4
  $region1: #{_lambda_.22} parent=0
    #allocation2 [shape = 'u8[32768]{0}', space=vmem, size = 0x8000, scoped, tag = 'input window, operand 0']
    #allocation3 [shape = 'u8[32768]{0}', space=vmem, size = 0x8000, scoped, tag = 'output window, operand 0']
    loop: start=0, step=1, limit=4
    $region2: #{_lambda_.22} parent=1 // loop_pre_header
      _
    $region3: #{_lambda_.22} parent=1 // loop_header
      %s9 = sphi 0, %s13
      %p10 = scmp.ge.s32.totalorder %s9, 4
      %s19 = sphi 0, %s21
      %s22 = sphi 0, %s19
      %s23 = sphi 0, %s22
      %s39 = sphi 0, %s23
      %s43 = sphi 0, %s43
      %s45 = sphi 0, %s43
      %s46 = sphi 0, %s45
      %s60 = sphi 0, %s46
      %s64 = sphi 0, %s64
      %s66 = sphi 0, %s64
      %s67 = sphi 0, %s66
      %s81 = sphi 0, %s67
      %s87 = sphi 0, %s89
      %s90 = sphi 0, %s87
      %s91 = sphi 0, %s90
      %s107 = sphi 0, %s91
    $region4: #{_lambda_.22} parent=1 // loop_header_branch
      %12 = sbr.rel (%p10) target = $region8
    $region5: #{_lambda_.22} parent=1 // loop_body
      %s14 = ssub.s32 %s9, 1
      %s15 = ssub.s32 %s9, 2
      %s16 = sadd.s32 %s9, 1
      %s17 = ssub.s32 %s9, %s16
      %p18 = scmp.eq.s32.totalorder %s17, 0
      %s20 = sadd.s32 %s19, 1
      %s21 = scalar_select %p18, %s19, %s20
      %p24 = pneg %p18
      %p25 = scmp.eq.s32.totalorder %s9, 1
      %p26 = por %p24, %p25
      %p27 = scmp.ne.s32.totalorder %s19, %s22
      %p28 = scmp.eq.s32.totalorder %s9, 0
      %p29 = por %p27, %p28
      %p30 = scmp.ne.s32.totalorder %s19, %s22
      %p31 = scmp.eq.s32.totalorder %s14, 1
      %p32 = por %p30, %p31
      %p33 = scmp.ne.s32.totalorder %s22, %s23
      %p34 = scmp.eq.s32.totalorder %s14, 0
      %p35 = por %p33, %p34
      %p36 = scmp.ne.s32.totalorder %s22, %s23
      %p37 = scmp.eq.s32.totalorder %s15, 1
      %p38 = por %p36, %p37
      %p40 = scmp.ne.s32.totalorder %s23, %s39
      %p41 = scmp.eq.s32.totalorder %s15, 0
      %p42 = por %p40, %p41
      %s44 = sadd.s32 %s43, 1
      %p47 = scmp.eq.s32.totalorder %s9, 1
      %p48 = scmp.ne.s32.totalorder %s43, %s45
      %p49 = scmp.eq.s32.totalorder %s9, 0
      %p50 = por %p48, %p49
      %p51 = scmp.ne.s32.totalorder %s43, %s45
      %p52 = scmp.eq.s32.totalorder %s14, 1
      %p53 = por %p51, %p52
      %p54 = scmp.ne.s32.totalorder %s45, %s46
      %p55 = scmp.eq.s32.totalorder %s14, 0
      %p56 = por %p54, %p55
      %p57 = scmp.ne.s32.totalorder %s45, %s46
      %p58 = scmp.eq.s32.totalorder %s15, 1
      %p59 = por %p57, %p58
      %p61 = scmp.ne.s32.totalorder %s46, %s60
      %p62 = scmp.eq.s32.totalorder %s15, 0
      %p63 = por %p61, %p62
      %s65 = sadd.s32 %s64, 1
      %p68 = scmp.eq.s32.totalorder %s9, 1
      %p69 = scmp.ne.s32.totalorder %s64, %s66
      %p70 = scmp.eq.s32.totalorder %s9, 0
      %p71 = por %p69, %p70
      %p72 = scmp.ne.s32.totalorder %s64, %s66
      %p73 = scmp.eq.s32.totalorder %s14, 1
      %p74 = por %p72, %p73
      %p75 = scmp.ne.s32.totalorder %s66, %s67
      %p76 = scmp.eq.s32.totalorder %s14, 0
      %p77 = por %p75, %p76
      %p78 = scmp.ne.s32.totalorder %s66, %s67
      %p79 = scmp.eq.s32.totalorder %s15, 1
      %p80 = por %p78, %p79
      %p82 = scmp.ne.s32.totalorder %s67, %s81
      %p83 = scmp.eq.s32.totalorder %s15, 0
      %p84 = por %p82, %p83
      %s85 = ssub.s32 %s9, %s16
      %p86 = scmp.eq.s32.totalorder %s85, 0
      %s88 = sadd.s32 %s87, 1
      %s89 = scalar_select %p86, %s87, %s88
      %p92 = pneg %p86
      %p93 = scmp.eq.s32.totalorder %s9, 1
      %p94 = por %p92, %p93
      %p95 = scmp.ne.s32.totalorder %s87, %s90
      %p96 = scmp.eq.s32.totalorder %s9, 0
      %p97 = por %p95, %p96
      %p98 = scmp.ne.s32.totalorder %s87, %s90
      %p99 = scmp.eq.s32.totalorder %s14, 1
      %p100 = por %p98, %p99
      %p101 = scmp.ne.s32.totalorder %s90, %s91
      %p102 = scmp.eq.s32.totalorder %s14, 0
      %p103 = por %p101, %p102
      %p104 = scmp.ne.s32.totalorder %s90, %s91
      %p105 = scmp.eq.s32.totalorder %s15, 1
      %p106 = por %p104, %p105
      %p108 = scmp.ne.s32.totalorder %s91, %s107
      %p109 = scmp.eq.s32.totalorder %s15, 0
      %p110 = por %p108, %p109
      %p111 = scmp.le.s32.totalorder 1, %s9
      %p112 = scmp.lt.s32.totalorder %s9, 3
      %p113 = pnand %p111, %p112
      %p114 = pneg %p113
      // Predicated region
      $region9: #{_lambda_.22} parent=5 // pred_check
        _
      $region10: #{_lambda_.22} parent=5 // pred_check_branch
        %116 = sbr.rel (%p113) target = $region12
      $region11: #{_lambda_.22} parent=5 // pred_region
        %s117 = ssub.s32 %s9, 1
        // Predicated region
        $region13: #{_lambda_.22} parent=11 // pred_check
          %p118 = pneg %p56
        $region14: #{_lambda_.22} parent=11 // pred_check_branch
          %120 = sbr.rel (%p118) target = $region16
        $region15: #{_lambda_.22} parent=11 // pred_region
          _
        $region16: #{_lambda_.22} parent=11 // pred_fallthru
          _
        // Predicated region
        $region17: #{_lambda_.22} parent=11 // pred_check
          %p121 = pneg %p77
        $region18: #{_lambda_.22} parent=11 // pred_check_branch
          %123 = sbr.rel (%p121) target = $region20
        $region19: #{_lambda_.22} parent=11 // pred_region
          _
        $region20: #{_lambda_.22} parent=11 // pred_fallthru
          _
      $region12: #{_lambda_.22} parent=5 // pred_fallthru
        _
      %p124 = scmp.lt.s32.totalorder %s9, 2
      // Predicated region
      $region21: #{_lambda_.22} parent=5 // pred_check
        %p125 = pneg %p124
      $region22: #{_lambda_.22} parent=5 // pred_check_branch
        %127 = sbr.rel (%p125) target = $region24
      $region23: #{_lambda_.22} parent=5 // pred_region
        // Predicated region
        $region25: #{_lambda_.22} parent=23 // pred_check
          %p128 = pneg %p29
        $region26: #{_lambda_.22} parent=23 // pred_check_branch
          %130 = sbr.rel (%p128) target = $region28
        $region27: #{_lambda_.22} parent=23 // pred_region
          %s131 = sand.u32 %s19, 1
          %s132 = sand.u32 %s19, 1
          %s133 = smul.addr %s132, 32
          %s134 = scalar_lea.vmem [#allocation2], %s133
          %s135 = smul.u32 2, %s9
          %s136 = smul.addr %s135, 8
          %s137 = scalar_lea.vmem %s0, %s136
          // Predicated region
          $region29: #{_lambda_.22} parent=27 // pred_check
            _
          $region30: #{_lambda_.22} parent=27 // pred_check_branch
            %139 = sbr.rel (0) target = $region32
          $region31: #{_lambda_.22} parent=27 // pred_region
            // Predicated region
            $region33: #{_lambda_.22} parent=31 // pred_check
              _
            $region34: #{_lambda_.22} parent=31 // pred_check_branch
              %141 = sbr.rel (0) target = $region36
            $region35: #{_lambda_.22} parent=31 // pred_region
              loop: start=0, step=1, limit=1
              $region37: #{_lambda_.22} parent=35 // loop_pre_header
                _
              $region38: #{_lambda_.22} parent=35 // loop_header
                %s143 = sphi 0, %s147
                %p144 = scmp.ge.s32.totalorder %s143, 1
                %s148 = sphi %s137, %s137
                %s149 = sphi %s134, %s134
              $region39: #{_lambda_.22} parent=35 // loop_header_branch
                %146 = sbr.rel (%p144) target = $region43
              $region40: #{_lambda_.22} parent=35 // loop_body
                %v150 = vld [vmem:[%s148] sm:$0xff]
                %151 = vst [vmem:[%s149] sm:$0xff] %v150
                %v152 = vld [vmem:[%s148 + $0x8] sm:$0xff]
                %153 = vst [vmem:[%s149 + $0x8] sm:$0xff] %v152
                %v154 = vld [vmem:[%s148 + $0x20] sm:$0xff]
                %155 = vst [vmem:[%s149 + $0x10] sm:$0xff] %v154
                %v156 = vld [vmem:[%s148 + $0x28] sm:$0xff]
                %157 = vst [vmem:[%s149 + $0x18] sm:$0xff] %v156
              $region41: #{_lambda_.22} parent=35 // loop_footer
                %s147 = sadd.s32 1, %s143
              $region42: #{_lambda_.22} parent=35 // loop_footer_branch
                %142 = sbr.rel target = $region38
              $region43: #{_lambda_.22} parent=35 // loop_exit
                _
            $region36: #{_lambda_.22} parent=31 // pred_fallthru
              _
            // Predicated region
            $region44: #{_lambda_.22} parent=31 // pred_check
              _
            $region45: #{_lambda_.22} parent=31 // pred_check_branch
              %159 = sbr.rel target = $region47
            $region46: #{_lambda_.22} parent=31 // pred_region
              _
            $region47: #{_lambda_.22} parent=31 // pred_fallthru
              _
          $region32: #{_lambda_.22} parent=27 // pred_fallthru
            _
          %160 = vnop
        $region28: #{_lambda_.22} parent=23 // pred_fallthru
          _
      $region24: #{_lambda_.22} parent=5 // pred_fallthru
        _
      %p161 = scmp.le.s32.totalorder 1, %s9
      %p162 = scmp.lt.s32.totalorder %s9, 3
      %p163 = pnand %p161, %p162
      %p164 = pneg %p163
      // Predicated region
      $region48: #{_lambda_.22} parent=5 // pred_check
        _
      $region49: #{_lambda_.22} parent=5 // pred_check_branch
        %166 = sbr.rel (%p163) target = $region51
      $region50: #{_lambda_.22} parent=5 // pred_region
        %s167 = ssub.s32 %s9, 1
        %s168 = sand.u32 %s22, 1
        %s169 = sand.u32 %s22, 1
        %s170 = smul.addr %s169, 32
        %s171 = scalar_lea.vmem [#allocation2], %s170
        // Predicated region
        $region52: #{_lambda_.22} parent=50 // pred_check
          %p172 = pneg %p35
        $region53: #{_lambda_.22} parent=50 // pred_check_branch
          %174 = sbr.rel (%p172) target = $region55
        $region54: #{_lambda_.22} parent=50 // pred_region
          _
        $region55: #{_lambda_.22} parent=50 // pred_fallthru
          _
        %s175 = sand.u32 %s22, 1
        %s176 = sand.u32 %s22, 1
        %s177 = smul.addr %s176, 32
        %s178 = scalar_lea.vmem [#allocation2], %s177
        %p179 = pneg %p35
        %p180 = pneg %p32
        %p181 = pneg %p56
        %p182 = pneg %p53
        %p183 = pneg %p77
        %p184 = pneg %p74
        %p185 = pneg %p103
        %p186 = pneg %p100
        %s187 = sand.u32 %s90, 1
        %s188 = sand.u32 %s90, 1
        %s189 = smul.addr %s188, 32
        %s190 = scalar_lea.vmem [#allocation3], %s189
        %s191 = smul.u32 2, %s14
        %s192 = smul.u32 2, %s14
        %v193 = vld [vmem:[%s171] sm:$0xff]
        %v194 = vld [vmem:[%s171 + $0x8] sm:$0xff]
        %v195 = vld [vmem:[%s171 + $0x10] sm:$0xff]
        %v196 = vld [vmem:[%s171 + $0x18] sm:$0xff]
        %v197 = vld [vmem:[%s1] sm:$0xff]
        %v198 = vld [vmem:[%s1 + $0x8] sm:$0xff]
        %200 = vset.pattern.permute.xlu0 0
        %201 = vperm.xlu0 %200, %v197
        %v202 = vpop.permute.xlu0 %201
        %205 = vset.pattern.permute.xlu0 0
        %206 = vperm.xlu0 %205, %v198
        %v207 = vpop.permute.xlu0 %206
        %v209 = vmul.f32 %v193, %v202
        %v210 = vmul.f32 %v194, %v202
        %v211 = vmul.f32 %v195, %v207
        %v212 = vmul.f32 %v196, %v207
        %v213 = vld [vmem:[%s2] sm:$0xff]
        %v214 = vld [vmem:[%s2 + $0x8] sm:$0xff]
        %216 = vset.pattern.permute.xlu0 0
        %217 = vperm.xlu0 %216, %v213
        %v218 = vpop.permute.xlu0 %217
        %221 = vset.pattern.permute.xlu0 0
        %222 = vperm.xlu0 %221, %v214
        %v223 = vpop.permute.xlu0 %222
        %v225 = vadd.f32 %v209, %v218
        %v226 = vadd.f32 %v210, %v218
        %v227 = vadd.f32 %v211, %v223
        %v228 = vadd.f32 %v212, %v223
        %v229 = vmax.f32 %v225, 0.0
        %v230 = vmax.f32 %v226, 0.0
        %v231 = vmax.f32 %v227, 0.0
        %v232 = vmax.f32 %v228, 0.0
        %233 = vst [vmem:[%s190] sm:$0xff] %v229
        %234 = vst [vmem:[%s190 + $0x8] sm:$0xff] %v230
        %235 = vst [vmem:[%s190 + $0x10] sm:$0xff] %v231
        %236 = vst [vmem:[%s190 + $0x18] sm:$0xff] %v232
        %s237 = sand.u32 %s90, 1
        %s238 = sand.u32 %s90, 1
        %s239 = smul.addr %s238, 32
        %s240 = scalar_lea.vmem [#allocation3], %s239
        // Predicated region
        $region56: #{_lambda_.22} parent=50 // pred_check
          %p241 = pneg %p100
        $region57: #{_lambda_.22} parent=50 // pred_check_branch
          %243 = sbr.rel (%p241) target = $region59
        $region58: #{_lambda_.22} parent=50 // pred_region
          %s244 = smul.u32 2, %s14
          %s245 = smul.addr %s244, 8
          %s246 = scalar_lea.vmem %s3, %s245
          // Predicated region
          $region60: #{_lambda_.22} parent=58 // pred_check
            _
          $region61: #{_lambda_.22} parent=58 // pred_check_branch
            %248 = sbr.rel (0) target = $region63
          $region62: #{_lambda_.22} parent=58 // pred_region
            // Predicated region
            $region64: #{_lambda_.22} parent=62 // pred_check
              _
            $region65: #{_lambda_.22} parent=62 // pred_check_branch
              %250 = sbr.rel (0) target = $region67
            $region66: #{_lambda_.22} parent=62 // pred_region
              loop: start=0, step=1, limit=1
              $region68: #{_lambda_.22} parent=66 // loop_pre_header
                _
              $region69: #{_lambda_.22} parent=66 // loop_header
                %s252 = sphi 0, %s256
                %p253 = scmp.ge.s32.totalorder %s252, 1
                %s257 = sphi %s240, %s240
                %s258 = sphi %s246, %s246
              $region70: #{_lambda_.22} parent=66 // loop_header_branch
                %255 = sbr.rel (%p253) target = $region74
              $region71: #{_lambda_.22} parent=66 // loop_body
                %v259 = vld [vmem:[%s257] sm:$0xff]
                %260 = vst [vmem:[%s258] sm:$0xff] %v259
                %v261 = vld [vmem:[%s257 + $0x8] sm:$0xff]
                %262 = vst [vmem:[%s258 + $0x8] sm:$0xff] %v261
                %v263 = vld [vmem:[%s257 + $0x10] sm:$0xff]
                %264 = vst [vmem:[%s258 + $0x20] sm:$0xff] %v263
                %v265 = vld [vmem:[%s257 + $0x18] sm:$0xff]
                %266 = vst [vmem:[%s258 + $0x28] sm:$0xff] %v265
              $region72: #{_lambda_.22} parent=66 // loop_footer
                %s256 = sadd.s32 1, %s252
              $region73: #{_lambda_.22} parent=66 // loop_footer_branch
                %251 = sbr.rel target = $region69
              $region74: #{_lambda_.22} parent=66 // loop_exit
                _
            $region67: #{_lambda_.22} parent=62 // pred_fallthru
              _
            // Predicated region
            $region75: #{_lambda_.22} parent=62 // pred_check
              _
            $region76: #{_lambda_.22} parent=62 // pred_check_branch
              %268 = sbr.rel target = $region78
            $region77: #{_lambda_.22} parent=62 // pred_region
              _
            $region78: #{_lambda_.22} parent=62 // pred_fallthru
              _
          $region63: #{_lambda_.22} parent=58 // pred_fallthru
            _
          %269 = vnop
        $region59: #{_lambda_.22} parent=50 // pred_fallthru
          _
      $region51: #{_lambda_.22} parent=5 // pred_fallthru
        _
      %p270 = scmp.le.s32.totalorder 2, %s9
      // Predicated region
      $region79: #{_lambda_.22} parent=5 // pred_check
        %p271 = pneg %p270
      $region80: #{_lambda_.22} parent=5 // pred_check_branch
        %273 = sbr.rel (%p271) target = $region82
      $region81: #{_lambda_.22} parent=5 // pred_region
        %s274 = ssub.s32 %s9, 2
        // Predicated region
        $region83: #{_lambda_.22} parent=81 // pred_check
          %p275 = pneg %p106
        $region84: #{_lambda_.22} parent=81 // pred_check_branch
          %277 = sbr.rel (%p275) target = $region86
        $region85: #{_lambda_.22} parent=81 // pred_region
          %s278 = sand.u32 %s91, 1
          %s279 = sand.u32 %s91, 1
          %s280 = smul.addr %s279, 32
          %s281 = scalar_lea.vmem [#allocation3], %s280
        $region86: #{_lambda_.22} parent=81 // pred_fallthru
          _
      $region82: #{_lambda_.22} parent=5 // pred_fallthru
        _
    $region6: #{_lambda_.22} parent=1 // loop_footer
      %s13 = sadd.s32 1, %s9
    $region7: #{_lambda_.22} parent=1 // loop_footer_branch
      %8 = sbr.rel target = $region3
    $region8: #{_lambda_.22} parent=1 // loop_exit
      _

// kernel: _lambda_.23
$region0: #{_lambda_.23}
  #allocation0 [shape = 'u32[]', space=smem, size = 0x4, offset = 0x4, fixed_abs, tag = 'smem constant byte address 0x4 - core index']
  #allocation1 [shape = 'u32[144,128]{1,0:T(1,128)}', space=vmem, size = 0x12000, scoped, tag = 'internal scratch']
  %s0 = inlined_call_operand.vmem [shape: bf16[32,256], index: 0, kind: input, shape index: {}]
  %s1 = inlined_call_operand.vmem [shape: bf16[256,128], index: 1, kind: input, shape index: {}]
  %s2 = inlined_call_operand.vmem [shape: f32[32,128], index: 2, kind: output, shape index: {0}]
  %s3 = inlined_call_operand.vmem [shape: f32[1,32,1], index: 3, kind: output, shape index: {1}]
  %s4 = inlined_call_operand.vmem [shape: f32[1,32,1], index: 4, kind: output, shape index: {2}]
  %5 = xla_tuple %s2, %s3, %s4
  %s6 = sld [smem:[#allocation0]]
  $region34: #{_lambda_.23} parent=0
    _
  %s8 = ssub.s32 1, %s6
  %s9 = scalar_select 0, %s8, %s6
  // Predicated region
  $region2: #{_lambda_.23} parent=0 // pred_check
    _
  $region3: #{_lambda_.23} parent=0 // pred_check_branch
    %11 = sbr.rel (0) target = $region5
  $region4: #{_lambda_.23} parent=0 // pred_region
    _
  $region5: #{_lambda_.23} parent=0 // pred_fallthru
    _
  // Predicated region
  $region6: #{_lambda_.23} parent=0 // pred_check
    _
  $region7: #{_lambda_.23} parent=0 // pred_check_branch
    %13 = sbr.rel (0) target = $region9
  $region8: #{_lambda_.23} parent=0 // pred_region
    _
  $region9: #{_lambda_.23} parent=0 // pred_fallthru
    _
  %v15 = vld [vmem:[%s0] sm:$0xff]
  %v16 = vld [vmem:[%s0 + $0x8] sm:$0xff]
  %v17 = vld [vmem:[%s0 + $0x10] sm:$0xff]
  %v18 = vld [vmem:[%s0 + $0x18] sm:$0xff]
  %v19 = vld [vmem:[%s1] sm:$0xf]
  %v20 = vld [vmem:[%s1 + $0x4] sm:$0xf]
  %v21 = vld [vmem:[%s1 + $0x8] sm:$0xf]
  %v22 = vld [vmem:[%s1 + $0xc] sm:$0xf]
  %v23 = vld [vmem:[%s1 + $0x10] sm:$0xf]
  %v24 = vld [vmem:[%s1 + $0x14] sm:$0xf]
  %v25 = vld [vmem:[%s1 + $0x18] sm:$0xf]
  %v26 = vld [vmem:[%s1 + $0x1c] sm:$0xf]
  %v27 = vld [vmem:[%s1 + $0x20] sm:$0xf]
  %v28 = vld [vmem:[%s1 + $0x24] sm:$0xf]
  %v29 = vld [vmem:[%s1 + $0x28] sm:$0xf]
  %v30 = vld [vmem:[%s1 + $0x2c] sm:$0xf]
  %v31 = vld [vmem:[%s1 + $0x30] sm:$0xf]
  %v32 = vld [vmem:[%s1 + $0x34] sm:$0xf]
  %v33 = vld [vmem:[%s1 + $0x38] sm:$0xf]
  %v34 = vld [vmem:[%s1 + $0x3c] sm:$0xf]
  %v35 = vld [vmem:[%s1 + $0x40] sm:$0xf]
  %v36 = vld [vmem:[%s1 + $0x44] sm:$0xf]
  %v37 = vld [vmem:[%s1 + $0x48] sm:$0xf]
  %v38 = vld [vmem:[%s1 + $0x4c] sm:$0xf]
  %v39 = vld [vmem:[%s1 + $0x50] sm:$0xf]
  %v40 = vld [vmem:[%s1 + $0x54] sm:$0xf]
  %v41 = vld [vmem:[%s1 + $0x58] sm:$0xf]
  %v42 = vld [vmem:[%s1 + $0x5c] sm:$0xf]
  %v43 = vld [vmem:[%s1 + $0x60] sm:$0xf]
  %v44 = vld [vmem:[%s1 + $0x64] sm:$0xf]
  %v45 = vld [vmem:[%s1 + $0x68] sm:$0xf]
  %v46 = vld [vmem:[%s1 + $0x6c] sm:$0xf]
  %v47 = vld [vmem:[%s1 + $0x70] sm:$0xf]
  %v48 = vld [vmem:[%s1 + $0x74] sm:$0xf]
  %v49 = vld [vmem:[%s1 + $0x78] sm:$0xf]
  %v50 = vld [vmem:[%s1 + $0x7c] sm:$0xf]
  %v55 = vunpack.c.l.b16 %v15
  %v56 = vunpack.c.h.b16 %v15
  %v57 = vunpack.c.l.b16 %v16
  %v58 = vunpack.c.h.b16 %v16
  %v59 = vunpack.c.l.b16 %v17
  %v60 = vunpack.c.h.b16 %v17
  %v61 = vunpack.c.l.b16 %v18
  %v62 = vunpack.c.h.b16 %v18
  %v63 = vpack.c.b16 %v57, %v55
  %v64 = vpack.c.b16 %v58, %v56
  %v65 = vpack.c.b16 %v61, %v59
  %v66 = vpack.c.b16 %v62, %v60
  %v103 = vunpack.c.l.b16 %v19
  %v104 = vunpack.c.l.b16 %v20
  %v105 = vunpack.c.l.b16 %v21
  %v106 = vunpack.c.l.b16 %v22
  %v107 = vunpack.c.l.b16 %v23
  %v108 = vunpack.c.l.b16 %v24
  %v109 = vunpack.c.l.b16 %v25
  %v110 = vunpack.c.l.b16 %v26
  %v111 = vunpack.c.l.b16 %v27
  %v112 = vunpack.c.l.b16 %v28
  %v113 = vunpack.c.l.b16 %v29
  %v114 = vunpack.c.l.b16 %v30
  %v115 = vunpack.c.l.b16 %v31
  %v116 = vunpack.c.l.b16 %v32
  %v117 = vunpack.c.l.b16 %v33
  %v118 = vunpack.c.l.b16 %v34
  %v119 = vunpack.c.l.b16 %v35
  %v120 = vunpack.c.l.b16 %v36
  %v121 = vunpack.c.l.b16 %v37
  %v122 = vunpack.c.l.b16 %v38
  %v123 = vunpack.c.l.b16 %v39
  %v124 = vunpack.c.l.b16 %v40
  %v125 = vunpack.c.l.b16 %v41
  %v126 = vunpack.c.l.b16 %v42
  %v127 = vunpack.c.l.b16 %v43
  %v128 = vunpack.c.l.b16 %v44
  %v129 = vunpack.c.l.b16 %v45
  %v130 = vunpack.c.l.b16 %v46
  %v131 = vunpack.c.l.b16 %v47
  %v132 = vunpack.c.l.b16 %v48
  %v133 = vunpack.c.l.b16 %v49
  %v134 = vunpack.c.l.b16 %v50
  %v135 = vpack.c.b16 %v104, %v103
  %v136 = vpack.c.b16 %v106, %v105
  %v137 = vpack.c.b16 %v108, %v107
  %v138 = vpack.c.b16 %v110, %v109
  %v139 = vpack.c.b16 %v112, %v111
  %v140 = vpack.c.b16 %v114, %v113
  %v141 = vpack.c.b16 %v116, %v115
  %v142 = vpack.c.b16 %v118, %v117
  %v143 = vpack.c.b16 %v120, %v119
  %v144 = vpack.c.b16 %v122, %v121
  %v145 = vpack.c.b16 %v124, %v123
  %v146 = vpack.c.b16 %v126, %v125
  %v147 = vpack.c.b16 %v128, %v127
  %v148 = vpack.c.b16 %v130, %v129
  %v149 = vpack.c.b16 %v132, %v131
  %v150 = vpack.c.b16 %v134, %v133
  %167 = vmatprep.subr.bf16.mxu0 0
  %168 = vmatpush1.bf16.msra.mxu0 %v135
  %169 = vmatprep.subr.bf16.mxu0 0
  %170 = vmatpush1.bf16.msra.mxu0 %v136
  %171 = vmatprep.subr.bf16.mxu0 0
  %172 = vmatpush1.bf16.msra.mxu0 %v137
  %173 = vmatprep.subr.bf16.mxu0 0
  %174 = vmatpush1.bf16.msra.mxu0 %v138
  %175 = vmatprep.subr.bf16.mxu0 0
  %176 = vmatpush1.bf16.msra.mxu0 %v139
  %177 = vmatprep.subr.bf16.mxu0 0
  %178 = vmatpush1.bf16.msra.mxu0 %v140
  %179 = vmatprep.subr.bf16.mxu0 0
  %180 = vmatpush1.bf16.msra.mxu0 %v141
  %181 = vmatprep.subr.bf16.mxu0 0
  %182 = vmatpush1.bf16.msra.mxu0 %v142
  %183 = vmatprep.subr.bf16.mxu0 0
  %184 = vmatpush1.bf16.msra.mxu0 %v143
  %185 = vmatprep.subr.bf16.mxu0 0
  %186 = vmatpush1.bf16.msra.mxu0 %v144
  %187 = vmatprep.subr.bf16.mxu0 0
  %188 = vmatpush1.bf16.msra.mxu0 %v145
  %189 = vmatprep.subr.bf16.mxu0 0
  %190 = vmatpush1.bf16.msra.mxu0 %v146
  %191 = vmatprep.subr.bf16.mxu0 0
  %192 = vmatpush1.bf16.msra.mxu0 %v147
  %193 = vmatprep.subr.bf16.mxu0 0
  %194 = vmatpush1.bf16.msra.mxu0 %v148
  %195 = vmatprep.subr.bf16.mxu0 0
  %196 = vmatpush1.bf16.msra.mxu0 %v149
  %197 = vmatprep.subr.bf16.mxu0 0
  %198 = vmatpush1.bf16.msra.mxu0 %v150
  %199 = vmatprep.mubr.bf16.mxu0 %v64
  %200 = vmatmul.mubr.bf16.gmra.mrb[0].mxu0 %v63
  %v201 = vpop.f32.mrb[0].mxu0
  %v202 = vadd.f32 0.0, %v201
  %v203 = vpop.f32.mrb[0].mxu0
  %v204 = vpop.f32.mrb[0].mxu0
  %v205 = vadd.f32 0.0, %v204
  %v206 = vpop.f32.mrb[0].mxu0
  %207 = vmatprep.mubr.bf16.mxu0 %v66
  %208 = vmatmul.mubr.bf16.gmra.mrb[0].mxu0 %v65
  %v209 = vpop.f32.mrb[0].mxu0
  %v210 = vadd.f32 0.0, %v209
  %v211 = vpop.f32.mrb[0].mxu0
  %v212 = vpop.f32.mrb[0].mxu0
  %v213 = vadd.f32 0.0, %v212
  %v214 = vpop.f32.mrb[0].mxu0
  %215 = vdwg.mxu0
  %216 = vst [vmem:[%s2] sm:$0xff] %v202
  %217 = vst [vmem:[%s2 + $0x8] sm:$0xff] %v205
  %218 = vst [vmem:[%s2 + $0x10] sm:$0xff] %v210
  %219 = vst [vmem:[%s2 + $0x18] sm:$0xff] %v213
  %220 = vadd.xlane.f32.xlu0 %v202
  %v221 = vpop.xlane.xlu0 %220
  %222 = vadd.xlane.f32.xlu0 %v205
  %v223 = vpop.xlane.xlu0 %222
  %224 = vadd.xlane.f32.xlu0 %v210
  %v225 = vpop.xlane.xlu0 %224
  %226 = vadd.xlane.f32.xlu0 %v213
  %v227 = vpop.xlane.xlu0 %226
  %vm228 = vcmask 7168
  %229 = vst.msk [vmem:[%s3] sm:$0xff] %vm228, %v221
  %230 = vst.msk [vmem:[%s3 + $0x8] sm:$0xff] %vm228, %v223
  %231 = vst.msk [vmem:[%s3 + $0x10] sm:$0xff] %vm228, %v225
  %232 = vst.msk [vmem:[%s3 + $0x18] sm:$0xff] %vm228, %v227
  %v233 = vmul.f32 %v202, %v202
  %v234 = vmul.f32 %v205, %v205
  %v235 = vmul.f32 %v210, %v210
  %v236 = vmul.f32 %v213, %v213
  %237 = vadd.xlane.f32.xlu0 %v233
  %v238 = vpop.xlane.xlu0 %237
  %239 = vadd.xlane.f32.xlu0 %v234
  %v240 = vpop.xlane.xlu0 %239
  %241 = vadd.xlane.f32.xlu0 %v235
  %v242 = vpop.xlane.xlu0 %241
  %243 = vadd.xlane.f32.xlu0 %v236
  %v244 = vpop.xlane.xlu0 %243
  %245 = vst.msk [vmem:[%s4] sm:$0xff] %vm228, %v238
  %246 = vst.msk [vmem:[%s4 + $0x8] sm:$0xff] %vm228, %v240
  %247 = vst.msk [vmem:[%s4 + $0x10] sm:$0xff] %vm228, %v242
  %248 = vst.msk [vmem:[%s4 + $0x18] sm:$0xff] %vm228, %v244
  // Predicated region
  $region10: #{_lambda_.23} parent=0 // pred_check
    _
  $region11: #{_lambda_.23} parent=0 // pred_check_branch
    %250 = sbr.rel (0) target = $region13
  $region12: #{_lambda_.23} parent=0 // pred_region
    _
  $region13: #{_lambda_.23} parent=0 // pred_fallthru
    _
  // Predicated region
  $region14: #{_lambda_.23} parent=0 // pred_check
    _
  $region15: #{_lambda_.23} parent=0 // pred_check_branch
    %252 = sbr.rel (0) target = $region17
  $region16: #{_lambda_.23} parent=0 // pred_region
    _
  $region17: #{_lambda_.23} parent=0 // pred_fallthru
    _
  // Predicated region
  $region18: #{_lambda_.23} parent=0 // pred_check
    _
  $region19: #{_lambda_.23} parent=0 // pred_check_branch
    %254 = sbr.rel (0) target = $region21
  $region20: #{_lambda_.23} parent=0 // pred_region
    _
  $region21: #{_lambda_.23} parent=0 // pred_fallthru
    _
  // Predicated region
  $region22: #{_lambda_.23} parent=0 // pred_check
    _
  $region23: #{_lambda_.23} parent=0 // pred_check_branch
    %256 = sbr.rel (0) target = $region25
  $region24: #{_lambda_.23} parent=0 // pred_region
    _
  $region25: #{_lambda_.23} parent=0 // pred_fallthru
    _
  // Predicated region
  $region26: #{_lambda_.23} parent=0 // pred_check
    _
  $region27: #{_lambda_.23} parent=0 // pred_check_branch
    %258 = sbr.rel (0) target = $region29
  $region28: #{_lambda_.23} parent=0 // pred_region
    _
  $region29: #{_lambda_.23} parent=0 // pred_fallthru
    _
  // Predicated region
  $region30: #{_lambda_.23} parent=0 // pred_check
    _
  $region31: #{_lambda_.23} parent=0 // pred_check_branch
    %260 = sbr.rel (0) target = $region33
  $region32: #{_lambda_.23} parent=0 // pred_region
    _
  $region33: #{_lambda_.23} parent=0 // pred_fallthru
    _

// kernel: _lambda_.24
$region0: #{_lambda_.24}
  #allocation0 [shape = 'u32[]', space=smem, size = 0x4, offset = 0x4, fixed_abs, tag = 'smem constant byte address 0x4 - core index']
  #allocation1 [shape = 'u32[144,128]{1,0:T(1,128)}', space=vmem, size = 0x12000, scoped, tag = 'internal scratch']
  %s0 = inlined_call_operand.vmem [shape: f32[32,128], index: 0, kind: input, shape index: {}]
  %s1 = inlined_call_operand.vmem [shape: f32[32,1], index: 1, kind: input, shape index: {}]
  %s2 = inlined_call_operand.vmem [shape: f32[32,1], index: 2, kind: input, shape index: {}]
  %s3 = inlined_call_operand.vmem [shape: f32[32,128], index: 3, kind: output, shape index: {}]
  %s4 = sld [smem:[#allocation0]]
  $region22: #{_lambda_.24} parent=0
    _
  %s6 = ssub.s32 1, %s4
  %s7 = scalar_select 0, %s6, %s4
  // Predicated region
  $region2: #{_lambda_.24} parent=0 // pred_check
    _
  $region3: #{_lambda_.24} parent=0 // pred_check_branch
    %9 = sbr.rel (0) target = $region5
  $region4: #{_lambda_.24} parent=0 // pred_region
    _
  $region5: #{_lambda_.24} parent=0 // pred_fallthru
    _
  // Predicated region
  $region6: #{_lambda_.24} parent=0 // pred_check
    _
  $region7: #{_lambda_.24} parent=0 // pred_check_branch
    %11 = sbr.rel (0) target = $region9
  $region8: #{_lambda_.24} parent=0 // pred_region
    _
  $region9: #{_lambda_.24} parent=0 // pred_fallthru
    _
  // Predicated region
  $region10: #{_lambda_.24} parent=0 // pred_check
    _
  $region11: #{_lambda_.24} parent=0 // pred_check_branch
    %13 = sbr.rel (0) target = $region13
  $region12: #{_lambda_.24} parent=0 // pred_region
    _
  $region13: #{_lambda_.24} parent=0 // pred_fallthru
    _
  %v14 = vld [vmem:[%s0] sm:$0xff]
  %v15 = vld [vmem:[%s0 + $0x8] sm:$0xff]
  %v16 = vld [vmem:[%s0 + $0x10] sm:$0xff]
  %v17 = vld [vmem:[%s0 + $0x18] sm:$0xff]
  %v18 = vld [vmem:[%s1] sm:$0xff]
  %v19 = vld [vmem:[%s1 + $0x8] sm:$0xff]
  %v20 = vld [vmem:[%s1 + $0x10] sm:$0xff]
  %v21 = vld [vmem:[%s1 + $0x18] sm:$0xff]
  %23 = vset.pattern.permute.xlu0 0
  %24 = vperm.xlu0 %23, %v18
  %v25 = vpop.permute.xlu0 %24
  %28 = vset.pattern.permute.xlu0 0
  %29 = vperm.xlu0 %28, %v19
  %v30 = vpop.permute.xlu0 %29
  %33 = vset.pattern.permute.xlu0 0
  %34 = vperm.xlu0 %33, %v20
  %v35 = vpop.permute.xlu0 %34
  %38 = vset.pattern.permute.xlu0 0
  %39 = vperm.xlu0 %38, %v21
  %v40 = vpop.permute.xlu0 %39
  %v42 = vmul.f32 %v14, %v25
  %v43 = vmul.f32 %v15, %v30
  %v44 = vmul.f32 %v16, %v35
  %v45 = vmul.f32 %v17, %v40
  %v46 = vld [vmem:[%s2] sm:$0xff]
  %v47 = vld [vmem:[%s2 + $0x8] sm:$0xff]
  %v48 = vld [vmem:[%s2 + $0x10] sm:$0xff]
  %v49 = vld [vmem:[%s2 + $0x18] sm:$0xff]
  %51 = vset.pattern.permute.xlu0 0
  %52 = vperm.xlu0 %51, %v46
  %v53 = vpop.permute.xlu0 %52
  %56 = vset.pattern.permute.xlu0 0
  %57 = vperm.xlu0 %56, %v47
  %v58 = vpop.permute.xlu0 %57
  %61 = vset.pattern.permute.xlu0 0
  %62 = vperm.xlu0 %61, %v48
  %v63 = vpop.permute.xlu0 %62
  %66 = vset.pattern.permute.xlu0 0
  %67 = vperm.xlu0 %66, %v49
  %v68 = vpop.permute.xlu0 %67
  %v70 = vadd.f32 %v42, %v53
  %v71 = vadd.f32 %v43, %v58
  %v72 = vadd.f32 %v44, %v63
  %v73 = vadd.f32 %v45, %v68
  %v74 = vmax.f32 %v70, 0.0
  %v75 = vmax.f32 %v71, 0.0
  %v76 = vmax.f32 %v72, 0.0
  %v77 = vmax.f32 %v73, 0.0
  %78 = vst [vmem:[%s3] sm:$0xff] %v74
  %79 = vst [vmem:[%s3 + $0x8] sm:$0xff] %v75
  %80 = vst [vmem:[%s3 + $0x10] sm:$0xff] %v76
  %81 = vst [vmem:[%s3 + $0x18] sm:$0xff] %v77
  // Predicated region
  $region14: #{_lambda_.24} parent=0 // pred_check
    _
  $region15: #{_lambda_.24} parent=0 // pred_check_branch
    %83 = sbr.rel (0) target = $region17
  $region16: #{_lambda_.24} parent=0 // pred_region
    _
  $region17: #{_lambda_.24} parent=0 // pred_fallthru
    _
  // Predicated region
  $region18: #{_lambda_.24} parent=0 // pred_check
    _
  $region19: #{_lambda_.24} parent=0 // pred_check_branch
    %85 = sbr.rel (0) target = $region21
  $region20: #{_lambda_.24} parent=0 // pred_region
    _
  $region21: #{_lambda_.24} parent=0 // pred_fallthru
    _

// kernel: _lambda_.25
$region0: #{_lambda_.25}
  #allocation0 [shape = 'u32[]', space=smem, size = 0x4, offset = 0x4, fixed_abs, tag = 'smem constant byte address 0x4 - core index']
  #allocation1 [shape = 'u32[144,128]{1,0:T(1,128)}', space=vmem, size = 0x12000, scoped, tag = 'internal scratch']
  %s0 = inlined_call_operand.vmem [shape: bf16[32,384], index: 0, kind: input, shape index: {}]
  %s1 = inlined_call_operand.vmem [shape: bf16[384,128], index: 1, kind: input, shape index: {}]
  %s2 = inlined_call_operand.vmem [shape: f32[32,128], index: 2, kind: output, shape index: {0}]
  %s3 = inlined_call_operand.vmem [shape: f32[1,32,1], index: 3, kind: output, shape index: {1}]
  %s4 = inlined_call_operand.vmem [shape: f32[1,32,1], index: 4, kind: output, shape index: {2}]
  %5 = xla_tuple %s2, %s3, %s4
  %s6 = sld [smem:[#allocation0]]
  $region34: #{_lambda_.25} parent=0
    _
  %s8 = ssub.s32 1, %s6
  %s9 = scalar_select 0, %s8, %s6
  // Predicated region
  $region2: #{_lambda_.25} parent=0 // pred_check
    _
  $region3: #{_lambda_.25} parent=0 // pred_check_branch
    %11 = sbr.rel (0) target = $region5
  $region4: #{_lambda_.25} parent=0 // pred_region
    _
  $region5: #{_lambda_.25} parent=0 // pred_fallthru
    _
  // Predicated region
  $region6: #{_lambda_.25} parent=0 // pred_check
    _
  $region7: #{_lambda_.25} parent=0 // pred_check_branch
    %13 = sbr.rel (0) target = $region9
  $region8: #{_lambda_.25} parent=0 // pred_region
    _
  $region9: #{_lambda_.25} parent=0 // pred_fallthru
    _
  %v15 = vld [vmem:[%s0] sm:$0xff]
  %v16 = vld [vmem:[%s0 + $0x8] sm:$0xf]
  %v17 = vld [vmem:[%s0 + $0xc] sm:$0xff]
  %v18 = vld [vmem:[%s0 + $0x14] sm:$0xf]
  %v19 = vld [vmem:[%s0 + $0x18] sm:$0xff]
  %v20 = vld [vmem:[%s0 + $0x20] sm:$0xf]
  %v21 = vld [vmem:[%s0 + $0x24] sm:$0xff]
  %v22 = vld [vmem:[%s0 + $0x2c] sm:$0xf]
  %v23 = vld [vmem:[%s1] sm:$0xf]
  %v24 = vld [vmem:[%s1 + $0x4] sm:$0xf]
  %v25 = vld [vmem:[%s1 + $0x8] sm:$0xf]
  %v26 = vld [vmem:[%s1 + $0xc] sm:$0xf]
  %v27 = vld [vmem:[%s1 + $0x10] sm:$0xf]
  %v28 = vld [vmem:[%s1 + $0x14] sm:$0xf]
  %v29 = vld [vmem:[%s1 + $0x18] sm:$0xf]
  %v30 = vld [vmem:[%s1 + $0x1c] sm:$0xf]
  %v31 = vld [vmem:[%s1 + $0x20] sm:$0xf]
  %v32 = vld [vmem:[%s1 + $0x24] sm:$0xf]
  %v33 = vld [vmem:[%s1 + $0x28] sm:$0xf]
  %v34 = vld [vmem:[%s1 + $0x2c] sm:$0xf]
  %v35 = vld [vmem:[%s1 + $0x30] sm:$0xf]
  %v36 = vld [vmem:[%s1 + $0x34] sm:$0xf]
  %v37 = vld [vmem:[%s1 + $0x38] sm:$0xf]
  %v38 = vld [vmem:[%s1 + $0x3c] sm:$0xf]
  %v39 = vld [vmem:[%s1 + $0x40] sm:$0xf]
  %v40 = vld [vmem:[%s1 + $0x44] sm:$0xf]
  %v41 = vld [vmem:[%s1 + $0x48] sm:$0xf]
  %v42 = vld [vmem:[%s1 + $0x4c] sm:$0xf]
  %v43 = vld [vmem:[%s1 + $0x50] sm:$0xf]
  %v44 = vld [vmem:[%s1 + $0x54] sm:$0xf]
  %v45 = vld [vmem:[%s1 + $0x58] sm:$0xf]
  %v46 = vld [vmem:[%s1 + $0x5c] sm:$0xf]
  %v47 = vld [vmem:[%s1 + $0x60] sm:$0xf]
  %v48 = vld [vmem:[%s1 + $0x64] sm:$0xf]
  %v49 = vld [vmem:[%s1 + $0x68] sm:$0xf]
  %v50 = vld [vmem:[%s1 + $0x6c] sm:$0xf]
  %v51 = vld [vmem:[%s1 + $0x70] sm:$0xf]
  %v52 = vld [vmem:[%s1 + $0x74] sm:$0xf]
  %v53 = vld [vmem:[%s1 + $0x78] sm:$0xf]
  %v54 = vld [vmem:[%s1 + $0x7c] sm:$0xf]
  %v55 = vld [vmem:[%s1 + $0x80] sm:$0xf]
  %v56 = vld [vmem:[%s1 + $0x84] sm:$0xf]
  %v57 = vld [vmem:[%s1 + $0x88] sm:$0xf]
  %v58 = vld [vmem:[%s1 + $0x8c] sm:$0xf]
  %v59 = vld [vmem:[%s1 + $0x90] sm:$0xf]
  %v60 = vld [vmem:[%s1 + $0x94] sm:$0xf]
  %v61 = vld [vmem:[%s1 + $0x98] sm:$0xf]
  %v62 = vld [vmem:[%s1 + $0x9c] sm:$0xf]
  %v63 = vld [vmem:[%s1 + $0xa0] sm:$0xf]
  %v64 = vld [vmem:[%s1 + $0xa4] sm:$0xf]
  %v65 = vld [vmem:[%s1 + $0xa8] sm:$0xf]
  %v66 = vld [vmem:[%s1 + $0xac] sm:$0xf]
  %v67 = vld [vmem:[%s1 + $0xb0] sm:$0xf]
  %v68 = vld [vmem:[%s1 + $0xb4] sm:$0xf]
  %v69 = vld [vmem:[%s1 + $0xb8] sm:$0xf]
  %v70 = vld [vmem:[%s1 + $0xbc] sm:$0xf]
  %v79 = vunpack.c.l.b16 %v15
  %v80 = vunpack.c.h.b16 %v15
  %v81 = vunpack.c.l.b16 %v16
  %v82 = vunpack.c.l.b16 %v17
  %v83 = vunpack.c.h.b16 %v17
  %v84 = vunpack.c.l.b16 %v18
  %v85 = vunpack.c.l.b16 %v19
  %v86 = vunpack.c.h.b16 %v19
  %v87 = vunpack.c.l.b16 %v20
  %v88 = vunpack.c.l.b16 %v21
  %v89 = vunpack.c.h.b16 %v21
  %v90 = vunpack.c.l.b16 %v22
  %v91 = vpack.c.b16 %v82, %v79
  %v92 = vpack.c.b16 %v83, %v80
  %v93 = vpack.c.b16 %v84, %v81
  %v94 = vpack.c.b16 %v88, %v85
  %v95 = vpack.c.b16 %v89, %v86
  %v96 = vpack.c.b16 %v90, %v87
  %v151 = vunpack.c.l.b16 %v23
  %v152 = vunpack.c.l.b16 %v24
  %v153 = vunpack.c.l.b16 %v25
  %v154 = vunpack.c.l.b16 %v26
  %v155 = vunpack.c.l.b16 %v27
  %v156 = vunpack.c.l.b16 %v28
  %v157 = vunpack.c.l.b16 %v29
  %v158 = vunpack.c.l.b16 %v30
  %v159 = vunpack.c.l.b16 %v31
  %v160 = vunpack.c.l.b16 %v32
  %v161 = vunpack.c.l.b16 %v33
  %v162 = vunpack.c.l.b16 %v34
  %v163 = vunpack.c.l.b16 %v35
  %v164 = vunpack.c.l.b16 %v36
  %v165 = vunpack.c.l.b16 %v37
  %v166 = vunpack.c.l.b16 %v38
  %v167 = vunpack.c.l.b16 %v39
  %v168 = vunpack.c.l.b16 %v40
  %v169 = vunpack.c.l.b16 %v41
  %v170 = vunpack.c.l.b16 %v42
  %v171 = vunpack.c.l.b16 %v43
  %v172 = vunpack.c.l.b16 %v44
  %v173 = vunpack.c.l.b16 %v45
  %v174 = vunpack.c.l.b16 %v46
  %v175 = vunpack.c.l.b16 %v47
  %v176 = vunpack.c.l.b16 %v48
  %v177 = vunpack.c.l.b16 %v49
  %v178 = vunpack.c.l.b16 %v50
  %v179 = vunpack.c.l.b16 %v51
  %v180 = vunpack.c.l.b16 %v52
  %v181 = vunpack.c.l.b16 %v53
  %v182 = vunpack.c.l.b16 %v54
  %v183 = vunpack.c.l.b16 %v55
  %v184 = vunpack.c.l.b16 %v56
  %v185 = vunpack.c.l.b16 %v57
  %v186 = vunpack.c.l.b16 %v58
  %v187 = vunpack.c.l.b16 %v59
  %v188 = vunpack.c.l.b16 %v60
  %v189 = vunpack.c.l.b16 %v61
  %v190 = vunpack.c.l.b16 %v62
  %v191 = vunpack.c.l.b16 %v63
  %v192 = vunpack.c.l.b16 %v64
  %v193 = vunpack.c.l.b16 %v65
  %v194 = vunpack.c.l.b16 %v66
  %v195 = vunpack.c.l.b16 %v67
  %v196 = vunpack.c.l.b16 %v68
  %v197 = vunpack.c.l.b16 %v69
  %v198 = vunpack.c.l.b16 %v70
  %v199 = vpack.c.b16 %v152, %v151
  %v200 = vpack.c.b16 %v154, %v153
  %v201 = vpack.c.b16 %v156, %v155
  %v202 = vpack.c.b16 %v158, %v157
  %v203 = vpack.c.b16 %v160, %v159
  %v204 = vpack.c.b16 %v162, %v161
  %v205 = vpack.c.b16 %v164, %v163
  %v206 = vpack.c.b16 %v166, %v165
  %v207 = vpack.c.b16 %v168, %v167
  %v208 = vpack.c.b16 %v170, %v169
  %v209 = vpack.c.b16 %v172, %v171
  %v210 = vpack.c.b16 %v174, %v173
  %v211 = vpack.c.b16 %v176, %v175
  %v212 = vpack.c.b16 %v178, %v177
  %v213 = vpack.c.b16 %v180, %v179
  %v214 = vpack.c.b16 %v182, %v181
  %v215 = vpack.c.b16 %v184, %v183
  %v216 = vpack.c.b16 %v186, %v185
  %v217 = vpack.c.b16 %v188, %v187
  %v218 = vpack.c.b16 %v190, %v189
  %v219 = vpack.c.b16 %v192, %v191
  %v220 = vpack.c.b16 %v194, %v193
  %v221 = vpack.c.b16 %v196, %v195
  %v222 = vpack.c.b16 %v198, %v197
  %247 = vmatprep.subr.bf16.mxu0 0
  %248 = vmatpush1.bf16.msra.mxu0 %v199
  %249 = vmatprep.subr.bf16.mxu0 0
  %250 = vmatpush1.bf16.msra.mxu0 %v200
  %251 = vmatprep.subr.bf16.mxu0 0
  %252 = vmatpush1.bf16.msra.mxu0 %v201
  %253 = vmatprep.subr.bf16.mxu0 0
  %254 = vmatpush1.bf16.msra.mxu0 %v202
  %255 = vmatprep.subr.bf16.mxu0 0
  %256 = vmatpush1.bf16.msra.mxu0 %v203
  %257 = vmatprep.subr.bf16.mxu0 0
  %258 = vmatpush1.bf16.msra.mxu0 %v204
  %259 = vmatprep.subr.bf16.mxu0 0
  %260 = vmatpush1.bf16.msra.mxu0 %v205
  %261 = vmatprep.subr.bf16.mxu0 0
  %262 = vmatpush1.bf16.msra.mxu0 %v206
  %263 = vmatprep.subr.bf16.mxu0 0
  %264 = vmatpush1.bf16.msra.mxu0 %v207
  %265 = vmatprep.subr.bf16.mxu0 0
  %266 = vmatpush1.bf16.msra.mxu0 %v208
  %267 = vmatprep.subr.bf16.mxu0 0
  %268 = vmatpush1.bf16.msra.mxu0 %v209
  %269 = vmatprep.subr.bf16.mxu0 0
  %270 = vmatpush1.bf16.msra.mxu0 %v210
  %271 = vmatprep.subr.bf16.mxu0 0
  %272 = vmatpush1.bf16.msra.mxu0 %v211
  %273 = vmatprep.subr.bf16.mxu0 0
  %274 = vmatpush1.bf16.msra.mxu0 %v212
  %275 = vmatprep.subr.bf16.mxu0 0
  %276 = vmatpush1.bf16.msra.mxu0 %v213
  %277 = vmatprep.subr.bf16.mxu0 0
  %278 = vmatpush1.bf16.msra.mxu0 %v214
  %279 = vmatprep.mubr.bf16.mxu0 %v92
  %280 = vmatmul.mubr.bf16.gmra.mrb[0].mxu0 %v91
  %v281 = vpop.f32.mrb[0].mxu0
  %v282 = vadd.f32 0.0, %v281
  %v283 = vpop.f32.mrb[0].mxu0
  %v284 = vpop.f32.mrb[0].mxu0
  %v285 = vadd.f32 0.0, %v284
  %v286 = vpop.f32.mrb[0].mxu0
  %287 = vmatprep.mubr.bf16.mxu0 %v95
  %288 = vmatmul.mubr.bf16.gmra.mrb[0].mxu0 %v94
  %v289 = vpop.f32.mrb[0].mxu0
  %v290 = vadd.f32 0.0, %v289
  %v291 = vpop.f32.mrb[0].mxu0
  %v292 = vpop.f32.mrb[0].mxu0
  %v293 = vadd.f32 0.0, %v292
  %v294 = vpop.f32.mrb[0].mxu0
  %295 = vdwg.mxu0
  %296 = vmatprep.subr.bf16.mxu0 0
  %297 = vmatpush1.bf16.msra.mxu0 %v215
  %298 = vmatprep.subr.bf16.mxu0 0
  %299 = vmatpush1.bf16.msra.mxu0 %v216
  %300 = vmatprep.subr.bf16.mxu0 0
  %301 = vmatpush1.bf16.msra.mxu0 %v217
  %302 = vmatprep.subr.bf16.mxu0 0
  %303 = vmatpush1.bf16.msra.mxu0 %v218
  %304 = vmatprep.subr.bf16.mxu0 0
  %305 = vmatpush1.bf16.msra.mxu0 %v219
  %306 = vmatprep.subr.bf16.mxu0 0
  %307 = vmatpush1.bf16.msra.mxu0 %v220
  %308 = vmatprep.subr.bf16.mxu0 0
  %309 = vmatpush1.bf16.msra.mxu0 %v221
  %310 = vmatprep.subr.bf16.mxu0 0
  %311 = vmatpush1.bf16.msra.mxu0 %v222
  %312 = vmatprep.subr.bf16.mxu0 0
  %313 = vmatpush1.bf16.msra.mxu0 0
  %314 = vmatprep.subr.bf16.mxu0 0
  %315 = vmatpush1.bf16.msra.mxu0 0
  %316 = vmatprep.subr.bf16.mxu0 0
  %317 = vmatpush1.bf16.msra.mxu0 0
  %318 = vmatprep.subr.bf16.mxu0 0
  %319 = vmatpush1.bf16.msra.mxu0 0
  %320 = vmatprep.subr.bf16.mxu0 0
  %321 = vmatpush1.bf16.msra.mxu0 0
  %322 = vmatprep.subr.bf16.mxu0 0
  %323 = vmatpush1.bf16.msra.mxu0 0
  %324 = vmatprep.subr.bf16.mxu0 0
  %325 = vmatpush1.bf16.msra.mxu0 0
  %326 = vmatprep.subr.bf16.mxu0 0
  %327 = vmatpush1.bf16.msra.mxu0 0
  %328 = vmatprep.mubr.bf16.mxu0 0
  %329 = vmatmul.mubr.bf16.gmra.mrb[0].mxu0 %v93
  %v330 = vpop.f32.mrb[0].mxu0
  %v331 = vadd.f32 %v282, %v330
  %v332 = vpop.f32.mrb[0].mxu0
  %v333 = vpop.f32.mrb[0].mxu0
  %v334 = vadd.f32 %v285, %v333
  %v335 = vpop.f32.mrb[0].mxu0
  %336 = vmatprep.mubr.bf16.mxu0 0
  %337 = vmatmul.mubr.bf16.gmra.mrb[0].mxu0 %v96
  %v338 = vpop.f32.mrb[0].mxu0
  %v339 = vadd.f32 %v290, %v338
  %v340 = vpop.f32.mrb[0].mxu0
  %v341 = vpop.f32.mrb[0].mxu0
  %v342 = vadd.f32 %v293, %v341
  %v343 = vpop.f32.mrb[0].mxu0
  %344 = vdwg.mxu0
  %345 = vst [vmem:[%s2] sm:$0xff] %v331
  %346 = vst [vmem:[%s2 + $0x8] sm:$0xff] %v334
  %347 = vst [vmem:[%s2 + $0x10] sm:$0xff] %v339
  %348 = vst [vmem:[%s2 + $0x18] sm:$0xff] %v342
  %349 = vadd.xlane.f32.xlu0 %v331
  %v350 = vpop.xlane.xlu0 %349
  %351 = vadd.xlane.f32.xlu0 %v334
  %v352 = vpop.xlane.xlu0 %351
  %353 = vadd.xlane.f32.xlu0 %v339
  %v354 = vpop.xlane.xlu0 %353
  %355 = vadd.xlane.f32.xlu0 %v342
  %v356 = vpop.xlane.xlu0 %355
  %vm357 = vcmask 7168
  %358 = vst.msk [vmem:[%s3] sm:$0xff] %vm357, %v350
  %359 = vst.msk [vmem:[%s3 + $0x8] sm:$0xff] %vm357, %v352
  %360 = vst.msk [vmem:[%s3 + $0x10] sm:$0xff] %vm357, %v354
  %361 = vst.msk [vmem:[%s3 + $0x18] sm:$0xff] %vm357, %v356
  %v362 = vmul.f32 %v331, %v331
  %v363 = vmul.f32 %v334, %v334
  %v364 = vmul.f32 %v339, %v339
  %v365 = vmul.f32 %v342, %v342
  %366 = vadd.xlane.f32.xlu0 %v362
  %v367 = vpop.xlane.xlu0 %366
  %368 = vadd.xlane.f32.xlu0 %v363
  %v369 = vpop.xlane.xlu0 %368
  %370 = vadd.xlane.f32.xlu0 %v364
  %v371 = vpop.xlane.xlu0 %370
  %372 = vadd.xlane.f32.xlu0 %v365
  %v373 = vpop.xlane.xlu0 %372
  %374 = vst.msk [vmem:[%s4] sm:$0xff] %vm357, %v367
  %375 = vst.msk [vmem:[%s4 + $0x8] sm:$0xff] %vm357, %v369
  %376 = vst.msk [vmem:[%s4 + $0x10] sm:$0xff] %vm357, %v371
  %377 = vst.msk [vmem:[%s4 + $0x18] sm:$0xff] %vm357, %v373
  // Predicated region
  $region10: #{_lambda_.25} parent=0 // pred_check
    _
  $region11: #{_lambda_.25} parent=0 // pred_check_branch
    %379 = sbr.rel (0) target = $region13
  $region12: #{_lambda_.25} parent=0 // pred_region
    _
  $region13: #{_lambda_.25} parent=0 // pred_fallthru
    _
  // Predicated region
  $region14: #{_lambda_.25} parent=0 // pred_check
    _
  $region15: #{_lambda_.25} parent=0 // pred_check_branch
    %381 = sbr.rel (0) target = $region17
  $region16: #{_lambda_.25} parent=0 // pred_region
    _
  $region17: #{_lambda_.25} parent=0 // pred_fallthru
    _
  // Predicated region
  $region18: #{_lambda_.25} parent=0 // pred_check
    _
  $region19: #{_lambda_.25} parent=0 // pred_check_branch
    %383 = sbr.rel (0) target = $region21
  $region20: #{_lambda_.25} parent=0 // pred_region
    _
  $region21: #{_lambda_.25} parent=0 // pred_fallthru
    _
  // Predicated region
  $region22: #{_lambda_.25} parent=0 // pred_check
    _
  $region23: #{_lambda_.25} parent=0 // pred_check_branch
    %385 = sbr.rel (0) target = $region25
  $region24: #{_lambda_.25} parent=0 // pred_region
    _
  $region25: #{_lambda_.25} parent=0 // pred_fallthru
    _
  // Predicated region
  $region26: #{_lambda_.25} parent=0 // pred_check
    _
  $region27: #{_lambda_.25} parent=0 // pred_check_branch
    %387 = sbr.rel (0) target = $region29
  $region28: #{_lambda_.25} parent=0 // pred_region
    _
  $region29: #{_lambda_.25} parent=0 // pred_fallthru
    _
  // Predicated region
  $region30: #{_lambda_.25} parent=0 // pred_check
    _
  $region31: #{_lambda_.25} parent=0 // pred_check_branch
    %389 = sbr.rel (0) target = $region33
  $region32: #{_lambda_.25} parent=0 // pred_region
    _
  $region33: #{_lambda_.25} parent=0 // pred_fallthru
    _

// kernel: _lambda_.28
$region0: #{_lambda_.28}
  #allocation0 [shape = 'u32[]', space=smem, size = 0x4, offset = 0x4, fixed_abs, tag = 'smem constant byte address 0x4 - core index']
  #allocation1 [shape = 'u32[144,128]{1,0:T(1,128)}', space=vmem, size = 0x12000, scoped, tag = 'internal scratch']
  %s0 = inlined_call_operand.vmem [shape: f32[32,128], index: 0, kind: input, shape index: {}]
  %s1 = inlined_call_operand.vmem [shape: f32[32,1], index: 1, kind: input, shape index: {}]
  %s2 = inlined_call_operand.vmem [shape: f32[32,1], index: 2, kind: input, shape index: {}]
  %s3 = inlined_call_operand.vmem [shape: f32[32,128], index: 3, kind: input, shape index: {}]
  %s4 = inlined_call_operand.vmem [shape: f32[32,128], index: 4, kind: output, shape index: {}]
  %s5 = sld [smem:[#allocation0]]
  $region26: #{_lambda_.28} parent=0
    _
  %s7 = ssub.s32 1, %s5
  %s8 = scalar_select 0, %s7, %s5
  // Predicated region
  $region2: #{_lambda_.28} parent=0 // pred_check
    _
  $region3: #{_lambda_.28} parent=0 // pred_check_branch
    %10 = sbr.rel (0) target = $region5
  $region4: #{_lambda_.28} parent=0 // pred_region
    _
  $region5: #{_lambda_.28} parent=0 // pred_fallthru
    _
  // Predicated region
  $region6: #{_lambda_.28} parent=0 // pred_check
    _
  $region7: #{_lambda_.28} parent=0 // pred_check_branch
    %12 = sbr.rel (0) target = $region9
  $region8: #{_lambda_.28} parent=0 // pred_region
    _
  $region9: #{_lambda_.28} parent=0 // pred_fallthru
    _
  // Predicated region
  $region10: #{_lambda_.28} parent=0 // pred_check
    _
  $region11: #{_lambda_.28} parent=0 // pred_check_branch
    %14 = sbr.rel (0) target = $region13
  $region12: #{_lambda_.28} parent=0 // pred_region
    _
  $region13: #{_lambda_.28} parent=0 // pred_fallthru
    _
  // Predicated region
  $region14: #{_lambda_.28} parent=0 // pred_check
    _
  $region15: #{_lambda_.28} parent=0 // pred_check_branch
    %16 = sbr.rel (0) target = $region17
  $region16: #{_lambda_.28} parent=0 // pred_region
    _
  $region17: #{_lambda_.28} parent=0 // pred_fallthru
    _
  %v17 = vld [vmem:[%s0] sm:$0xff]
  %v18 = vld [vmem:[%s0 + $0x8] sm:$0xff]
  %v19 = vld [vmem:[%s0 + $0x10] sm:$0xff]
  %v20 = vld [vmem:[%s0 + $0x18] sm:$0xff]
  %v21 = vld [vmem:[%s1] sm:$0xff]
  %v22 = vld [vmem:[%s1 + $0x8] sm:$0xff]
  %v23 = vld [vmem:[%s1 + $0x10] sm:$0xff]
  %v24 = vld [vmem:[%s1 + $0x18] sm:$0xff]
  %26 = vset.pattern.permute.xlu0 0
  %27 = vperm.xlu0 %26, %v21
  %v28 = vpop.permute.xlu0 %27
  %31 = vset.pattern.permute.xlu0 0
  %32 = vperm.xlu0 %31, %v22
  %v33 = vpop.permute.xlu0 %32
  %36 = vset.pattern.permute.xlu0 0
  %37 = vperm.xlu0 %36, %v23
  %v38 = vpop.permute.xlu0 %37
  %41 = vset.pattern.permute.xlu0 0
  %42 = vperm.xlu0 %41, %v24
  %v43 = vpop.permute.xlu0 %42
  %v45 = vmul.f32 %v17, %v28
  %v46 = vmul.f32 %v18, %v33
  %v47 = vmul.f32 %v19, %v38
  %v48 = vmul.f32 %v20, %v43
  %v49 = vld [vmem:[%s2] sm:$0xff]
  %v50 = vld [vmem:[%s2 + $0x8] sm:$0xff]
  %v51 = vld [vmem:[%s2 + $0x10] sm:$0xff]
  %v52 = vld [vmem:[%s2 + $0x18] sm:$0xff]
  %54 = vset.pattern.permute.xlu0 0
  %55 = vperm.xlu0 %54, %v49
  %v56 = vpop.permute.xlu0 %55
  %59 = vset.pattern.permute.xlu0 0
  %60 = vperm.xlu0 %59, %v50
  %v61 = vpop.permute.xlu0 %60
  %64 = vset.pattern.permute.xlu0 0
  %65 = vperm.xlu0 %64, %v51
  %v66 = vpop.permute.xlu0 %65
  %69 = vset.pattern.permute.xlu0 0
  %70 = vperm.xlu0 %69, %v52
  %v71 = vpop.permute.xlu0 %70
  %v73 = vadd.f32 %v45, %v56
  %v74 = vadd.f32 %v46, %v61
  %v75 = vadd.f32 %v47, %v66
  %v76 = vadd.f32 %v48, %v71
  %v77 = vld [vmem:[%s3] sm:$0xff]
  %v78 = vld [vmem:[%s3 + $0x8] sm:$0xff]
  %v79 = vld [vmem:[%s3 + $0x10] sm:$0xff]
  %v80 = vld [vmem:[%s3 + $0x18] sm:$0xff]
  %v81 = vadd.f32 %v73, %v77
  %v82 = vadd.f32 %v74, %v78
  %v83 = vadd.f32 %v75, %v79
  %v84 = vadd.f32 %v76, %v80
  %85 = vst [vmem:[%s4] sm:$0xff] %v81
  %86 = vst [vmem:[%s4 + $0x8] sm:$0xff] %v82
  %87 = vst [vmem:[%s4 + $0x10] sm:$0xff] %v83
  %88 = vst [vmem:[%s4 + $0x18] sm:$0xff] %v84
  // Predicated region
  $region18: #{_lambda_.28} parent=0 // pred_check
    _
  $region19: #{_lambda_.28} parent=0 // pred_check_branch
    %90 = sbr.rel (0) target = $region21
  $region20: #{_lambda_.28} parent=0 // pred_region
    _
  $region21: #{_lambda_.28} parent=0 // pred_fallthru
    _
  // Predicated region
  $region22: #{_lambda_.28} parent=0 // pred_check
    _
  $region23: #{_lambda_.28} parent=0 // pred_check_branch
    %92 = sbr.rel (0) target = $region25
  $region24: #{_lambda_.28} parent=0 // pred_region
    _
  $region25: #{_lambda_.28} parent=0 // pred_fallthru
    _

// kernel: _lambda_.33
$region0: #{_lambda_.33}
  #allocation0 [shape = 'u32[]', space=smem, size = 0x4, offset = 0x4, fixed_abs, tag = 'smem constant byte address 0x4 - core index']
  #allocation1 [shape = 'u32[144,128]{1,0:T(1,128)}', space=vmem, size = 0x12000, scoped, tag = 'internal scratch']
  %s0 = inlined_call_operand.vmem [shape: bf16[64,128], index: 0, kind: input, shape index: {}]
  %s1 = inlined_call_operand.vmem [shape: bf16[128,128], index: 1, kind: input, shape index: {}]
  %s2 = inlined_call_operand.vmem [shape: f32[64,128], index: 2, kind: output, shape index: {0}]
  %s3 = inlined_call_operand.vmem [shape: f32[1,64,1], index: 3, kind: output, shape index: {1}]
  %s4 = inlined_call_operand.vmem [shape: f32[1,64,1], index: 4, kind: output, shape index: {2}]
  %5 = xla_tuple %s2, %s3, %s4
  %s6 = sld [smem:[#allocation0]]
  $region34: #{_lambda_.33} parent=0
    _
  %s8 = ssub.s32 1, %s6
  %s9 = scalar_select 0, %s8, %s6
  // Predicated region
  $region2: #{_lambda_.33} parent=0 // pred_check
    _
  $region3: #{_lambda_.33} parent=0 // pred_check_branch
    %11 = sbr.rel (0) target = $region5
  $region4: #{_lambda_.33} parent=0 // pred_region
    _
  $region5: #{_lambda_.33} parent=0 // pred_fallthru
    _
  // Predicated region
  $region6: #{_lambda_.33} parent=0 // pred_check
    _
  $region7: #{_lambda_.33} parent=0 // pred_check_branch
    %13 = sbr.rel (0) target = $region9
  $region8: #{_lambda_.33} parent=0 // pred_region
    _
  $region9: #{_lambda_.33} parent=0 // pred_fallthru
    _
  %v15 = vld [vmem:[%s0] sm:$0xf]
  %v16 = vld [vmem:[%s0 + $0x4] sm:$0xf]
  %v17 = vld [vmem:[%s0 + $0x8] sm:$0xf]
  %v18 = vld [vmem:[%s0 + $0xc] sm:$0xf]
  %v19 = vld [vmem:[%s0 + $0x10] sm:$0xf]
  %v20 = vld [vmem:[%s0 + $0x14] sm:$0xf]
  %v21 = vld [vmem:[%s0 + $0x18] sm:$0xf]
  %v22 = vld [vmem:[%s0 + $0x1c] sm:$0xf]
  %v23 = vld [vmem:[%s1] sm:$0xf]
  %v24 = vld [vmem:[%s1 + $0x4] sm:$0xf]
  %v25 = vld [vmem:[%s1 + $0x8] sm:$0xf]
  %v26 = vld [vmem:[%s1 + $0xc] sm:$0xf]
  %v27 = vld [vmem:[%s1 + $0x10] sm:$0xf]
  %v28 = vld [vmem:[%s1 + $0x14] sm:$0xf]
  %v29 = vld [vmem:[%s1 + $0x18] sm:$0xf]
  %v30 = vld [vmem:[%s1 + $0x1c] sm:$0xf]
  %v31 = vld [vmem:[%s1 + $0x20] sm:$0xf]
  %v32 = vld [vmem:[%s1 + $0x24] sm:$0xf]
  %v33 = vld [vmem:[%s1 + $0x28] sm:$0xf]
  %v34 = vld [vmem:[%s1 + $0x2c] sm:$0xf]
  %v35 = vld [vmem:[%s1 + $0x30] sm:$0xf]
  %v36 = vld [vmem:[%s1 + $0x34] sm:$0xf]
  %v37 = vld [vmem:[%s1 + $0x38] sm:$0xf]
  %v38 = vld [vmem:[%s1 + $0x3c] sm:$0xf]
  %v47 = vunpack.c.l.b16 %v15
  %v48 = vunpack.c.l.b16 %v16
  %v49 = vunpack.c.l.b16 %v17
  %v50 = vunpack.c.l.b16 %v18
  %v51 = vunpack.c.l.b16 %v19
  %v52 = vunpack.c.l.b16 %v20
  %v53 = vunpack.c.l.b16 %v21
  %v54 = vunpack.c.l.b16 %v22
  %v55 = vpack.c.b16 %v48, %v47
  %v56 = vpack.c.b16 %v50, %v49
  %v57 = vpack.c.b16 %v52, %v51
  %v58 = vpack.c.b16 %v54, %v53
  %v79 = vunpack.c.l.b16 %v23
  %v80 = vunpack.c.l.b16 %v24
  %v81 = vunpack.c.l.b16 %v25
  %v82 = vunpack.c.l.b16 %v26
  %v83 = vunpack.c.l.b16 %v27
  %v84 = vunpack.c.l.b16 %v28
  %v85 = vunpack.c.l.b16 %v29
  %v86 = vunpack.c.l.b16 %v30
  %v87 = vunpack.c.l.b16 %v31
  %v88 = vunpack.c.l.b16 %v32
  %v89 = vunpack.c.l.b16 %v33
  %v90 = vunpack.c.l.b16 %v34
  %v91 = vunpack.c.l.b16 %v35
  %v92 = vunpack.c.l.b16 %v36
  %v93 = vunpack.c.l.b16 %v37
  %v94 = vunpack.c.l.b16 %v38
  %v95 = vpack.c.b16 %v80, %v79
  %v96 = vpack.c.b16 %v82, %v81
  %v97 = vpack.c.b16 %v84, %v83
  %v98 = vpack.c.b16 %v86, %v85
  %v99 = vpack.c.b16 %v88, %v87
  %v100 = vpack.c.b16 %v90, %v89
  %v101 = vpack.c.b16 %v92, %v91
  %v102 = vpack.c.b16 %v94, %v93
  %111 = vmatprep.subr.bf16.mxu0 0
  %112 = vmatpush1.bf16.msra.mxu0 %v95
  %113 = vmatprep.subr.bf16.mxu0 0
  %114 = vmatpush1.bf16.msra.mxu0 %v96
  %115 = vmatprep.subr.bf16.mxu0 0
  %116 = vmatpush1.bf16.msra.mxu0 %v97
  %117 = vmatprep.subr.bf16.mxu0 0
  %118 = vmatpush1.bf16.msra.mxu0 %v98
  %119 = vmatprep.subr.bf16.mxu0 0
  %120 = vmatpush1.bf16.msra.mxu0 %v99
  %121 = vmatprep.subr.bf16.mxu0 0
  %122 = vmatpush1.bf16.msra.mxu0 %v100
  %123 = vmatprep.subr.bf16.mxu0 0
  %124 = vmatpush1.bf16.msra.mxu0 %v101
  %125 = vmatprep.subr.bf16.mxu0 0
  %126 = vmatpush1.bf16.msra.mxu0 %v102
  %127 = vmatprep.subr.bf16.mxu0 0
  %128 = vmatpush1.bf16.msra.mxu0 0
  %129 = vmatprep.subr.bf16.mxu0 0
  %130 = vmatpush1.bf16.msra.mxu0 0
  %131 = vmatprep.subr.bf16.mxu0 0
  %132 = vmatpush1.bf16.msra.mxu0 0
  %133 = vmatprep.subr.bf16.mxu0 0
  %134 = vmatpush1.bf16.msra.mxu0 0
  %135 = vmatprep.subr.bf16.mxu0 0
  %136 = vmatpush1.bf16.msra.mxu0 0
  %137 = vmatprep.subr.bf16.mxu0 0
  %138 = vmatpush1.bf16.msra.mxu0 0
  %139 = vmatprep.subr.bf16.mxu0 0
  %140 = vmatpush1.bf16.msra.mxu0 0
  %141 = vmatprep.subr.bf16.mxu0 0
  %142 = vmatpush1.bf16.msra.mxu0 0
  %143 = vmatprep.mubr.bf16.mxu0 0
  %144 = vmatmul.mubr.bf16.gmra.mrb[0].mxu0 %v55
  %v145 = vpop.f32.mrb[0].mxu0
  %v146 = vadd.f32 0.0, %v145
  %v147 = vpop.f32.mrb[0].mxu0
  %v148 = vpop.f32.mrb[0].mxu0
  %v149 = vadd.f32 0.0, %v148
  %v150 = vpop.f32.mrb[0].mxu0
  %151 = vmatprep.mubr.bf16.mxu0 0
  %152 = vmatmul.mubr.bf16.gmra.mrb[0].mxu0 %v56
  %v153 = vpop.f32.mrb[0].mxu0
  %v154 = vadd.f32 0.0, %v153
  %v155 = vpop.f32.mrb[0].mxu0
  %v156 = vpop.f32.mrb[0].mxu0
  %v157 = vadd.f32 0.0, %v156
  %v158 = vpop.f32.mrb[0].mxu0
  %159 = vmatprep.mubr.bf16.mxu0 0
  %160 = vmatmul.mubr.bf16.gmra.mrb[0].mxu0 %v57
  %v161 = vpop.f32.mrb[0].mxu0
  %v162 = vadd.f32 0.0, %v161
  %v163 = vpop.f32.mrb[0].mxu0
  %v164 = vpop.f32.mrb[0].mxu0
  %v165 = vadd.f32 0.0, %v164
  %v166 = vpop.f32.mrb[0].mxu0
  %167 = vmatprep.mubr.bf16.mxu0 0
  %168 = vmatmul.mubr.bf16.gmra.mrb[0].mxu0 %v58
  %v169 = vpop.f32.mrb[0].mxu0
  %v170 = vadd.f32 0.0, %v169
  %v171 = vpop.f32.mrb[0].mxu0
  %v172 = vpop.f32.mrb[0].mxu0
  %v173 = vadd.f32 0.0, %v172
  %v174 = vpop.f32.mrb[0].mxu0
  %175 = vdwg.mxu0
  %176 = vst [vmem:[%s2] sm:$0xff] %v146
  %177 = vst [vmem:[%s2 + $0x8] sm:$0xff] %v149
  %178 = vst [vmem:[%s2 + $0x10] sm:$0xff] %v154
  %179 = vst [vmem:[%s2 + $0x18] sm:$0xff] %v157
  %180 = vst [vmem:[%s2 + $0x20] sm:$0xff] %v162
  %181 = vst [vmem:[%s2 + $0x28] sm:$0xff] %v165
  %182 = vst [vmem:[%s2 + $0x30] sm:$0xff] %v170
  %183 = vst [vmem:[%s2 + $0x38] sm:$0xff] %v173
  %184 = vadd.xlane.f32.xlu0 %v146
  %v185 = vpop.xlane.xlu0 %184
  %186 = vadd.xlane.f32.xlu0 %v149
  %v187 = vpop.xlane.xlu0 %186
  %188 = vadd.xlane.f32.xlu0 %v154
  %v189 = vpop.xlane.xlu0 %188
  %190 = vadd.xlane.f32.xlu0 %v157
  %v191 = vpop.xlane.xlu0 %190
  %192 = vadd.xlane.f32.xlu0 %v162
  %v193 = vpop.xlane.xlu0 %192
  %194 = vadd.xlane.f32.xlu0 %v165
  %v195 = vpop.xlane.xlu0 %194
  %196 = vadd.xlane.f32.xlu0 %v170
  %v197 = vpop.xlane.xlu0 %196
  %198 = vadd.xlane.f32.xlu0 %v173
  %v199 = vpop.xlane.xlu0 %198
  %vm200 = vcmask 7168
  %201 = vst.msk [vmem:[%s3] sm:$0xff] %vm200, %v185
  %202 = vst.msk [vmem:[%s3 + $0x8] sm:$0xff] %vm200, %v187
  %203 = vst.msk [vmem:[%s3 + $0x10] sm:$0xff] %vm200, %v189
  %204 = vst.msk [vmem:[%s3 + $0x18] sm:$0xff] %vm200, %v191
  %205 = vst.msk [vmem:[%s3 + $0x20] sm:$0xff] %vm200, %v193
  %206 = vst.msk [vmem:[%s3 + $0x28] sm:$0xff] %vm200, %v195
  %207 = vst.msk [vmem:[%s3 + $0x30] sm:$0xff] %vm200, %v197
  %208 = vst.msk [vmem:[%s3 + $0x38] sm:$0xff] %vm200, %v199
  %v209 = vmul.f32 %v146, %v146
  %v210 = vmul.f32 %v149, %v149
  %v211 = vmul.f32 %v154, %v154
  %v212 = vmul.f32 %v157, %v157
  %v213 = vmul.f32 %v162, %v162
  %v214 = vmul.f32 %v165, %v165
  %v215 = vmul.f32 %v170, %v170
  %v216 = vmul.f32 %v173, %v173
  %217 = vadd.xlane.f32.xlu0 %v209
  %v218 = vpop.xlane.xlu0 %217
  %219 = vadd.xlane.f32.xlu0 %v210
  %v220 = vpop.xlane.xlu0 %219
  %221 = vadd.xlane.f32.xlu0 %v211
  %v222 = vpop.xlane.xlu0 %221
  %223 = vadd.xlane.f32.xlu0 %v212
  %v224 = vpop.xlane.xlu0 %223
  %225 = vadd.xlane.f32.xlu0 %v213
  %v226 = vpop.xlane.xlu0 %225
  %227 = vadd.xlane.f32.xlu0 %v214
  %v228 = vpop.xlane.xlu0 %227
  %229 = vadd.xlane.f32.xlu0 %v215
  %v230 = vpop.xlane.xlu0 %229
  %231 = vadd.xlane.f32.xlu0 %v216
  %v232 = vpop.xlane.xlu0 %231
  %233 = vst.msk [vmem:[%s4] sm:$0xff] %vm200, %v218
  %234 = vst.msk [vmem:[%s4 + $0x8] sm:$0xff] %vm200, %v220
  %235 = vst.msk [vmem:[%s4 + $0x10] sm:$0xff] %vm200, %v222
  %236 = vst.msk [vmem:[%s4 + $0x18] sm:$0xff] %vm200, %v224
  %237 = vst.msk [vmem:[%s4 + $0x20] sm:$0xff] %vm200, %v226
  %238 = vst.msk [vmem:[%s4 + $0x28] sm:$0xff] %vm200, %v228
  %239 = vst.msk [vmem:[%s4 + $0x30] sm:$0xff] %vm200, %v230
  %240 = vst.msk [vmem:[%s4 + $0x38] sm:$0xff] %vm200, %v232
  // Predicated region
  $region10: #{_lambda_.33} parent=0 // pred_check
    _
  $region11: #{_lambda_.33} parent=0 // pred_check_branch
    %242 = sbr.rel (0) target = $region13
  $region12: #{_lambda_.33} parent=0 // pred_region
    _
  $region13: #{_lambda_.33} parent=0 // pred_fallthru
    _
  // Predicated region
  $region14: #{_lambda_.33} parent=0 // pred_check
    _
  $region15: #{_lambda_.33} parent=0 // pred_check_branch
    %244 = sbr.rel (0) target = $region17
  $region16: #{_lambda_.33} parent=0 // pred_region
    _
  $region17: #{_lambda_.33} parent=0 // pred_fallthru
    _
  // Predicated region
  $region18: #{_lambda_.33} parent=0 // pred_check
    _
  $region19: #{_lambda_.33} parent=0 // pred_check_branch
    %246 = sbr.rel (0) target = $region21
  $region20: #{_lambda_.33} parent=0 // pred_region
    _
  $region21: #{_lambda_.33} parent=0 // pred_fallthru
    _
  // Predicated region
  $region22: #{_lambda_.33} parent=0 // pred_check
    _
  $region23: #{_lambda_.33} parent=0 // pred_check_branch
    %248 = sbr.rel (0) target = $region25
  $region24: #{_lambda_.33} parent=0 // pred_region
    _
  $region25: #{_lambda_.33} parent=0 // pred_fallthru
    _
  // Predicated region
  $region26: #{_lambda_.33} parent=0 // pred_check
    _
  $region27: #{_lambda_.33} parent=0 // pred_check_branch
    %250 = sbr.rel (0) target = $region29
  $region28: #{_lambda_.33} parent=0 // pred_region
    _
  $region29: #{_lambda_.33} parent=0 // pred_fallthru
    _
  // Predicated region
  $region30: #{_lambda_.33} parent=0 // pred_check
    _
  $region31: #{_lambda_.33} parent=0 // pred_check_branch
    %252 = sbr.rel (0) target = $region33
  $region32: #{_lambda_.33} parent=0 // pred_region
    _
  $region33: #{_lambda_.33} parent=0 // pred_fallthru
    _

// kernel: tile.27
$region0: #{tile.27}
  #allocation0 [shape = 's32[1]{0}', space=sflag, size = 0x4, scoped, tag = 'scoped memory for tile.27']
  %s0 = inlined_call_operand.vmem [shape: f32[16], index: 0, kind: input, shape index: {}]
  %s1 = inlined_call_operand.vmem [shape: f32[4,16], index: 1, kind: output, shape index: {}]
  // Predicated region
  $region2: #{tile.27} parent=0 // pred_check
    _
  $region3: #{tile.27} parent=0 // pred_check_branch
    %3 = sbr.rel (0) target = $region5
  $region4: #{tile.27} parent=0 // pred_region
    _
  $region5: #{tile.27} parent=0 // pred_fallthru
    _
  %v4 = vld [vmem:[%s0] ss:$0 sm:$0xff]
  %5 = vst [vmem:[%s1] sm:$0xf] %v4

// kernel: tile.0
$region0: #{tile.0}
  %s0 = inlined_call_operand.vmem [shape: f32[4,16], index: 0, kind: input, shape index: {}]
  %s1 = inlined_call_operand.vmem [shape: f32[64,1], index: 1, kind: output, shape index: {}]
  $region1: #{tile.0} parent=0
    #allocation0 [shape = 'u8[4096]{0}', space=vmem, size = 0x1000, scoped, tag = 'scoped mem for input reshape']
    %s3 = sshllo.u32 0, 4
    %v4 = vld [vmem:[%s0] sm:%s3]
    %5 = vst [vmem:[#allocation0] sm:%s3] %v4
    %v6 = vld [vmem:[#allocation0] sm:$0xf]
    %vm7 = vcmask 7168
    %8 = vst.msk [vmem:[%s1] ss:$16 sm:$0x3] %vm7, %v6
    %9 = vst.msk [vmem:[%s1] ss:$16 sm:$0xc] %vm7, %v6
    %v10 = vld [vmem:[#allocation0] sm:$0xf]
    %11 = vrot.lane.b32.xlu0 %v10, 127
    %v12 = vpop.permute.xlu0 %11
    %vm13 = vcmask 7168
    %s14 = scalar_lea.vmem %s1, 1
    %15 = vst.msk [vmem:[%s14] ss:$16 sm:$0x3] %vm13, %v12
    %s16 = scalar_lea.vmem %s1, 1
    %17 = vst.msk [vmem:[%s16] ss:$16 sm:$0xc] %vm13, %v12
    %v18 = vld [vmem:[#allocation0] sm:$0xf]
    %19 = vrot.lane.b32.xlu0 %v18, 126
    %v20 = vpop.permute.xlu0 %19
    %vm21 = vcmask 7168
    %s22 = scalar_lea.vmem %s1, 2
    %23 = vst.msk [vmem:[%s22] ss:$16 sm:$0x3] %vm21, %v20
    %s24 = scalar_lea.vmem %s1, 2
    %25 = vst.msk [vmem:[%s24] ss:$16 sm:$0xc] %vm21, %v20
    %v26 = vld [vmem:[#allocation0] sm:$0xf]
    %27 = vrot.lane.b32.xlu0 %v26, 125
    %v28 = vpop.permute.xlu0 %27
    %vm29 = vcmask 7168
    %s30 = scalar_lea.vmem %s1, 3
    %31 = vst.msk [vmem:[%s30] ss:$16 sm:$0x3] %vm29, %v28
    %s32 = scalar_lea.vmem %s1, 3
    %33 = vst.msk [vmem:[%s32] ss:$16 sm:$0xc] %vm29, %v28
    %v34 = vld [vmem:[#allocation0] sm:$0xf]
    %35 = vrot.lane.b32.xlu0 %v34, 124
    %v36 = vpop.permute.xlu0 %35
    %vm37 = vcmask 7168
    %s38 = scalar_lea.vmem %s1, 4
    %39 = vst.msk [vmem:[%s38] ss:$16 sm:$0x3] %vm37, %v36
    %s40 = scalar_lea.vmem %s1, 4
    %41 = vst.msk [vmem:[%s40] ss:$16 sm:$0xc] %vm37, %v36
    %v42 = vld [vmem:[#allocation0] sm:$0xf]
    %43 = vrot.lane.b32.xlu0 %v42, 123
    %v44 = vpop.permute.xlu0 %43
    %vm45 = vcmask 7168
    %s46 = scalar_lea.vmem %s1, 5
    %47 = vst.msk [vmem:[%s46] ss:$16 sm:$0x3] %vm45, %v44
    %s48 = scalar_lea.vmem %s1, 5
    %49 = vst.msk [vmem:[%s48] ss:$16 sm:$0xc] %vm45, %v44
    %v50 = vld [vmem:[#allocation0] sm:$0xf]
    %51 = vrot.lane.b32.xlu0 %v50, 122
    %v52 = vpop.permute.xlu0 %51
    %vm53 = vcmask 7168
    %s54 = scalar_lea.vmem %s1, 6
    %55 = vst.msk [vmem:[%s54] ss:$16 sm:$0x3] %vm53, %v52
    %s56 = scalar_lea.vmem %s1, 6
    %57 = vst.msk [vmem:[%s56] ss:$16 sm:$0xc] %vm53, %v52
    %v58 = vld [vmem:[#allocation0] sm:$0xf]
    %59 = vrot.lane.b32.xlu0 %v58, 121
    %v60 = vpop.permute.xlu0 %59
    %vm61 = vcmask 7168
    %s62 = scalar_lea.vmem %s1, 7
    %63 = vst.msk [vmem:[%s62] ss:$16 sm:$0x3] %vm61, %v60
    %s64 = scalar_lea.vmem %s1, 7
    %65 = vst.msk [vmem:[%s64] ss:$16 sm:$0xc] %vm61, %v60
    %v66 = vld [vmem:[#allocation0] sm:$0xf]
    %67 = vrot.lane.b32.xlu0 %v66, 120
    %v68 = vpop.permute.xlu0 %67
    %vm69 = vcmask 7168
    %s70 = scalar_lea.vmem %s1, 8
    %71 = vst.msk [vmem:[%s70] ss:$16 sm:$0x3] %vm69, %v68
    %s72 = scalar_lea.vmem %s1, 8
    %73 = vst.msk [vmem:[%s72] ss:$16 sm:$0xc] %vm69, %v68
    %v74 = vld [vmem:[#allocation0] sm:$0xf]
    %75 = vrot.lane.b32.xlu0 %v74, 119
    %v76 = vpop.permute.xlu0 %75
    %vm77 = vcmask 7168
    %s78 = scalar_lea.vmem %s1, 9
    %79 = vst.msk [vmem:[%s78] ss:$16 sm:$0x3] %vm77, %v76
    %s80 = scalar_lea.vmem %s1, 9
    %81 = vst.msk [vmem:[%s80] ss:$16 sm:$0xc] %vm77, %v76
    %v82 = vld [vmem:[#allocation0] sm:$0xf]
    %83 = vrot.lane.b32.xlu0 %v82, 118
    %v84 = vpop.permute.xlu0 %83
    %vm85 = vcmask 7168
    %s86 = scalar_lea.vmem %s1, 10
    %87 = vst.msk [vmem:[%s86] ss:$16 sm:$0x3] %vm85, %v84
    %s88 = scalar_lea.vmem %s1, 10
    %89 = vst.msk [vmem:[%s88] ss:$16 sm:$0xc] %vm85, %v84
    %v90 = vld [vmem:[#allocation0] sm:$0xf]
    %91 = vrot.lane.b32.xlu0 %v90, 117
    %v92 = vpop.permute.xlu0 %91
    %vm93 = vcmask 7168
    %s94 = scalar_lea.vmem %s1, 11
    %95 = vst.msk [vmem:[%s94] ss:$16 sm:$0x3] %vm93, %v92
    %s96 = scalar_lea.vmem %s1, 11
    %97 = vst.msk [vmem:[%s96] ss:$16 sm:$0xc] %vm93, %v92
    %v98 = vld [vmem:[#allocation0] sm:$0xf]
    %99 = vrot.lane.b32.xlu0 %v98, 116
    %v100 = vpop.permute.xlu0 %99
    %vm101 = vcmask 7168
    %s102 = scalar_lea.vmem %s1, 12
    %103 = vst.msk [vmem:[%s102] ss:$16 sm:$0x3] %vm101, %v100
    %s104 = scalar_lea.vmem %s1, 12
    %105 = vst.msk [vmem:[%s104] ss:$16 sm:$0xc] %vm101, %v100
    %v106 = vld [vmem:[#allocation0] sm:$0xf]
    %107 = vrot.lane.b32.xlu0 %v106, 115
    %v108 = vpop.permute.xlu0 %107
    %vm109 = vcmask 7168
    %s110 = scalar_lea.vmem %s1, 13
    %111 = vst.msk [vmem:[%s110] ss:$16 sm:$0x3] %vm109, %v108
    %s112 = scalar_lea.vmem %s1, 13
    %113 = vst.msk [vmem:[%s112] ss:$16 sm:$0xc] %vm109, %v108
    %v114 = vld [vmem:[#allocation0] sm:$0xf]
    %115 = vrot.lane.b32.xlu0 %v114, 114
    %v116 = vpop.permute.xlu0 %115
    %vm117 = vcmask 7168
    %s118 = scalar_lea.vmem %s1, 14
    %119 = vst.msk [vmem:[%s118] ss:$16 sm:$0x3] %vm117, %v116
    %s120 = scalar_lea.vmem %s1, 14
    %121 = vst.msk [vmem:[%s120] ss:$16 sm:$0xc] %vm117, %v116
    %v122 = vld [vmem:[#allocation0] sm:$0xf]
    %123 = vrot.lane.b32.xlu0 %v122, 113
    %v124 = vpop.permute.xlu0 %123
    %vm125 = vcmask 7168
    %s126 = scalar_lea.vmem %s1, 15
    %127 = vst.msk [vmem:[%s126] ss:$16 sm:$0x3] %vm125, %v124
    %s128 = scalar_lea.vmem %s1, 15
    %129 = vst.msk [vmem:[%s128] ss:$16 sm:$0xc] %vm125, %v124

// kernel: _lambda_.34
$region0: #{_lambda_.34}
  #allocation0 [shape = 'u32[]', space=smem, size = 0x4, offset = 0x4, fixed_abs, tag = 'smem constant byte address 0x4 - core index']
  #allocation1 [shape = 'u32[144,128]{1,0:T(1,128)}', space=vmem, size = 0x12000, scoped, tag = 'internal scratch']
  %s0 = inlined_call_operand.vmem [shape: f32[64,128], index: 0, kind: input, shape index: {}]
  %s1 = inlined_call_operand.vmem [shape: f32[64,1], index: 1, kind: input, shape index: {}]
  %s2 = inlined_call_operand.vmem [shape: f32[64,1], index: 2, kind: input, shape index: {}]
  %s3 = inlined_call_operand.vmem [shape: f32[64,128], index: 3, kind: output, shape index: {}]
  %s4 = sld [smem:[#allocation0]]
  $region22: #{_lambda_.34} parent=0
    _
  %s6 = ssub.s32 1, %s4
  %s7 = scalar_select 0, %s6, %s4
  // Predicated region
  $region2: #{_lambda_.34} parent=0 // pred_check
    _
  $region3: #{_lambda_.34} parent=0 // pred_check_branch
    %9 = sbr.rel (0) target = $region5
  $region4: #{_lambda_.34} parent=0 // pred_region
    _
  $region5: #{_lambda_.34} parent=0 // pred_fallthru
    _
  // Predicated region
  $region6: #{_lambda_.34} parent=0 // pred_check
    _
  $region7: #{_lambda_.34} parent=0 // pred_check_branch
    %11 = sbr.rel (0) target = $region9
  $region8: #{_lambda_.34} parent=0 // pred_region
    _
  $region9: #{_lambda_.34} parent=0 // pred_fallthru
    _
  // Predicated region
  $region10: #{_lambda_.34} parent=0 // pred_check
    _
  $region11: #{_lambda_.34} parent=0 // pred_check_branch
    %13 = sbr.rel (0) target = $region13
  $region12: #{_lambda_.34} parent=0 // pred_region
    _
  $region13: #{_lambda_.34} parent=0 // pred_fallthru
    _
  %v14 = vld [vmem:[%s0] sm:$0xff]
  %v15 = vld [vmem:[%s0 + $0x8] sm:$0xff]
  %v16 = vld [vmem:[%s0 + $0x10] sm:$0xff]
  %v17 = vld [vmem:[%s0 + $0x18] sm:$0xff]
  %v18 = vld [vmem:[%s0 + $0x20] sm:$0xff]
  %v19 = vld [vmem:[%s0 + $0x28] sm:$0xff]
  %v20 = vld [vmem:[%s0 + $0x30] sm:$0xff]
  %v21 = vld [vmem:[%s0 + $0x38] sm:$0xff]
  %v22 = vld [vmem:[%s1] sm:$0xff]
  %v23 = vld [vmem:[%s1 + $0x8] sm:$0xff]
  %v24 = vld [vmem:[%s1 + $0x10] sm:$0xff]
  %v25 = vld [vmem:[%s1 + $0x18] sm:$0xff]
  %v26 = vld [vmem:[%s1 + $0x20] sm:$0xff]
  %v27 = vld [vmem:[%s1 + $0x28] sm:$0xff]
  %v28 = vld [vmem:[%s1 + $0x30] sm:$0xff]
  %v29 = vld [vmem:[%s1 + $0x38] sm:$0xff]
  %31 = vset.pattern.permute.xlu0 0
  %32 = vperm.xlu0 %31, %v22
  %v33 = vpop.permute.xlu0 %32
  %36 = vset.pattern.permute.xlu0 0
  %37 = vperm.xlu0 %36, %v23
  %v38 = vpop.permute.xlu0 %37
  %41 = vset.pattern.permute.xlu0 0
  %42 = vperm.xlu0 %41, %v24
  %v43 = vpop.permute.xlu0 %42
  %46 = vset.pattern.permute.xlu0 0
  %47 = vperm.xlu0 %46, %v25
  %v48 = vpop.permute.xlu0 %47
  %51 = vset.pattern.permute.xlu0 0
  %52 = vperm.xlu0 %51, %v26
  %v53 = vpop.permute.xlu0 %52
  %56 = vset.pattern.permute.xlu0 0
  %57 = vperm.xlu0 %56, %v27
  %v58 = vpop.permute.xlu0 %57
  %61 = vset.pattern.permute.xlu0 0
  %62 = vperm.xlu0 %61, %v28
  %v63 = vpop.permute.xlu0 %62
  %66 = vset.pattern.permute.xlu0 0
  %67 = vperm.xlu0 %66, %v29
  %v68 = vpop.permute.xlu0 %67
  %v70 = vmul.f32 %v14, %v33
  %v71 = vmul.f32 %v15, %v38
  %v72 = vmul.f32 %v16, %v43
  %v73 = vmul.f32 %v17, %v48
  %v74 = vmul.f32 %v18, %v53
  %v75 = vmul.f32 %v19, %v58
  %v76 = vmul.f32 %v20, %v63
  %v77 = vmul.f32 %v21, %v68
  %v78 = vld [vmem:[%s2] sm:$0xff]
  %v79 = vld [vmem:[%s2 + $0x8] sm:$0xff]
  %v80 = vld [vmem:[%s2 + $0x10] sm:$0xff]
  %v81 = vld [vmem:[%s2 + $0x18] sm:$0xff]
  %v82 = vld [vmem:[%s2 + $0x20] sm:$0xff]
  %v83 = vld [vmem:[%s2 + $0x28] sm:$0xff]
  %v84 = vld [vmem:[%s2 + $0x30] sm:$0xff]
  %v85 = vld [vmem:[%s2 + $0x38] sm:$0xff]
  %87 = vset.pattern.permute.xlu0 0
  %88 = vperm.xlu0 %87, %v78
  %v89 = vpop.permute.xlu0 %88
  %92 = vset.pattern.permute.xlu0 0
  %93 = vperm.xlu0 %92, %v79
  %v94 = vpop.permute.xlu0 %93
  %97 = vset.pattern.permute.xlu0 0
  %98 = vperm.xlu0 %97, %v80
  %v99 = vpop.permute.xlu0 %98
  %102 = vset.pattern.permute.xlu0 0
  %103 = vperm.xlu0 %102, %v81
  %v104 = vpop.permute.xlu0 %103
  %107 = vset.pattern.permute.xlu0 0
  %108 = vperm.xlu0 %107, %v82
  %v109 = vpop.permute.xlu0 %108
  %112 = vset.pattern.permute.xlu0 0
  %113 = vperm.xlu0 %112, %v83
  %v114 = vpop.permute.xlu0 %113
  %117 = vset.pattern.permute.xlu0 0
  %118 = vperm.xlu0 %117, %v84
  %v119 = vpop.permute.xlu0 %118
  %122 = vset.pattern.permute.xlu0 0
  %123 = vperm.xlu0 %122, %v85
  %v124 = vpop.permute.xlu0 %123
  %v126 = vadd.f32 %v70, %v89
  %v127 = vadd.f32 %v71, %v94
  %v128 = vadd.f32 %v72, %v99
  %v129 = vadd.f32 %v73, %v104
  %v130 = vadd.f32 %v74, %v109
  %v131 = vadd.f32 %v75, %v114
  %v132 = vadd.f32 %v76, %v119
  %v133 = vadd.f32 %v77, %v124
  %v134 = vmax.f32 %v126, 0.0
  %v135 = vmax.f32 %v127, 0.0
  %v136 = vmax.f32 %v128, 0.0
  %v137 = vmax.f32 %v129, 0.0
  %v138 = vmax.f32 %v130, 0.0
  %v139 = vmax.f32 %v131, 0.0
  %v140 = vmax.f32 %v132, 0.0
  %v141 = vmax.f32 %v133, 0.0
  %142 = vst [vmem:[%s3] sm:$0xff] %v134
  %143 = vst [vmem:[%s3 + $0x8] sm:$0xff] %v135
  %144 = vst [vmem:[%s3 + $0x10] sm:$0xff] %v136
  %145 = vst [vmem:[%s3 + $0x18] sm:$0xff] %v137
  %146 = vst [vmem:[%s3 + $0x20] sm:$0xff] %v138
  %147 = vst [vmem:[%s3 + $0x28] sm:$0xff] %v139
  %148 = vst [vmem:[%s3 + $0x30] sm:$0xff] %v140
  %149 = vst [vmem:[%s3 + $0x38] sm:$0xff] %v141
  // Predicated region
  $region14: #{_lambda_.34} parent=0 // pred_check
    _
  $region15: #{_lambda_.34} parent=0 // pred_check_branch
    %151 = sbr.rel (0) target = $region17
  $region16: #{_lambda_.34} parent=0 // pred_region
    _
  $region17: #{_lambda_.34} parent=0 // pred_fallthru
    _
  // Predicated region
  $region18: #{_lambda_.34} parent=0 // pred_check
    _
  $region19: #{_lambda_.34} parent=0 // pred_check_branch
    %153 = sbr.rel (0) target = $region21
  $region20: #{_lambda_.34} parent=0 // pred_region
    _
  $region21: #{_lambda_.34} parent=0 // pred_fallthru
    _

// kernel: _lambda_.35
$region0: #{_lambda_.35}
  #allocation0 [shape = 'u32[]', space=smem, size = 0x4, offset = 0x4, fixed_abs, tag = 'smem constant byte address 0x4 - core index']
  #allocation1 [shape = 'u32[144,128]{1,0:T(1,128)}', space=vmem, size = 0x12000, scoped, tag = 'internal scratch']
  %s0 = inlined_call_operand.vmem [shape: bf16[32,128], index: 0, kind: input, shape index: {}]
  %s1 = inlined_call_operand.vmem [shape: bf16[128,512], index: 1, kind: input, shape index: {}]
  %s2 = inlined_call_operand.vmem [shape: f32[32,512], index: 2, kind: output, shape index: {0}]
  %s3 = inlined_call_operand.vmem [shape: f32[2,32,1], index: 3, kind: output, shape index: {1}]
  %s4 = inlined_call_operand.vmem [shape: f32[2,32,1], index: 4, kind: output, shape index: {2}]
  %5 = xla_tuple %s2, %s3, %s4
  %s6 = sld [smem:[#allocation0]]
  $region114: #{_lambda_.35} parent=0
    _
  %s8 = ssub.s32 1, %s6
  %s9 = scalar_select 0, %s8, %s6
  $region1: #{_lambda_.35} parent=0
    #allocation2 [shape = 'u8[131072]{0}', space=vmem, size = 0x20000, scoped, tag = 'input window, operand 1']
    #allocation3 [shape = 'u8[65536]{0}', space=vmem, size = 0x10000, scoped, tag = 'output window, operand 0']
    loop: start=0, step=1, limit=4
    $region2: #{_lambda_.35} parent=1 // loop_pre_header
      _
    $region3: #{_lambda_.35} parent=1 // loop_header
      %s11 = sphi 0, %s15
      %p12 = scmp.ge.s32.totalorder %s11, 4
      %s19 = sphi 0, %s19
      %s21 = sphi 0, %s19
      %s22 = sphi 0, %s21
      %s36 = sphi 0, %s22
      %s42 = sphi 0, %s44
      %s45 = sphi 0, %s42
      %s46 = sphi 0, %s45
      %s62 = sphi 0, %s46
      %s68 = sphi 0, %s70
      %s71 = sphi 0, %s68
      %s72 = sphi 0, %s71
      %s88 = sphi 0, %s72
      %s94 = sphi 0, %s96
      %s97 = sphi 0, %s94
      %s98 = sphi 0, %s97
      %s114 = sphi 0, %s98
      %s120 = sphi 0, %s122
      %s123 = sphi 0, %s120
      %s124 = sphi 0, %s123
      %s140 = sphi 0, %s124
    $region4: #{_lambda_.35} parent=1 // loop_header_branch
      %14 = sbr.rel (%p12) target = $region8
    $region5: #{_lambda_.35} parent=1 // loop_body
      %s16 = ssub.s32 %s11, 1
      %s17 = ssub.s32 %s11, 2
      %s18 = sadd.s32 %s11, 1
      %s20 = sadd.s32 %s19, 1
      %p23 = scmp.eq.s32.totalorder %s11, 1
      %p24 = scmp.ne.s32.totalorder %s19, %s21
      %p25 = scmp.eq.s32.totalorder %s11, 0
      %p26 = por %p24, %p25
      %p27 = scmp.ne.s32.totalorder %s19, %s21
      %p28 = scmp.eq.s32.totalorder %s16, 1
      %p29 = por %p27, %p28
      %p30 = scmp.ne.s32.totalorder %s21, %s22
      %p31 = scmp.eq.s32.totalorder %s16, 0
      %p32 = por %p30, %p31
      %p33 = scmp.ne.s32.totalorder %s21, %s22
      %p34 = scmp.eq.s32.totalorder %s17, 1
      %p35 = por %p33, %p34
      %p37 = scmp.ne.s32.totalorder %s22, %s36
      %p38 = scmp.eq.s32.totalorder %s17, 0
      %p39 = por %p37, %p38
      %s40 = ssub.s32 %s11, %s18
      %p41 = scmp.eq.s32.totalorder %s40, 0
      %s43 = sadd.s32 %s42, 1
      %s44 = scalar_select %p41, %s42, %s43
      %p47 = pneg %p41
      %p48 = scmp.eq.s32.totalorder %s11, 1
      %p49 = por %p47, %p48
      %p50 = scmp.ne.s32.totalorder %s42, %s45
      %p51 = scmp.eq.s32.totalorder %s11, 0
      %p52 = por %p50, %p51
      %p53 = scmp.ne.s32.totalorder %s42, %s45
      %p54 = scmp.eq.s32.totalorder %s16, 1
      %p55 = por %p53, %p54
      %p56 = scmp.ne.s32.totalorder %s45, %s46
      %p57 = scmp.eq.s32.totalorder %s16, 0
      %p58 = por %p56, %p57
      %p59 = scmp.ne.s32.totalorder %s45, %s46
      %p60 = scmp.eq.s32.totalorder %s17, 1
      %p61 = por %p59, %p60
      %p63 = scmp.ne.s32.totalorder %s46, %s62
      %p64 = scmp.eq.s32.totalorder %s17, 0
      %p65 = por %p63, %p64
      %s66 = ssub.s32 %s11, %s18
      %p67 = scmp.eq.s32.totalorder %s66, 0
      %s69 = sadd.s32 %s68, 1
      %s70 = scalar_select %p67, %s68, %s69
      %p73 = pneg %p67
      %p74 = scmp.eq.s32.totalorder %s11, 1
      %p75 = por %p73, %p74
      %p76 = scmp.ne.s32.totalorder %s68, %s71
      %p77 = scmp.eq.s32.totalorder %s11, 0
      %p78 = por %p76, %p77
      %p79 = scmp.ne.s32.totalorder %s68, %s71
      %p80 = scmp.eq.s32.totalorder %s16, 1
      %p81 = por %p79, %p80
      %p82 = scmp.ne.s32.totalorder %s71, %s72
      %p83 = scmp.eq.s32.totalorder %s16, 0
      %p84 = por %p82, %p83
      %p85 = scmp.ne.s32.totalorder %s71, %s72
      %p86 = scmp.eq.s32.totalorder %s17, 1
      %p87 = por %p85, %p86
      %p89 = scmp.ne.s32.totalorder %s72, %s88
      %p90 = scmp.eq.s32.totalorder %s17, 0
      %p91 = por %p89, %p90
      %s92 = ssub.s32 %s11, %s18
      %p93 = scmp.eq.s32.totalorder %s92, 0
      %s95 = sadd.s32 %s94, 1
      %s96 = scalar_select %p93, %s94, %s95
      %p99 = pneg %p93
      %p100 = scmp.eq.s32.totalorder %s11, 1
      %p101 = por %p99, %p100
      %p102 = scmp.ne.s32.totalorder %s94, %s97
      %p103 = scmp.eq.s32.totalorder %s11, 0
      %p104 = por %p102, %p103
      %p105 = scmp.ne.s32.totalorder %s94, %s97
      %p106 = scmp.eq.s32.totalorder %s16, 1
      %p107 = por %p105, %p106
      %p108 = scmp.ne.s32.totalorder %s97, %s98
      %p109 = scmp.eq.s32.totalorder %s16, 0
      %p110 = por %p108, %p109
      %p111 = scmp.ne.s32.totalorder %s97, %s98
      %p112 = scmp.eq.s32.totalorder %s17, 1
      %p113 = por %p111, %p112
      %p115 = scmp.ne.s32.totalorder %s98, %s114
      %p116 = scmp.eq.s32.totalorder %s17, 0
      %p117 = por %p115, %p116
      %s118 = ssub.s32 %s11, %s18
      %p119 = scmp.eq.s32.totalorder %s118, 0
      %s121 = sadd.s32 %s120, 1
      %s122 = scalar_select %p119, %s120, %s121
      %p125 = pneg %p119
      %p126 = scmp.eq.s32.totalorder %s11, 1
      %p127 = por %p125, %p126
      %p128 = scmp.ne.s32.totalorder %s120, %s123
      %p129 = scmp.eq.s32.totalorder %s11, 0
      %p130 = por %p128, %p129
      %p131 = scmp.ne.s32.totalorder %s120, %s123
      %p132 = scmp.eq.s32.totalorder %s16, 1
      %p133 = por %p131, %p132
      %p134 = scmp.ne.s32.totalorder %s123, %s124
      %p135 = scmp.eq.s32.totalorder %s16, 0
      %p136 = por %p134, %p135
      %p137 = scmp.ne.s32.totalorder %s123, %s124
      %p138 = scmp.eq.s32.totalorder %s17, 1
      %p139 = por %p137, %p138
      %p141 = scmp.ne.s32.totalorder %s124, %s140
      %p142 = scmp.eq.s32.totalorder %s17, 0
      %p143 = por %p141, %p142
      %p144 = scmp.le.s32.totalorder 1, %s11
      %p145 = scmp.lt.s32.totalorder %s11, 3
      %p146 = pnand %p144, %p145
      %p147 = pneg %p146
      // Predicated region
      $region9: #{_lambda_.35} parent=5 // pred_check
        _
      $region10: #{_lambda_.35} parent=5 // pred_check_branch
        %149 = sbr.rel (%p146) target = $region12
      $region11: #{_lambda_.35} parent=5 // pred_region
        %s150 = ssub.s32 %s11, 1
        // Predicated region
        $region13: #{_lambda_.35} parent=11 // pred_check
          %p151 = pneg %p32
        $region14: #{_lambda_.35} parent=11 // pred_check_branch
          %153 = sbr.rel (%p151) target = $region16
        $region15: #{_lambda_.35} parent=11 // pred_region
          _
        $region16: #{_lambda_.35} parent=11 // pred_fallthru
          _
      $region12: #{_lambda_.35} parent=5 // pred_fallthru
        _
      %p154 = scmp.lt.s32.totalorder %s11, 2
      // Predicated region
      $region17: #{_lambda_.35} parent=5 // pred_check
        %p155 = pneg %p154
      $region18: #{_lambda_.35} parent=5 // pred_check_branch
        %157 = sbr.rel (%p155) target = $region20
      $region19: #{_lambda_.35} parent=5 // pred_region
        // Predicated region
        $region21: #{_lambda_.35} parent=19 // pred_check
          %p158 = pneg %p52
        $region22: #{_lambda_.35} parent=19 // pred_check_branch
          %160 = sbr.rel (%p158) target = $region24
        $region23: #{_lambda_.35} parent=19 // pred_region
          %s161 = sand.u32 %s42, 1
          %s162 = sand.u32 %s42, 1
          %s163 = smul.addr %s162, 128
          %s164 = scalar_lea.vmem [#allocation2], %s163
          %s165 = smul.u32 2, %s11
          %s166 = smul.addr %s165, 4
          %s167 = scalar_lea.vmem %s1, %s166
          // Predicated region
          $region25: #{_lambda_.35} parent=23 // pred_check
            _
          $region26: #{_lambda_.35} parent=23 // pred_check_branch
            %169 = sbr.rel (0) target = $region28
          $region27: #{_lambda_.35} parent=23 // pred_region
            // Predicated region
            $region29: #{_lambda_.35} parent=27 // pred_check
              _
            $region30: #{_lambda_.35} parent=27 // pred_check_branch
              %171 = sbr.rel (0) target = $region32
            $region31: #{_lambda_.35} parent=27 // pred_region
              // Predicated region
              $region44: #{_lambda_.35} parent=31 // pred_check
                _
              $region45: #{_lambda_.35} parent=31 // pred_check_branch
                %216 = sbr.rel (0) target = $region47
              $region46: #{_lambda_.35} parent=31 // pred_region
                loop: start=0, step=1, limit=1
                $region48: #{_lambda_.35} parent=46 // loop_pre_header
                  _
                $region49: #{_lambda_.35} parent=46 // loop_header
                  %s218 = sphi 0, %s222
                  %p219 = scmp.ge.s32.totalorder %s218, 1
                  %s223 = sphi %s167, %s167
                  %s224 = sphi %s164, %s164
                $region50: #{_lambda_.35} parent=46 // loop_header_branch
                  %221 = sbr.rel (%p219) target = $region54
                $region51: #{_lambda_.35} parent=46 // loop_body
                  %v225 = vld [vmem:[%s223] sm:$0xff]
                  %226 = vst [vmem:[%s224] sm:$0xff] %v225
                  %v227 = vld [vmem:[%s223 + $0x10] sm:$0xff]
                  %228 = vst [vmem:[%s224 + $0x8] sm:$0xff] %v227
                  %v229 = vld [vmem:[%s223 + $0x20] sm:$0xff]
                  %230 = vst [vmem:[%s224 + $0x10] sm:$0xff] %v229
                  %v231 = vld [vmem:[%s223 + $0x30] sm:$0xff]
                  %232 = vst [vmem:[%s224 + $0x18] sm:$0xff] %v231
                  %v233 = vld [vmem:[%s223 + $0x40] sm:$0xff]
                  %234 = vst [vmem:[%s224 + $0x20] sm:$0xff] %v233
                  %v235 = vld [vmem:[%s223 + $0x50] sm:$0xff]
                  %236 = vst [vmem:[%s224 + $0x28] sm:$0xff] %v235
                  %v237 = vld [vmem:[%s223 + $0x60] sm:$0xff]
                  %238 = vst [vmem:[%s224 + $0x30] sm:$0xff] %v237
                  %v239 = vld [vmem:[%s223 + $0x70] sm:$0xff]
                  %240 = vst [vmem:[%s224 + $0x38] sm:$0xff] %v239
                  %v241 = vld [vmem:[%s223 + $0x80] sm:$0xff]
                  %242 = vst [vmem:[%s224 + $0x40] sm:$0xff] %v241
                  %v243 = vld [vmem:[%s223 + $0x90] sm:$0xff]
                  %244 = vst [vmem:[%s224 + $0x48] sm:$0xff] %v243
                  %v245 = vld [vmem:[%s223 + $0xa0] sm:$0xff]
                  %246 = vst [vmem:[%s224 + $0x50] sm:$0xff] %v245
                  %v247 = vld [vmem:[%s223 + $0xb0] sm:$0xff]
                  %248 = vst [vmem:[%s224 + $0x58] sm:$0xff] %v247
                  %v249 = vld [vmem:[%s223 + $0xc0] sm:$0xff]
                  %250 = vst [vmem:[%s224 + $0x60] sm:$0xff] %v249
                  %v251 = vld [vmem:[%s223 + $0xd0] sm:$0xff]
                  %252 = vst [vmem:[%s224 + $0x68] sm:$0xff] %v251
                  %v253 = vld [vmem:[%s223 + $0xe0] sm:$0xff]
                  %254 = vst [vmem:[%s224 + $0x70] sm:$0xff] %v253
                  %v255 = vld [vmem:[%s223 + $0xf0] sm:$0xff]
                  %256 = vst [vmem:[%s224 + $0x78] sm:$0xff] %v255
                $region52: #{_lambda_.35} parent=46 // loop_footer
                  %s222 = sadd.s32 1, %s218
                $region53: #{_lambda_.35} parent=46 // loop_footer_branch
                  %217 = sbr.rel target = $region49
                $region54: #{_lambda_.35} parent=46 // loop_exit
                  _
              $region47: #{_lambda_.35} parent=31 // pred_fallthru
                _
              // Predicated region
              $region55: #{_lambda_.35} parent=31 // pred_check
                _
              $region56: #{_lambda_.35} parent=31 // pred_check_branch
                %258 = sbr.rel target = $region58
              $region57: #{_lambda_.35} parent=31 // pred_region
                _
              $region58: #{_lambda_.35} parent=31 // pred_fallthru
                _
            $region32: #{_lambda_.35} parent=27 // pred_fallthru
              _
            // Predicated region
            $region33: #{_lambda_.35} parent=27 // pred_check
              _
            $region34: #{_lambda_.35} parent=27 // pred_check_branch
              %173 = sbr.rel target = $region36
            $region35: #{_lambda_.35} parent=27 // pred_region
              loop: start=0, step=1, limit=1
              $region37: #{_lambda_.35} parent=35 // loop_pre_header
                _
              $region38: #{_lambda_.35} parent=35 // loop_header
                %s176 = sphi 0, %s180
                %p177 = scmp.ge.s32.totalorder %s176, 1
                %s181 = sphi %s167, %s167
                %s182 = sphi %s164, %s164
              $region39: #{_lambda_.35} parent=35 // loop_header_branch
                %179 = sbr.rel (%p177) target = $region43
              $region40: #{_lambda_.35} parent=35 // loop_body
                %v183 = vld [vmem:[%s181] sm:$0xff]
                %184 = vst [vmem:[%s182] sm:$0xff] %v183
                %v185 = vld [vmem:[%s181 + $0x10] sm:$0xff]
                %186 = vst [vmem:[%s182 + $0x8] sm:$0xff] %v185
                %v187 = vld [vmem:[%s181 + $0x20] sm:$0xff]
                %188 = vst [vmem:[%s182 + $0x10] sm:$0xff] %v187
                %v189 = vld [vmem:[%s181 + $0x30] sm:$0xff]
                %190 = vst [vmem:[%s182 + $0x18] sm:$0xff] %v189
                %v191 = vld [vmem:[%s181 + $0x40] sm:$0xff]
                %192 = vst [vmem:[%s182 + $0x20] sm:$0xff] %v191
                %v193 = vld [vmem:[%s181 + $0x50] sm:$0xff]
                %194 = vst [vmem:[%s182 + $0x28] sm:$0xff] %v193
                %v195 = vld [vmem:[%s181 + $0x60] sm:$0xff]
                %196 = vst [vmem:[%s182 + $0x30] sm:$0xff] %v195
                %v197 = vld [vmem:[%s181 + $0x70] sm:$0xff]
                %198 = vst [vmem:[%s182 + $0x38] sm:$0xff] %v197
                %v199 = vld [vmem:[%s181 + $0x80] sm:$0xff]
                %200 = vst [vmem:[%s182 + $0x40] sm:$0xff] %v199
                %v201 = vld [vmem:[%s181 + $0x90] sm:$0xff]
                %202 = vst [vmem:[%s182 + $0x48] sm:$0xff] %v201
                %v203 = vld [vmem:[%s181 + $0xa0] sm:$0xff]
                %204 = vst [vmem:[%s182 + $0x50] sm:$0xff] %v203
                %v205 = vld [vmem:[%s181 + $0xb0] sm:$0xff]
                %206 = vst [vmem:[%s182 + $0x58] sm:$0xff] %v205
                %v207 = vld [vmem:[%s181 + $0xc0] sm:$0xff]
                %208 = vst [vmem:[%s182 + $0x60] sm:$0xff] %v207
                %v209 = vld [vmem:[%s181 + $0xd0] sm:$0xff]
                %210 = vst [vmem:[%s182 + $0x68] sm:$0xff] %v209
                %v211 = vld [vmem:[%s181 + $0xe0] sm:$0xff]
                %212 = vst [vmem:[%s182 + $0x70] sm:$0xff] %v211
                %v213 = vld [vmem:[%s181 + $0xf0] sm:$0xff]
                %214 = vst [vmem:[%s182 + $0x78] sm:$0xff] %v213
              $region41: #{_lambda_.35} parent=35 // loop_footer
                %s180 = sadd.s32 1, %s176
              $region42: #{_lambda_.35} parent=35 // loop_footer_branch
                %175 = sbr.rel target = $region38
              $region43: #{_lambda_.35} parent=35 // loop_exit
                _
            $region36: #{_lambda_.35} parent=27 // pred_fallthru
              _
          $region28: #{_lambda_.35} parent=23 // pred_fallthru
            _
          %259 = vnop
        $region24: #{_lambda_.35} parent=19 // pred_fallthru
          _
      $region20: #{_lambda_.35} parent=5 // pred_fallthru
        _
      %p260 = scmp.le.s32.totalorder 1, %s11
      %p261 = scmp.lt.s32.totalorder %s11, 3
      %p262 = pnand %p260, %p261
      %p263 = pneg %p262
      // Predicated region
      $region59: #{_lambda_.35} parent=5 // pred_check
        _
      $region60: #{_lambda_.35} parent=5 // pred_check_branch
        %265 = sbr.rel (%p262) target = $region62
      $region61: #{_lambda_.35} parent=5 // pred_region
        %s266 = ssub.s32 %s11, 1
        %s267 = sand.u32 %s45, 1
        %s268 = sand.u32 %s45, 1
        %s269 = smul.addr %s268, 128
        %s270 = scalar_lea.vmem [#allocation2], %s269
        // Predicated region
        $region63: #{_lambda_.35} parent=61 // pred_check
          %p271 = pneg %p58
        $region64: #{_lambda_.35} parent=61 // pred_check_branch
          %273 = sbr.rel (%p271) target = $region66
        $region65: #{_lambda_.35} parent=61 // pred_region
          _
        $region66: #{_lambda_.35} parent=61 // pred_fallthru
          _
        %p274 = pneg %p32
        %p275 = pneg %p29
        %s276 = sand.u32 %s45, 1
        %s277 = sand.u32 %s45, 1
        %s278 = smul.addr %s277, 128
        %s279 = scalar_lea.vmem [#allocation2], %s278
        %p280 = pneg %p58
        %p281 = pneg %p55
        %p282 = pneg %p84
        %p283 = pneg %p81
        %s284 = sand.u32 %s71, 1
        %s285 = sand.u32 %s71, 1
        %s286 = smul.addr %s285, 64
        %s287 = scalar_lea.vmem [#allocation3], %s286
        %p288 = pneg %p110
        %p289 = pneg %p107
        %p290 = scmp.lt.s32.totalorder %s16, 1
        %s291 = scalar_select %p290, %s16, 1
        %s292 = smul.addr %s291, 4
        %s293 = smul.addr %s292, 8
        %s294 = scalar_lea.vmem %s3, %s293
        %p295 = pneg %p136
        %p296 = pneg %p133
        %p297 = scmp.lt.s32.totalorder %s16, 1
        %s298 = scalar_select %p297, %s16, 1
        %s299 = smul.addr %s298, 4
        %s300 = smul.addr %s299, 8
        %s301 = scalar_lea.vmem %s4, %s300
        %s302 = smul.u32 2, %s16
        %s303 = smul.u32 2, %s16
        %p304 = scmp.lt.s32.totalorder %s16, 1
        %s305 = scalar_select %p304, %s16, 1
        %s306 = smul.addr %s305, 4
        %s307 = smul.addr %s306, 8
        %s308 = scalar_lea.vmem %s3, %s307
        %p309 = scmp.lt.s32.totalorder %s16, 1
        %s310 = scalar_select %p309, %s16, 1
        %s311 = smul.addr %s310, 4
        %s312 = smul.addr %s311, 8
        %s313 = scalar_lea.vmem %s4, %s312
        %v315 = vld [vmem:[%s0] sm:$0xf]
        %v316 = vld [vmem:[%s0 + $0x4] sm:$0xf]
        %v317 = vld [vmem:[%s0 + $0x8] sm:$0xf]
        %v318 = vld [vmem:[%s0 + $0xc] sm:$0xf]
        %v319 = vld [vmem:[%s270] sm:$0xff]
        %v320 = vld [vmem:[%s270 + $0x8] sm:$0xff]
        %v321 = vld [vmem:[%s270 + $0x10] sm:$0xff]
        %v322 = vld [vmem:[%s270 + $0x18] sm:$0xff]
        %v323 = vld [vmem:[%s270 + $0x20] sm:$0xff]
        %v324 = vld [vmem:[%s270 + $0x28] sm:$0xff]
        %v325 = vld [vmem:[%s270 + $0x30] sm:$0xff]
        %v326 = vld [vmem:[%s270 + $0x38] sm:$0xff]
        %v327 = vld [vmem:[%s270 + $0x40] sm:$0xff]
        %v328 = vld [vmem:[%s270 + $0x48] sm:$0xff]
        %v329 = vld [vmem:[%s270 + $0x50] sm:$0xff]
        %v330 = vld [vmem:[%s270 + $0x58] sm:$0xff]
        %v331 = vld [vmem:[%s270 + $0x60] sm:$0xff]
        %v332 = vld [vmem:[%s270 + $0x68] sm:$0xff]
        %v333 = vld [vmem:[%s270 + $0x70] sm:$0xff]
        %v334 = vld [vmem:[%s270 + $0x78] sm:$0xff]
        %v339 = vunpack.c.l.b16 %v315
        %v340 = vunpack.c.l.b16 %v316
        %v341 = vunpack.c.l.b16 %v317
        %v342 = vunpack.c.l.b16 %v318
        %v343 = vpack.c.b16 %v340, %v339
        %v344 = vpack.c.b16 %v342, %v341
        %v363 = vunpack.c.l.b16 %v319
        %v364 = vunpack.c.h.b16 %v319
        %v365 = vunpack.c.l.b16 %v320
        %v366 = vunpack.c.h.b16 %v320
        %v367 = vunpack.c.l.b16 %v321
        %v368 = vunpack.c.h.b16 %v321
        %v369 = vunpack.c.l.b16 %v322
        %v370 = vunpack.c.h.b16 %v322
        %v371 = vunpack.c.l.b16 %v323
        %v372 = vunpack.c.h.b16 %v323
        %v373 = vunpack.c.l.b16 %v324
        %v374 = vunpack.c.h.b16 %v324
        %v375 = vunpack.c.l.b16 %v325
        %v376 = vunpack.c.h.b16 %v325
        %v377 = vunpack.c.l.b16 %v326
        %v378 = vunpack.c.h.b16 %v326
        %v379 = vunpack.c.l.b16 %v327
        %v380 = vunpack.c.h.b16 %v327
        %v381 = vunpack.c.l.b16 %v328
        %v382 = vunpack.c.h.b16 %v328
        %v383 = vunpack.c.l.b16 %v329
        %v384 = vunpack.c.h.b16 %v329
        %v385 = vunpack.c.l.b16 %v330
        %v386 = vunpack.c.h.b16 %v330
        %v387 = vunpack.c.l.b16 %v331
        %v388 = vunpack.c.h.b16 %v331
        %v389 = vunpack.c.l.b16 %v332
        %v390 = vunpack.c.h.b16 %v332
        %v391 = vunpack.c.l.b16 %v333
        %v392 = vunpack.c.h.b16 %v333
        %v393 = vunpack.c.l.b16 %v334
        %v394 = vunpack.c.h.b16 %v334
        %v395 = vpack.c.b16 %v365, %v363
        %v396 = vpack.c.b16 %v366, %v364
        %v397 = vpack.c.b16 %v369, %v367
        %v398 = vpack.c.b16 %v370, %v368
        %v399 = vpack.c.b16 %v373, %v371
        %v400 = vpack.c.b16 %v374, %v372
        %v401 = vpack.c.b16 %v377, %v375
        %v402 = vpack.c.b16 %v378, %v376
        %v403 = vpack.c.b16 %v381, %v379
        %v404 = vpack.c.b16 %v382, %v380
        %v405 = vpack.c.b16 %v385, %v383
        %v406 = vpack.c.b16 %v386, %v384
        %v407 = vpack.c.b16 %v389, %v387
        %v408 = vpack.c.b16 %v390, %v388
        %v409 = vpack.c.b16 %v393, %v391
        %v410 = vpack.c.b16 %v394, %v392
        %427 = vmatprep.subr.bf16.mxu0 %v396
        %428 = vmatpush1.bf16.msra.mxu0 %v395
        %429 = vmatprep.subr.bf16.mxu0 %v398
        %430 = vmatpush1.bf16.msra.mxu0 %v397
        %431 = vmatprep.subr.bf16.mxu0 %v400
        %432 = vmatpush1.bf16.msra.mxu0 %v399
        %433 = vmatprep.subr.bf16.mxu0 %v402
        %434 = vmatpush1.bf16.msra.mxu0 %v401
        %435 = vmatprep.subr.bf16.mxu0 %v404
        %436 = vmatpush1.bf16.msra.mxu0 %v403
        %437 = vmatprep.subr.bf16.mxu0 %v406
        %438 = vmatpush1.bf16.msra.mxu0 %v405
        %439 = vmatprep.subr.bf16.mxu0 %v408
        %440 = vmatpush1.bf16.msra.mxu0 %v407
        %441 = vmatprep.subr.bf16.mxu0 %v410
        %442 = vmatpush1.bf16.msra.mxu0 %v409
        %443 = vmatprep.subr.bf16.mxu0 0
        %444 = vmatpush1.bf16.msra.mxu0 0
        %445 = vmatprep.subr.bf16.mxu0 0
        %446 = vmatpush1.bf16.msra.mxu0 0
        %447 = vmatprep.subr.bf16.mxu0 0
        %448 = vmatpush1.bf16.msra.mxu0 0
        %449 = vmatprep.subr.bf16.mxu0 0
        %450 = vmatpush1.bf16.msra.mxu0 0
        %451 = vmatprep.subr.bf16.mxu0 0
        %452 = vmatpush1.bf16.msra.mxu0 0
        %453 = vmatprep.subr.bf16.mxu0 0
        %454 = vmatpush1.bf16.msra.mxu0 0
        %455 = vmatprep.subr.bf16.mxu0 0
        %456 = vmatpush1.bf16.msra.mxu0 0
        %457 = vmatprep.subr.bf16.mxu0 0
        %458 = vmatpush1.bf16.msra.mxu0 0
        %459 = vmatprep.mubr.bf16.mxu0 0
        %460 = vmatmul.mubr.bf16.gmra.mrb[0].mxu0 %v343
        %v461 = vpop.f32.mrb[0].mxu0
        %v462 = vadd.f32 0.0, %v461
        %v463 = vpop.f32.mrb[0].mxu0
        %v464 = vadd.f32 0.0, %v463
        %v465 = vpop.f32.mrb[0].mxu0
        %v466 = vadd.f32 0.0, %v465
        %v467 = vpop.f32.mrb[0].mxu0
        %v468 = vadd.f32 0.0, %v467
        %469 = vmatprep.mubr.bf16.mxu0 0
        %470 = vmatmul.mubr.bf16.gmra.mrb[0].mxu0 %v344
        %v471 = vpop.f32.mrb[0].mxu0
        %v472 = vadd.f32 0.0, %v471
        %v473 = vpop.f32.mrb[0].mxu0
        %v474 = vadd.f32 0.0, %v473
        %v475 = vpop.f32.mrb[0].mxu0
        %v476 = vadd.f32 0.0, %v475
        %v477 = vpop.f32.mrb[0].mxu0
        %v478 = vadd.f32 0.0, %v477
        %479 = vdwg.mxu0
        %480 = vst [vmem:[%s287] sm:$0xff] %v462
        %481 = vst [vmem:[%s287 + $0x8] sm:$0xff] %v464
        %482 = vst [vmem:[%s287 + $0x10] sm:$0xff] %v466
        %483 = vst [vmem:[%s287 + $0x18] sm:$0xff] %v468
        %484 = vst [vmem:[%s287 + $0x20] sm:$0xff] %v472
        %485 = vst [vmem:[%s287 + $0x28] sm:$0xff] %v474
        %486 = vst [vmem:[%s287 + $0x30] sm:$0xff] %v476
        %487 = vst [vmem:[%s287 + $0x38] sm:$0xff] %v478
        %v488 = vadd.f32 %v462, %v464
        %489 = vadd.xlane.f32.xlu0 %v488
        %v490 = vpop.xlane.xlu0 %489
        %v491 = vadd.f32 %v466, %v468
        %492 = vadd.xlane.f32.xlu0 %v491
        %v493 = vpop.xlane.xlu0 %492
        %v494 = vadd.f32 %v472, %v474
        %495 = vadd.xlane.f32.xlu0 %v494
        %v496 = vpop.xlane.xlu0 %495
        %v497 = vadd.f32 %v476, %v478
        %498 = vadd.xlane.f32.xlu0 %v497
        %v499 = vpop.xlane.xlu0 %498
        %vm500 = vcmask 7168
        %501 = vst.msk [vmem:[%s308] sm:$0xff] %vm500, %v490
        %502 = vst.msk [vmem:[%s308 + $0x8] sm:$0xff] %vm500, %v493
        %503 = vst.msk [vmem:[%s308 + $0x10] sm:$0xff] %vm500, %v496
        %504 = vst.msk [vmem:[%s308 + $0x18] sm:$0xff] %vm500, %v499
        %v505 = vmul.f32 %v462, %v462
        %v506 = vmul.f32 %v464, %v464
        %v507 = vmul.f32 %v466, %v466
        %v508 = vmul.f32 %v468, %v468
        %v509 = vmul.f32 %v472, %v472
        %v510 = vmul.f32 %v474, %v474
        %v511 = vmul.f32 %v476, %v476
        %v512 = vmul.f32 %v478, %v478
        %v513 = vadd.f32 %v505, %v506
        %514 = vadd.xlane.f32.xlu0 %v513
        %v515 = vpop.xlane.xlu0 %514
        %v516 = vadd.f32 %v507, %v508
        %517 = vadd.xlane.f32.xlu0 %v516
        %v518 = vpop.xlane.xlu0 %517
        %v519 = vadd.f32 %v509, %v510
        %520 = vadd.xlane.f32.xlu0 %v519
        %v521 = vpop.xlane.xlu0 %520
        %v522 = vadd.f32 %v511, %v512
        %523 = vadd.xlane.f32.xlu0 %v522
        %v524 = vpop.xlane.xlu0 %523
        %525 = vst.msk [vmem:[%s313] sm:$0xff] %vm500, %v515
        %526 = vst.msk [vmem:[%s313 + $0x8] sm:$0xff] %vm500, %v518
        %527 = vst.msk [vmem:[%s313 + $0x10] sm:$0xff] %vm500, %v521
        %528 = vst.msk [vmem:[%s313 + $0x18] sm:$0xff] %vm500, %v524
        %s529 = sand.u32 %s71, 1
        %s530 = sand.u32 %s71, 1
        %s531 = smul.addr %s530, 64
        %s532 = scalar_lea.vmem [#allocation3], %s531
        %p533 = scmp.lt.s32.totalorder %s16, 1
        %s534 = scalar_select %p533, %s16, 1
        %s535 = smul.addr %s534, 4
        %s536 = smul.addr %s535, 8
        %s537 = scalar_lea.vmem %s3, %s536
        %p538 = scmp.lt.s32.totalorder %s16, 1
        %s539 = scalar_select %p538, %s16, 1
        %s540 = smul.addr %s539, 4
        %s541 = smul.addr %s540, 8
        %s542 = scalar_lea.vmem %s4, %s541
        // Predicated region
        $region67: #{_lambda_.35} parent=61 // pred_check
          %p543 = pneg %p81
        $region68: #{_lambda_.35} parent=61 // pred_check_branch
          %545 = sbr.rel (%p543) target = $region70
        $region69: #{_lambda_.35} parent=61 // pred_region
          %s546 = smul.u32 2, %s16
          %s547 = smul.addr %s546, 8
          %s548 = scalar_lea.vmem %s2, %s547
          // Predicated region
          $region71: #{_lambda_.35} parent=69 // pred_check
            _
          $region72: #{_lambda_.35} parent=69 // pred_check_branch
            %550 = sbr.rel (0) target = $region74
          $region73: #{_lambda_.35} parent=69 // pred_region
            // Predicated region
            $region75: #{_lambda_.35} parent=73 // pred_check
              _
            $region76: #{_lambda_.35} parent=73 // pred_check_branch
              %552 = sbr.rel (0) target = $region78
            $region77: #{_lambda_.35} parent=73 // pred_region
              loop: start=0, step=1, limit=1
              $region79: #{_lambda_.35} parent=77 // loop_pre_header
                _
              $region80: #{_lambda_.35} parent=77 // loop_header
                %s554 = sphi 0, %s558
                %p555 = scmp.ge.s32.totalorder %s554, 1
                %s559 = sphi %s532, %s532
                %s560 = sphi %s548, %s548
              $region81: #{_lambda_.35} parent=77 // loop_header_branch
                %557 = sbr.rel (%p555) target = $region85
              $region82: #{_lambda_.35} parent=77 // loop_body
                %v561 = vld [vmem:[%s559] sm:$0xff]
                %562 = vst [vmem:[%s560] sm:$0xff] %v561
                %v563 = vld [vmem:[%s559 + $0x8] sm:$0xff]
                %564 = vst [vmem:[%s560 + $0x8] sm:$0xff] %v563
                %v565 = vld [vmem:[%s559 + $0x10] sm:$0xff]
                %566 = vst [vmem:[%s560 + $0x20] sm:$0xff] %v565
                %v567 = vld [vmem:[%s559 + $0x18] sm:$0xff]
                %568 = vst [vmem:[%s560 + $0x28] sm:$0xff] %v567
                %v569 = vld [vmem:[%s559 + $0x20] sm:$0xff]
                %570 = vst [vmem:[%s560 + $0x40] sm:$0xff] %v569
                %v571 = vld [vmem:[%s559 + $0x28] sm:$0xff]
                %572 = vst [vmem:[%s560 + $0x48] sm:$0xff] %v571
                %v573 = vld [vmem:[%s559 + $0x30] sm:$0xff]
                %574 = vst [vmem:[%s560 + $0x60] sm:$0xff] %v573
                %v575 = vld [vmem:[%s559 + $0x38] sm:$0xff]
                %576 = vst [vmem:[%s560 + $0x68] sm:$0xff] %v575
              $region83: #{_lambda_.35} parent=77 // loop_footer
                %s558 = sadd.s32 1, %s554
              $region84: #{_lambda_.35} parent=77 // loop_footer_branch
                %553 = sbr.rel target = $region80
              $region85: #{_lambda_.35} parent=77 // loop_exit
                _
            $region78: #{_lambda_.35} parent=73 // pred_fallthru
              _
            // Predicated region
            $region86: #{_lambda_.35} parent=73 // pred_check
              _
            $region87: #{_lambda_.35} parent=73 // pred_check_branch
              %578 = sbr.rel target = $region89
            $region88: #{_lambda_.35} parent=73 // pred_region
              _
            $region89: #{_lambda_.35} parent=73 // pred_fallthru
              _
          $region74: #{_lambda_.35} parent=69 // pred_fallthru
            _
          %579 = vnop
        $region70: #{_lambda_.35} parent=61 // pred_fallthru
          _
        // Predicated region
        $region90: #{_lambda_.35} parent=61 // pred_check
          %p580 = pneg %p107
        $region91: #{_lambda_.35} parent=61 // pred_check_branch
          %582 = sbr.rel (%p580) target = $region93
        $region92: #{_lambda_.35} parent=61 // pred_region
          _
        $region93: #{_lambda_.35} parent=61 // pred_fallthru
          _
        // Predicated region
        $region94: #{_lambda_.35} parent=61 // pred_check
          %p583 = pneg %p133
        $region95: #{_lambda_.35} parent=61 // pred_check_branch
          %585 = sbr.rel (%p583) target = $region97
        $region96: #{_lambda_.35} parent=61 // pred_region
          _
        $region97: #{_lambda_.35} parent=61 // pred_fallthru
          _
      $region62: #{_lambda_.35} parent=5 // pred_fallthru
        _
      %p586 = scmp.le.s32.totalorder 2, %s11
      // Predicated region
      $region98: #{_lambda_.35} parent=5 // pred_check
        %p587 = pneg %p586
      $region99: #{_lambda_.35} parent=5 // pred_check_branch
        %589 = sbr.rel (%p587) target = $region101
      $region100: #{_lambda_.35} parent=5 // pred_region
        %s590 = ssub.s32 %s11, 2
        // Predicated region
        $region102: #{_lambda_.35} parent=100 // pred_check
          %p591 = pneg %p87
        $region103: #{_lambda_.35} parent=100 // pred_check_branch
          %593 = sbr.rel (%p591) target = $region105
        $region104: #{_lambda_.35} parent=100 // pred_region
          %s594 = sand.u32 %s72, 1
          %s595 = sand.u32 %s72, 1
          %s596 = smul.addr %s595, 64
          %s597 = scalar_lea.vmem [#allocation3], %s596
        $region105: #{_lambda_.35} parent=100 // pred_fallthru
          _
        // Predicated region
        $region106: #{_lambda_.35} parent=100 // pred_check
          %p598 = pneg %p113
        $region107: #{_lambda_.35} parent=100 // pred_check_branch
          %600 = sbr.rel (%p598) target = $region109
        $region108: #{_lambda_.35} parent=100 // pred_region
          %p601 = scmp.lt.s32.totalorder %s17, 1
          %s602 = scalar_select %p601, %s17, 1
          %s603 = smul.addr %s602, 4
          %s604 = smul.addr %s603, 8
          %s605 = scalar_lea.vmem %s3, %s604
        $region109: #{_lambda_.35} parent=100 // pred_fallthru
          _
        // Predicated region
        $region110: #{_lambda_.35} parent=100 // pred_check
          %p606 = pneg %p139
        $region111: #{_lambda_.35} parent=100 // pred_check_branch
          %608 = sbr.rel (%p606) target = $region113
        $region112: #{_lambda_.35} parent=100 // pred_region
          %p609 = scmp.lt.s32.totalorder %s17, 1
          %s610 = scalar_select %p609, %s17, 1
          %s611 = smul.addr %s610, 4
          %s612 = smul.addr %s611, 8
          %s613 = scalar_lea.vmem %s4, %s612
        $region113: #{_lambda_.35} parent=100 // pred_fallthru
          _
      $region101: #{_lambda_.35} parent=5 // pred_fallthru
        _
    $region6: #{_lambda_.35} parent=1 // loop_footer
      %s15 = sadd.s32 1, %s11
    $region7: #{_lambda_.35} parent=1 // loop_footer_branch
      %10 = sbr.rel target = $region3
    $region8: #{_lambda_.35} parent=1 // loop_exit
      _

// kernel: tile.37
$region0: #{tile.37}
  #allocation0 [shape = 's32[1]{0}', space=sflag, size = 0x4, scoped, tag = 'scoped memory for tile.37']
  %s0 = inlined_call_operand.vmem [shape: f32[8], index: 0, kind: input, shape index: {}]
  %s1 = inlined_call_operand.vmem [shape: f32[4,8], index: 1, kind: output, shape index: {}]
  // Predicated region
  $region2: #{tile.37} parent=0 // pred_check
    _
  $region3: #{tile.37} parent=0 // pred_check_branch
    %3 = sbr.rel (0) target = $region5
  $region4: #{tile.37} parent=0 // pred_region
    _
  $region5: #{tile.37} parent=0 // pred_fallthru
    _
  %v4 = vld [vmem:[%s0] ss:$0 sm:$0xff]
  %5 = vst [vmem:[%s1] sm:$0xf] %v4

// kernel: tile.2
$region0: #{tile.2}
  %s0 = inlined_call_operand.vmem [shape: f32[4,8], index: 0, kind: input, shape index: {}]
  %s1 = inlined_call_operand.vmem [shape: f32[32,1], index: 1, kind: output, shape index: {}]
  $region1: #{tile.2} parent=0
    #allocation0 [shape = 'u8[4096]{0}', space=vmem, size = 0x1000, scoped, tag = 'scoped mem for input reshape']
    %s3 = sshllo.u32 0, 4
    %v4 = vld [vmem:[%s0] sm:%s3]
    %5 = vst [vmem:[#allocation0] sm:%s3] %v4
    %v6 = vld [vmem:[#allocation0] sm:$0xf]
    %vm7 = vcmask 7168
    %8 = vst.msk [vmem:[%s1] ss:$8 sm:$0xf] %vm7, %v6
    %v9 = vld [vmem:[#allocation0] sm:$0xf]
    %10 = vrot.lane.b32.xlu0 %v9, 127
    %v11 = vpop.permute.xlu0 %10
    %vm12 = vcmask 7168
    %s13 = scalar_lea.vmem %s1, 1
    %14 = vst.msk [vmem:[%s13] ss:$8 sm:$0xf] %vm12, %v11
    %v15 = vld [vmem:[#allocation0] sm:$0xf]
    %16 = vrot.lane.b32.xlu0 %v15, 126
    %v17 = vpop.permute.xlu0 %16
    %vm18 = vcmask 7168
    %s19 = scalar_lea.vmem %s1, 2
    %20 = vst.msk [vmem:[%s19] ss:$8 sm:$0xf] %vm18, %v17
    %v21 = vld [vmem:[#allocation0] sm:$0xf]
    %22 = vrot.lane.b32.xlu0 %v21, 125
    %v23 = vpop.permute.xlu0 %22
    %vm24 = vcmask 7168
    %s25 = scalar_lea.vmem %s1, 3
    %26 = vst.msk [vmem:[%s25] ss:$8 sm:$0xf] %vm24, %v23
    %v27 = vld [vmem:[#allocation0] sm:$0xf]
    %28 = vrot.lane.b32.xlu0 %v27, 124
    %v29 = vpop.permute.xlu0 %28
    %vm30 = vcmask 7168
    %s31 = scalar_lea.vmem %s1, 4
    %32 = vst.msk [vmem:[%s31] ss:$8 sm:$0xf] %vm30, %v29
    %v33 = vld [vmem:[#allocation0] sm:$0xf]
    %34 = vrot.lane.b32.xlu0 %v33, 123
    %v35 = vpop.permute.xlu0 %34
    %vm36 = vcmask 7168
    %s37 = scalar_lea.vmem %s1, 5
    %38 = vst.msk [vmem:[%s37] ss:$8 sm:$0xf] %vm36, %v35
    %v39 = vld [vmem:[#allocation0] sm:$0xf]
    %40 = vrot.lane.b32.xlu0 %v39, 122
    %v41 = vpop.permute.xlu0 %40
    %vm42 = vcmask 7168
    %s43 = scalar_lea.vmem %s1, 6
    %44 = vst.msk [vmem:[%s43] ss:$8 sm:$0xf] %vm42, %v41
    %v45 = vld [vmem:[#allocation0] sm:$0xf]
    %46 = vrot.lane.b32.xlu0 %v45, 121
    %v47 = vpop.permute.xlu0 %46
    %vm48 = vcmask 7168
    %s49 = scalar_lea.vmem %s1, 7
    %50 = vst.msk [vmem:[%s49] ss:$8 sm:$0xf] %vm48, %v47

// kernel: _lambda_.36
$region0: #{_lambda_.36}
  #allocation0 [shape = 'u32[]', space=smem, size = 0x4, offset = 0x4, fixed_abs, tag = 'smem constant byte address 0x4 - core index']
  #allocation1 [shape = 'u32[144,128]{1,0:T(1,128)}', space=vmem, size = 0x12000, scoped, tag = 'internal scratch']
  %s0 = inlined_call_operand.vmem [shape: f32[32,512], index: 0, kind: input, shape index: {}]
  %s1 = inlined_call_operand.vmem [shape: f32[32,1], index: 1, kind: input, shape index: {}]
  %s2 = inlined_call_operand.vmem [shape: f32[32,1], index: 2, kind: input, shape index: {}]
  %s3 = inlined_call_operand.vmem [shape: f32[32,512], index: 3, kind: output, shape index: {}]
  %s4 = sld [smem:[#allocation0]]
  $region87: #{_lambda_.36} parent=0
    _
  %s6 = ssub.s32 1, %s4
  %s7 = scalar_select 0, %s6, %s4
  $region1: #{_lambda_.36} parent=0
    #allocation2 [shape = 'u8[65536]{0}', space=vmem, size = 0x10000, scoped, tag = 'input window, operand 0']
    #allocation3 [shape = 'u8[65536]{0}', space=vmem, size = 0x10000, scoped, tag = 'output window, operand 0']
    loop: start=0, step=1, limit=4
    $region2: #{_lambda_.36} parent=1 // loop_pre_header
      _
    $region3: #{_lambda_.36} parent=1 // loop_header
      %s9 = sphi 0, %s13
      %p10 = scmp.ge.s32.totalorder %s9, 4
      %s19 = sphi 0, %s21
      %s22 = sphi 0, %s19
      %s23 = sphi 0, %s22
      %s39 = sphi 0, %s23
      %s43 = sphi 0, %s43
      %s45 = sphi 0, %s43
      %s46 = sphi 0, %s45
      %s60 = sphi 0, %s46
      %s64 = sphi 0, %s64
      %s66 = sphi 0, %s64
      %s67 = sphi 0, %s66
      %s81 = sphi 0, %s67
      %s87 = sphi 0, %s89
      %s90 = sphi 0, %s87
      %s91 = sphi 0, %s90
      %s107 = sphi 0, %s91
    $region4: #{_lambda_.36} parent=1 // loop_header_branch
      %12 = sbr.rel (%p10) target = $region8
    $region5: #{_lambda_.36} parent=1 // loop_body
      %s14 = ssub.s32 %s9, 1
      %s15 = ssub.s32 %s9, 2
      %s16 = sadd.s32 %s9, 1
      %s17 = ssub.s32 %s9, %s16
      %p18 = scmp.eq.s32.totalorder %s17, 0
      %s20 = sadd.s32 %s19, 1
      %s21 = scalar_select %p18, %s19, %s20
      %p24 = pneg %p18
      %p25 = scmp.eq.s32.totalorder %s9, 1
      %p26 = por %p24, %p25
      %p27 = scmp.ne.s32.totalorder %s19, %s22
      %p28 = scmp.eq.s32.totalorder %s9, 0
      %p29 = por %p27, %p28
      %p30 = scmp.ne.s32.totalorder %s19, %s22
      %p31 = scmp.eq.s32.totalorder %s14, 1
      %p32 = por %p30, %p31
      %p33 = scmp.ne.s32.totalorder %s22, %s23
      %p34 = scmp.eq.s32.totalorder %s14, 0
      %p35 = por %p33, %p34
      %p36 = scmp.ne.s32.totalorder %s22, %s23
      %p37 = scmp.eq.s32.totalorder %s15, 1
      %p38 = por %p36, %p37
      %p40 = scmp.ne.s32.totalorder %s23, %s39
      %p41 = scmp.eq.s32.totalorder %s15, 0
      %p42 = por %p40, %p41
      %s44 = sadd.s32 %s43, 1
      %p47 = scmp.eq.s32.totalorder %s9, 1
      %p48 = scmp.ne.s32.totalorder %s43, %s45
      %p49 = scmp.eq.s32.totalorder %s9, 0
      %p50 = por %p48, %p49
      %p51 = scmp.ne.s32.totalorder %s43, %s45
      %p52 = scmp.eq.s32.totalorder %s14, 1
      %p53 = por %p51, %p52
      %p54 = scmp.ne.s32.totalorder %s45, %s46
      %p55 = scmp.eq.s32.totalorder %s14, 0
      %p56 = por %p54, %p55
      %p57 = scmp.ne.s32.totalorder %s45, %s46
      %p58 = scmp.eq.s32.totalorder %s15, 1
      %p59 = por %p57, %p58
      %p61 = scmp.ne.s32.totalorder %s46, %s60
      %p62 = scmp.eq.s32.totalorder %s15, 0
      %p63 = por %p61, %p62
      %s65 = sadd.s32 %s64, 1
      %p68 = scmp.eq.s32.totalorder %s9, 1
      %p69 = scmp.ne.s32.totalorder %s64, %s66
      %p70 = scmp.eq.s32.totalorder %s9, 0
      %p71 = por %p69, %p70
      %p72 = scmp.ne.s32.totalorder %s64, %s66
      %p73 = scmp.eq.s32.totalorder %s14, 1
      %p74 = por %p72, %p73
      %p75 = scmp.ne.s32.totalorder %s66, %s67
      %p76 = scmp.eq.s32.totalorder %s14, 0
      %p77 = por %p75, %p76
      %p78 = scmp.ne.s32.totalorder %s66, %s67
      %p79 = scmp.eq.s32.totalorder %s15, 1
      %p80 = por %p78, %p79
      %p82 = scmp.ne.s32.totalorder %s67, %s81
      %p83 = scmp.eq.s32.totalorder %s15, 0
      %p84 = por %p82, %p83
      %s85 = ssub.s32 %s9, %s16
      %p86 = scmp.eq.s32.totalorder %s85, 0
      %s88 = sadd.s32 %s87, 1
      %s89 = scalar_select %p86, %s87, %s88
      %p92 = pneg %p86
      %p93 = scmp.eq.s32.totalorder %s9, 1
      %p94 = por %p92, %p93
      %p95 = scmp.ne.s32.totalorder %s87, %s90
      %p96 = scmp.eq.s32.totalorder %s9, 0
      %p97 = por %p95, %p96
      %p98 = scmp.ne.s32.totalorder %s87, %s90
      %p99 = scmp.eq.s32.totalorder %s14, 1
      %p100 = por %p98, %p99
      %p101 = scmp.ne.s32.totalorder %s90, %s91
      %p102 = scmp.eq.s32.totalorder %s14, 0
      %p103 = por %p101, %p102
      %p104 = scmp.ne.s32.totalorder %s90, %s91
      %p105 = scmp.eq.s32.totalorder %s15, 1
      %p106 = por %p104, %p105
      %p108 = scmp.ne.s32.totalorder %s91, %s107
      %p109 = scmp.eq.s32.totalorder %s15, 0
      %p110 = por %p108, %p109
      %p111 = scmp.le.s32.totalorder 1, %s9
      %p112 = scmp.lt.s32.totalorder %s9, 3
      %p113 = pnand %p111, %p112
      %p114 = pneg %p113
      // Predicated region
      $region9: #{_lambda_.36} parent=5 // pred_check
        _
      $region10: #{_lambda_.36} parent=5 // pred_check_branch
        %116 = sbr.rel (%p113) target = $region12
      $region11: #{_lambda_.36} parent=5 // pred_region
        %s117 = ssub.s32 %s9, 1
        // Predicated region
        $region13: #{_lambda_.36} parent=11 // pred_check
          %p118 = pneg %p56
        $region14: #{_lambda_.36} parent=11 // pred_check_branch
          %120 = sbr.rel (%p118) target = $region16
        $region15: #{_lambda_.36} parent=11 // pred_region
          _
        $region16: #{_lambda_.36} parent=11 // pred_fallthru
          _
        // Predicated region
        $region17: #{_lambda_.36} parent=11 // pred_check
          %p121 = pneg %p77
        $region18: #{_lambda_.36} parent=11 // pred_check_branch
          %123 = sbr.rel (%p121) target = $region20
        $region19: #{_lambda_.36} parent=11 // pred_region
          _
        $region20: #{_lambda_.36} parent=11 // pred_fallthru
          _
      $region12: #{_lambda_.36} parent=5 // pred_fallthru
        _
      %p124 = scmp.lt.s32.totalorder %s9, 2
      // Predicated region
      $region21: #{_lambda_.36} parent=5 // pred_check
        %p125 = pneg %p124
      $region22: #{_lambda_.36} parent=5 // pred_check_branch
        %127 = sbr.rel (%p125) target = $region24
      $region23: #{_lambda_.36} parent=5 // pred_region
        // Predicated region
        $region25: #{_lambda_.36} parent=23 // pred_check
          %p128 = pneg %p29
        $region26: #{_lambda_.36} parent=23 // pred_check_branch
          %130 = sbr.rel (%p128) target = $region28
        $region27: #{_lambda_.36} parent=23 // pred_region
          %s131 = sand.u32 %s19, 1
          %s132 = sand.u32 %s19, 1
          %s133 = smul.addr %s132, 64
          %s134 = scalar_lea.vmem [#allocation2], %s133
          %s135 = smul.u32 2, %s9
          %s136 = smul.addr %s135, 8
          %s137 = scalar_lea.vmem %s0, %s136
          // Predicated region
          $region29: #{_lambda_.36} parent=27 // pred_check
            _
          $region30: #{_lambda_.36} parent=27 // pred_check_branch
            %139 = sbr.rel (0) target = $region32
          $region31: #{_lambda_.36} parent=27 // pred_region
            // Predicated region
            $region33: #{_lambda_.36} parent=31 // pred_check
              _
            $region34: #{_lambda_.36} parent=31 // pred_check_branch
              %141 = sbr.rel (0) target = $region36
            $region35: #{_lambda_.36} parent=31 // pred_region
              loop: start=0, step=1, limit=1
              $region37: #{_lambda_.36} parent=35 // loop_pre_header
                _
              $region38: #{_lambda_.36} parent=35 // loop_header
                %s143 = sphi 0, %s147
                %p144 = scmp.ge.s32.totalorder %s143, 1
                %s148 = sphi %s137, %s137
                %s149 = sphi %s134, %s134
              $region39: #{_lambda_.36} parent=35 // loop_header_branch
                %146 = sbr.rel (%p144) target = $region43
              $region40: #{_lambda_.36} parent=35 // loop_body
                %v150 = vld [vmem:[%s148] sm:$0xff]
                %151 = vst [vmem:[%s149] sm:$0xff] %v150
                %v152 = vld [vmem:[%s148 + $0x8] sm:$0xff]
                %153 = vst [vmem:[%s149 + $0x8] sm:$0xff] %v152
                %v154 = vld [vmem:[%s148 + $0x20] sm:$0xff]
                %155 = vst [vmem:[%s149 + $0x10] sm:$0xff] %v154
                %v156 = vld [vmem:[%s148 + $0x28] sm:$0xff]
                %157 = vst [vmem:[%s149 + $0x18] sm:$0xff] %v156
                %v158 = vld [vmem:[%s148 + $0x40] sm:$0xff]
                %159 = vst [vmem:[%s149 + $0x20] sm:$0xff] %v158
                %v160 = vld [vmem:[%s148 + $0x48] sm:$0xff]
                %161 = vst [vmem:[%s149 + $0x28] sm:$0xff] %v160
                %v162 = vld [vmem:[%s148 + $0x60] sm:$0xff]
                %163 = vst [vmem:[%s149 + $0x30] sm:$0xff] %v162
                %v164 = vld [vmem:[%s148 + $0x68] sm:$0xff]
                %165 = vst [vmem:[%s149 + $0x38] sm:$0xff] %v164
              $region41: #{_lambda_.36} parent=35 // loop_footer
                %s147 = sadd.s32 1, %s143
              $region42: #{_lambda_.36} parent=35 // loop_footer_branch
                %142 = sbr.rel target = $region38
              $region43: #{_lambda_.36} parent=35 // loop_exit
                _
            $region36: #{_lambda_.36} parent=31 // pred_fallthru
              _
            // Predicated region
            $region44: #{_lambda_.36} parent=31 // pred_check
              _
            $region45: #{_lambda_.36} parent=31 // pred_check_branch
              %167 = sbr.rel target = $region47
            $region46: #{_lambda_.36} parent=31 // pred_region
              _
            $region47: #{_lambda_.36} parent=31 // pred_fallthru
              _
          $region32: #{_lambda_.36} parent=27 // pred_fallthru
            _
          %168 = vnop
        $region28: #{_lambda_.36} parent=23 // pred_fallthru
          _
      $region24: #{_lambda_.36} parent=5 // pred_fallthru
        _
      %p169 = scmp.le.s32.totalorder 1, %s9
      %p170 = scmp.lt.s32.totalorder %s9, 3
      %p171 = pnand %p169, %p170
      %p172 = pneg %p171
      // Predicated region
      $region48: #{_lambda_.36} parent=5 // pred_check
        _
      $region49: #{_lambda_.36} parent=5 // pred_check_branch
        %174 = sbr.rel (%p171) target = $region51
      $region50: #{_lambda_.36} parent=5 // pred_region
        %s175 = ssub.s32 %s9, 1
        %s176 = sand.u32 %s22, 1
        %s177 = sand.u32 %s22, 1
        %s178 = smul.addr %s177, 64
        %s179 = scalar_lea.vmem [#allocation2], %s178
        // Predicated region
        $region52: #{_lambda_.36} parent=50 // pred_check
          %p180 = pneg %p35
        $region53: #{_lambda_.36} parent=50 // pred_check_branch
          %182 = sbr.rel (%p180) target = $region55
        $region54: #{_lambda_.36} parent=50 // pred_region
          _
        $region55: #{_lambda_.36} parent=50 // pred_fallthru
          _
        %s183 = sand.u32 %s22, 1
        %s184 = sand.u32 %s22, 1
        %s185 = smul.addr %s184, 64
        %s186 = scalar_lea.vmem [#allocation2], %s185
        %p187 = pneg %p35
        %p188 = pneg %p32
        %p189 = pneg %p56
        %p190 = pneg %p53
        %p191 = pneg %p77
        %p192 = pneg %p74
        %p193 = pneg %p103
        %p194 = pneg %p100
        %s195 = sand.u32 %s90, 1
        %s196 = sand.u32 %s90, 1
        %s197 = smul.addr %s196, 64
        %s198 = scalar_lea.vmem [#allocation3], %s197
        %s199 = smul.u32 2, %s14
        %s200 = smul.u32 2, %s14
        %v201 = vld [vmem:[%s179] sm:$0xff]
        %v202 = vld [vmem:[%s179 + $0x8] sm:$0xff]
        %v203 = vld [vmem:[%s179 + $0x10] sm:$0xff]
        %v204 = vld [vmem:[%s179 + $0x18] sm:$0xff]
        %v205 = vld [vmem:[%s179 + $0x20] sm:$0xff]
        %v206 = vld [vmem:[%s179 + $0x28] sm:$0xff]
        %v207 = vld [vmem:[%s179 + $0x30] sm:$0xff]
        %v208 = vld [vmem:[%s179 + $0x38] sm:$0xff]
        %v209 = vld [vmem:[%s1] sm:$0xff]
        %v210 = vld [vmem:[%s1 + $0x8] sm:$0xff]
        %v211 = vld [vmem:[%s1 + $0x10] sm:$0xff]
        %v212 = vld [vmem:[%s1 + $0x18] sm:$0xff]
        %214 = vset.pattern.permute.xlu0 0
        %215 = vperm.xlu0 %214, %v209
        %v216 = vpop.permute.xlu0 %215
        %219 = vset.pattern.permute.xlu0 0
        %220 = vperm.xlu0 %219, %v210
        %v221 = vpop.permute.xlu0 %220
        %224 = vset.pattern.permute.xlu0 0
        %225 = vperm.xlu0 %224, %v211
        %v226 = vpop.permute.xlu0 %225
        %229 = vset.pattern.permute.xlu0 0
        %230 = vperm.xlu0 %229, %v212
        %v231 = vpop.permute.xlu0 %230
        %v233 = vmul.f32 %v201, %v216
        %v234 = vmul.f32 %v202, %v216
        %v235 = vmul.f32 %v203, %v221
        %v236 = vmul.f32 %v204, %v221
        %v237 = vmul.f32 %v205, %v226
        %v238 = vmul.f32 %v206, %v226
        %v239 = vmul.f32 %v207, %v231
        %v240 = vmul.f32 %v208, %v231
        %v241 = vld [vmem:[%s2] sm:$0xff]
        %v242 = vld [vmem:[%s2 + $0x8] sm:$0xff]
        %v243 = vld [vmem:[%s2 + $0x10] sm:$0xff]
        %v244 = vld [vmem:[%s2 + $0x18] sm:$0xff]
        %246 = vset.pattern.permute.xlu0 0
        %247 = vperm.xlu0 %246, %v241
        %v248 = vpop.permute.xlu0 %247
        %251 = vset.pattern.permute.xlu0 0
        %252 = vperm.xlu0 %251, %v242
        %v253 = vpop.permute.xlu0 %252
        %256 = vset.pattern.permute.xlu0 0
        %257 = vperm.xlu0 %256, %v243
        %v258 = vpop.permute.xlu0 %257
        %261 = vset.pattern.permute.xlu0 0
        %262 = vperm.xlu0 %261, %v244
        %v263 = vpop.permute.xlu0 %262
        %v265 = vadd.f32 %v233, %v248
        %v266 = vadd.f32 %v234, %v248
        %v267 = vadd.f32 %v235, %v253
        %v268 = vadd.f32 %v236, %v253
        %v269 = vadd.f32 %v237, %v258
        %v270 = vadd.f32 %v238, %v258
        %v271 = vadd.f32 %v239, %v263
        %v272 = vadd.f32 %v240, %v263
        %v273 = vmax.f32 %v265, 0.0
        %v274 = vmax.f32 %v266, 0.0
        %v275 = vmax.f32 %v267, 0.0
        %v276 = vmax.f32 %v268, 0.0
        %v277 = vmax.f32 %v269, 0.0
        %v278 = vmax.f32 %v270, 0.0
        %v279 = vmax.f32 %v271, 0.0
        %v280 = vmax.f32 %v272, 0.0
        %281 = vst [vmem:[%s198] sm:$0xff] %v273
        %282 = vst [vmem:[%s198 + $0x8] sm:$0xff] %v274
        %283 = vst [vmem:[%s198 + $0x10] sm:$0xff] %v275
        %284 = vst [vmem:[%s198 + $0x18] sm:$0xff] %v276
        %285 = vst [vmem:[%s198 + $0x20] sm:$0xff] %v277
        %286 = vst [vmem:[%s198 + $0x28] sm:$0xff] %v278
        %287 = vst [vmem:[%s198 + $0x30] sm:$0xff] %v279
        %288 = vst [vmem:[%s198 + $0x38] sm:$0xff] %v280
        %s289 = sand.u32 %s90, 1
        %s290 = sand.u32 %s90, 1
        %s291 = smul.addr %s290, 64
        %s292 = scalar_lea.vmem [#allocation3], %s291
        // Predicated region
        $region56: #{_lambda_.36} parent=50 // pred_check
          %p293 = pneg %p100
        $region57: #{_lambda_.36} parent=50 // pred_check_branch
          %295 = sbr.rel (%p293) target = $region59
        $region58: #{_lambda_.36} parent=50 // pred_region
          %s296 = smul.u32 2, %s14
          %s297 = smul.addr %s296, 8
          %s298 = scalar_lea.vmem %s3, %s297
          // Predicated region
          $region60: #{_lambda_.36} parent=58 // pred_check
            _
          $region61: #{_lambda_.36} parent=58 // pred_check_branch
            %300 = sbr.rel (0) target = $region63
          $region62: #{_lambda_.36} parent=58 // pred_region
            // Predicated region
            $region64: #{_lambda_.36} parent=62 // pred_check
              _
            $region65: #{_lambda_.36} parent=62 // pred_check_branch
              %302 = sbr.rel (0) target = $region67
            $region66: #{_lambda_.36} parent=62 // pred_region
              loop: start=0, step=1, limit=1
              $region68: #{_lambda_.36} parent=66 // loop_pre_header
                _
              $region69: #{_lambda_.36} parent=66 // loop_header
                %s304 = sphi 0, %s308
                %p305 = scmp.ge.s32.totalorder %s304, 1
                %s309 = sphi %s292, %s292
                %s310 = sphi %s298, %s298
              $region70: #{_lambda_.36} parent=66 // loop_header_branch
                %307 = sbr.rel (%p305) target = $region74
              $region71: #{_lambda_.36} parent=66 // loop_body
                %v311 = vld [vmem:[%s309] sm:$0xff]
                %312 = vst [vmem:[%s310] sm:$0xff] %v311
                %v313 = vld [vmem:[%s309 + $0x8] sm:$0xff]
                %314 = vst [vmem:[%s310 + $0x8] sm:$0xff] %v313
                %v315 = vld [vmem:[%s309 + $0x10] sm:$0xff]
                %316 = vst [vmem:[%s310 + $0x20] sm:$0xff] %v315
                %v317 = vld [vmem:[%s309 + $0x18] sm:$0xff]
                %318 = vst [vmem:[%s310 + $0x28] sm:$0xff] %v317
                %v319 = vld [vmem:[%s309 + $0x20] sm:$0xff]
                %320 = vst [vmem:[%s310 + $0x40] sm:$0xff] %v319
                %v321 = vld [vmem:[%s309 + $0x28] sm:$0xff]
                %322 = vst [vmem:[%s310 + $0x48] sm:$0xff] %v321
                %v323 = vld [vmem:[%s309 + $0x30] sm:$0xff]
                %324 = vst [vmem:[%s310 + $0x60] sm:$0xff] %v323
                %v325 = vld [vmem:[%s309 + $0x38] sm:$0xff]
                %326 = vst [vmem:[%s310 + $0x68] sm:$0xff] %v325
              $region72: #{_lambda_.36} parent=66 // loop_footer
                %s308 = sadd.s32 1, %s304
              $region73: #{_lambda_.36} parent=66 // loop_footer_branch
                %303 = sbr.rel target = $region69
              $region74: #{_lambda_.36} parent=66 // loop_exit
                _
            $region67: #{_lambda_.36} parent=62 // pred_fallthru
              _
            // Predicated region
            $region75: #{_lambda_.36} parent=62 // pred_check
              _
            $region76: #{_lambda_.36} parent=62 // pred_check_branch
              %328 = sbr.rel target = $region78
            $region77: #{_lambda_.36} parent=62 // pred_region
              _
            $region78: #{_lambda_.36} parent=62 // pred_fallthru
              _
          $region63: #{_lambda_.36} parent=58 // pred_fallthru
            _
          %329 = vnop
        $region59: #{_lambda_.36} parent=50 // pred_fallthru
          _
      $region51: #{_lambda_.36} parent=5 // pred_fallthru
        _
      %p330 = scmp.le.s32.totalorder 2, %s9
      // Predicated region
      $region79: #{_lambda_.36} parent=5 // pred_check
        %p331 = pneg %p330
      $region80: #{_lambda_.36} parent=5 // pred_check_branch
        %333 = sbr.rel (%p331) target = $region82
      $region81: #{_lambda_.36} parent=5 // pred_region
        %s334 = ssub.s32 %s9, 2
        // Predicated region
        $region83: #{_lambda_.36} parent=81 // pred_check
          %p335 = pneg %p106
        $region84: #{_lambda_.36} parent=81 // pred_check_branch
          %337 = sbr.rel (%p335) target = $region86
        $region85: #{_lambda_.36} parent=81 // pred_region
          %s338 = sand.u32 %s91, 1
          %s339 = sand.u32 %s91, 1
          %s340 = smul.addr %s339, 64
          %s341 = scalar_lea.vmem [#allocation3], %s340
        $region86: #{_lambda_.36} parent=81 // pred_fallthru
          _
      $region82: #{_lambda_.36} parent=5 // pred_fallthru
        _
    $region6: #{_lambda_.36} parent=1 // loop_footer
      %s13 = sadd.s32 1, %s9
    $region7: #{_lambda_.36} parent=1 // loop_footer_branch
      %8 = sbr.rel target = $region3
    $region8: #{_lambda_.36} parent=1 // loop_exit
      _

// kernel: _lambda_.37
$region0: #{_lambda_.37}
  #allocation0 [shape = 'u32[]', space=smem, size = 0x4, offset = 0x4, fixed_abs, tag = 'smem constant byte address 0x4 - core index']
  #allocation1 [shape = 'u32[144,128]{1,0:T(1,128)}', space=vmem, size = 0x12000, scoped, tag = 'internal scratch']
  %s0 = inlined_call_operand.vmem [shape: bf16[3,512], index: 0, kind: input, shape index: {}]
  %s1 = inlined_call_operand.vmem [shape: bf16[512,2048], index: 1, kind: input, shape index: {}]
  %s2 = inlined_call_operand.vmem [shape: f32[3,1], index: 2, kind: input, shape index: {}]
  %s3 = inlined_call_operand.vmem [shape: f32[3,2048], index: 3, kind: output, shape index: {}]
  %s4 = sld [smem:[#allocation0]]
  $region68: #{_lambda_.37} parent=0
    _
  %s6 = ssub.s32 1, %s4
  %s7 = scalar_select 0, %s6, %s4
  $region1: #{_lambda_.37} parent=0
    #allocation2 [shape = 'u8[1048576]{0}', space=vmem, size = 0x100000, scoped, tag = 'input window, operand 1']
    loop: start=0, step=1, limit=6
    $region2: #{_lambda_.37} parent=1 // loop_pre_header
      _
    $region3: #{_lambda_.37} parent=1 // loop_header
      %s9 = sphi 0, %s13
      %p10 = scmp.ge.s32.totalorder %s9, 6
      %s17 = sphi 0, %s17
      %s19 = sphi 0, %s17
      %s20 = sphi 0, %s19
      %s34 = sphi 0, %s20
      %s40 = sphi 0, %s42
      %s43 = sphi 0, %s40
      %s44 = sphi 0, %s43
      %s60 = sphi 0, %s44
      %s64 = sphi 0, %s64
      %s66 = sphi 0, %s64
      %s67 = sphi 0, %s66
      %s81 = sphi 0, %s67
      %s87 = sphi 0, %s89
      %s90 = sphi 0, %s87
      %s91 = sphi 0, %s90
      %s107 = sphi 0, %s91
    $region4: #{_lambda_.37} parent=1 // loop_header_branch
      %12 = sbr.rel (%p10) target = $region8
    $region5: #{_lambda_.37} parent=1 // loop_body
      %s14 = ssub.s32 %s9, 1
      %s15 = ssub.s32 %s9, 2
      %s16 = sadd.s32 %s9, 1
      %s18 = sadd.s32 %s17, 1
      %p21 = scmp.eq.s32.totalorder %s9, 3
      %p22 = scmp.ne.s32.totalorder %s17, %s19
      %p23 = scmp.eq.s32.totalorder %s9, 0
      %p24 = por %p22, %p23
      %p25 = scmp.ne.s32.totalorder %s17, %s19
      %p26 = scmp.eq.s32.totalorder %s14, 3
      %p27 = por %p25, %p26
      %p28 = scmp.ne.s32.totalorder %s19, %s20
      %p29 = scmp.eq.s32.totalorder %s14, 0
      %p30 = por %p28, %p29
      %p31 = scmp.ne.s32.totalorder %s19, %s20
      %p32 = scmp.eq.s32.totalorder %s15, 3
      %p33 = por %p31, %p32
      %p35 = scmp.ne.s32.totalorder %s20, %s34
      %p36 = scmp.eq.s32.totalorder %s15, 0
      %p37 = por %p35, %p36
      %s38 = ssub.s32 %s9, %s16
      %p39 = scmp.eq.s32.totalorder %s38, 0
      %s41 = sadd.s32 %s40, 1
      %s42 = scalar_select %p39, %s40, %s41
      %p45 = pneg %p39
      %p46 = scmp.eq.s32.totalorder %s9, 3
      %p47 = por %p45, %p46
      %p48 = scmp.ne.s32.totalorder %s40, %s43
      %p49 = scmp.eq.s32.totalorder %s9, 0
      %p50 = por %p48, %p49
      %p51 = scmp.ne.s32.totalorder %s40, %s43
      %p52 = scmp.eq.s32.totalorder %s14, 3
      %p53 = por %p51, %p52
      %p54 = scmp.ne.s32.totalorder %s43, %s44
      %p55 = scmp.eq.s32.totalorder %s14, 0
      %p56 = por %p54, %p55
      %p57 = scmp.ne.s32.totalorder %s43, %s44
      %p58 = scmp.eq.s32.totalorder %s15, 3
      %p59 = por %p57, %p58
      %p61 = scmp.ne.s32.totalorder %s44, %s60
      %p62 = scmp.eq.s32.totalorder %s15, 0
      %p63 = por %p61, %p62
      %s65 = sadd.s32 %s64, 1
      %p68 = scmp.eq.s32.totalorder %s9, 3
      %p69 = scmp.ne.s32.totalorder %s64, %s66
      %p70 = scmp.eq.s32.totalorder %s9, 0
      %p71 = por %p69, %p70
      %p72 = scmp.ne.s32.totalorder %s64, %s66
      %p73 = scmp.eq.s32.totalorder %s14, 3
      %p74 = por %p72, %p73
      %p75 = scmp.ne.s32.totalorder %s66, %s67
      %p76 = scmp.eq.s32.totalorder %s14, 0
      %p77 = por %p75, %p76
      %p78 = scmp.ne.s32.totalorder %s66, %s67
      %p79 = scmp.eq.s32.totalorder %s15, 3
      %p80 = por %p78, %p79
      %p82 = scmp.ne.s32.totalorder %s67, %s81
      %p83 = scmp.eq.s32.totalorder %s15, 0
      %p84 = por %p82, %p83
      %s85 = ssub.s32 %s9, %s16
      %p86 = scmp.eq.s32.totalorder %s85, 0
      %s88 = sadd.s32 %s87, 1
      %s89 = scalar_select %p86, %s87, %s88
      %p92 = pneg %p86
      %p93 = scmp.eq.s32.totalorder %s9, 3
      %p94 = por %p92, %p93
      %p95 = scmp.ne.s32.totalorder %s87, %s90
      %p96 = scmp.eq.s32.totalorder %s9, 0
      %p97 = por %p95, %p96
      %p98 = scmp.ne.s32.totalorder %s87, %s90
      %p99 = scmp.eq.s32.totalorder %s14, 3
      %p100 = por %p98, %p99
      %p101 = scmp.ne.s32.totalorder %s90, %s91
      %p102 = scmp.eq.s32.totalorder %s14, 0
      %p103 = por %p101, %p102
      %p104 = scmp.ne.s32.totalorder %s90, %s91
      %p105 = scmp.eq.s32.totalorder %s15, 3
      %p106 = por %p104, %p105
      %p108 = scmp.ne.s32.totalorder %s91, %s107
      %p109 = scmp.eq.s32.totalorder %s15, 0
      %p110 = por %p108, %p109
      %p111 = scmp.le.s32.totalorder 1, %s9
      %p112 = scmp.lt.s32.totalorder %s9, 5
      %p113 = pnand %p111, %p112
      %p114 = pneg %p113
      // Predicated region
      $region9: #{_lambda_.37} parent=5 // pred_check
        _
      $region10: #{_lambda_.37} parent=5 // pred_check_branch
        %116 = sbr.rel (%p113) target = $region12
      $region11: #{_lambda_.37} parent=5 // pred_region
        %s117 = ssub.s32 %s9, 1
        // Predicated region
        $region13: #{_lambda_.37} parent=11 // pred_check
          %p118 = pneg %p30
        $region14: #{_lambda_.37} parent=11 // pred_check_branch
          %120 = sbr.rel (%p118) target = $region16
        $region15: #{_lambda_.37} parent=11 // pred_region
          _
        $region16: #{_lambda_.37} parent=11 // pred_fallthru
          _
        // Predicated region
        $region17: #{_lambda_.37} parent=11 // pred_check
          %p121 = pneg %p77
        $region18: #{_lambda_.37} parent=11 // pred_check_branch
          %123 = sbr.rel (%p121) target = $region20
        $region19: #{_lambda_.37} parent=11 // pred_region
          _
        $region20: #{_lambda_.37} parent=11 // pred_fallthru
          _
      $region12: #{_lambda_.37} parent=5 // pred_fallthru
        _
      %p124 = scmp.lt.s32.totalorder %s9, 4
      // Predicated region
      $region21: #{_lambda_.37} parent=5 // pred_check
        %p125 = pneg %p124
      $region22: #{_lambda_.37} parent=5 // pred_check_branch
        %127 = sbr.rel (%p125) target = $region24
      $region23: #{_lambda_.37} parent=5 // pred_region
        // Predicated region
        $region25: #{_lambda_.37} parent=23 // pred_check
          %p128 = pneg %p50
        $region26: #{_lambda_.37} parent=23 // pred_check_branch
          %130 = sbr.rel (%p128) target = $region28
        $region27: #{_lambda_.37} parent=23 // pred_region
          %s131 = sand.u32 %s40, 1
          %s132 = sand.u32 %s40, 1
          %s133 = smul.addr %s132, 1024
          %s134 = scalar_lea.vmem [#allocation2], %s133
          %s135 = smul.u32 4, %s9
          %s136 = smul.addr %s135, 4
          %s137 = scalar_lea.vmem %s1, %s136
          // Predicated region
          $region29: #{_lambda_.37} parent=27 // pred_check
            _
          $region30: #{_lambda_.37} parent=27 // pred_check_branch
            %139 = sbr.rel (0) target = $region32
          $region31: #{_lambda_.37} parent=27 // pred_region
            // Predicated region
            $region33: #{_lambda_.37} parent=31 // pred_check
              _
            $region34: #{_lambda_.37} parent=31 // pred_check_branch
              %141 = sbr.rel (0) target = $region36
            $region35: #{_lambda_.37} parent=31 // pred_region
              loop: start=0, step=1, limit=1
              $region37: #{_lambda_.37} parent=35 // loop_pre_header
                _
              $region38: #{_lambda_.37} parent=35 // loop_header
                %s143 = sphi 0, %s147
                %p144 = scmp.ge.s32.totalorder %s143, 1
                %s148 = sphi %s137, %s137
                %s149 = sphi %s134, %s134
              $region39: #{_lambda_.37} parent=35 // loop_header_branch
                %146 = sbr.rel (%p144) target = $region43
              $region40: #{_lambda_.37} parent=35 // loop_body
                %v150 = vld [vmem:[%s148] sm:$0xff]
                %151 = vst [vmem:[%s149] sm:$0xff] %v150
                %v152 = vld [vmem:[%s148 + $0x8] sm:$0xff]
                %153 = vst [vmem:[%s149 + $0x8] sm:$0xff] %v152
                %v154 = vld [vmem:[%s148 + $0x40] sm:$0xff]
                %155 = vst [vmem:[%s149 + $0x10] sm:$0xff] %v154
                %v156 = vld [vmem:[%s148 + $0x48] sm:$0xff]
                %157 = vst [vmem:[%s149 + $0x18] sm:$0xff] %v156
                %v158 = vld [vmem:[%s148 + $0x80] sm:$0xff]
                %159 = vst [vmem:[%s149 + $0x20] sm:$0xff] %v158
                %v160 = vld [vmem:[%s148 + $0x88] sm:$0xff]
                %161 = vst [vmem:[%s149 + $0x28] sm:$0xff] %v160
                %v162 = vld [vmem:[%s148 + $0xc0] sm:$0xff]
                %163 = vst [vmem:[%s149 + $0x30] sm:$0xff] %v162
                %v164 = vld [vmem:[%s148 + $0xc8] sm:$0xff]
                %165 = vst [vmem:[%s149 + $0x38] sm:$0xff] %v164
                %v166 = vld [vmem:[%s148 + $0x100] sm:$0xff]
                %167 = vst [vmem:[%s149 + $0x40] sm:$0xff] %v166
                %v168 = vld [vmem:[%s148 + $0x108] sm:$0xff]
                %169 = vst [vmem:[%s149 + $0x48] sm:$0xff] %v168
                %v170 = vld [vmem:[%s148 + $0x140] sm:$0xff]
                %171 = vst [vmem:[%s149 + $0x50] sm:$0xff] %v170
                %v172 = vld [vmem:[%s148 + $0x148] sm:$0xff]
                %173 = vst [vmem:[%s149 + $0x58] sm:$0xff] %v172
                %v174 = vld [vmem:[%s148 + $0x180] sm:$0xff]
                %175 = vst [vmem:[%s149 + $0x60] sm:$0xff] %v174
                %v176 = vld [vmem:[%s148 + $0x188] sm:$0xff]
                %177 = vst [vmem:[%s149 + $0x68] sm:$0xff] %v176
                %v178 = vld [vmem:[%s148 + $0x1c0] sm:$0xff]
                %179 = vst [vmem:[%s149 + $0x70] sm:$0xff] %v178
                %v180 = vld [vmem:[%s148 + $0x1c8] sm:$0xff]
                %181 = vst [vmem:[%s149 + $0x78] sm:$0xff] %v180
                %v182 = vld [vmem:[%s148 + $0x200] sm:$0xff]
                %183 = vst [vmem:[%s149 + $0x80] sm:$0xff] %v182
                %v184 = vld [vmem:[%s148 + $0x208] sm:$0xff]
                %185 = vst [vmem:[%s149 + $0x88] sm:$0xff] %v184
                %v186 = vld [vmem:[%s148 + $0x240] sm:$0xff]
                %187 = vst [vmem:[%s149 + $0x90] sm:$0xff] %v186
                %v188 = vld [vmem:[%s148 + $0x248] sm:$0xff]
                %189 = vst [vmem:[%s149 + $0x98] sm:$0xff] %v188
                %v190 = vld [vmem:[%s148 + $0x280] sm:$0xff]
                %191 = vst [vmem:[%s149 + $0xa0] sm:$0xff] %v190
                %v192 = vld [vmem:[%s148 + $0x288] sm:$0xff]
                %193 = vst [vmem:[%s149 + $0xa8] sm:$0xff] %v192
                %v194 = vld [vmem:[%s148 + $0x2c0] sm:$0xff]
                %195 = vst [vmem:[%s149 + $0xb0] sm:$0xff] %v194
                %v196 = vld [vmem:[%s148 + $0x2c8] sm:$0xff]
                %197 = vst [vmem:[%s149 + $0xb8] sm:$0xff] %v196
                %v198 = vld [vmem:[%s148 + $0x300] sm:$0xff]
                %199 = vst [vmem:[%s149 + $0xc0] sm:$0xff] %v198
                %v200 = vld [vmem:[%s148 + $0x308] sm:$0xff]
                %201 = vst [vmem:[%s149 + $0xc8] sm:$0xff] %v200
                %v202 = vld [vmem:[%s148 + $0x340] sm:$0xff]
                %203 = vst [vmem:[%s149 + $0xd0] sm:$0xff] %v202
                %v204 = vld [vmem:[%s148 + $0x348] sm:$0xff]
                %205 = vst [vmem:[%s149 + $0xd8] sm:$0xff] %v204
                %v206 = vld [vmem:[%s148 + $0x380] sm:$0xff]
                %207 = vst [vmem:[%s149 + $0xe0] sm:$0xff] %v206
                %v208 = vld [vmem:[%s148 + $0x388] sm:$0xff]
                %209 = vst [vmem:[%s149 + $0xe8] sm:$0xff] %v208
                %v210 = vld [vmem:[%s148 + $0x3c0] sm:$0xff]
                %211 = vst [vmem:[%s149 + $0xf0] sm:$0xff] %v210
                %v212 = vld [vmem:[%s148 + $0x3c8] sm:$0xff]
                %213 = vst [vmem:[%s149 + $0xf8] sm:$0xff] %v212
                %v214 = vld [vmem:[%s148 + $0x400] sm:$0xff]
                %215 = vst [vmem:[%s149 + $0x100] sm:$0xff] %v214
                %v216 = vld [vmem:[%s148 + $0x408] sm:$0xff]
                %217 = vst [vmem:[%s149 + $0x108] sm:$0xff] %v216
                %v218 = vld [vmem:[%s148 + $0x440] sm:$0xff]
                %219 = vst [vmem:[%s149 + $0x110] sm:$0xff] %v218
                %v220 = vld [vmem:[%s148 + $0x448] sm:$0xff]
                %221 = vst [vmem:[%s149 + $0x118] sm:$0xff] %v220
                %v222 = vld [vmem:[%s148 + $0x480] sm:$0xff]
                %223 = vst [vmem:[%s149 + $0x120] sm:$0xff] %v222
                %v224 = vld [vmem:[%s148 + $0x488] sm:$0xff]
                %225 = vst [vmem:[%s149 + $0x128] sm:$0xff] %v224
                %v226 = vld [vmem:[%s148 + $0x4c0] sm:$0xff]
                %227 = vst [vmem:[%s149 + $0x130] sm:$0xff] %v226
                %v228 = vld [vmem:[%s148 + $0x4c8] sm:$0xff]
                %229 = vst [vmem:[%s149 + $0x138] sm:$0xff] %v228
                %v230 = vld [vmem:[%s148 + $0x500] sm:$0xff]
                %231 = vst [vmem:[%s149 + $0x140] sm:$0xff] %v230
                %v232 = vld [vmem:[%s148 + $0x508] sm:$0xff]
                %233 = vst [vmem:[%s149 + $0x148] sm:$0xff] %v232
                %v234 = vld [vmem:[%s148 + $0x540] sm:$0xff]
                %235 = vst [vmem:[%s149 + $0x150] sm:$0xff] %v234
                %v236 = vld [vmem:[%s148 + $0x548] sm:$0xff]
                %237 = vst [vmem:[%s149 + $0x158] sm:$0xff] %v236
                %v238 = vld [vmem:[%s148 + $0x580] sm:$0xff]
                %239 = vst [vmem:[%s149 + $0x160] sm:$0xff] %v238
                %v240 = vld [vmem:[%s148 + $0x588] sm:$0xff]
                %241 = vst [vmem:[%s149 + $0x168] sm:$0xff] %v240
                %v242 = vld [vmem:[%s148 + $0x5c0] sm:$0xff]
                %243 = vst [vmem:[%s149 + $0x170] sm:$0xff] %v242
                %v244 = vld [vmem:[%s148 + $0x5c8] sm:$0xff]
                %245 = vst [vmem:[%s149 + $0x178] sm:$0xff] %v244
                %v246 = vld [vmem:[%s148 + $0x600] sm:$0xff]
                %247 = vst [vmem:[%s149 + $0x180] sm:$0xff] %v246
                %v248 = vld [vmem:[%s148 + $0x608] sm:$0xff]
                %249 = vst [vmem:[%s149 + $0x188] sm:$0xff] %v248
                %v250 = vld [vmem:[%s148 + $0x640] sm:$0xff]
                %251 = vst [vmem:[%s149 + $0x190] sm:$0xff] %v250
                %v252 = vld [vmem:[%s148 + $0x648] sm:$0xff]
                %253 = vst [vmem:[%s149 + $0x198] sm:$0xff] %v252
                %v254 = vld [vmem:[%s148 + $0x680] sm:$0xff]
                %255 = vst [vmem:[%s149 + $0x1a0] sm:$0xff] %v254
                %v256 = vld [vmem:[%s148 + $0x688] sm:$0xff]
                %257 = vst [vmem:[%s149 + $0x1a8] sm:$0xff] %v256
                %v258 = vld [vmem:[%s148 + $0x6c0] sm:$0xff]
                %259 = vst [vmem:[%s149 + $0x1b0] sm:$0xff] %v258
                %v260 = vld [vmem:[%s148 + $0x6c8] sm:$0xff]
                %261 = vst [vmem:[%s149 + $0x1b8] sm:$0xff] %v260
                %v262 = vld [vmem:[%s148 + $0x700] sm:$0xff]
                %263 = vst [vmem:[%s149 + $0x1c0] sm:$0xff] %v262
                %v264 = vld [vmem:[%s148 + $0x708] sm:$0xff]
                %265 = vst [vmem:[%s149 + $0x1c8] sm:$0xff] %v264
                %v266 = vld [vmem:[%s148 + $0x740] sm:$0xff]
                %267 = vst [vmem:[%s149 + $0x1d0] sm:$0xff] %v266
                %v268 = vld [vmem:[%s148 + $0x748] sm:$0xff]
                %269 = vst [vmem:[%s149 + $0x1d8] sm:$0xff] %v268
                %v270 = vld [vmem:[%s148 + $0x780] sm:$0xff]
                %271 = vst [vmem:[%s149 + $0x1e0] sm:$0xff] %v270
                %v272 = vld [vmem:[%s148 + $0x788] sm:$0xff]
                %273 = vst [vmem:[%s149 + $0x1e8] sm:$0xff] %v272
                %v274 = vld [vmem:[%s148 + $0x7c0] sm:$0xff]
                %275 = vst [vmem:[%s149 + $0x1f0] sm:$0xff] %v274
                %v276 = vld [vmem:[%s148 + $0x7c8] sm:$0xff]
                %277 = vst [vmem:[%s149 + $0x1f8] sm:$0xff] %v276
                %v278 = vld [vmem:[%s148 + $0x800] sm:$0xff]
                %279 = vst [vmem:[%s149 + $0x200] sm:$0xff] %v278
                %v280 = vld [vmem:[%s148 + $0x808] sm:$0xff]
                %281 = vst [vmem:[%s149 + $0x208] sm:$0xff] %v280
                %v282 = vld [vmem:[%s148 + $0x840] sm:$0xff]
                %283 = vst [vmem:[%s149 + $0x210] sm:$0xff] %v282
                %v284 = vld [vmem:[%s148 + $0x848] sm:$0xff]
                %285 = vst [vmem:[%s149 + $0x218] sm:$0xff] %v284
                %v286 = vld [vmem:[%s148 + $0x880] sm:$0xff]
                %287 = vst [vmem:[%s149 + $0x220] sm:$0xff] %v286
                %v288 = vld [vmem:[%s148 + $0x888] sm:$0xff]
                %289 = vst [vmem:[%s149 + $0x228] sm:$0xff] %v288
                %v290 = vld [vmem:[%s148 + $0x8c0] sm:$0xff]
                %291 = vst [vmem:[%s149 + $0x230] sm:$0xff] %v290
                %v292 = vld [vmem:[%s148 + $0x8c8] sm:$0xff]
                %293 = vst [vmem:[%s149 + $0x238] sm:$0xff] %v292
                %v294 = vld [vmem:[%s148 + $0x900] sm:$0xff]
                %295 = vst [vmem:[%s149 + $0x240] sm:$0xff] %v294
                %v296 = vld [vmem:[%s148 + $0x908] sm:$0xff]
                %297 = vst [vmem:[%s149 + $0x248] sm:$0xff] %v296
                %v298 = vld [vmem:[%s148 + $0x940] sm:$0xff]
                %299 = vst [vmem:[%s149 + $0x250] sm:$0xff] %v298
                %v300 = vld [vmem:[%s148 + $0x948] sm:$0xff]
                %301 = vst [vmem:[%s149 + $0x258] sm:$0xff] %v300
                %v302 = vld [vmem:[%s148 + $0x980] sm:$0xff]
                %303 = vst [vmem:[%s149 + $0x260] sm:$0xff] %v302
                %v304 = vld [vmem:[%s148 + $0x988] sm:$0xff]
                %305 = vst [vmem:[%s149 + $0x268] sm:$0xff] %v304
                %v306 = vld [vmem:[%s148 + $0x9c0] sm:$0xff]
                %307 = vst [vmem:[%s149 + $0x270] sm:$0xff] %v306
                %v308 = vld [vmem:[%s148 + $0x9c8] sm:$0xff]
                %309 = vst [vmem:[%s149 + $0x278] sm:$0xff] %v308
                %v310 = vld [vmem:[%s148 + $0xa00] sm:$0xff]
                %311 = vst [vmem:[%s149 + $0x280] sm:$0xff] %v310
                %v312 = vld [vmem:[%s148 + $0xa08] sm:$0xff]
                %313 = vst [vmem:[%s149 + $0x288] sm:$0xff] %v312
                %v314 = vld [vmem:[%s148 + $0xa40] sm:$0xff]
                %315 = vst [vmem:[%s149 + $0x290] sm:$0xff] %v314
                %v316 = vld [vmem:[%s148 + $0xa48] sm:$0xff]
                %317 = vst [vmem:[%s149 + $0x298] sm:$0xff] %v316
                %v318 = vld [vmem:[%s148 + $0xa80] sm:$0xff]
                %319 = vst [vmem:[%s149 + $0x2a0] sm:$0xff] %v318
                %v320 = vld [vmem:[%s148 + $0xa88] sm:$0xff]
                %321 = vst [vmem:[%s149 + $0x2a8] sm:$0xff] %v320
                %v322 = vld [vmem:[%s148 + $0xac0] sm:$0xff]
                %323 = vst [vmem:[%s149 + $0x2b0] sm:$0xff] %v322
                %v324 = vld [vmem:[%s148 + $0xac8] sm:$0xff]
                %325 = vst [vmem:[%s149 + $0x2b8] sm:$0xff] %v324
                %v326 = vld [vmem:[%s148 + $0xb00] sm:$0xff]
                %327 = vst [vmem:[%s149 + $0x2c0] sm:$0xff] %v326
                %v328 = vld [vmem:[%s148 + $0xb08] sm:$0xff]
                %329 = vst [vmem:[%s149 + $0x2c8] sm:$0xff] %v328
                %v330 = vld [vmem:[%s148 + $0xb40] sm:$0xff]
                %331 = vst [vmem:[%s149 + $0x2d0] sm:$0xff] %v330
                %v332 = vld [vmem:[%s148 + $0xb48] sm:$0xff]
                %333 = vst [vmem:[%s149 + $0x2d8] sm:$0xff] %v332
                %v334 = vld [vmem:[%s148 + $0xb80] sm:$0xff]
                %335 = vst [vmem:[%s149 + $0x2e0] sm:$0xff] %v334
                %v336 = vld [vmem:[%s148 + $0xb88] sm:$0xff]
                %337 = vst [vmem:[%s149 + $0x2e8] sm:$0xff] %v336
                %v338 = vld [vmem:[%s148 + $0xbc0] sm:$0xff]
                %339 = vst [vmem:[%s149 + $0x2f0] sm:$0xff] %v338
                %v340 = vld [vmem:[%s148 + $0xbc8] sm:$0xff]
                %341 = vst [vmem:[%s149 + $0x2f8] sm:$0xff] %v340
                %v342 = vld [vmem:[%s148 + $0xc00] sm:$0xff]
                %343 = vst [vmem:[%s149 + $0x300] sm:$0xff] %v342
                %v344 = vld [vmem:[%s148 + $0xc08] sm:$0xff]
                %345 = vst [vmem:[%s149 + $0x308] sm:$0xff] %v344
                %v346 = vld [vmem:[%s148 + $0xc40] sm:$0xff]
                %347 = vst [vmem:[%s149 + $0x310] sm:$0xff] %v346
                %v348 = vld [vmem:[%s148 + $0xc48] sm:$0xff]
                %349 = vst [vmem:[%s149 + $0x318] sm:$0xff] %v348
                %v350 = vld [vmem:[%s148 + $0xc80] sm:$0xff]
                %351 = vst [vmem:[%s149 + $0x320] sm:$0xff] %v350
                %v352 = vld [vmem:[%s148 + $0xc88] sm:$0xff]
                %353 = vst [vmem:[%s149 + $0x328] sm:$0xff] %v352
                %v354 = vld [vmem:[%s148 + $0xcc0] sm:$0xff]
                %355 = vst [vmem:[%s149 + $0x330] sm:$0xff] %v354
                %v356 = vld [vmem:[%s148 + $0xcc8] sm:$0xff]
                %357 = vst [vmem:[%s149 + $0x338] sm:$0xff] %v356
                %v358 = vld [vmem:[%s148 + $0xd00] sm:$0xff]
                %359 = vst [vmem:[%s149 + $0x340] sm:$0xff] %v358
                %v360 = vld [vmem:[%s148 + $0xd08] sm:$0xff]
                %361 = vst [vmem:[%s149 + $0x348] sm:$0xff] %v360
                %v362 = vld [vmem:[%s148 + $0xd40] sm:$0xff]
                %363 = vst [vmem:[%s149 + $0x350] sm:$0xff] %v362
                %v364 = vld [vmem:[%s148 + $0xd48] sm:$0xff]
                %365 = vst [vmem:[%s149 + $0x358] sm:$0xff] %v364
                %v366 = vld [vmem:[%s148 + $0xd80] sm:$0xff]
                %367 = vst [vmem:[%s149 + $0x360] sm:$0xff] %v366
                %v368 = vld [vmem:[%s148 + $0xd88] sm:$0xff]
                %369 = vst [vmem:[%s149 + $0x368] sm:$0xff] %v368
                %v370 = vld [vmem:[%s148 + $0xdc0] sm:$0xff]
                %371 = vst [vmem:[%s149 + $0x370] sm:$0xff] %v370
                %v372 = vld [vmem:[%s148 + $0xdc8] sm:$0xff]
                %373 = vst [vmem:[%s149 + $0x378] sm:$0xff] %v372
                %v374 = vld [vmem:[%s148 + $0xe00] sm:$0xff]
                %375 = vst [vmem:[%s149 + $0x380] sm:$0xff] %v374
                %v376 = vld [vmem:[%s148 + $0xe08] sm:$0xff]
                %377 = vst [vmem:[%s149 + $0x388] sm:$0xff] %v376
                %v378 = vld [vmem:[%s148 + $0xe40] sm:$0xff]
                %379 = vst [vmem:[%s149 + $0x390] sm:$0xff] %v378
                %v380 = vld [vmem:[%s148 + $0xe48] sm:$0xff]
                %381 = vst [vmem:[%s149 + $0x398] sm:$0xff] %v380
                %v382 = vld [vmem:[%s148 + $0xe80] sm:$0xff]
                %383 = vst [vmem:[%s149 + $0x3a0] sm:$0xff] %v382
                %v384 = vld [vmem:[%s148 + $0xe88] sm:$0xff]
                %385 = vst [vmem:[%s149 + $0x3a8] sm:$0xff] %v384
                %v386 = vld [vmem:[%s148 + $0xec0] sm:$0xff]
                %387 = vst [vmem:[%s149 + $0x3b0] sm:$0xff] %v386
                %v388 = vld [vmem:[%s148 + $0xec8] sm:$0xff]
                %389 = vst [vmem:[%s149 + $0x3b8] sm:$0xff] %v388
                %v390 = vld [vmem:[%s148 + $0xf00] sm:$0xff]
                %391 = vst [vmem:[%s149 + $0x3c0] sm:$0xff] %v390
                %v392 = vld [vmem:[%s148 + $0xf08] sm:$0xff]
                %393 = vst [vmem:[%s149 + $0x3c8] sm:$0xff] %v392
                %v394 = vld [vmem:[%s148 + $0xf40] sm:$0xff]
                %395 = vst [vmem:[%s149 + $0x3d0] sm:$0xff] %v394
                %v396 = vld [vmem:[%s148 + $0xf48] sm:$0xff]
                %397 = vst [vmem:[%s149 + $0x3d8] sm:$0xff] %v396
                %v398 = vld [vmem:[%s148 + $0xf80] sm:$0xff]
                %399 = vst [vmem:[%s149 + $0x3e0] sm:$0xff] %v398
                %v400 = vld [vmem:[%s148 + $0xf88] sm:$0xff]
                %401 = vst [vmem:[%s149 + $0x3e8] sm:$0xff] %v400
                %v402 = vld [vmem:[%s148 + $0xfc0] sm:$0xff]
                %403 = vst [vmem:[%s149 + $0x3f0] sm:$0xff] %v402
                %v404 = vld [vmem:[%s148 + $0xfc8] sm:$0xff]
                %405 = vst [vmem:[%s149 + $0x3f8] sm:$0xff] %v404
              $region41: #{_lambda_.37} parent=35 // loop_footer
                %s147 = sadd.s32 1, %s143
              $region42: #{_lambda_.37} parent=35 // loop_footer_branch
                %142 = sbr.rel target = $region38
              $region43: #{_lambda_.37} parent=35 // loop_exit
                _
            $region36: #{_lambda_.37} parent=31 // pred_fallthru
              _
            // Predicated region
            $region44: #{_lambda_.37} parent=31 // pred_check
              _
            $region45: #{_lambda_.37} parent=31 // pred_check_branch
              %407 = sbr.rel target = $region47
            $region46: #{_lambda_.37} parent=31 // pred_region
              _
            $region47: #{_lambda_.37} parent=31 // pred_fallthru
              _
          $region32: #{_lambda_.37} parent=27 // pred_fallthru
            _
          %408 = vnop
        $region28: #{_lambda_.37} parent=23 // pred_fallthru
          _
      $region24: #{_lambda_.37} parent=5 // pred_fallthru
        _
      %p409 = scmp.le.s32.totalorder 1, %s9
      %p410 = scmp.lt.s32.totalorder %s9, 5
      %p411 = pnand %p409, %p410
      %p412 = pneg %p411
      // Predicated region
      $region48: #{_lambda_.37} parent=5 // pred_check
        _
      $region49: #{_lambda_.37} parent=5 // pred_check_branch
        %414 = sbr.rel (%p411) target = $region51
      $region50: #{_lambda_.37} parent=5 // pred_region
        %s415 = ssub.s32 %s9, 1
        %s416 = sand.u32 %s43, 1
        %s417 = sand.u32 %s43, 1
        %s418 = smul.addr %s417, 1024
        %s419 = scalar_lea.vmem [#allocation2], %s418
        // Predicated region
        $region52: #{_lambda_.37} parent=50 // pred_check
          %p420 = pneg %p56
        $region53: #{_lambda_.37} parent=50 // pred_check_branch
          %422 = sbr.rel (%p420) target = $region55
        $region54: #{_lambda_.37} parent=50 // pred_region
          _
        $region55: #{_lambda_.37} parent=50 // pred_fallthru
          _
        %p423 = pneg %p30
        %p424 = pneg %p27
        %s425 = sand.u32 %s43, 1
        %s426 = sand.u32 %s43, 1
        %s427 = smul.addr %s426, 1024
        %s428 = scalar_lea.vmem [#allocation2], %s427
        %p429 = pneg %p56
        %p430 = pneg %p53
        %p431 = pneg %p77
        %p432 = pneg %p74
        %p433 = pneg %p103
        %p434 = pneg %p100
        %s435 = smul.u32 4, %s14
        %p436 = scmp.lt.s32.totalorder %s435, 15
        %s437 = scalar_select %p436, %s435, 15
        %s438 = smul.addr %s437, 4
        %s439 = scalar_lea.vmem %s3, %s438
        %s440 = smul.u32 4, %s14
        %s441 = smul.u32 4, %s14
        %p442 = scmp.lt.s32.totalorder %s441, 15
        %s443 = scalar_select %p442, %s441, 15
        %s444 = smul.addr %s443, 4
        %s445 = scalar_lea.vmem %s3, %s444
        %s446 = smul.u32 4, %s14
        %v447 = vld [vmem:[%s0] sm:$0xff]
        %v448 = vld [vmem:[%s419] sm:$0xff]
        %v449 = vld [vmem:[%s419 + $0x8] sm:$0xff]
        %v450 = vld [vmem:[%s419 + $0x10] sm:$0xff]
        %v451 = vld [vmem:[%s419 + $0x18] sm:$0xff]
        %v452 = vld [vmem:[%s419 + $0x20] sm:$0xff]
        %v453 = vld [vmem:[%s419 + $0x28] sm:$0xff]
        %v454 = vld [vmem:[%s419 + $0x30] sm:$0xff]
        %v455 = vld [vmem:[%s419 + $0x38] sm:$0xff]
        %v456 = vld [vmem:[%s419 + $0x40] sm:$0xff]
        %v457 = vld [vmem:[%s419 + $0x48] sm:$0xff]
        %v458 = vld [vmem:[%s419 + $0x50] sm:$0xff]
        %v459 = vld [vmem:[%s419 + $0x58] sm:$0xff]
        %v460 = vld [vmem:[%s419 + $0x60] sm:$0xff]
        %v461 = vld [vmem:[%s419 + $0x68] sm:$0xff]
        %v462 = vld [vmem:[%s419 + $0x70] sm:$0xff]
        %v463 = vld [vmem:[%s419 + $0x78] sm:$0xff]
        %v464 = vld [vmem:[%s419 + $0x80] sm:$0xff]
        %v465 = vld [vmem:[%s419 + $0x88] sm:$0xff]
        %v466 = vld [vmem:[%s419 + $0x90] sm:$0xff]
        %v467 = vld [vmem:[%s419 + $0x98] sm:$0xff]
        %v468 = vld [vmem:[%s419 + $0xa0] sm:$0xff]
        %v469 = vld [vmem:[%s419 + $0xa8] sm:$0xff]
        %v470 = vld [vmem:[%s419 + $0xb0] sm:$0xff]
        %v471 = vld [vmem:[%s419 + $0xb8] sm:$0xff]
        %v472 = vld [vmem:[%s419 + $0xc0] sm:$0xff]
        %v473 = vld [vmem:[%s419 + $0xc8] sm:$0xff]
        %v474 = vld [vmem:[%s419 + $0xd0] sm:$0xff]
        %v475 = vld [vmem:[%s419 + $0xd8] sm:$0xff]
        %v476 = vld [vmem:[%s419 + $0xe0] sm:$0xff]
        %v477 = vld [vmem:[%s419 + $0xe8] sm:$0xff]
        %v478 = vld [vmem:[%s419 + $0xf0] sm:$0xff]
        %v479 = vld [vmem:[%s419 + $0xf8] sm:$0xff]
        %v480 = vld [vmem:[%s419 + $0x100] sm:$0xff]
        %v481 = vld [vmem:[%s419 + $0x108] sm:$0xff]
        %v482 = vld [vmem:[%s419 + $0x110] sm:$0xff]
        %v483 = vld [vmem:[%s419 + $0x118] sm:$0xff]
        %v484 = vld [vmem:[%s419 + $0x120] sm:$0xff]
        %v485 = vld [vmem:[%s419 + $0x128] sm:$0xff]
        %v486 = vld [vmem:[%s419 + $0x130] sm:$0xff]
        %v487 = vld [vmem:[%s419 + $0x138] sm:$0xff]
        %v488 = vld [vmem:[%s419 + $0x140] sm:$0xff]
        %v489 = vld [vmem:[%s419 + $0x148] sm:$0xff]
        %v490 = vld [vmem:[%s419 + $0x150] sm:$0xff]
        %v491 = vld [vmem:[%s419 + $0x158] sm:$0xff]
        %v492 = vld [vmem:[%s419 + $0x160] sm:$0xff]
        %v493 = vld [vmem:[%s419 + $0x168] sm:$0xff]
        %v494 = vld [vmem:[%s419 + $0x170] sm:$0xff]
        %v495 = vld [vmem:[%s419 + $0x178] sm:$0xff]
        %v496 = vld [vmem:[%s419 + $0x180] sm:$0xff]
        %v497 = vld [vmem:[%s419 + $0x188] sm:$0xff]
        %v498 = vld [vmem:[%s419 + $0x190] sm:$0xff]
        %v499 = vld [vmem:[%s419 + $0x198] sm:$0xff]
        %v500 = vld [vmem:[%s419 + $0x1a0] sm:$0xff]
        %v501 = vld [vmem:[%s419 + $0x1a8] sm:$0xff]
        %v502 = vld [vmem:[%s419 + $0x1b0] sm:$0xff]
        %v503 = vld [vmem:[%s419 + $0x1b8] sm:$0xff]
        %v504 = vld [vmem:[%s419 + $0x1c0] sm:$0xff]
        %v505 = vld [vmem:[%s419 + $0x1c8] sm:$0xff]
        %v506 = vld [vmem:[%s419 + $0x1d0] sm:$0xff]
        %v507 = vld [vmem:[%s419 + $0x1d8] sm:$0xff]
        %v508 = vld [vmem:[%s419 + $0x1e0] sm:$0xff]
        %v509 = vld [vmem:[%s419 + $0x1e8] sm:$0xff]
        %v510 = vld [vmem:[%s419 + $0x1f0] sm:$0xff]
        %v511 = vld [vmem:[%s419 + $0x1f8] sm:$0xff]
        %v512 = vld [vmem:[%s419 + $0x200] sm:$0xff]
        %v513 = vld [vmem:[%s419 + $0x208] sm:$0xff]
        %v514 = vld [vmem:[%s419 + $0x210] sm:$0xff]
        %v515 = vld [vmem:[%s419 + $0x218] sm:$0xff]
        %v516 = vld [vmem:[%s419 + $0x220] sm:$0xff]
        %v517 = vld [vmem:[%s419 + $0x228] sm:$0xff]
        %v518 = vld [vmem:[%s419 + $0x230] sm:$0xff]
        %v519 = vld [vmem:[%s419 + $0x238] sm:$0xff]
        %v520 = vld [vmem:[%s419 + $0x240] sm:$0xff]
        %v521 = vld [vmem:[%s419 + $0x248] sm:$0xff]
        %v522 = vld [vmem:[%s419 + $0x250] sm:$0xff]
        %v523 = vld [vmem:[%s419 + $0x258] sm:$0xff]
        %v524 = vld [vmem:[%s419 + $0x260] sm:$0xff]
        %v525 = vld [vmem:[%s419 + $0x268] sm:$0xff]
        %v526 = vld [vmem:[%s419 + $0x270] sm:$0xff]
        %v527 = vld [vmem:[%s419 + $0x278] sm:$0xff]
        %v528 = vld [vmem:[%s419 + $0x280] sm:$0xff]
        %v529 = vld [vmem:[%s419 + $0x288] sm:$0xff]
        %v530 = vld [vmem:[%s419 + $0x290] sm:$0xff]
        %v531 = vld [vmem:[%s419 + $0x298] sm:$0xff]
        %v532 = vld [vmem:[%s419 + $0x2a0] sm:$0xff]
        %v533 = vld [vmem:[%s419 + $0x2a8] sm:$0xff]
        %v534 = vld [vmem:[%s419 + $0x2b0] sm:$0xff]
        %v535 = vld [vmem:[%s419 + $0x2b8] sm:$0xff]
        %v536 = vld [vmem:[%s419 + $0x2c0] sm:$0xff]
        %v537 = vld [vmem:[%s419 + $0x2c8] sm:$0xff]
        %v538 = vld [vmem:[%s419 + $0x2d0] sm:$0xff]
        %v539 = vld [vmem:[%s419 + $0x2d8] sm:$0xff]
        %v540 = vld [vmem:[%s419 + $0x2e0] sm:$0xff]
        %v541 = vld [vmem:[%s419 + $0x2e8] sm:$0xff]
        %v542 = vld [vmem:[%s419 + $0x2f0] sm:$0xff]
        %v543 = vld [vmem:[%s419 + $0x2f8] sm:$0xff]
        %v544 = vld [vmem:[%s419 + $0x300] sm:$0xff]
        %v545 = vld [vmem:[%s419 + $0x308] sm:$0xff]
        %v546 = vld [vmem:[%s419 + $0x310] sm:$0xff]
        %v547 = vld [vmem:[%s419 + $0x318] sm:$0xff]
        %v548 = vld [vmem:[%s419 + $0x320] sm:$0xff]
        %v549 = vld [vmem:[%s419 + $0x328] sm:$0xff]
        %v550 = vld [vmem:[%s419 + $0x330] sm:$0xff]
        %v551 = vld [vmem:[%s419 + $0x338] sm:$0xff]
        %v552 = vld [vmem:[%s419 + $0x340] sm:$0xff]
        %v553 = vld [vmem:[%s419 + $0x348] sm:$0xff]
        %v554 = vld [vmem:[%s419 + $0x350] sm:$0xff]
        %v555 = vld [vmem:[%s419 + $0x358] sm:$0xff]
        %v556 = vld [vmem:[%s419 + $0x360] sm:$0xff]
        %v557 = vld [vmem:[%s419 + $0x368] sm:$0xff]
        %v558 = vld [vmem:[%s419 + $0x370] sm:$0xff]
        %v559 = vld [vmem:[%s419 + $0x378] sm:$0xff]
        %v560 = vld [vmem:[%s419 + $0x380] sm:$0xff]
        %v561 = vld [vmem:[%s419 + $0x388] sm:$0xff]
        %v562 = vld [vmem:[%s419 + $0x390] sm:$0xff]
        %v563 = vld [vmem:[%s419 + $0x398] sm:$0xff]
        %v564 = vld [vmem:[%s419 + $0x3a0] sm:$0xff]
        %v565 = vld [vmem:[%s419 + $0x3a8] sm:$0xff]
        %v566 = vld [vmem:[%s419 + $0x3b0] sm:$0xff]
        %v567 = vld [vmem:[%s419 + $0x3b8] sm:$0xff]
        %v568 = vld [vmem:[%s419 + $0x3c0] sm:$0xff]
        %v569 = vld [vmem:[%s419 + $0x3c8] sm:$0xff]
        %v570 = vld [vmem:[%s419 + $0x3d0] sm:$0xff]
        %v571 = vld [vmem:[%s419 + $0x3d8] sm:$0xff]
        %v572 = vld [vmem:[%s419 + $0x3e0] sm:$0xff]
        %v573 = vld [vmem:[%s419 + $0x3e8] sm:$0xff]
        %v574 = vld [vmem:[%s419 + $0x3f0] sm:$0xff]
        %v575 = vld [vmem:[%s419 + $0x3f8] sm:$0xff]
        %v576 = vld [vmem:[%s2] sm:$0x7]
        %578 = vset.pattern.permute.xlu0 0
        %579 = vperm.xlu0 %578, %v576
        %v580 = vpop.permute.xlu0 %579
        %v583 = vcombine.high %v447, %v447
        %v585 = vunpack.c.l.s4 1983009808
        %v586 = vunpack.c.0.s8 %v585
        %v587 = vlaneseq
        %v588 = vshrl.u32 %v587, 7
        %v589 = vsub.s32 %v586, %v588
        %v590 = vrot.slane %v447, %v589
        %v592 = vunpack.c.l.s4 1983009808
        %v593 = vunpack.c.0.s8 %v592
        %v594 = vlaneseq
        %v595 = vshrl.u32 %v594, 7
        %v596 = vsub.s32 %v593, %v595
        %v597 = vrot.slane %v583, %v596
        %v598 = vcombine.high %v590, %v590
        %v599 = vcombine.high %v597, %v597
        %v732 = vunpack.c.l.b16 %v448
        %v733 = vunpack.c.h.b16 %v448
        %v734 = vunpack.c.l.b16 %v449
        %v735 = vunpack.c.h.b16 %v449
        %v736 = vunpack.c.l.b16 %v450
        %v737 = vunpack.c.h.b16 %v450
        %v738 = vunpack.c.l.b16 %v451
        %v739 = vunpack.c.h.b16 %v451
        %v740 = vunpack.c.l.b16 %v452
        %v741 = vunpack.c.h.b16 %v452
        %v742 = vunpack.c.l.b16 %v453
        %v743 = vunpack.c.h.b16 %v453
        %v744 = vunpack.c.l.b16 %v454
        %v745 = vunpack.c.h.b16 %v454
        %v746 = vunpack.c.l.b16 %v455
        %v747 = vunpack.c.h.b16 %v455
        %v748 = vunpack.c.l.b16 %v456
        %v749 = vunpack.c.h.b16 %v456
        %v750 = vunpack.c.l.b16 %v457
        %v751 = vunpack.c.h.b16 %v457
        %v752 = vunpack.c.l.b16 %v458
        %v753 = vunpack.c.h.b16 %v458
        %v754 = vunpack.c.l.b16 %v459
        %v755 = vunpack.c.h.b16 %v459
        %v756 = vunpack.c.l.b16 %v460
        %v757 = vunpack.c.h.b16 %v460
        %v758 = vunpack.c.l.b16 %v461
        %v759 = vunpack.c.h.b16 %v461
        %v760 = vunpack.c.l.b16 %v462
        %v761 = vunpack.c.h.b16 %v462
        %v762 = vunpack.c.l.b16 %v463
        %v763 = vunpack.c.h.b16 %v463
        %v764 = vunpack.c.l.b16 %v464
        %v765 = vunpack.c.h.b16 %v464
        %v766 = vunpack.c.l.b16 %v465
        %v767 = vunpack.c.h.b16 %v465
        %v768 = vunpack.c.l.b16 %v466
        %v769 = vunpack.c.h.b16 %v466
        %v770 = vunpack.c.l.b16 %v467
        %v771 = vunpack.c.h.b16 %v467
        %v772 = vunpack.c.l.b16 %v468
        %v773 = vunpack.c.h.b16 %v468
        %v774 = vunpack.c.l.b16 %v469
        %v775 = vunpack.c.h.b16 %v469
        %v776 = vunpack.c.l.b16 %v470
        %v777 = vunpack.c.h.b16 %v470
        %v778 = vunpack.c.l.b16 %v471
        %v779 = vunpack.c.h.b16 %v471
        %v780 = vunpack.c.l.b16 %v472
        %v781 = vunpack.c.h.b16 %v472
        %v782 = vunpack.c.l.b16 %v473
        %v783 = vunpack.c.h.b16 %v473
        %v784 = vunpack.c.l.b16 %v474
        %v785 = vunpack.c.h.b16 %v474
        %v786 = vunpack.c.l.b16 %v475
        %v787 = vunpack.c.h.b16 %v475
        %v788 = vunpack.c.l.b16 %v476
        %v789 = vunpack.c.h.b16 %v476
        %v790 = vunpack.c.l.b16 %v477
        %v791 = vunpack.c.h.b16 %v477
        %v792 = vunpack.c.l.b16 %v478
        %v793 = vunpack.c.h.b16 %v478
        %v794 = vunpack.c.l.b16 %v479
        %v795 = vunpack.c.h.b16 %v479
        %v796 = vunpack.c.l.b16 %v480
        %v797 = vunpack.c.h.b16 %v480
        %v798 = vunpack.c.l.b16 %v481
        %v799 = vunpack.c.h.b16 %v481
        %v800 = vunpack.c.l.b16 %v482
        %v801 = vunpack.c.h.b16 %v482
        %v802 = vunpack.c.l.b16 %v483
        %v803 = vunpack.c.h.b16 %v483
        %v804 = vunpack.c.l.b16 %v484
        %v805 = vunpack.c.h.b16 %v484
        %v806 = vunpack.c.l.b16 %v485
        %v807 = vunpack.c.h.b16 %v485
        %v808 = vunpack.c.l.b16 %v486
        %v809 = vunpack.c.h.b16 %v486
        %v810 = vunpack.c.l.b16 %v487
        %v811 = vunpack.c.h.b16 %v487
        %v812 = vunpack.c.l.b16 %v488
        %v813 = vunpack.c.h.b16 %v488
        %v814 = vunpack.c.l.b16 %v489
        %v815 = vunpack.c.h.b16 %v489
        %v816 = vunpack.c.l.b16 %v490
        %v817 = vunpack.c.h.b16 %v490
        %v818 = vunpack.c.l.b16 %v491
        %v819 = vunpack.c.h.b16 %v491
        %v820 = vunpack.c.l.b16 %v492
        %v821 = vunpack.c.h.b16 %v492
        %v822 = vunpack.c.l.b16 %v493
        %v823 = vunpack.c.h.b16 %v493
        %v824 = vunpack.c.l.b16 %v494
        %v825 = vunpack.c.h.b16 %v494
        %v826 = vunpack.c.l.b16 %v495
        %v827 = vunpack.c.h.b16 %v495
        %v828 = vunpack.c.l.b16 %v496
        %v829 = vunpack.c.h.b16 %v496
        %v830 = vunpack.c.l.b16 %v497
        %v831 = vunpack.c.h.b16 %v497
        %v832 = vunpack.c.l.b16 %v498
        %v833 = vunpack.c.h.b16 %v498
        %v834 = vunpack.c.l.b16 %v499
        %v835 = vunpack.c.h.b16 %v499
        %v836 = vunpack.c.l.b16 %v500
        %v837 = vunpack.c.h.b16 %v500
        %v838 = vunpack.c.l.b16 %v501
        %v839 = vunpack.c.h.b16 %v501
        %v840 = vunpack.c.l.b16 %v502
        %v841 = vunpack.c.h.b16 %v502
        %v842 = vunpack.c.l.b16 %v503
        %v843 = vunpack.c.h.b16 %v503
        %v844 = vunpack.c.l.b16 %v504
        %v845 = vunpack.c.h.b16 %v504
        %v846 = vunpack.c.l.b16 %v505
        %v847 = vunpack.c.h.b16 %v505
        %v848 = vunpack.c.l.b16 %v506
        %v849 = vunpack.c.h.b16 %v506
        %v850 = vunpack.c.l.b16 %v507
        %v851 = vunpack.c.h.b16 %v507
        %v852 = vunpack.c.l.b16 %v508
        %v853 = vunpack.c.h.b16 %v508
        %v854 = vunpack.c.l.b16 %v509
        %v855 = vunpack.c.h.b16 %v509
        %v856 = vunpack.c.l.b16 %v510
        %v857 = vunpack.c.h.b16 %v510
        %v858 = vunpack.c.l.b16 %v511
        %v859 = vunpack.c.h.b16 %v511
        %v860 = vunpack.c.l.b16 %v512
        %v861 = vunpack.c.h.b16 %v512
        %v862 = vunpack.c.l.b16 %v513
        %v863 = vunpack.c.h.b16 %v513
        %v864 = vunpack.c.l.b16 %v514
        %v865 = vunpack.c.h.b16 %v514
        %v866 = vunpack.c.l.b16 %v515
        %v867 = vunpack.c.h.b16 %v515
        %v868 = vunpack.c.l.b16 %v516
        %v869 = vunpack.c.h.b16 %v516
        %v870 = vunpack.c.l.b16 %v517
        %v871 = vunpack.c.h.b16 %v517
        %v872 = vunpack.c.l.b16 %v518
        %v873 = vunpack.c.h.b16 %v518
        %v874 = vunpack.c.l.b16 %v519
        %v875 = vunpack.c.h.b16 %v519
        %v876 = vunpack.c.l.b16 %v520
        %v877 = vunpack.c.h.b16 %v520
        %v878 = vunpack.c.l.b16 %v521
        %v879 = vunpack.c.h.b16 %v521
        %v880 = vunpack.c.l.b16 %v522
        %v881 = vunpack.c.h.b16 %v522
        %v882 = vunpack.c.l.b16 %v523
        %v883 = vunpack.c.h.b16 %v523
        %v884 = vunpack.c.l.b16 %v524
        %v885 = vunpack.c.h.b16 %v524
        %v886 = vunpack.c.l.b16 %v525
        %v887 = vunpack.c.h.b16 %v525
        %v888 = vunpack.c.l.b16 %v526
        %v889 = vunpack.c.h.b16 %v526
        %v890 = vunpack.c.l.b16 %v527
        %v891 = vunpack.c.h.b16 %v527
        %v892 = vunpack.c.l.b16 %v528
        %v893 = vunpack.c.h.b16 %v528
        %v894 = vunpack.c.l.b16 %v529
        %v895 = vunpack.c.h.b16 %v529
        %v896 = vunpack.c.l.b16 %v530
        %v897 = vunpack.c.h.b16 %v530
        %v898 = vunpack.c.l.b16 %v531
        %v899 = vunpack.c.h.b16 %v531
        %v900 = vunpack.c.l.b16 %v532
        %v901 = vunpack.c.h.b16 %v532
        %v902 = vunpack.c.l.b16 %v533
        %v903 = vunpack.c.h.b16 %v533
        %v904 = vunpack.c.l.b16 %v534
        %v905 = vunpack.c.h.b16 %v534
        %v906 = vunpack.c.l.b16 %v535
        %v907 = vunpack.c.h.b16 %v535
        %v908 = vunpack.c.l.b16 %v536
        %v909 = vunpack.c.h.b16 %v536
        %v910 = vunpack.c.l.b16 %v537
        %v911 = vunpack.c.h.b16 %v537
        %v912 = vunpack.c.l.b16 %v538
        %v913 = vunpack.c.h.b16 %v538
        %v914 = vunpack.c.l.b16 %v539
        %v915 = vunpack.c.h.b16 %v539
        %v916 = vunpack.c.l.b16 %v540
        %v917 = vunpack.c.h.b16 %v540
        %v918 = vunpack.c.l.b16 %v541
        %v919 = vunpack.c.h.b16 %v541
        %v920 = vunpack.c.l.b16 %v542
        %v921 = vunpack.c.h.b16 %v542
        %v922 = vunpack.c.l.b16 %v543
        %v923 = vunpack.c.h.b16 %v543
        %v924 = vunpack.c.l.b16 %v544
        %v925 = vunpack.c.h.b16 %v544
        %v926 = vunpack.c.l.b16 %v545
        %v927 = vunpack.c.h.b16 %v545
        %v928 = vunpack.c.l.b16 %v546
        %v929 = vunpack.c.h.b16 %v546
        %v930 = vunpack.c.l.b16 %v547
        %v931 = vunpack.c.h.b16 %v547
        %v932 = vunpack.c.l.b16 %v548
        %v933 = vunpack.c.h.b16 %v548
        %v934 = vunpack.c.l.b16 %v549
        %v935 = vunpack.c.h.b16 %v549
        %v936 = vunpack.c.l.b16 %v550
        %v937 = vunpack.c.h.b16 %v550
        %v938 = vunpack.c.l.b16 %v551
        %v939 = vunpack.c.h.b16 %v551
        %v940 = vunpack.c.l.b16 %v552
        %v941 = vunpack.c.h.b16 %v552
        %v942 = vunpack.c.l.b16 %v553
        %v943 = vunpack.c.h.b16 %v553
        %v944 = vunpack.c.l.b16 %v554
        %v945 = vunpack.c.h.b16 %v554
        %v946 = vunpack.c.l.b16 %v555
        %v947 = vunpack.c.h.b16 %v555
        %v948 = vunpack.c.l.b16 %v556
        %v949 = vunpack.c.h.b16 %v556
        %v950 = vunpack.c.l.b16 %v557
        %v951 = vunpack.c.h.b16 %v557
        %v952 = vunpack.c.l.b16 %v558
        %v953 = vunpack.c.h.b16 %v558
        %v954 = vunpack.c.l.b16 %v559
        %v955 = vunpack.c.h.b16 %v559
        %v956 = vunpack.c.l.b16 %v560
        %v957 = vunpack.c.h.b16 %v560
        %v958 = vunpack.c.l.b16 %v561
        %v959 = vunpack.c.h.b16 %v561
        %v960 = vunpack.c.l.b16 %v562
        %v961 = vunpack.c.h.b16 %v562
        %v962 = vunpack.c.l.b16 %v563
        %v963 = vunpack.c.h.b16 %v563
        %v964 = vunpack.c.l.b16 %v564
        %v965 = vunpack.c.h.b16 %v564
        %v966 = vunpack.c.l.b16 %v565
        %v967 = vunpack.c.h.b16 %v565
        %v968 = vunpack.c.l.b16 %v566
        %v969 = vunpack.c.h.b16 %v566
        %v970 = vunpack.c.l.b16 %v567
        %v971 = vunpack.c.h.b16 %v567
        %v972 = vunpack.c.l.b16 %v568
        %v973 = vunpack.c.h.b16 %v568
        %v974 = vunpack.c.l.b16 %v569
        %v975 = vunpack.c.h.b16 %v569
        %v976 = vunpack.c.l.b16 %v570
        %v977 = vunpack.c.h.b16 %v570
        %v978 = vunpack.c.l.b16 %v571
        %v979 = vunpack.c.h.b16 %v571
        %v980 = vunpack.c.l.b16 %v572
        %v981 = vunpack.c.h.b16 %v572
        %v982 = vunpack.c.l.b16 %v573
        %v983 = vunpack.c.h.b16 %v573
        %v984 = vunpack.c.l.b16 %v574
        %v985 = vunpack.c.h.b16 %v574
        %v986 = vunpack.c.l.b16 %v575
        %v987 = vunpack.c.h.b16 %v575
        %v988 = vpack.c.b16 %v736, %v732
        %v989 = vpack.c.b16 %v737, %v733
        %v990 = vpack.c.b16 %v738, %v734
        %v991 = vpack.c.b16 %v739, %v735
        %v992 = vpack.c.b16 %v744, %v740
        %v993 = vpack.c.b16 %v745, %v741
        %v994 = vpack.c.b16 %v746, %v742
        %v995 = vpack.c.b16 %v747, %v743
        %v996 = vpack.c.b16 %v752, %v748
        %v997 = vpack.c.b16 %v753, %v749
        %v998 = vpack.c.b16 %v754, %v750
        %v999 = vpack.c.b16 %v755, %v751
        %v1000 = vpack.c.b16 %v760, %v756
        %v1001 = vpack.c.b16 %v761, %v757
        %v1002 = vpack.c.b16 %v762, %v758
        %v1003 = vpack.c.b16 %v763, %v759
        %v1004 = vpack.c.b16 %v768, %v764
        %v1005 = vpack.c.b16 %v769, %v765
        %v1006 = vpack.c.b16 %v770, %v766
        %v1007 = vpack.c.b16 %v771, %v767
        %v1008 = vpack.c.b16 %v776, %v772
        %v1009 = vpack.c.b16 %v777, %v773
        %v1010 = vpack.c.b16 %v778, %v774
        %v1011 = vpack.c.b16 %v779, %v775
        %v1012 = vpack.c.b16 %v784, %v780
        %v1013 = vpack.c.b16 %v785, %v781
        %v1014 = vpack.c.b16 %v786, %v782
        %v1015 = vpack.c.b16 %v787, %v783
        %v1016 = vpack.c.b16 %v792, %v788
        %v1017 = vpack.c.b16 %v793, %v789
        %v1018 = vpack.c.b16 %v794, %v790
        %v1019 = vpack.c.b16 %v795, %v791
        %v1020 = vpack.c.b16 %v800, %v796
        %v1021 = vpack.c.b16 %v801, %v797
        %v1022 = vpack.c.b16 %v802, %v798
        %v1023 = vpack.c.b16 %v803, %v799
        %v1024 = vpack.c.b16 %v808, %v804
        %v1025 = vpack.c.b16 %v809, %v805
        %v1026 = vpack.c.b16 %v810, %v806
        %v1027 = vpack.c.b16 %v811, %v807
        %v1028 = vpack.c.b16 %v816, %v812
        %v1029 = vpack.c.b16 %v817, %v813
        %v1030 = vpack.c.b16 %v818, %v814
        %v1031 = vpack.c.b16 %v819, %v815
        %v1032 = vpack.c.b16 %v824, %v820
        %v1033 = vpack.c.b16 %v825, %v821
        %v1034 = vpack.c.b16 %v826, %v822
        %v1035 = vpack.c.b16 %v827, %v823
        %v1036 = vpack.c.b16 %v832, %v828
        %v1037 = vpack.c.b16 %v833, %v829
        %v1038 = vpack.c.b16 %v834, %v830
        %v1039 = vpack.c.b16 %v835, %v831
        %v1040 = vpack.c.b16 %v840, %v836
        %v1041 = vpack.c.b16 %v841, %v837
        %v1042 = vpack.c.b16 %v842, %v838
        %v1043 = vpack.c.b16 %v843, %v839
        %v1044 = vpack.c.b16 %v848, %v844
        %v1045 = vpack.c.b16 %v849, %v845
        %v1046 = vpack.c.b16 %v850, %v846
        %v1047 = vpack.c.b16 %v851, %v847
        %v1048 = vpack.c.b16 %v856, %v852
        %v1049 = vpack.c.b16 %v857, %v853
        %v1050 = vpack.c.b16 %v858, %v854
        %v1051 = vpack.c.b16 %v859, %v855
        %v1052 = vpack.c.b16 %v864, %v860
        %v1053 = vpack.c.b16 %v865, %v861
        %v1054 = vpack.c.b16 %v866, %v862
        %v1055 = vpack.c.b16 %v867, %v863
        %v1056 = vpack.c.b16 %v872, %v868
        %v1057 = vpack.c.b16 %v873, %v869
        %v1058 = vpack.c.b16 %v874, %v870
        %v1059 = vpack.c.b16 %v875, %v871
        %v1060 = vpack.c.b16 %v880, %v876
        %v1061 = vpack.c.b16 %v881, %v877
        %v1062 = vpack.c.b16 %v882, %v878
        %v1063 = vpack.c.b16 %v883, %v879
        %v1064 = vpack.c.b16 %v888, %v884
        %v1065 = vpack.c.b16 %v889, %v885
        %v1066 = vpack.c.b16 %v890, %v886
        %v1067 = vpack.c.b16 %v891, %v887
        %v1068 = vpack.c.b16 %v896, %v892
        %v1069 = vpack.c.b16 %v897, %v893
        %v1070 = vpack.c.b16 %v898, %v894
        %v1071 = vpack.c.b16 %v899, %v895
        %v1072 = vpack.c.b16 %v904, %v900
        %v1073 = vpack.c.b16 %v905, %v901
        %v1074 = vpack.c.b16 %v906, %v902
        %v1075 = vpack.c.b16 %v907, %v903
        %v1076 = vpack.c.b16 %v912, %v908
        %v1077 = vpack.c.b16 %v913, %v909
        %v1078 = vpack.c.b16 %v914, %v910
        %v1079 = vpack.c.b16 %v915, %v911
        %v1080 = vpack.c.b16 %v920, %v916
        %v1081 = vpack.c.b16 %v921, %v917
        %v1082 = vpack.c.b16 %v922, %v918
        %v1083 = vpack.c.b16 %v923, %v919
        %v1084 = vpack.c.b16 %v928, %v924
        %v1085 = vpack.c.b16 %v929, %v925
        %v1086 = vpack.c.b16 %v930, %v926
        %v1087 = vpack.c.b16 %v931, %v927
        %v1088 = vpack.c.b16 %v936, %v932
        %v1089 = vpack.c.b16 %v937, %v933
        %v1090 = vpack.c.b16 %v938, %v934
        %v1091 = vpack.c.b16 %v939, %v935
        %v1092 = vpack.c.b16 %v944, %v940
        %v1093 = vpack.c.b16 %v945, %v941
        %v1094 = vpack.c.b16 %v946, %v942
        %v1095 = vpack.c.b16 %v947, %v943
        %v1096 = vpack.c.b16 %v952, %v948
        %v1097 = vpack.c.b16 %v953, %v949
        %v1098 = vpack.c.b16 %v954, %v950
        %v1099 = vpack.c.b16 %v955, %v951
        %v1100 = vpack.c.b16 %v960, %v956
        %v1101 = vpack.c.b16 %v961, %v957
        %v1102 = vpack.c.b16 %v962, %v958
        %v1103 = vpack.c.b16 %v963, %v959
        %v1104 = vpack.c.b16 %v968, %v964
        %v1105 = vpack.c.b16 %v969, %v965
        %v1106 = vpack.c.b16 %v970, %v966
        %v1107 = vpack.c.b16 %v971, %v967
        %v1108 = vpack.c.b16 %v976, %v972
        %v1109 = vpack.c.b16 %v977, %v973
        %v1110 = vpack.c.b16 %v978, %v974
        %v1111 = vpack.c.b16 %v979, %v975
        %v1112 = vpack.c.b16 %v984, %v980
        %v1113 = vpack.c.b16 %v985, %v981
        %v1114 = vpack.c.b16 %v986, %v982
        %v1115 = vpack.c.b16 %v987, %v983
        %1244 = vmatprep.subr.bf16.mxu0 %v989
        %1245 = vmatpush1.bf16.msra.mxu0 %v988
        %1246 = vmatprep.subr.bf16.mxu0 %v993
        %1247 = vmatpush1.bf16.msra.mxu0 %v992
        %1248 = vmatprep.subr.bf16.mxu0 %v997
        %1249 = vmatpush1.bf16.msra.mxu0 %v996
        %1250 = vmatprep.subr.bf16.mxu0 %v1001
        %1251 = vmatpush1.bf16.msra.mxu0 %v1000
        %1252 = vmatprep.subr.bf16.mxu0 %v1005
        %1253 = vmatpush1.bf16.msra.mxu0 %v1004
        %1254 = vmatprep.subr.bf16.mxu0 %v1009
        %1255 = vmatpush1.bf16.msra.mxu0 %v1008
        %1256 = vmatprep.subr.bf16.mxu0 %v1013
        %1257 = vmatpush1.bf16.msra.mxu0 %v1012
        %1258 = vmatprep.subr.bf16.mxu0 %v1017
        %1259 = vmatpush1.bf16.msra.mxu0 %v1016
        %1260 = vmatprep.subr.bf16.mxu0 %v1021
        %1261 = vmatpush1.bf16.msra.mxu0 %v1020
        %1262 = vmatprep.subr.bf16.mxu0 %v1025
        %1263 = vmatpush1.bf16.msra.mxu0 %v1024
        %1264 = vmatprep.subr.bf16.mxu0 %v1029
        %1265 = vmatpush1.bf16.msra.mxu0 %v1028
        %1266 = vmatprep.subr.bf16.mxu0 %v1033
        %1267 = vmatpush1.bf16.msra.mxu0 %v1032
        %1268 = vmatprep.subr.bf16.mxu0 %v1037
        %1269 = vmatpush1.bf16.msra.mxu0 %v1036
        %1270 = vmatprep.subr.bf16.mxu0 %v1041
        %1271 = vmatpush1.bf16.msra.mxu0 %v1040
        %1272 = vmatprep.subr.bf16.mxu0 %v1045
        %1273 = vmatpush1.bf16.msra.mxu0 %v1044
        %1274 = vmatprep.subr.bf16.mxu0 %v1049
        %1275 = vmatpush1.bf16.msra.mxu0 %v1048
        %1276 = vmatprep.mubr.bf16.mxu0 %v598
        %1277 = vmatmul.mubr.bf16.gmra.mrb[0].mxu0 %v590
        %v1278 = vpop.f32.mrb[0].mxu0
        %v1279 = vadd.f32 %v580, %v1278
        %v1280 = vpop.f32.mrb[0].mxu0
        %v1281 = vadd.f32 %v580, %v1280
        %v1282 = vpop.f32.mrb[0].mxu0
        %v1283 = vpop.f32.mrb[0].mxu0
        %1284 = vdwg.mxu0
        %1285 = vmatprep.subr.bf16.mxu0 %v1053
        %1286 = vmatpush1.bf16.msra.mxu0 %v1052
        %1287 = vmatprep.subr.bf16.mxu0 %v1057
        %1288 = vmatpush1.bf16.msra.mxu0 %v1056
        %1289 = vmatprep.subr.bf16.mxu0 %v1061
        %1290 = vmatpush1.bf16.msra.mxu0 %v1060
        %1291 = vmatprep.subr.bf16.mxu0 %v1065
        %1292 = vmatpush1.bf16.msra.mxu0 %v1064
        %1293 = vmatprep.subr.bf16.mxu0 %v1069
        %1294 = vmatpush1.bf16.msra.mxu0 %v1068
        %1295 = vmatprep.subr.bf16.mxu0 %v1073
        %1296 = vmatpush1.bf16.msra.mxu0 %v1072
        %1297 = vmatprep.subr.bf16.mxu0 %v1077
        %1298 = vmatpush1.bf16.msra.mxu0 %v1076
        %1299 = vmatprep.subr.bf16.mxu0 %v1081
        %1300 = vmatpush1.bf16.msra.mxu0 %v1080
        %1301 = vmatprep.subr.bf16.mxu0 %v1085
        %1302 = vmatpush1.bf16.msra.mxu0 %v1084
        %1303 = vmatprep.subr.bf16.mxu0 %v1089
        %1304 = vmatpush1.bf16.msra.mxu0 %v1088
        %1305 = vmatprep.subr.bf16.mxu0 %v1093
        %1306 = vmatpush1.bf16.msra.mxu0 %v1092
        %1307 = vmatprep.subr.bf16.mxu0 %v1097
        %1308 = vmatpush1.bf16.msra.mxu0 %v1096
        %1309 = vmatprep.subr.bf16.mxu0 %v1101
        %1310 = vmatpush1.bf16.msra.mxu0 %v1100
        %1311 = vmatprep.subr.bf16.mxu0 %v1105
        %1312 = vmatpush1.bf16.msra.mxu0 %v1104
        %1313 = vmatprep.subr.bf16.mxu0 %v1109
        %1314 = vmatpush1.bf16.msra.mxu0 %v1108
        %1315 = vmatprep.subr.bf16.mxu0 %v1113
        %1316 = vmatpush1.bf16.msra.mxu0 %v1112
        %1317 = vmatprep.mubr.bf16.mxu0 %v599
        %1318 = vmatmul.mubr.bf16.gmra.mrb[0].mxu0 %v597
        %v1319 = vpop.f32.mrb[0].mxu0
        %v1320 = vadd.f32 %v1279, %v1319
        %v1321 = vpop.f32.mrb[0].mxu0
        %v1322 = vadd.f32 %v1281, %v1321
        %v1323 = vpop.f32.mrb[0].mxu0
        %v1324 = vpop.f32.mrb[0].mxu0
        %1325 = vdwg.mxu0
        %1326 = vmatprep.subr.bf16.mxu0 %v991
        %1327 = vmatpush1.bf16.msra.mxu0 %v990
        %1328 = vmatprep.subr.bf16.mxu0 %v995
        %1329 = vmatpush1.bf16.msra.mxu0 %v994
        %1330 = vmatprep.subr.bf16.mxu0 %v999
        %1331 = vmatpush1.bf16.msra.mxu0 %v998
        %1332 = vmatprep.subr.bf16.mxu0 %v1003
        %1333 = vmatpush1.bf16.msra.mxu0 %v1002
        %1334 = vmatprep.subr.bf16.mxu0 %v1007
        %1335 = vmatpush1.bf16.msra.mxu0 %v1006
        %1336 = vmatprep.subr.bf16.mxu0 %v1011
        %1337 = vmatpush1.bf16.msra.mxu0 %v1010
        %1338 = vmatprep.subr.bf16.mxu0 %v1015
        %1339 = vmatpush1.bf16.msra.mxu0 %v1014
        %1340 = vmatprep.subr.bf16.mxu0 %v1019
        %1341 = vmatpush1.bf16.msra.mxu0 %v1018
        %1342 = vmatprep.subr.bf16.mxu0 %v1023
        %1343 = vmatpush1.bf16.msra.mxu0 %v1022
        %1344 = vmatprep.subr.bf16.mxu0 %v1027
        %1345 = vmatpush1.bf16.msra.mxu0 %v1026
        %1346 = vmatprep.subr.bf16.mxu0 %v1031
        %1347 = vmatpush1.bf16.msra.mxu0 %v1030
        %1348 = vmatprep.subr.bf16.mxu0 %v1035
        %1349 = vmatpush1.bf16.msra.mxu0 %v1034
        %1350 = vmatprep.subr.bf16.mxu0 %v1039
        %1351 = vmatpush1.bf16.msra.mxu0 %v1038
        %1352 = vmatprep.subr.bf16.mxu0 %v1043
        %1353 = vmatpush1.bf16.msra.mxu0 %v1042
        %1354 = vmatprep.subr.bf16.mxu0 %v1047
        %1355 = vmatpush1.bf16.msra.mxu0 %v1046
        %1356 = vmatprep.subr.bf16.mxu0 %v1051
        %1357 = vmatpush1.bf16.msra.mxu0 %v1050
        %1358 = vmatprep.mubr.bf16.mxu0 %v598
        %1359 = vmatmul.mubr.bf16.gmra.mrb[0].mxu0 %v590
        %v1360 = vpop.f32.mrb[0].mxu0
        %v1361 = vadd.f32 %v580, %v1360
        %v1362 = vpop.f32.mrb[0].mxu0
        %v1363 = vadd.f32 %v580, %v1362
        %v1364 = vpop.f32.mrb[0].mxu0
        %v1365 = vpop.f32.mrb[0].mxu0
        %1366 = vdwg.mxu0
        %1367 = vmatprep.subr.bf16.mxu0 %v1055
        %1368 = vmatpush1.bf16.msra.mxu0 %v1054
        %1369 = vmatprep.subr.bf16.mxu0 %v1059
        %1370 = vmatpush1.bf16.msra.mxu0 %v1058
        %1371 = vmatprep.subr.bf16.mxu0 %v1063
        %1372 = vmatpush1.bf16.msra.mxu0 %v1062
        %1373 = vmatprep.subr.bf16.mxu0 %v1067
        %1374 = vmatpush1.bf16.msra.mxu0 %v1066
        %1375 = vmatprep.subr.bf16.mxu0 %v1071
        %1376 = vmatpush1.bf16.msra.mxu0 %v1070
        %1377 = vmatprep.subr.bf16.mxu0 %v1075
        %1378 = vmatpush1.bf16.msra.mxu0 %v1074
        %1379 = vmatprep.subr.bf16.mxu0 %v1079
        %1380 = vmatpush1.bf16.msra.mxu0 %v1078
        %1381 = vmatprep.subr.bf16.mxu0 %v1083
        %1382 = vmatpush1.bf16.msra.mxu0 %v1082
        %1383 = vmatprep.subr.bf16.mxu0 %v1087
        %1384 = vmatpush1.bf16.msra.mxu0 %v1086
        %1385 = vmatprep.subr.bf16.mxu0 %v1091
        %1386 = vmatpush1.bf16.msra.mxu0 %v1090
        %1387 = vmatprep.subr.bf16.mxu0 %v1095
        %1388 = vmatpush1.bf16.msra.mxu0 %v1094
        %1389 = vmatprep.subr.bf16.mxu0 %v1099
        %1390 = vmatpush1.bf16.msra.mxu0 %v1098
        %1391 = vmatprep.subr.bf16.mxu0 %v1103
        %1392 = vmatpush1.bf16.msra.mxu0 %v1102
        %1393 = vmatprep.subr.bf16.mxu0 %v1107
        %1394 = vmatpush1.bf16.msra.mxu0 %v1106
        %1395 = vmatprep.subr.bf16.mxu0 %v1111
        %1396 = vmatpush1.bf16.msra.mxu0 %v1110
        %1397 = vmatprep.subr.bf16.mxu0 %v1115
        %1398 = vmatpush1.bf16.msra.mxu0 %v1114
        %1399 = vmatprep.mubr.bf16.mxu0 %v599
        %1400 = vmatmul.mubr.bf16.gmra.mrb[0].mxu0 %v597
        %v1401 = vpop.f32.mrb[0].mxu0
        %v1402 = vadd.f32 %v1361, %v1401
        %v1403 = vpop.f32.mrb[0].mxu0
        %v1404 = vadd.f32 %v1363, %v1403
        %v1405 = vpop.f32.mrb[0].mxu0
        %v1406 = vpop.f32.mrb[0].mxu0
        %1407 = vdwg.mxu0
        %v1408 = vtanh.pop %v1320
        %v1409 = vtanh.pop %v1322
        %v1410 = vtanh.pop %v1402
        %v1411 = vtanh.pop %v1404
        %v1416 = vcombine.low %v1408, %v1409
        %v1417 = vcombine.low %v1410, %v1411
        %1420 = vst [vmem:[%s445] sm:$0x77] %v1416
        %1421 = vst [vmem:[%s445 + $0x8] sm:$0x77] %v1417
        %s1422 = smul.u32 4, %s14
        %p1423 = scmp.lt.s32.totalorder %s1422, 15
        %s1424 = scalar_select %p1423, %s1422, 15
        %s1425 = smul.addr %s1424, 4
        %s1426 = scalar_lea.vmem %s3, %s1425
        // Predicated region
        $region56: #{_lambda_.37} parent=50 // pred_check
          %p1427 = pneg %p100
        $region57: #{_lambda_.37} parent=50 // pred_check_branch
          %1429 = sbr.rel (%p1427) target = $region59
        $region58: #{_lambda_.37} parent=50 // pred_region
          %s1430 = smul.u32 4, %s14
        $region59: #{_lambda_.37} parent=50 // pred_fallthru
          _
      $region51: #{_lambda_.37} parent=5 // pred_fallthru
        _
      %p1431 = scmp.le.s32.totalorder 2, %s9
      // Predicated region
      $region60: #{_lambda_.37} parent=5 // pred_check
        %p1432 = pneg %p1431
      $region61: #{_lambda_.37} parent=5 // pred_check_branch
        %1434 = sbr.rel (%p1432) target = $region63
      $region62: #{_lambda_.37} parent=5 // pred_region
        %s1435 = ssub.s32 %s9, 2
        // Predicated region
        $region64: #{_lambda_.37} parent=62 // pred_check
          %p1436 = pneg %p106
        $region65: #{_lambda_.37} parent=62 // pred_check_branch
          %1438 = sbr.rel (%p1436) target = $region67
        $region66: #{_lambda_.37} parent=62 // pred_region
          %s1439 = smul.u32 4, %s15
          %p1440 = scmp.lt.s32.totalorder %s1439, 15
          %s1441 = scalar_select %p1440, %s1439, 15
          %s1442 = smul.addr %s1441, 4
          %s1443 = scalar_lea.vmem %s3, %s1442
        $region67: #{_lambda_.37} parent=62 // pred_fallthru
          _
      $region63: #{_lambda_.37} parent=5 // pred_fallthru
        _
    $region6: #{_lambda_.37} parent=1 // loop_footer
      %s13 = sadd.s32 1, %s9
    $region7: #{_lambda_.37} parent=1 // loop_footer_branch
      %8 = sbr.rel target = $region3
    $region8: #{_lambda_.37} parent=1 // loop_exit
      _

</llo_original>
